<compile_context>
chip_gen: v5e
topology: v5e:2x2
jax: 0.10.0
libtpu: 0.0.40
codegen_flags: <defaults>
</compile_context>

<pallas_src>
import functools

import jax
import jax.numpy as jnp
from jax.experimental import pallas as pl
from jax.experimental.pallas import tpu as pltpu

CP1 = 32      # conv1 out channels 20 -> padded (12*32 = 384 lanes, 3 vregs)
CP2 = 64      # conv2 out channels 50 -> padded ( 4*64 = 256 lanes, 2 vregs)
FC1P = 512    # fc1 out 500 -> padded
FC2P = 128    # fc2 out 10  -> padded
VMEM_LIMIT = 32 * 1024 * 1024  # explicit scoped-VMEM limit, safe on v5e/v6e/v7x


# ---------------------------------------------------------------------------
# Kernel 1/2: fused conv(5x5, stride 1) + bias + ReLU + 2x2/stride-2 max-pool
# ---------------------------------------------------------------------------
def _conv_pool_kernel(x_ref, m_ref, b_ref, o_ref, *, kh, oh, ph):
    # x_ref: (1, H, W*Cin)      per-image input, f32
    # m_ref: (2*kh, W*Cin, L)   bf16 Toeplitz weights, [2*i + width_parity]
    # b_ref: (1, L)             f32 bias tiled over pooled-width positions
    # o_ref: (1, ph, L)         f32 pooled output, L = PW*Cout_pad (lane-dense)
    x = x_ref[0]
    lanes = o_ref.shape[2]
    z_even = jnp.zeros((oh, lanes), jnp.float32)
    z_odd = jnp.zeros((oh, lanes), jnp.float32)
    for i in range(kh):  # 5 shifted slices of the resident input tile
        xi = x[i:i + oh, :].astype(jnp.bfloat16)
        z_even += jnp.dot(xi, m_ref[2 * i], preferred_element_type=jnp.float32)
        z_odd += jnp.dot(xi, m_ref[2 * i + 1], preferred_element_type=jnp.float32)
    zw = jnp.maximum(z_even, z_odd)  # max over width-direction pool pairs
    # height-direction pool: select rows 2p / 2p+1 via tiny matmuls, then max
    prow = jax.lax.broadcasted_iota(jnp.int32, (ph, oh), 0)
    crow = jax.lax.broadcasted_iota(jnp.int32, (ph, oh), 1)
    s_even = (crow == 2 * prow).astype(jnp.float32)
    s_odd = (crow == 2 * prow + 1).astype(jnp.float32)
    pooled = jnp.maximum(
        jnp.dot(s_even, zw, preferred_element_type=jnp.float32),
        jnp.dot(s_odd, zw, preferred_element_type=jnp.float32))
    # relu(x + b) is monotone, so pool-then-bias-relu == PyTorch relu-then-pool
    o_ref[0] = jnp.maximum(pooled + b_ref[...], 0.0)


def conv_pool_layer(x, m, bias_t, *, kh, oh, ph):
    """x: (N, H, W*Cin) f32;  m: (2*kh, W*Cin, L) bf16;  bias_t: (1, L) f32."""
    n, h, win = x.shape
    lanes = m.shape[2]
    kern = functools.partial(_conv_pool_kernel, kh=kh, oh=oh, ph=ph)
    return pl.pallas_call(
        kern,
        out_shape=jax.ShapeDtypeStruct((n, ph, lanes), jnp.float32),
        grid=(n,),  # batch-parallel -> megacore split on v7x
        in_specs=[
            pl.BlockSpec((1, h, win), lambda i: (i, 0, 0)),
            pl.BlockSpec((2 * kh, win, lanes), lambda i: (0, 0, 0)),  # resident
            pl.BlockSpec((1, lanes), lambda i: (0, 0)),
        ],
        out_specs=pl.BlockSpec((1, ph, lanes), lambda i: (i, 0, 0)),
        compiler_params=pltpu.CompilerParams(
            dimension_semantics=("parallel",),
            vmem_limit_bytes=VMEM_LIMIT,
        ),
    )(x, m, bias_t)


# ---------------------------------------------------------------------------
# Kernel 3: fused fc1 + ReLU + fc2 (intermediate kept in VMEM), tiled over M
# ---------------------------------------------------------------------------
def _fc_fused_kernel(x_ref, w1_ref, b1_ref, w2_ref, b2_ref, o_ref):
    x = x_ref[...].astype(jnp.bfloat16)
    h = jnp.dot(x, w1_ref[...], preferred_element_type=jnp.float32) + b1_ref[...]
    h = jnp.maximum(h, 0.0).astype(jnp.bfloat16)
    o_ref[...] = (jnp.dot(h, w2_ref[...], preferred_element_type=jnp.float32)
                  + b2_ref[...])


def fc_fused(x, w1, b1, w2, b2):
    n, k1 = x.shape
    _, n1 = w1.shape
    _, n2 = w2.shape
    tm = n if n <= 512 else 512           # M tile; batch-scalable VMEM use
    n_pad = ((n + tm - 1) // tm) * tm
    if n_pad != n:
        x = jnp.pad(x, ((0, n_pad - n), (0, 0)))
    out = pl.pallas_call(
        _fc_fused_kernel,
        out_shape=jax.ShapeDtypeStruct((n_pad, n2), jnp.float32),
        grid=(n_pad // tm,),
        in_specs=[
            pl.BlockSpec((tm, k1), lambda i: (i, 0)),
            pl.BlockSpec((k1, n1), lambda i: (0, 0)),
            pl.BlockSpec((1, n1), lambda i: (0, 0)),
            pl.BlockSpec((n1, n2), lambda i: (0, 0)),
            pl.BlockSpec((1, n2), lambda i: (0, 0)),
        ],
        out_specs=pl.BlockSpec((tm, n2), lambda i: (i, 0)),
        compiler_params=pltpu.CompilerParams(
            dimension_semantics=("parallel",),
            vmem_limit_bytes=VMEM_LIMIT,
        ),
    )(x, w1, b1, w2, b2)
    return out[:n]


# ---------------------------------------------------------------------------
# One-time parameter preparation (outside the forward): Toeplitz conv weights,
# transposed/permuted/zero-padded FC weights, bf16 pre-cast.
# ---------------------------------------------------------------------------
def _toeplitz_conv_weights(w_oihw, bias, *, cin_pad, cout_pad, w_in, pw_out):
    cout, cin, kh, kw = w_oihw.shape
    w_idx = jnp.arange(w_in)
    pw_idx = jnp.arange(pw_out)
    blocks = []
    for i in range(kh):
        for parity in (0, 1):
            j = w_idx[:, None] - 2 * pw_idx[None, :] - parity      # (w_in, pw_out)
            valid = (j >= 0) & (j < kw)
            jc = jnp.clip(j, 0, kw - 1)
            vals = w_oihw[:, :, i, :][:, :, jc]                     # (co, ci, w_in, pw)
            vals = jnp.where(valid[None, None, :, :], vals, 0.0)
            vals = jnp.transpose(vals, (2, 1, 3, 0))                # (w_in, ci, pw, co)
            vals = jnp.pad(vals, ((0, 0), (0, cin_pad - cin),
                                  (0, 0), (0, cout_pad - cout)))
            blocks.append(vals.reshape(w_in * cin_pad, pw_out * cout_pad))
    m = jnp.stack(blocks, axis=0).astype(jnp.bfloat16)              # (2*kh, K, L)
    b_t = jnp.tile(jnp.pad(bias, (0, cout_pad - cout)), pw_out).reshape(1, -1)
    return m, b_t.astype(jnp.float32)


def prepare_params(params):
    m1, b1t = _toeplitz_conv_weights(params["conv1_w"], params["conv1_b"],
                                     cin_pad=1, cout_pad=CP1, w_in=28, pw_out=12)
    m2, b2t = _toeplitz_conv_weights(params["conv2_w"], params["conv2_b"],
                                     cin_pad=CP1, cout_pad=CP2, w_in=12, pw_out=4)
    # PyTorch flattens NCHW -> (c, h, w); our features are (h, w, c_pad).
    wf1 = params["fc1_w"].reshape(500, 50, 4, 4)         # (o, c, h, w)
    wf1 = jnp.transpose(wf1, (2, 3, 1, 0))               # (h, w, c, o)
    wf1 = jnp.pad(wf1, ((0, 0), (0, 0), (0, CP2 - 50), (0, FC1P - 500)))
    wf1 = wf1.reshape(4 * 4 * CP2, FC1P).astype(jnp.bfloat16)
    bf1 = jnp.pad(params["fc1_b"], (0, FC1P - 500)).reshape(1, FC1P)
    wf2 = jnp.pad(params["fc2_w"].T,
                  ((0, FC1P - 500), (0, FC2P - 10))).astype(jnp.bfloat16)
    bf2 = jnp.pad(params["fc2_b"], (0, FC2P - 10)).reshape(1, FC2P)
    return {"m1": m1, "b1t": b1t, "m2": m2, "b2t": b2t,
            "wf1": wf1, "bf1": bf1, "wf2": wf2, "bf2": bf2}


# ---------------------------------------------------------------------------
# Full forward pass (matches Net_mnist.forward)
# ---------------------------------------------------------------------------
def net_mnist_forward(prep, x_nchw):
    n = x_nchw.shape[0]
    img = x_nchw[:, 0, :, :]                                       # (N, 28, 28)
    a1 = conv_pool_layer(img, prep["m1"], prep["b1t"], kh=5, oh=24, ph=12)  # (N,12,384)
    a2 = conv_pool_layer(a1, prep["m2"], prep["b2t"], kh=5, oh=8, ph=4)     # (N,4,256)
    feat = a2.reshape(n, 4 * 4 * CP2)                              # (h, w, c_pad) flatten
    logits = fc_fused(feat, prep["wf1"], prep["bf1"], prep["wf2"], prep["bf2"])
    return logits[:, :10]


# ---------------------------------------------------------------------------
# Reference (pure JAX) and synthetic parameters
# ---------------------------------------------------------------------------
def net_mnist_reference(params, x_nchw):
    def pool2x2(y):
        n, c, h, w = y.shape
        return y.reshape(n, c, h // 2, 2, w // 2, 2).max(axis=(3, 5))
    dn = ("NCHW", "OIHW", "NCHW")
    y = jax.lax.conv_general_dilated(x_nchw, params["conv1_w"], (1, 1), "VALID",
                                     dimension_numbers=dn)
    y = pool2x2(jax.nn.relu(y + params["conv1_b"][None, :, None, None]))
    y = jax.lax.conv_general_dilated(y, params["conv2_w"], (1, 1), "VALID",
                                     dimension_numbers=dn)
    y = pool2x2(jax.nn.relu(y + params["conv2_b"][None, :, None, None]))
    y = y.reshape(y.shape[0], 4 * 4 * 50)
    y = jax.nn.relu(jnp.dot(y, params["fc1_w"].T,
                            precision=jax.lax.Precision.HIGHEST) + params["fc1_b"])
    return jnp.dot(y, params["fc2_w"].T,
                   precision=jax.lax.Precision.HIGHEST) + params["fc2_b"]


def init_params(key):
    ks = jax.random.split(key, 8)

    def u(k, shape, fan_in):
        bound = 1.0 / (fan_in ** 0.5)
        return jax.random.uniform(k, shape, jnp.float32, -bound, bound)

    return {
        "conv1_w": u(ks[0], (20, 1, 5, 5), 1 * 5 * 5),
        "conv1_b": u(ks[1], (20,), 1 * 5 * 5),
        "conv2_w": u(ks[2], (50, 20, 5, 5), 20 * 5 * 5),
        "conv2_b": u(ks[3], (50,), 20 * 5 * 5),
        "fc1_w": u(ks[4], (500, 4 * 4 * 50), 4 * 4 * 50),
        "fc1_b": u(ks[5], (500,), 4 * 4 * 50),
        "fc2_w": u(ks[6], (10, 500), 500),
        "fc2_b": u(ks[7], (10,), 500),
    }


if __name__ == "__main__":
    key = jax.random.PRNGKey(0)
    pkey, xkey = jax.random.split(key)
    params = init_params(pkey)
    prep = prepare_params(params)  # one-time weight transform (outside forward)
    x = jax.random.normal(xkey, (2, 1, 28, 28), jnp.float32)  # 28x28 required by fc1 = 4*4*50
    out = jax.jit(net_mnist_forward)(prep, x)
    out = jax.block_until_ready(out)
    assert out.shape == (2, 10) and out.dtype == jnp.float32
    ref = net_mnist_reference(params, x)
    assert jnp.allclose(out, ref, rtol=5e-2, atol=5e-2), float(jnp.max(jnp.abs(out - ref)))
    print("KERNEL_OK")
</pallas_src>

<mosaic_0001>
module attributes {stable_mosaic.version = 11 : i64} {
  func.func @_conv_pool_kernel(%arg0: i32, %arg1: memref<1x12x384xf32, #tpu.memory_space<vmem>>, %arg2: memref<10x384x256xbf16, #tpu.memory_space<vmem>>, %arg3: memref<1x256xf32, #tpu.memory_space<vmem>>, %arg4: memref<1x4x256xf32, #tpu.memory_space<vmem>>) attributes {dimension_semantics = [#tpu.dimension_semantics<parallel>], iteration_bounds = array<i64: 2>, scalar_prefetch = 0 : i64, scratch_operands = 0 : i64, tpu.core_type = #tpu.core_type<tc>, window_params = [{transform_indices = @transform_0, window_bounds = array<i64: 1, 12, 384>}, {pipeline_mode = #tpu.pipeline_mode<synchronous>, transform_indices = @transform_1, window_bounds = array<i64: 10, 384, 256>}, {pipeline_mode = #tpu.pipeline_mode<synchronous>, transform_indices = @transform_2, window_bounds = array<i64: 1, 256>}, {transform_indices = @transform_3, window_bounds = array<i64: 1, 4, 256>}]} {
    %c0 = arith.constant 0 : index
    %c0_0 = arith.constant 0 : index
    %c0_1 = arith.constant 0 : index
    %0 = vector.load %arg1[%c0, %c0_0, %c0_1] : memref<1x12x384xf32, #tpu.memory_space<vmem>>, vector<1x12x384xf32>
    %1 = vector.shape_cast %0 : vector<1x12x384xf32> to vector<12x384xf32>
    %cst = arith.constant 0.000000e+00 : f32
    %2 = vector.broadcast %cst : f32 to vector<8x256xf32>
    %cst_2 = arith.constant 0.000000e+00 : f32
    %3 = vector.broadcast %cst_2 : f32 to vector<8x256xf32>
    %4 = vector.extract_strided_slice %1 {offsets = [0, 0], sizes = [8, 384], strides = [1, 1]} : vector<12x384xf32> to vector<8x384xf32>
    %5 = arith.truncf %4 : vector<8x384xf32> to vector<8x384xbf16>
    %c0_3 = arith.constant 0 : index
    %c0_4 = arith.constant 0 : index
    %c0_5 = arith.constant 0 : index
    %6 = vector.load %arg2[%c0_3, %c0_4, %c0_5] : memref<10x384x256xbf16, #tpu.memory_space<vmem>>, vector<1x384x256xbf16>
    %7 = vector.shape_cast %6 : vector<1x384x256xbf16> to vector<384x256xbf16>
    %cst_6 = arith.constant dense<0.000000e+00> : vector<8x256xf32>
    %8 = tpu.matmul %5, %7, %cst_6 {dimension_numbers = #tpu.dot_dimension_numbers<[1], [0], [0], [1], [0, 0, 1, 1], [], []>} : vector<8x384xbf16>, vector<384x256xbf16>, vector<8x256xf32> -> vector<8x256xf32>
    %9 = arith.addf %2, %8 : vector<8x256xf32>
    %c1 = arith.constant 1 : index
    %c0_7 = arith.constant 0 : index
    %c0_8 = arith.constant 0 : index
    %10 = vector.load %arg2[%c1, %c0_7, %c0_8] : memref<10x384x256xbf16, #tpu.memory_space<vmem>>, vector<1x384x256xbf16>
    %11 = vector.shape_cast %10 : vector<1x384x256xbf16> to vector<384x256xbf16>
    %cst_9 = arith.constant dense<0.000000e+00> : vector<8x256xf32>
    %12 = tpu.matmul %5, %11, %cst_9 {dimension_numbers = #tpu.dot_dimension_numbers<[1], [0], [0], [1], [0, 0, 1, 1], [], []>} : vector<8x384xbf16>, vector<384x256xbf16>, vector<8x256xf32> -> vector<8x256xf32>
    %13 = arith.addf %3, %12 : vector<8x256xf32>
    %14 = vector.extract_strided_slice %1 {offsets = [1, 0], sizes = [8, 384], strides = [1, 1]} : vector<12x384xf32> to vector<8x384xf32>
    %15 = arith.truncf %14 : vector<8x384xf32> to vector<8x384xbf16>
    %c2 = arith.constant 2 : index
    %c0_10 = arith.constant 0 : index
    %c0_11 = arith.constant 0 : index
    %16 = vector.load %arg2[%c2, %c0_10, %c0_11] : memref<10x384x256xbf16, #tpu.memory_space<vmem>>, vector<1x384x256xbf16>
    %17 = vector.shape_cast %16 : vector<1x384x256xbf16> to vector<384x256xbf16>
    %cst_12 = arith.constant dense<0.000000e+00> : vector<8x256xf32>
    %18 = tpu.matmul %15, %17, %cst_12 {dimension_numbers = #tpu.dot_dimension_numbers<[1], [0], [0], [1], [0, 0, 1, 1], [], []>} : vector<8x384xbf16>, vector<384x256xbf16>, vector<8x256xf32> -> vector<8x256xf32>
    %19 = arith.addf %9, %18 : vector<8x256xf32>
    %c3 = arith.constant 3 : index
    %c0_13 = arith.constant 0 : index
    %c0_14 = arith.constant 0 : index
    %20 = vector.load %arg2[%c3, %c0_13, %c0_14] : memref<10x384x256xbf16, #tpu.memory_space<vmem>>, vector<1x384x256xbf16>
    %21 = vector.shape_cast %20 : vector<1x384x256xbf16> to vector<384x256xbf16>
    %cst_15 = arith.constant dense<0.000000e+00> : vector<8x256xf32>
    %22 = tpu.matmul %15, %21, %cst_15 {dimension_numbers = #tpu.dot_dimension_numbers<[1], [0], [0], [1], [0, 0, 1, 1], [], []>} : vector<8x384xbf16>, vector<384x256xbf16>, vector<8x256xf32> -> vector<8x256xf32>
    %23 = arith.addf %13, %22 : vector<8x256xf32>
    %24 = vector.extract_strided_slice %1 {offsets = [2, 0], sizes = [8, 384], strides = [1, 1]} : vector<12x384xf32> to vector<8x384xf32>
    %25 = arith.truncf %24 : vector<8x384xf32> to vector<8x384xbf16>
    %c4 = arith.constant 4 : index
    %c0_16 = arith.constant 0 : index
    %c0_17 = arith.constant 0 : index
    %26 = vector.load %arg2[%c4, %c0_16, %c0_17] : memref<10x384x256xbf16, #tpu.memory_space<vmem>>, vector<1x384x256xbf16>
    %27 = vector.shape_cast %26 : vector<1x384x256xbf16> to vector<384x256xbf16>
    %cst_18 = arith.constant dense<0.000000e+00> : vector<8x256xf32>
    %28 = tpu.matmul %25, %27, %cst_18 {dimension_numbers = #tpu.dot_dimension_numbers<[1], [0], [0], [1], [0, 0, 1, 1], [], []>} : vector<8x384xbf16>, vector<384x256xbf16>, vector<8x256xf32> -> vector<8x256xf32>
    %29 = arith.addf %19, %28 : vector<8x256xf32>
    %c5 = arith.constant 5 : index
    %c0_19 = arith.constant 0 : index
    %c0_20 = arith.constant 0 : index
    %30 = vector.load %arg2[%c5, %c0_19, %c0_20] : memref<10x384x256xbf16, #tpu.memory_space<vmem>>, vector<1x384x256xbf16>
    %31 = vector.shape_cast %30 : vector<1x384x256xbf16> to vector<384x256xbf16>
    %cst_21 = arith.constant dense<0.000000e+00> : vector<8x256xf32>
    %32 = tpu.matmul %25, %31, %cst_21 {dimension_numbers = #tpu.dot_dimension_numbers<[1], [0], [0], [1], [0, 0, 1, 1], [], []>} : vector<8x384xbf16>, vector<384x256xbf16>, vector<8x256xf32> -> vector<8x256xf32>
    %33 = arith.addf %23, %32 : vector<8x256xf32>
    %34 = vector.extract_strided_slice %1 {offsets = [3, 0], sizes = [8, 384], strides = [1, 1]} : vector<12x384xf32> to vector<8x384xf32>
    %35 = arith.truncf %34 : vector<8x384xf32> to vector<8x384xbf16>
    %c6 = arith.constant 6 : index
    %c0_22 = arith.constant 0 : index
    %c0_23 = arith.constant 0 : index
    %36 = vector.load %arg2[%c6, %c0_22, %c0_23] : memref<10x384x256xbf16, #tpu.memory_space<vmem>>, vector<1x384x256xbf16>
    %37 = vector.shape_cast %36 : vector<1x384x256xbf16> to vector<384x256xbf16>
    %cst_24 = arith.constant dense<0.000000e+00> : vector<8x256xf32>
    %38 = tpu.matmul %35, %37, %cst_24 {dimension_numbers = #tpu.dot_dimension_numbers<[1], [0], [0], [1], [0, 0, 1, 1], [], []>} : vector<8x384xbf16>, vector<384x256xbf16>, vector<8x256xf32> -> vector<8x256xf32>
    %39 = arith.addf %29, %38 : vector<8x256xf32>
    %c7 = arith.constant 7 : index
    %c0_25 = arith.constant 0 : index
    %c0_26 = arith.constant 0 : index
    %40 = vector.load %arg2[%c7, %c0_25, %c0_26] : memref<10x384x256xbf16, #tpu.memory_space<vmem>>, vector<1x384x256xbf16>
    %41 = vector.shape_cast %40 : vector<1x384x256xbf16> to vector<384x256xbf16>
    %cst_27 = arith.constant dense<0.000000e+00> : vector<8x256xf32>
    %42 = tpu.matmul %35, %41, %cst_27 {dimension_numbers = #tpu.dot_dimension_numbers<[1], [0], [0], [1], [0, 0, 1, 1], [], []>} : vector<8x384xbf16>, vector<384x256xbf16>, vector<8x256xf32> -> vector<8x256xf32>
    %43 = arith.addf %33, %42 : vector<8x256xf32>
    %44 = vector.extract_strided_slice %1 {offsets = [4, 0], sizes = [8, 384], strides = [1, 1]} : vector<12x384xf32> to vector<8x384xf32>
    %45 = arith.truncf %44 : vector<8x384xf32> to vector<8x384xbf16>
    %c8 = arith.constant 8 : index
    %c0_28 = arith.constant 0 : index
    %c0_29 = arith.constant 0 : index
    %46 = vector.load %arg2[%c8, %c0_28, %c0_29] : memref<10x384x256xbf16, #tpu.memory_space<vmem>>, vector<1x384x256xbf16>
    %47 = vector.shape_cast %46 : vector<1x384x256xbf16> to vector<384x256xbf16>
    %cst_30 = arith.constant dense<0.000000e+00> : vector<8x256xf32>
    %48 = tpu.matmul %45, %47, %cst_30 {dimension_numbers = #tpu.dot_dimension_numbers<[1], [0], [0], [1], [0, 0, 1, 1], [], []>} : vector<8x384xbf16>, vector<384x256xbf16>, vector<8x256xf32> -> vector<8x256xf32>
    %49 = arith.addf %39, %48 : vector<8x256xf32>
    %c9 = arith.constant 9 : index
    %c0_31 = arith.constant 0 : index
    %c0_32 = arith.constant 0 : index
    %50 = vector.load %arg2[%c9, %c0_31, %c0_32] : memref<10x384x256xbf16, #tpu.memory_space<vmem>>, vector<1x384x256xbf16>
    %51 = vector.shape_cast %50 : vector<1x384x256xbf16> to vector<384x256xbf16>
    %cst_33 = arith.constant dense<0.000000e+00> : vector<8x256xf32>
    %52 = tpu.matmul %45, %51, %cst_33 {dimension_numbers = #tpu.dot_dimension_numbers<[1], [0], [0], [1], [0, 0, 1, 1], [], []>} : vector<8x384xbf16>, vector<384x256xbf16>, vector<8x256xf32> -> vector<8x256xf32>
    %53 = arith.addf %43, %52 : vector<8x256xf32>
    %54 = arith.maximumf %49, %53 : vector<8x256xf32>
    %55 = tpu.iota {dimensions = array<i32: 0>} : vector<4x8xi32>
    %56 = tpu.iota {dimensions = array<i32: 1>} : vector<4x8xi32>
    %c2_i32 = arith.constant 2 : i32
    %57 = vector.broadcast %c2_i32 : i32 to vector<4x8xi32>
    %58 = arith.muli %57, %55 : vector<4x8xi32>
    %59 = arith.cmpi eq, %56, %58 : vector<4x8xi32>
    %60 = arith.extui %59 : vector<4x8xi1> to vector<4x8xi32>
    %61 = arith.sitofp %60 : vector<4x8xi32> to vector<4x8xf32>
    %c2_i32_34 = arith.constant 2 : i32
    %62 = vector.broadcast %c2_i32_34 : i32 to vector<4x8xi32>
    %63 = arith.muli %62, %55 : vector<4x8xi32>
    %c1_i32 = arith.constant 1 : i32
    %64 = vector.broadcast %c1_i32 : i32 to vector<4x8xi32>
    %65 = arith.addi %63, %64 : vector<4x8xi32>
    %66 = arith.cmpi eq, %56, %65 : vector<4x8xi32>
    %67 = arith.extui %66 : vector<4x8xi1> to vector<4x8xi32>
    %68 = arith.sitofp %67 : vector<4x8xi32> to vector<4x8xf32>
    %cst_35 = arith.constant dense<0.000000e+00> : vector<4x256xf32>
    %69 = tpu.matmul %61, %54, %cst_35 {dimension_numbers = #tpu.dot_dimension_numbers<[1], [0], [0], [1], [0, 0, 1, 1], [], []>} : vector<4x8xf32>, vector<8x256xf32>, vector<4x256xf32> -> vector<4x256xf32>
    %cst_36 = arith.constant dense<0.000000e+00> : vector<4x256xf32>
    %70 = tpu.matmul %68, %54, %cst_36 {dimension_numbers = #tpu.dot_dimension_numbers<[1], [0], [0], [1], [0, 0, 1, 1], [], []>} : vector<4x8xf32>, vector<8x256xf32>, vector<4x256xf32> -> vector<4x256xf32>
    %71 = arith.maximumf %69, %70 : vector<4x256xf32>
    %c0_37 = arith.constant 0 : index
    %c0_38 = arith.constant 0 : index
    %72 = vector.load %arg3[%c0_37, %c0_38] : memref<1x256xf32, #tpu.memory_space<vmem>>, vector<1x256xf32>
    %73 = vector.broadcast %72 : vector<1x256xf32> to vector<4x256xf32>
    %74 = arith.addf %71, %73 : vector<4x256xf32>
    %cst_39 = arith.constant 0.000000e+00 : f32
    %75 = vector.broadcast %cst_39 : f32 to vector<4x256xf32>
    %76 = arith.maximumf %74, %75 : vector<4x256xf32>
    %c0_40 = arith.constant 0 : index
    %c0_41 = arith.constant 0 : index
    %c0_42 = arith.constant 0 : index
    %77 = vector.load %arg4[%c0_40, %c0_41, %c0_42] : memref<1x4x256xf32, #tpu.memory_space<vmem>>, vector<1x4x256xf32>
    %78 = vector.shape_cast %77 : vector<1x4x256xf32> to vector<4x256xf32>
    %79 = vector.shape_cast %76 : vector<4x256xf32> to vector<1x4x256xf32>
    tpu.vector_store %arg4[%c0_40, %c0_41, %c0_42], %79 {strides = array<i32>} : memref<1x4x256xf32, #tpu.memory_space<vmem>>, vector<1x4x256xf32>,
    return
  }
  func.func @transform_0(%arg0: i32) -> (i32, i32, i32) {
    %c0_i32 = arith.constant 0 : i32
    %c0_i32_0 = arith.constant 0 : i32
    %c0_i32_1 = arith.constant 0 : i32
    return %arg0, %c0_i32, %c0_i32_0 : i32, i32, i32
  }
  func.func @transform_1(%arg0: i32) -> (i32, i32, i32) {
    %c0_i32 = arith.constant 0 : i32
    %c0_i32_0 = arith.constant 0 : i32
    %c0_i32_1 = arith.constant 0 : i32
    %c0_i32_2 = arith.constant 0 : i32
    return %c0_i32, %c0_i32_0, %c0_i32_1 : i32, i32, i32
  }
  func.func @transform_2(%arg0: i32) -> (i32, i32) {
    %c0_i32 = arith.constant 0 : i32
    %c0_i32_0 = arith.constant 0 : i32
    %c0_i32_1 = arith.constant 0 : i32
    return %c0_i32, %c0_i32_0 : i32, i32
  }
  func.func @transform_3(%arg0: i32) -> (i32, i32, i32) {
    %c0_i32 = arith.constant 0 : i32
    %c0_i32_0 = arith.constant 0 : i32
    %c0_i32_1 = arith.constant 0 : i32
    return %arg0, %c0_i32, %c0_i32_0 : i32, i32, i32
  }
}

module attributes {stable_mosaic.version = 11 : i64} {
  func.func @_conv_pool_kernel(%arg0: i32, %arg1: memref<1x28x28xf32, #tpu.memory_space<vmem>>, %arg2: memref<10x28x384xbf16, #tpu.memory_space<vmem>>, %arg3: memref<1x384xf32, #tpu.memory_space<vmem>>, %arg4: memref<1x12x384xf32, #tpu.memory_space<vmem>>) attributes {dimension_semantics = [#tpu.dimension_semantics<parallel>], iteration_bounds = array<i64: 2>, scalar_prefetch = 0 : i64, scratch_operands = 0 : i64, tpu.core_type = #tpu.core_type<tc>, window_params = [{transform_indices = @transform_0, window_bounds = array<i64: 1, 28, 28>}, {pipeline_mode = #tpu.pipeline_mode<synchronous>, transform_indices = @transform_1, window_bounds = array<i64: 10, 28, 384>}, {pipeline_mode = #tpu.pipeline_mode<synchronous>, transform_indices = @transform_2, window_bounds = array<i64: 1, 384>}, {transform_indices = @transform_3, window_bounds = array<i64: 1, 12, 384>}]} {
    %c0 = arith.constant 0 : index
    %c0_0 = arith.constant 0 : index
    %c0_1 = arith.constant 0 : index
    %0 = vector.load %arg1[%c0, %c0_0, %c0_1] : memref<1x28x28xf32, #tpu.memory_space<vmem>>, vector<1x28x28xf32>
    %1 = vector.shape_cast %0 : vector<1x28x28xf32> to vector<28x28xf32>
    %cst = arith.constant 0.000000e+00 : f32
    %2 = vector.broadcast %cst : f32 to vector<24x384xf32>
    %cst_2 = arith.constant 0.000000e+00 : f32
    %3 = vector.broadcast %cst_2 : f32 to vector<24x384xf32>
    %4 = vector.extract_strided_slice %1 {offsets = [0, 0], sizes = [24, 28], strides = [1, 1]} : vector<28x28xf32> to vector<24x28xf32>
    %5 = arith.truncf %4 : vector<24x28xf32> to vector<24x28xbf16>
    %c0_3 = arith.constant 0 : index
    %c0_4 = arith.constant 0 : index
    %c0_5 = arith.constant 0 : index
    %6 = vector.load %arg2[%c0_3, %c0_4, %c0_5] : memref<10x28x384xbf16, #tpu.memory_space<vmem>>, vector<1x28x384xbf16>
    %7 = vector.shape_cast %6 : vector<1x28x384xbf16> to vector<28x384xbf16>
    %cst_6 = arith.constant dense<0.000000e+00> : vector<24x384xf32>
    %8 = tpu.matmul %5, %7, %cst_6 {dimension_numbers = #tpu.dot_dimension_numbers<[1], [0], [0], [1], [0, 0, 1, 1], [], []>} : vector<24x28xbf16>, vector<28x384xbf16>, vector<24x384xf32> -> vector<24x384xf32>
    %9 = arith.addf %2, %8 : vector<24x384xf32>
    %c1 = arith.constant 1 : index
    %c0_7 = arith.constant 0 : index
    %c0_8 = arith.constant 0 : index
    %10 = vector.load %arg2[%c1, %c0_7, %c0_8] : memref<10x28x384xbf16, #tpu.memory_space<vmem>>, vector<1x28x384xbf16>
    %11 = vector.shape_cast %10 : vector<1x28x384xbf16> to vector<28x384xbf16>
    %cst_9 = arith.constant dense<0.000000e+00> : vector<24x384xf32>
    %12 = tpu.matmul %5, %11, %cst_9 {dimension_numbers = #tpu.dot_dimension_numbers<[1], [0], [0], [1], [0, 0, 1, 1], [], []>} : vector<24x28xbf16>, vector<28x384xbf16>, vector<24x384xf32> -> vector<24x384xf32>
    %13 = arith.addf %3, %12 : vector<24x384xf32>
    %14 = vector.extract_strided_slice %1 {offsets = [1, 0], sizes = [24, 28], strides = [1, 1]} : vector<28x28xf32> to vector<24x28xf32>
    %15 = arith.truncf %14 : vector<24x28xf32> to vector<24x28xbf16>
    %c2 = arith.constant 2 : index
    %c0_10 = arith.constant 0 : index
    %c0_11 = arith.constant 0 : index
    %16 = vector.load %arg2[%c2, %c0_10, %c0_11] : memref<10x28x384xbf16, #tpu.memory_space<vmem>>, vector<1x28x384xbf16>
    %17 = vector.shape_cast %16 : vector<1x28x384xbf16> to vector<28x384xbf16>
    %cst_12 = arith.constant dense<0.000000e+00> : vector<24x384xf32>
    %18 = tpu.matmul %15, %17, %cst_12 {dimension_numbers = #tpu.dot_dimension_numbers<[1], [0], [0], [1], [0, 0, 1, 1], [], []>} : vector<24x28xbf16>, vector<28x384xbf16>, vector<24x384xf32> -> vector<24x384xf32>
    %19 = arith.addf %9, %18 : vector<24x384xf32>
    %c3 = arith.constant 3 : index
    %c0_13 = arith.constant 0 : index
    %c0_14 = arith.constant 0 : index
    %20 = vector.load %arg2[%c3, %c0_13, %c0_14] : memref<10x28x384xbf16, #tpu.memory_space<vmem>>, vector<1x28x384xbf16>
    %21 = vector.shape_cast %20 : vector<1x28x384xbf16> to vector<28x384xbf16>
    %cst_15 = arith.constant dense<0.000000e+00> : vector<24x384xf32>
    %22 = tpu.matmul %15, %21, %cst_15 {dimension_numbers = #tpu.dot_dimension_numbers<[1], [0], [0], [1], [0, 0, 1, 1], [], []>} : vector<24x28xbf16>, vector<28x384xbf16>, vector<24x384xf32> -> vector<24x384xf32>
    %23 = arith.addf %13, %22 : vector<24x384xf32>
    %24 = vector.extract_strided_slice %1 {offsets = [2, 0], sizes = [24, 28], strides = [1, 1]} : vector<28x28xf32> to vector<24x28xf32>
    %25 = arith.truncf %24 : vector<24x28xf32> to vector<24x28xbf16>
    %c4 = arith.constant 4 : index
    %c0_16 = arith.constant 0 : index
    %c0_17 = arith.constant 0 : index
    %26 = vector.load %arg2[%c4, %c0_16, %c0_17] : memref<10x28x384xbf16, #tpu.memory_space<vmem>>, vector<1x28x384xbf16>
    %27 = vector.shape_cast %26 : vector<1x28x384xbf16> to vector<28x384xbf16>
    %cst_18 = arith.constant dense<0.000000e+00> : vector<24x384xf32>
    %28 = tpu.matmul %25, %27, %cst_18 {dimension_numbers = #tpu.dot_dimension_numbers<[1], [0], [0], [1], [0, 0, 1, 1], [], []>} : vector<24x28xbf16>, vector<28x384xbf16>, vector<24x384xf32> -> vector<24x384xf32>
    %29 = arith.addf %19, %28 : vector<24x384xf32>
    %c5 = arith.constant 5 : index
    %c0_19 = arith.constant 0 : index
    %c0_20 = arith.constant 0 : index
    %30 = vector.load %arg2[%c5, %c0_19, %c0_20] : memref<10x28x384xbf16, #tpu.memory_space<vmem>>, vector<1x28x384xbf16>
    %31 = vector.shape_cast %30 : vector<1x28x384xbf16> to vector<28x384xbf16>
    %cst_21 = arith.constant dense<0.000000e+00> : vector<24x384xf32>
    %32 = tpu.matmul %25, %31, %cst_21 {dimension_numbers = #tpu.dot_dimension_numbers<[1], [0], [0], [1], [0, 0, 1, 1], [], []>} : vector<24x28xbf16>, vector<28x384xbf16>, vector<24x384xf32> -> vector<24x384xf32>
    %33 = arith.addf %23, %32 : vector<24x384xf32>
    %34 = vector.extract_strided_slice %1 {offsets = [3, 0], sizes = [24, 28], strides = [1, 1]} : vector<28x28xf32> to vector<24x28xf32>
    %35 = arith.truncf %34 : vector<24x28xf32> to vector<24x28xbf16>
    %c6 = arith.constant 6 : index
    %c0_22 = arith.constant 0 : index
    %c0_23 = arith.constant 0 : index
    %36 = vector.load %arg2[%c6, %c0_22, %c0_23] : memref<10x28x384xbf16, #tpu.memory_space<vmem>>, vector<1x28x384xbf16>
    %37 = vector.shape_cast %36 : vector<1x28x384xbf16> to vector<28x384xbf16>
    %cst_24 = arith.constant dense<0.000000e+00> : vector<24x384xf32>
    %38 = tpu.matmul %35, %37, %cst_24 {dimension_numbers = #tpu.dot_dimension_numbers<[1], [0], [0], [1], [0, 0, 1, 1], [], []>} : vector<24x28xbf16>, vector<28x384xbf16>, vector<24x384xf32> -> vector<24x384xf32>
    %39 = arith.addf %29, %38 : vector<24x384xf32>
    %c7 = arith.constant 7 : index
    %c0_25 = arith.constant 0 : index
    %c0_26 = arith.constant 0 : index
    %40 = vector.load %arg2[%c7, %c0_25, %c0_26] : memref<10x28x384xbf16, #tpu.memory_space<vmem>>, vector<1x28x384xbf16>
    %41 = vector.shape_cast %40 : vector<1x28x384xbf16> to vector<28x384xbf16>
    %cst_27 = arith.constant dense<0.000000e+00> : vector<24x384xf32>
    %42 = tpu.matmul %35, %41, %cst_27 {dimension_numbers = #tpu.dot_dimension_numbers<[1], [0], [0], [1], [0, 0, 1, 1], [], []>} : vector<24x28xbf16>, vector<28x384xbf16>, vector<24x384xf32> -> vector<24x384xf32>
    %43 = arith.addf %33, %42 : vector<24x384xf32>
    %44 = vector.extract_strided_slice %1 {offsets = [4, 0], sizes = [24, 28], strides = [1, 1]} : vector<28x28xf32> to vector<24x28xf32>
    %45 = arith.truncf %44 : vector<24x28xf32> to vector<24x28xbf16>
    %c8 = arith.constant 8 : index
    %c0_28 = arith.constant 0 : index
    %c0_29 = arith.constant 0 : index
    %46 = vector.load %arg2[%c8, %c0_28, %c0_29] : memref<10x28x384xbf16, #tpu.memory_space<vmem>>, vector<1x28x384xbf16>
    %47 = vector.shape_cast %46 : vector<1x28x384xbf16> to vector<28x384xbf16>
    %cst_30 = arith.constant dense<0.000000e+00> : vector<24x384xf32>
    %48 = tpu.matmul %45, %47, %cst_30 {dimension_numbers = #tpu.dot_dimension_numbers<[1], [0], [0], [1], [0, 0, 1, 1], [], []>} : vector<24x28xbf16>, vector<28x384xbf16>, vector<24x384xf32> -> vector<24x384xf32>
    %49 = arith.addf %39, %48 : vector<24x384xf32>
    %c9 = arith.constant 9 : index
    %c0_31 = arith.constant 0 : index
    %c0_32 = arith.constant 0 : index
    %50 = vector.load %arg2[%c9, %c0_31, %c0_32] : memref<10x28x384xbf16, #tpu.memory_space<vmem>>, vector<1x28x384xbf16>
    %51 = vector.shape_cast %50 : vector<1x28x384xbf16> to vector<28x384xbf16>
    %cst_33 = arith.constant dense<0.000000e+00> : vector<24x384xf32>
    %52 = tpu.matmul %45, %51, %cst_33 {dimension_numbers = #tpu.dot_dimension_numbers<[1], [0], [0], [1], [0, 0, 1, 1], [], []>} : vector<24x28xbf16>, vector<28x384xbf16>, vector<24x384xf32> -> vector<24x384xf32>
    %53 = arith.addf %43, %52 : vector<24x384xf32>
    %54 = arith.maximumf %49, %53 : vector<24x384xf32>
    %55 = tpu.iota {dimensions = array<i32: 0>} : vector<12x24xi32>
    %56 = tpu.iota {dimensions = array<i32: 1>} : vector<12x24xi32>
    %c2_i32 = arith.constant 2 : i32
    %57 = vector.broadcast %c2_i32 : i32 to vector<12x24xi32>
    %58 = arith.muli %57, %55 : vector<12x24xi32>
    %59 = arith.cmpi eq, %56, %58 : vector<12x24xi32>
    %60 = arith.extui %59 : vector<12x24xi1> to vector<12x24xi32>
    %61 = arith.sitofp %60 : vector<12x24xi32> to vector<12x24xf32>
    %c2_i32_34 = arith.constant 2 : i32
    %62 = vector.broadcast %c2_i32_34 : i32 to vector<12x24xi32>
    %63 = arith.muli %62, %55 : vector<12x24xi32>
    %c1_i32 = arith.constant 1 : i32
    %64 = vector.broadcast %c1_i32 : i32 to vector<12x24xi32>
    %65 = arith.addi %63, %64 : vector<12x24xi32>
    %66 = arith.cmpi eq, %56, %65 : vector<12x24xi32>
    %67 = arith.extui %66 : vector<12x24xi1> to vector<12x24xi32>
    %68 = arith.sitofp %67 : vector<12x24xi32> to vector<12x24xf32>
    %cst_35 = arith.constant dense<0.000000e+00> : vector<12x384xf32>
    %69 = tpu.matmul %61, %54, %cst_35 {dimension_numbers = #tpu.dot_dimension_numbers<[1], [0], [0], [1], [0, 0, 1, 1], [], []>} : vector<12x24xf32>, vector<24x384xf32>, vector<12x384xf32> -> vector<12x384xf32>
    %cst_36 = arith.constant dense<0.000000e+00> : vector<12x384xf32>
    %70 = tpu.matmul %68, %54, %cst_36 {dimension_numbers = #tpu.dot_dimension_numbers<[1], [0], [0], [1], [0, 0, 1, 1], [], []>} : vector<12x24xf32>, vector<24x384xf32>, vector<12x384xf32> -> vector<12x384xf32>
    %71 = arith.maximumf %69, %70 : vector<12x384xf32>
    %c0_37 = arith.constant 0 : index
    %c0_38 = arith.constant 0 : index
    %72 = vector.load %arg3[%c0_37, %c0_38] : memref<1x384xf32, #tpu.memory_space<vmem>>, vector<1x384xf32>
    %73 = vector.broadcast %72 : vector<1x384xf32> to vector<12x384xf32>
    %74 = arith.addf %71, %73 : vector<12x384xf32>
    %cst_39 = arith.constant 0.000000e+00 : f32
    %75 = vector.broadcast %cst_39 : f32 to vector<12x384xf32>
    %76 = arith.maximumf %74, %75 : vector<12x384xf32>
    %c0_40 = arith.constant 0 : index
    %c0_41 = arith.constant 0 : index
    %c0_42 = arith.constant 0 : index
    %77 = vector.load %arg4[%c0_40, %c0_41, %c0_42] : memref<1x12x384xf32, #tpu.memory_space<vmem>>, vector<1x12x384xf32>
    %78 = vector.shape_cast %77 : vector<1x12x384xf32> to vector<12x384xf32>
    %79 = vector.shape_cast %76 : vector<12x384xf32> to vector<1x12x384xf32>
    tpu.vector_store %arg4[%c0_40, %c0_41, %c0_42], %79 {strides = array<i32>} : memref<1x12x384xf32, #tpu.memory_space<vmem>>, vector<1x12x384xf32>,
    return
  }
  func.func @transform_0(%arg0: i32) -> (i32, i32, i32) {
    %c0_i32 = arith.constant 0 : i32
    %c0_i32_0 = arith.constant 0 : i32
    %c0_i32_1 = arith.constant 0 : i32
    return %arg0, %c0_i32, %c0_i32_0 : i32, i32, i32
  }
  func.func @transform_1(%arg0: i32) -> (i32, i32, i32) {
    %c0_i32 = arith.constant 0 : i32
    %c0_i32_0 = arith.constant 0 : i32
    %c0_i32_1 = arith.constant 0 : i32
    %c0_i32_2 = arith.constant 0 : i32
    return %c0_i32, %c0_i32_0, %c0_i32_1 : i32, i32, i32
  }
  func.func @transform_2(%arg0: i32) -> (i32, i32) {
    %c0_i32 = arith.constant 0 : i32
    %c0_i32_0 = arith.constant 0 : i32
    %c0_i32_1 = arith.constant 0 : i32
    return %c0_i32, %c0_i32_0 : i32, i32
  }
  func.func @transform_3(%arg0: i32) -> (i32, i32, i32) {
    %c0_i32 = arith.constant 0 : i32
    %c0_i32_0 = arith.constant 0 : i32
    %c0_i32_1 = arith.constant 0 : i32
    return %arg0, %c0_i32, %c0_i32_0 : i32, i32, i32
  }
}

module attributes {stable_mosaic.version = 11 : i64} {
  func.func @_fc_fused_kernel(%arg0: i32, %arg1: memref<2x1024xf32, #tpu.memory_space<vmem>>, %arg2: memref<1024x512xbf16, #tpu.memory_space<vmem>>, %arg3: memref<1x512xf32, #tpu.memory_space<vmem>>, %arg4: memref<512x128xbf16, #tpu.memory_space<vmem>>, %arg5: memref<1x128xf32, #tpu.memory_space<vmem>>, %arg6: memref<2x128xf32, #tpu.memory_space<vmem>>) attributes {dimension_semantics = [#tpu.dimension_semantics<parallel>], iteration_bounds = array<i64: 1>, scalar_prefetch = 0 : i64, scratch_operands = 0 : i64, tpu.core_type = #tpu.core_type<tc>, window_params = [{transform_indices = @transform_0, window_bounds = array<i64: 2, 1024>}, {pipeline_mode = #tpu.pipeline_mode<synchronous>, transform_indices = @transform_1, window_bounds = array<i64: 1024, 512>}, {pipeline_mode = #tpu.pipeline_mode<synchronous>, transform_indices = @transform_2, window_bounds = array<i64: 1, 512>}, {pipeline_mode = #tpu.pipeline_mode<synchronous>, transform_indices = @transform_3, window_bounds = array<i64: 512, 128>}, {pipeline_mode = #tpu.pipeline_mode<synchronous>, transform_indices = @transform_4, window_bounds = array<i64: 1, 128>}, {transform_indices = @transform_5, window_bounds = array<i64: 2, 128>}]} {
    %c0 = arith.constant 0 : index
    %c0_0 = arith.constant 0 : index
    %0 = vector.load %arg1[%c0, %c0_0] : memref<2x1024xf32, #tpu.memory_space<vmem>>, vector<2x1024xf32>
    %1 = arith.truncf %0 : vector<2x1024xf32> to vector<2x1024xbf16>
    %c0_1 = arith.constant 0 : index
    %c0_2 = arith.constant 0 : index
    %2 = vector.load %arg2[%c0_1, %c0_2] : memref<1024x512xbf16, #tpu.memory_space<vmem>>, vector<1024x512xbf16>
    %cst = arith.constant dense<0.000000e+00> : vector<2x512xf32>
    %3 = tpu.matmul %1, %2, %cst {dimension_numbers = #tpu.dot_dimension_numbers<[1], [0], [0], [1], [0, 0, 1, 1], [], []>} : vector<2x1024xbf16>, vector<1024x512xbf16>, vector<2x512xf32> -> vector<2x512xf32>
    %c0_3 = arith.constant 0 : index
    %c0_4 = arith.constant 0 : index
    %4 = vector.load %arg3[%c0_3, %c0_4] : memref<1x512xf32, #tpu.memory_space<vmem>>, vector<1x512xf32>
    %5 = vector.broadcast %4 : vector<1x512xf32> to vector<2x512xf32>
    %6 = arith.addf %3, %5 : vector<2x512xf32>
    %cst_5 = arith.constant 0.000000e+00 : f32
    %7 = vector.broadcast %cst_5 : f32 to vector<2x512xf32>
    %8 = arith.maximumf %6, %7 : vector<2x512xf32>
    %9 = arith.truncf %8 : vector<2x512xf32> to vector<2x512xbf16>
    %c0_6 = arith.constant 0 : index
    %c0_7 = arith.constant 0 : index
    %10 = vector.load %arg4[%c0_6, %c0_7] : memref<512x128xbf16, #tpu.memory_space<vmem>>, vector<512x128xbf16>
    %cst_8 = arith.constant dense<0.000000e+00> : vector<2x128xf32>
    %11 = tpu.matmul %9, %10, %cst_8 {dimension_numbers = #tpu.dot_dimension_numbers<[1], [0], [0], [1], [0, 0, 1, 1], [], []>} : vector<2x512xbf16>, vector<512x128xbf16>, vector<2x128xf32> -> vector<2x128xf32>
    %c0_9 = arith.constant 0 : index
    %c0_10 = arith.constant 0 : index
    %12 = vector.load %arg5[%c0_9, %c0_10] : memref<1x128xf32, #tpu.memory_space<vmem>>, vector<1x128xf32>
    %13 = vector.broadcast %12 : vector<1x128xf32> to vector<2x128xf32>
    %14 = arith.addf %11, %13 : vector<2x128xf32>
    %c0_11 = arith.constant 0 : index
    %c0_12 = arith.constant 0 : index
    %15 = vector.load %arg6[%c0_11, %c0_12] : memref<2x128xf32, #tpu.memory_space<vmem>>, vector<2x128xf32>
    tpu.vector_store %arg6[%c0_11, %c0_12], %14 {strides = array<i32>} : memref<2x128xf32, #tpu.memory_space<vmem>>, vector<2x128xf32>,
    return
  }
  func.func @transform_0(%arg0: i32) -> (i32, i32) {
    %c0_i32 = arith.constant 0 : i32
    %c0_i32_0 = arith.constant 0 : i32
    return %arg0, %c0_i32 : i32, i32
  }
  func.func @transform_1(%arg0: i32) -> (i32, i32) {
    %c0_i32 = arith.constant 0 : i32
    %c0_i32_0 = arith.constant 0 : i32
    %c0_i32_1 = arith.constant 0 : i32
    return %c0_i32, %c0_i32_0 : i32, i32
  }
  func.func @transform_2(%arg0: i32) -> (i32, i32) {
    %c0_i32 = arith.constant 0 : i32
    %c0_i32_0 = arith.constant 0 : i32
    %c0_i32_1 = arith.constant 0 : i32
    return %c0_i32, %c0_i32_0 : i32, i32
  }
  func.func @transform_3(%arg0: i32) -> (i32, i32) {
    %c0_i32 = arith.constant 0 : i32
    %c0_i32_0 = arith.constant 0 : i32
    %c0_i32_1 = arith.constant 0 : i32
    return %c0_i32, %c0_i32_0 : i32, i32
  }
  func.func @transform_4(%arg0: i32) -> (i32, i32) {
    %c0_i32 = arith.constant 0 : i32
    %c0_i32_0 = arith.constant 0 : i32
    %c0_i32_1 = arith.constant 0 : i32
    return %c0_i32, %c0_i32_0 : i32, i32
  }
  func.func @transform_5(%arg0: i32) -> (i32, i32) {
    %c0_i32 = arith.constant 0 : i32
    %c0_i32_0 = arith.constant 0 : i32
    return %arg0, %c0_i32 : i32, i32
  }
}

</mosaic_0001>

<llo_original>
// kernel: net_mnist_forward.3
$region0: #{net_mnist_forward.3}
  #allocation0 [shape = 'u32[]', space=smem, size = 0x4, offset = 0x4, fixed_abs, tag = 'smem constant byte address 0x4 - core index']
  #allocation1 [shape = 'u32[72,128]{1,0:T(1,128)}', space=vmem, size = 0x9000, scoped, tag = 'internal scratch']
  %s0 = inlined_call_operand.vmem [shape: f32[2,28,28], index: 0, kind: input, shape index: {}]
  %s1 = inlined_call_operand.hbm [shape: bf16[10,28,384], index: 1, kind: input, shape index: {}]
  %s2 = inlined_call_operand.hbm [shape: f32[1,384], index: 2, kind: input, shape index: {}]
  %s3 = inlined_call_operand.vmem [shape: f32[2,12,384], index: 3, kind: output, shape index: {}]
  %s4 = sld [smem:[#allocation0]]
  $region53: #{net_mnist_forward.3} parent=0
    _
  %s6 = ssub.s32 1, %s4
  %s7 = scalar_select 0, %s6, %s4
  $region1: #{net_mnist_forward.3} parent=0
    #allocation2 [shape = 'u8[245760]{0}', space=vmem, size = 0x3c000, scoped, tag = 'input window, operand 1, single buffered']
    #allocation3 [shape = 's32[2]{0}', space=sflag, size = 0x8, scoped, tag = 'scoped memory for net_mnist_forward.3']
    #allocation4 [shape = 'u8[1536]{0}', space=vmem, size = 0x800, scoped, tag = 'input window, operand 2, single buffered']
    #allocation5 [shape = 's32[1]{0}', space=sflag, size = 0x4, scoped, tag = 'scoped memory for net_mnist_forward.3']
    %8 = vsyncpa [#allocation3], 0
    %9 = vsyncpa [#allocation5], 0
    loop: start=0, step=1, limit=4
    $region2: #{net_mnist_forward.3} parent=1 // loop_pre_header
      _
    $region3: #{net_mnist_forward.3} parent=1 // loop_header
      %s11 = sphi 0, %s15
      %p12 = scmp.ge.s32.totalorder %s11, 4
      %s21 = sphi 0, %s23
      %s24 = sphi 0, %s21
      %s25 = sphi 0, %s24
      %s41 = sphi 0, %s25
      %s45 = sphi 0, %s45
      %s47 = sphi 0, %s45
      %s48 = sphi 0, %s47
      %s62 = sphi 0, %s48
      %s66 = sphi 0, %s66
      %s68 = sphi 0, %s66
      %s69 = sphi 0, %s68
      %s83 = sphi 0, %s69
      %s89 = sphi 0, %s91
      %s92 = sphi 0, %s89
      %s93 = sphi 0, %s92
      %s109 = sphi 0, %s93
    $region4: #{net_mnist_forward.3} parent=1 // loop_header_branch
      %14 = sbr.rel (%p12) target = $region8
    $region5: #{net_mnist_forward.3} parent=1 // loop_body
      %s16 = ssub.s32 %s11, 1
      %s17 = ssub.s32 %s11, 2
      %s18 = sadd.s32 %s11, 1
      %s19 = ssub.s32 %s11, %s18
      %p20 = scmp.eq.s32.totalorder %s19, 0
      %s22 = sadd.s32 %s21, 1
      %s23 = scalar_select %p20, %s21, %s22
      %p26 = pneg %p20
      %p27 = scmp.eq.s32.totalorder %s11, 1
      %p28 = por %p26, %p27
      %p29 = scmp.ne.s32.totalorder %s21, %s24
      %p30 = scmp.eq.s32.totalorder %s11, 0
      %p31 = por %p29, %p30
      %p32 = scmp.ne.s32.totalorder %s21, %s24
      %p33 = scmp.eq.s32.totalorder %s16, 1
      %p34 = por %p32, %p33
      %p35 = scmp.ne.s32.totalorder %s24, %s25
      %p36 = scmp.eq.s32.totalorder %s16, 0
      %p37 = por %p35, %p36
      %p38 = scmp.ne.s32.totalorder %s24, %s25
      %p39 = scmp.eq.s32.totalorder %s17, 1
      %p40 = por %p38, %p39
      %p42 = scmp.ne.s32.totalorder %s25, %s41
      %p43 = scmp.eq.s32.totalorder %s17, 0
      %p44 = por %p42, %p43
      %s46 = sadd.s32 %s45, 1
      %p49 = scmp.eq.s32.totalorder %s11, 1
      %p50 = scmp.ne.s32.totalorder %s45, %s47
      %p51 = scmp.eq.s32.totalorder %s11, 0
      %p52 = por %p50, %p51
      %p53 = scmp.ne.s32.totalorder %s45, %s47
      %p54 = scmp.eq.s32.totalorder %s16, 1
      %p55 = por %p53, %p54
      %p56 = scmp.ne.s32.totalorder %s47, %s48
      %p57 = scmp.eq.s32.totalorder %s16, 0
      %p58 = por %p56, %p57
      %p59 = scmp.ne.s32.totalorder %s47, %s48
      %p60 = scmp.eq.s32.totalorder %s17, 1
      %p61 = por %p59, %p60
      %p63 = scmp.ne.s32.totalorder %s48, %s62
      %p64 = scmp.eq.s32.totalorder %s17, 0
      %p65 = por %p63, %p64
      %s67 = sadd.s32 %s66, 1
      %p70 = scmp.eq.s32.totalorder %s11, 1
      %p71 = scmp.ne.s32.totalorder %s66, %s68
      %p72 = scmp.eq.s32.totalorder %s11, 0
      %p73 = por %p71, %p72
      %p74 = scmp.ne.s32.totalorder %s66, %s68
      %p75 = scmp.eq.s32.totalorder %s16, 1
      %p76 = por %p74, %p75
      %p77 = scmp.ne.s32.totalorder %s68, %s69
      %p78 = scmp.eq.s32.totalorder %s16, 0
      %p79 = por %p77, %p78
      %p80 = scmp.ne.s32.totalorder %s68, %s69
      %p81 = scmp.eq.s32.totalorder %s17, 1
      %p82 = por %p80, %p81
      %p84 = scmp.ne.s32.totalorder %s69, %s83
      %p85 = scmp.eq.s32.totalorder %s17, 0
      %p86 = por %p84, %p85
      %s87 = ssub.s32 %s11, %s18
      %p88 = scmp.eq.s32.totalorder %s87, 0
      %s90 = sadd.s32 %s89, 1
      %s91 = scalar_select %p88, %s89, %s90
      %p94 = pneg %p88
      %p95 = scmp.eq.s32.totalorder %s11, 1
      %p96 = por %p94, %p95
      %p97 = scmp.ne.s32.totalorder %s89, %s92
      %p98 = scmp.eq.s32.totalorder %s11, 0
      %p99 = por %p97, %p98
      %p100 = scmp.ne.s32.totalorder %s89, %s92
      %p101 = scmp.eq.s32.totalorder %s16, 1
      %p102 = por %p100, %p101
      %p103 = scmp.ne.s32.totalorder %s92, %s93
      %p104 = scmp.eq.s32.totalorder %s16, 0
      %p105 = por %p103, %p104
      %p106 = scmp.ne.s32.totalorder %s92, %s93
      %p107 = scmp.eq.s32.totalorder %s17, 1
      %p108 = por %p106, %p107
      %p110 = scmp.ne.s32.totalorder %s93, %s109
      %p111 = scmp.eq.s32.totalorder %s17, 0
      %p112 = por %p110, %p111
      %p113 = scmp.le.s32.totalorder 1, %s11
      %p114 = scmp.lt.s32.totalorder %s11, 3
      %p115 = pnand %p113, %p114
      %p116 = pneg %p115
      // Predicated region
      $region9: #{net_mnist_forward.3} parent=5 // pred_check
        _
      $region10: #{net_mnist_forward.3} parent=5 // pred_check_branch
        %118 = sbr.rel (%p115) target = $region12
      $region11: #{net_mnist_forward.3} parent=5 // pred_region
        %s119 = ssub.s32 %s11, 1
        // Predicated region
        $region13: #{net_mnist_forward.3} parent=11 // pred_check
          %p120 = pneg %p58
        $region14: #{net_mnist_forward.3} parent=11 // pred_check_branch
          %122 = sbr.rel (%p120) target = $region16
        $region15: #{net_mnist_forward.3} parent=11 // pred_region
          %124 = vsyncadd [#allocation3], 0
          %s125 = sshll.u32 %s1, 4
          %s126 = int_to_ptr.hbm [resolvable:$true] %s125
          %s127 = sshll.u32 [#allocation2], 4
          %s128 = int_to_ptr.vmem [resolvable:$true] %s127
          %133 = dma.hbm_to_vmem [thread:$0]  %s126, 7680, %s128, [#allocation3], 192, 192, 12
        $region16: #{net_mnist_forward.3} parent=11 // pred_fallthru
          _
        // Predicated region
        $region17: #{net_mnist_forward.3} parent=11 // pred_check
          %p134 = pneg %p79
        $region18: #{net_mnist_forward.3} parent=11 // pred_check_branch
          %136 = sbr.rel (%p134) target = $region20
        $region19: #{net_mnist_forward.3} parent=11 // pred_region
          %138 = vsyncadd [#allocation5], 0
          %s140 = sshll.u32 %s2, 4
          %s141 = int_to_ptr.hbm [resolvable:$true] %s140
          %s142 = sshll.u32 [#allocation4], 4
          %s143 = int_to_ptr.vmem [resolvable:$true] %s142
          %145 = dma.hbm_to_vmem [thread:$0]  %s141, 48, %s143, [#allocation5]
        $region20: #{net_mnist_forward.3} parent=11 // pred_fallthru
          _
      $region12: #{net_mnist_forward.3} parent=5 // pred_fallthru
        _
      %p146 = scmp.lt.s32.totalorder %s11, 2
      // Predicated region
      $region21: #{net_mnist_forward.3} parent=5 // pred_check
        %p147 = pneg %p146
      $region22: #{net_mnist_forward.3} parent=5 // pred_check_branch
        %149 = sbr.rel (%p147) target = $region24
      $region23: #{net_mnist_forward.3} parent=5 // pred_region
        // Predicated region
        $region25: #{net_mnist_forward.3} parent=23 // pred_check
          %p150 = pneg %p31
        $region26: #{net_mnist_forward.3} parent=23 // pred_check_branch
          %152 = sbr.rel (%p150) target = $region28
        $region27: #{net_mnist_forward.3} parent=23 // pred_region
          %p153 = scmp.lt.s32.totalorder %s11, 1
          %s154 = scalar_select %p153, %s11, 1
          %s155 = smul.addr %s154, 4
          %s156 = smul.addr %s155, 8
          %s157 = scalar_lea.vmem %s0, %s156
        $region28: #{net_mnist_forward.3} parent=23 // pred_fallthru
          _
      $region24: #{net_mnist_forward.3} parent=5 // pred_fallthru
        _
      %p158 = scmp.le.s32.totalorder 1, %s11
      %p159 = scmp.lt.s32.totalorder %s11, 3
      %p160 = pnand %p158, %p159
      %p161 = pneg %p160
      // Predicated region
      $region29: #{net_mnist_forward.3} parent=5 // pred_check
        _
      $region30: #{net_mnist_forward.3} parent=5 // pred_check_branch
        %163 = sbr.rel (%p160) target = $region32
      $region31: #{net_mnist_forward.3} parent=5 // pred_region
        %s164 = ssub.s32 %s11, 1
        // Predicated region
        $region33: #{net_mnist_forward.3} parent=31 // pred_check
          %p165 = pneg %p58
        $region34: #{net_mnist_forward.3} parent=31 // pred_check_branch
          %167 = sbr.rel (%p165) target = $region36
        $region35: #{net_mnist_forward.3} parent=31 // pred_region
          %169 = dma.done [#allocation3], 7680
        $region36: #{net_mnist_forward.3} parent=31 // pred_fallthru
          _
        // Predicated region
        $region37: #{net_mnist_forward.3} parent=31 // pred_check
          %p170 = pneg %p79
        $region38: #{net_mnist_forward.3} parent=31 // pred_check_branch
          %172 = sbr.rel (%p170) target = $region40
        $region39: #{net_mnist_forward.3} parent=31 // pred_region
          %174 = dma.done [#allocation5], 48
        $region40: #{net_mnist_forward.3} parent=31 // pred_fallthru
          _
        %p175 = scmp.lt.s32.totalorder %s16, 1
        %s176 = scalar_select %p175, %s16, 1
        %s177 = smul.addr %s176, 4
        %s178 = smul.addr %s177, 8
        %s179 = scalar_lea.vmem %s0, %s178
        %p180 = pneg %p37
        %p181 = pneg %p34
        %p182 = pneg %p58
        %p183 = pneg %p55
        %p184 = pneg %p79
        %p185 = pneg %p76
        %p186 = pneg %p105
        %p187 = pneg %p102
        %p188 = scmp.lt.s32.totalorder %s16, 1
        %s189 = scalar_select %p188, %s16, 1
        %s190 = smul.addr %s189, 6
        %s191 = smul.addr %s190, 8
        %s192 = scalar_lea.vmem %s3, %s191
        %p193 = scmp.lt.s32.totalorder %s16, 1
        %s194 = scalar_select %p193, %s16, 1
        %s195 = smul.addr %s194, 4
        %s196 = smul.addr %s195, 8
        %s197 = scalar_lea.vmem %s0, %s196
        %p198 = scmp.lt.s32.totalorder %s16, 1
        %s199 = scalar_select %p198, %s16, 1
        %s200 = smul.addr %s199, 6
        %s201 = smul.addr %s200, 8
        %s202 = scalar_lea.vmem %s3, %s201
        %v204 = vld [vmem:[%s197] sm:$0xff]
        %v205 = vld [vmem:[%s197 + $0x8] sm:$0xff]
        %v206 = vld [vmem:[%s197 + $0x10] sm:$0xff]
        %v207 = vld [vmem:[%s197 + $0x18] sm:$0xf]
        %v208 = vpack.c.bf16 %v205, %v204
        %v209 = vpack.c.bf16 %v206, %v206
        %v210 = vld [vmem:[#allocation2] sm:$0xff]
        %v211 = vld [vmem:[#allocation2 + $0x8] sm:$0xf]
        %v212 = vld [vmem:[#allocation2 + $0xc] sm:$0xff]
        %v213 = vld [vmem:[#allocation2 + $0x14] sm:$0xf]
        %v214 = vld [vmem:[#allocation2 + $0x18] sm:$0xff]
        %v215 = vld [vmem:[#allocation2 + $0x20] sm:$0xf]
        %v216 = vld [vmem:[#allocation2 + $0x24] sm:$0x33]
        %v217 = vld [vmem:[#allocation2 + $0x2c] sm:$0x3]
        %s218 = scalar_lea.vmem [#allocation2], 48
        %v219 = vld [vmem:[%s218] sm:$0xff]
        %v220 = vld [vmem:[%s218 + $0x8] sm:$0xf]
        %v221 = vld [vmem:[%s218 + $0xc] sm:$0xff]
        %v222 = vld [vmem:[%s218 + $0x14] sm:$0xf]
        %v223 = vld [vmem:[%s218 + $0x18] sm:$0xff]
        %v224 = vld [vmem:[%s218 + $0x20] sm:$0xf]
        %v225 = vld [vmem:[%s218 + $0x24] sm:$0x33]
        %v226 = vld [vmem:[%s218 + $0x2c] sm:$0x3]
        %v227 = vpack.c.bf16 %v207, %v206
        %s228 = scalar_lea.vmem [#allocation2], 96
        %v229 = vld [vmem:[%s228] sm:$0xff]
        %v230 = vld [vmem:[%s228 + $0x8] sm:$0xf]
        %v231 = vld [vmem:[%s228 + $0xc] sm:$0xff]
        %v232 = vld [vmem:[%s228 + $0x14] sm:$0xf]
        %v233 = vld [vmem:[%s228 + $0x18] sm:$0xff]
        %v234 = vld [vmem:[%s228 + $0x20] sm:$0xf]
        %v235 = vld [vmem:[%s228 + $0x24] sm:$0x33]
        %v236 = vld [vmem:[%s228 + $0x2c] sm:$0x3]
        %vm237 = vsmask.f32 7424
        %v239 = vshrl.u32 %v208, 16
        %v241 = vshll.u32 %v208, 16
        %v243 = vrot.slane %v241, 1
        %v244 = vor.u32 %v239, %v243
        %v246 = vshll.u32 %v227, 16
        %v248 = vrot.slane %v246, 1
        %v249 = vsel %vm237, %v244, %v248
        %v250 = vshrl.u32 %v227, 16
        %v252 = vor.u32 %v250, %v248
        %v261 = vunpack.c.l.b16 %v229
        %v262 = vunpack.c.h.b16 %v229
        %v263 = vunpack.c.l.b16 %v230
        %v264 = vunpack.c.l.b16 %v231
        %v265 = vunpack.c.h.b16 %v231
        %v266 = vunpack.c.l.b16 %v232
        %v267 = vunpack.c.l.b16 %v233
        %v268 = vunpack.c.h.b16 %v233
        %v269 = vunpack.c.l.b16 %v234
        %v270 = vunpack.c.l.b16 %v235
        %v271 = vunpack.c.h.b16 %v235
        %v272 = vunpack.c.l.b16 %v236
        %v273 = vpack.c.b16 %v264, %v261
        %v274 = vpack.c.b16 %v265, %v262
        %v275 = vpack.c.b16 %v266, %v263
        %v276 = vpack.c.b16 %v270, %v267
        %v277 = vpack.c.b16 %v271, %v268
        %v278 = vpack.c.b16 %v272, %v269
        %vm282 = vcmask 228352
        %v284 = vsel %vm282, %v249, 0
        %v287 = vsel %vm282, %v252, 0
        %vm289 = vcmask 1045504
        %v291 = vsel %vm289, %v276, 0
        %v294 = vsel %vm289, %v277, 0
        %v297 = vsel %vm289, %v278, 0
        %299 = vmatpush.bf16.msra.mxu0 0
        %300 = vmatpush.bf16.msra.mxu0 0
        %301 = vmatpush.bf16.msra.mxu0 0
        %302 = vmatpush.bf16.msra.mxu0 0
        %303 = vmatpush.bf16.msra.mxu0 0
        %304 = vmatpush.bf16.msra.mxu0 0
        %305 = vmatpush.bf16.msra.mxu0 %v291
        %306 = vmatpush.bf16.msra.mxu0 %v273
        %307 = vmatmul.bf16.gmra.mxu0 %v284
        %v308 = vpop.f32.mrf.mxu0
        %v309 = vadd.f32 0.0, %v308
        %v310 = vpop.f32.mrf.mxu0
        %v311 = vadd.f32 0.0, %v310
        %312 = vmatmul.bf16.gmra.mxu0 %v287
        %v313 = vpop.f32.mrf.mxu0
        %v314 = vadd.f32 0.0, %v313
        %v315 = vpop.f32.mrf.mxu0
        %316 = vdwg.mxu0
        %317 = vmatpush.bf16.msra.mxu0 0
        %318 = vmatpush.bf16.msra.mxu0 0
        %319 = vmatpush.bf16.msra.mxu0 0
        %320 = vmatpush.bf16.msra.mxu0 0
        %321 = vmatpush.bf16.msra.mxu0 0
        %322 = vmatpush.bf16.msra.mxu0 0
        %323 = vmatpush.bf16.msra.mxu0 %v294
        %324 = vmatpush.bf16.msra.mxu0 %v274
        %325 = vmatmul.bf16.gmra.mxu0 %v284
        %v326 = vpop.f32.mrf.mxu0
        %v327 = vadd.f32 0.0, %v326
        %v328 = vpop.f32.mrf.mxu0
        %v329 = vadd.f32 0.0, %v328
        %330 = vmatmul.bf16.gmra.mxu0 %v287
        %v331 = vpop.f32.mrf.mxu0
        %v332 = vadd.f32 0.0, %v331
        %v333 = vpop.f32.mrf.mxu0
        %334 = vdwg.mxu0
        %335 = vmatpush.bf16.msra.mxu0 0
        %336 = vmatpush.bf16.msra.mxu0 0
        %337 = vmatpush.bf16.msra.mxu0 0
        %338 = vmatpush.bf16.msra.mxu0 0
        %339 = vmatpush.bf16.msra.mxu0 0
        %340 = vmatpush.bf16.msra.mxu0 0
        %341 = vmatpush.bf16.msra.mxu0 %v297
        %342 = vmatpush.bf16.msra.mxu0 %v275
        %343 = vmatmul.bf16.gmra.mxu0 %v284
        %v344 = vpop.f32.mrf.mxu0
        %v345 = vadd.f32 0.0, %v344
        %v346 = vpop.f32.mrf.mxu0
        %v347 = vadd.f32 0.0, %v346
        %348 = vmatmul.bf16.gmra.mxu0 %v287
        %v349 = vpop.f32.mrf.mxu0
        %v350 = vadd.f32 0.0, %v349
        %v351 = vpop.f32.mrf.mxu0
        %352 = vdwg.mxu0
        %v361 = vunpack.c.l.b16 %v210
        %v362 = vunpack.c.h.b16 %v210
        %v363 = vunpack.c.l.b16 %v211
        %v364 = vunpack.c.l.b16 %v212
        %v365 = vunpack.c.h.b16 %v212
        %v366 = vunpack.c.l.b16 %v213
        %v367 = vunpack.c.l.b16 %v214
        %v368 = vunpack.c.h.b16 %v214
        %v369 = vunpack.c.l.b16 %v215
        %v370 = vunpack.c.l.b16 %v216
        %v371 = vunpack.c.h.b16 %v216
        %v372 = vunpack.c.l.b16 %v217
        %v373 = vpack.c.b16 %v364, %v361
        %v374 = vpack.c.b16 %v365, %v362
        %v375 = vpack.c.b16 %v366, %v363
        %v376 = vpack.c.b16 %v370, %v367
        %v377 = vpack.c.b16 %v371, %v368
        %v378 = vpack.c.b16 %v372, %v369
        %v382 = vsel %vm282, %v208, 0
        %v385 = vsel %vm282, %v209, 0
        %v388 = vsel %vm289, %v376, 0
        %v391 = vsel %vm289, %v377, 0
        %v394 = vsel %vm289, %v378, 0
        %396 = vmatpush.bf16.msra.mxu0 0
        %397 = vmatpush.bf16.msra.mxu0 0
        %398 = vmatpush.bf16.msra.mxu0 0
        %399 = vmatpush.bf16.msra.mxu0 0
        %400 = vmatpush.bf16.msra.mxu0 0
        %401 = vmatpush.bf16.msra.mxu0 0
        %402 = vmatpush.bf16.msra.mxu0 %v388
        %403 = vmatpush.bf16.msra.mxu0 %v373
        %404 = vmatmul.bf16.gmra.mxu0 %v382
        %v405 = vpop.f32.mrf.mxu0
        %v406 = vadd.f32 %v309, %v405
        %v407 = vpop.f32.mrf.mxu0
        %v408 = vadd.f32 %v311, %v407
        %409 = vmatmul.bf16.gmra.mxu0 %v385
        %v410 = vpop.f32.mrf.mxu0
        %v411 = vadd.f32 %v314, %v410
        %v412 = vpop.f32.mrf.mxu0
        %413 = vdwg.mxu0
        %414 = vmatpush.bf16.msra.mxu0 0
        %415 = vmatpush.bf16.msra.mxu0 0
        %416 = vmatpush.bf16.msra.mxu0 0
        %417 = vmatpush.bf16.msra.mxu0 0
        %418 = vmatpush.bf16.msra.mxu0 0
        %419 = vmatpush.bf16.msra.mxu0 0
        %420 = vmatpush.bf16.msra.mxu0 %v391
        %421 = vmatpush.bf16.msra.mxu0 %v374
        %422 = vmatmul.bf16.gmra.mxu0 %v382
        %v423 = vpop.f32.mrf.mxu0
        %v424 = vadd.f32 %v327, %v423
        %v425 = vpop.f32.mrf.mxu0
        %v426 = vadd.f32 %v329, %v425
        %427 = vmatmul.bf16.gmra.mxu0 %v385
        %v428 = vpop.f32.mrf.mxu0
        %v429 = vadd.f32 %v332, %v428
        %v430 = vpop.f32.mrf.mxu0
        %431 = vdwg.mxu0
        %432 = vmatpush.bf16.msra.mxu0 0
        %433 = vmatpush.bf16.msra.mxu0 0
        %434 = vmatpush.bf16.msra.mxu0 0
        %435 = vmatpush.bf16.msra.mxu0 0
        %436 = vmatpush.bf16.msra.mxu0 0
        %437 = vmatpush.bf16.msra.mxu0 0
        %438 = vmatpush.bf16.msra.mxu0 %v394
        %439 = vmatpush.bf16.msra.mxu0 %v375
        %440 = vmatmul.bf16.gmra.mxu0 %v382
        %v441 = vpop.f32.mrf.mxu0
        %v442 = vadd.f32 %v345, %v441
        %v443 = vpop.f32.mrf.mxu0
        %v444 = vadd.f32 %v347, %v443
        %445 = vmatmul.bf16.gmra.mxu0 %v385
        %v446 = vpop.f32.mrf.mxu0
        %v447 = vadd.f32 %v350, %v446
        %v448 = vpop.f32.mrf.mxu0
        %449 = vdwg.mxu0
        %s450 = scalar_lea.vmem [#allocation2], 144
        %v451 = vld [vmem:[%s450] sm:$0xff]
        %v452 = vld [vmem:[%s450 + $0x8] sm:$0xf]
        %v453 = vld [vmem:[%s450 + $0xc] sm:$0xff]
        %v454 = vld [vmem:[%s450 + $0x14] sm:$0xf]
        %v455 = vld [vmem:[%s450 + $0x18] sm:$0xff]
        %v456 = vld [vmem:[%s450 + $0x20] sm:$0xf]
        %v457 = vld [vmem:[%s450 + $0x24] sm:$0x33]
        %v458 = vld [vmem:[%s450 + $0x2c] sm:$0x3]
        %v467 = vunpack.c.l.b16 %v451
        %v468 = vunpack.c.h.b16 %v451
        %v469 = vunpack.c.l.b16 %v452
        %v470 = vunpack.c.l.b16 %v453
        %v471 = vunpack.c.h.b16 %v453
        %v472 = vunpack.c.l.b16 %v454
        %v473 = vunpack.c.l.b16 %v455
        %v474 = vunpack.c.h.b16 %v455
        %v475 = vunpack.c.l.b16 %v456
        %v476 = vunpack.c.l.b16 %v457
        %v477 = vunpack.c.h.b16 %v457
        %v478 = vunpack.c.l.b16 %v458
        %v479 = vpack.c.b16 %v470, %v467
        %v480 = vpack.c.b16 %v471, %v468
        %v481 = vpack.c.b16 %v472, %v469
        %v482 = vpack.c.b16 %v476, %v473
        %v483 = vpack.c.b16 %v477, %v474
        %v484 = vpack.c.b16 %v478, %v475
        %v489 = vsel %vm289, %v482, 0
        %v492 = vsel %vm289, %v483, 0
        %v495 = vsel %vm289, %v484, 0
        %497 = vmatpush.bf16.msra.mxu0 0
        %498 = vmatpush.bf16.msra.mxu0 0
        %499 = vmatpush.bf16.msra.mxu0 0
        %500 = vmatpush.bf16.msra.mxu0 0
        %501 = vmatpush.bf16.msra.mxu0 0
        %502 = vmatpush.bf16.msra.mxu0 0
        %503 = vmatpush.bf16.msra.mxu0 %v489
        %504 = vmatpush.bf16.msra.mxu0 %v479
        %505 = vmatmul.bf16.gmra.mxu0 %v284
        %v506 = vpop.f32.mrf.mxu0
        %v507 = vadd.f32 0.0, %v506
        %v508 = vpop.f32.mrf.mxu0
        %v509 = vadd.f32 0.0, %v508
        %510 = vmatmul.bf16.gmra.mxu0 %v287
        %v511 = vpop.f32.mrf.mxu0
        %v512 = vadd.f32 0.0, %v511
        %v513 = vpop.f32.mrf.mxu0
        %514 = vdwg.mxu0
        %515 = vmatpush.bf16.msra.mxu0 0
        %516 = vmatpush.bf16.msra.mxu0 0
        %517 = vmatpush.bf16.msra.mxu0 0
        %518 = vmatpush.bf16.msra.mxu0 0
        %519 = vmatpush.bf16.msra.mxu0 0
        %520 = vmatpush.bf16.msra.mxu0 0
        %521 = vmatpush.bf16.msra.mxu0 %v492
        %522 = vmatpush.bf16.msra.mxu0 %v480
        %523 = vmatmul.bf16.gmra.mxu0 %v284
        %v524 = vpop.f32.mrf.mxu0
        %v525 = vadd.f32 0.0, %v524
        %v526 = vpop.f32.mrf.mxu0
        %v527 = vadd.f32 0.0, %v526
        %528 = vmatmul.bf16.gmra.mxu0 %v287
        %v529 = vpop.f32.mrf.mxu0
        %v530 = vadd.f32 0.0, %v529
        %v531 = vpop.f32.mrf.mxu0
        %532 = vdwg.mxu0
        %533 = vmatpush.bf16.msra.mxu0 0
        %534 = vmatpush.bf16.msra.mxu0 0
        %535 = vmatpush.bf16.msra.mxu0 0
        %536 = vmatpush.bf16.msra.mxu0 0
        %537 = vmatpush.bf16.msra.mxu0 0
        %538 = vmatpush.bf16.msra.mxu0 0
        %539 = vmatpush.bf16.msra.mxu0 %v495
        %540 = vmatpush.bf16.msra.mxu0 %v481
        %541 = vmatmul.bf16.gmra.mxu0 %v284
        %v542 = vpop.f32.mrf.mxu0
        %v543 = vadd.f32 0.0, %v542
        %v544 = vpop.f32.mrf.mxu0
        %v545 = vadd.f32 0.0, %v544
        %546 = vmatmul.bf16.gmra.mxu0 %v287
        %v547 = vpop.f32.mrf.mxu0
        %v548 = vadd.f32 0.0, %v547
        %v549 = vpop.f32.mrf.mxu0
        %550 = vdwg.mxu0
        %v559 = vunpack.c.l.b16 %v219
        %v560 = vunpack.c.h.b16 %v219
        %v561 = vunpack.c.l.b16 %v220
        %v562 = vunpack.c.l.b16 %v221
        %v563 = vunpack.c.h.b16 %v221
        %v564 = vunpack.c.l.b16 %v222
        %v565 = vunpack.c.l.b16 %v223
        %v566 = vunpack.c.h.b16 %v223
        %v567 = vunpack.c.l.b16 %v224
        %v568 = vunpack.c.l.b16 %v225
        %v569 = vunpack.c.h.b16 %v225
        %v570 = vunpack.c.l.b16 %v226
        %v571 = vpack.c.b16 %v562, %v559
        %v572 = vpack.c.b16 %v563, %v560
        %v573 = vpack.c.b16 %v564, %v561
        %v574 = vpack.c.b16 %v568, %v565
        %v575 = vpack.c.b16 %v569, %v566
        %v576 = vpack.c.b16 %v570, %v567
        %v581 = vsel %vm289, %v574, 0
        %v584 = vsel %vm289, %v575, 0
        %v587 = vsel %vm289, %v576, 0
        %589 = vmatpush.bf16.msra.mxu0 0
        %590 = vmatpush.bf16.msra.mxu0 0
        %591 = vmatpush.bf16.msra.mxu0 0
        %592 = vmatpush.bf16.msra.mxu0 0
        %593 = vmatpush.bf16.msra.mxu0 0
        %594 = vmatpush.bf16.msra.mxu0 0
        %595 = vmatpush.bf16.msra.mxu0 %v581
        %596 = vmatpush.bf16.msra.mxu0 %v571
        %597 = vmatmul.bf16.gmra.mxu0 %v382
        %v598 = vpop.f32.mrf.mxu0
        %v599 = vadd.f32 %v507, %v598
        %v600 = vpop.f32.mrf.mxu0
        %v601 = vadd.f32 %v509, %v600
        %602 = vmatmul.bf16.gmra.mxu0 %v385
        %v603 = vpop.f32.mrf.mxu0
        %v604 = vadd.f32 %v512, %v603
        %v605 = vpop.f32.mrf.mxu0
        %606 = vdwg.mxu0
        %607 = vmatpush.bf16.msra.mxu0 0
        %608 = vmatpush.bf16.msra.mxu0 0
        %609 = vmatpush.bf16.msra.mxu0 0
        %610 = vmatpush.bf16.msra.mxu0 0
        %611 = vmatpush.bf16.msra.mxu0 0
        %612 = vmatpush.bf16.msra.mxu0 0
        %613 = vmatpush.bf16.msra.mxu0 %v584
        %614 = vmatpush.bf16.msra.mxu0 %v572
        %615 = vmatmul.bf16.gmra.mxu0 %v382
        %v616 = vpop.f32.mrf.mxu0
        %v617 = vadd.f32 %v525, %v616
        %v618 = vpop.f32.mrf.mxu0
        %v619 = vadd.f32 %v527, %v618
        %620 = vmatmul.bf16.gmra.mxu0 %v385
        %v621 = vpop.f32.mrf.mxu0
        %v622 = vadd.f32 %v530, %v621
        %v623 = vpop.f32.mrf.mxu0
        %624 = vdwg.mxu0
        %625 = vmatpush.bf16.msra.mxu0 0
        %626 = vmatpush.bf16.msra.mxu0 0
        %627 = vmatpush.bf16.msra.mxu0 0
        %628 = vmatpush.bf16.msra.mxu0 0
        %629 = vmatpush.bf16.msra.mxu0 0
        %630 = vmatpush.bf16.msra.mxu0 0
        %631 = vmatpush.bf16.msra.mxu0 %v587
        %632 = vmatpush.bf16.msra.mxu0 %v573
        %633 = vmatmul.bf16.gmra.mxu0 %v382
        %v634 = vpop.f32.mrf.mxu0
        %v635 = vadd.f32 %v543, %v634
        %v636 = vpop.f32.mrf.mxu0
        %v637 = vadd.f32 %v545, %v636
        %638 = vmatmul.bf16.gmra.mxu0 %v385
        %v639 = vpop.f32.mrf.mxu0
        %v640 = vadd.f32 %v548, %v639
        %v641 = vpop.f32.mrf.mxu0
        %642 = vdwg.mxu0
        %s643 = scalar_lea.vmem [#allocation2], 192
        %v644 = vld [vmem:[%s643] sm:$0xff]
        %v645 = vld [vmem:[%s643 + $0x8] sm:$0xf]
        %v646 = vld [vmem:[%s643 + $0xc] sm:$0xff]
        %v647 = vld [vmem:[%s643 + $0x14] sm:$0xf]
        %v648 = vld [vmem:[%s643 + $0x18] sm:$0xff]
        %v649 = vld [vmem:[%s643 + $0x20] sm:$0xf]
        %v650 = vld [vmem:[%s643 + $0x24] sm:$0x33]
        %v651 = vld [vmem:[%s643 + $0x2c] sm:$0x3]
        %vm654 = vcmask 1046528
        %v655 = vrot.slane %v208, 1
        %v656 = vrot.slane %v227, 1
        %v657 = vsel %vm654, %v655, %v656
        %v666 = vunpack.c.l.b16 %v644
        %v667 = vunpack.c.h.b16 %v644
        %v668 = vunpack.c.l.b16 %v645
        %v669 = vunpack.c.l.b16 %v646
        %v670 = vunpack.c.h.b16 %v646
        %v671 = vunpack.c.l.b16 %v647
        %v672 = vunpack.c.l.b16 %v648
        %v673 = vunpack.c.h.b16 %v648
        %v674 = vunpack.c.l.b16 %v649
        %v675 = vunpack.c.l.b16 %v650
        %v676 = vunpack.c.h.b16 %v650
        %v677 = vunpack.c.l.b16 %v651
        %v678 = vpack.c.b16 %v669, %v666
        %v679 = vpack.c.b16 %v670, %v667
        %v680 = vpack.c.b16 %v671, %v668
        %v681 = vpack.c.b16 %v675, %v672
        %v682 = vpack.c.b16 %v676, %v673
        %v683 = vpack.c.b16 %v677, %v674
        %v688 = vsel %vm282, %v657, 0
        %v691 = vsel %vm282, %v656, 0
        %v694 = vsel %vm289, %v681, 0
        %v697 = vsel %vm289, %v682, 0
        %v700 = vsel %vm289, %v683, 0
        %702 = vmatpush.bf16.msra.mxu0 0
        %703 = vmatpush.bf16.msra.mxu0 0
        %704 = vmatpush.bf16.msra.mxu0 0
        %705 = vmatpush.bf16.msra.mxu0 0
        %706 = vmatpush.bf16.msra.mxu0 0
        %707 = vmatpush.bf16.msra.mxu0 0
        %708 = vmatpush.bf16.msra.mxu0 %v694
        %709 = vmatpush.bf16.msra.mxu0 %v678
        %710 = vmatmul.bf16.gmra.mxu0 %v688
        %v711 = vpop.f32.mrf.mxu0
        %v712 = vadd.f32 0.0, %v711
        %v713 = vpop.f32.mrf.mxu0
        %v714 = vadd.f32 0.0, %v713
        %715 = vmatmul.bf16.gmra.mxu0 %v691
        %v716 = vpop.f32.mrf.mxu0
        %v717 = vadd.f32 0.0, %v716
        %v718 = vpop.f32.mrf.mxu0
        %719 = vdwg.mxu0
        %720 = vmatpush.bf16.msra.mxu0 0
        %721 = vmatpush.bf16.msra.mxu0 0
        %722 = vmatpush.bf16.msra.mxu0 0
        %723 = vmatpush.bf16.msra.mxu0 0
        %724 = vmatpush.bf16.msra.mxu0 0
        %725 = vmatpush.bf16.msra.mxu0 0
        %726 = vmatpush.bf16.msra.mxu0 %v697
        %727 = vmatpush.bf16.msra.mxu0 %v679
        %728 = vmatmul.bf16.gmra.mxu0 %v688
        %v729 = vpop.f32.mrf.mxu0
        %v730 = vadd.f32 0.0, %v729
        %v731 = vpop.f32.mrf.mxu0
        %v732 = vadd.f32 0.0, %v731
        %733 = vmatmul.bf16.gmra.mxu0 %v691
        %v734 = vpop.f32.mrf.mxu0
        %v735 = vadd.f32 0.0, %v734
        %v736 = vpop.f32.mrf.mxu0
        %737 = vdwg.mxu0
        %738 = vmatpush.bf16.msra.mxu0 0
        %739 = vmatpush.bf16.msra.mxu0 0
        %740 = vmatpush.bf16.msra.mxu0 0
        %741 = vmatpush.bf16.msra.mxu0 0
        %742 = vmatpush.bf16.msra.mxu0 0
        %743 = vmatpush.bf16.msra.mxu0 0
        %744 = vmatpush.bf16.msra.mxu0 %v700
        %745 = vmatpush.bf16.msra.mxu0 %v680
        %746 = vmatmul.bf16.gmra.mxu0 %v688
        %v747 = vpop.f32.mrf.mxu0
        %v748 = vadd.f32 0.0, %v747
        %v749 = vpop.f32.mrf.mxu0
        %v750 = vadd.f32 0.0, %v749
        %751 = vmatmul.bf16.gmra.mxu0 %v691
        %v752 = vpop.f32.mrf.mxu0
        %v753 = vadd.f32 0.0, %v752
        %v754 = vpop.f32.mrf.mxu0
        %755 = vdwg.mxu0
        %v756 = vadd.f32 %v406, %v712
        %v757 = vadd.f32 %v424, %v730
        %v758 = vadd.f32 %v442, %v748
        %v759 = vadd.f32 %v408, %v714
        %v760 = vadd.f32 %v426, %v732
        %v761 = vadd.f32 %v444, %v750
        %v762 = vadd.f32 %v411, %v717
        %v763 = vadd.f32 %v429, %v735
        %v764 = vadd.f32 %v447, %v753
        %s765 = scalar_lea.vmem [#allocation2], 240
        %v766 = vld [vmem:[%s765] sm:$0xff]
        %v767 = vld [vmem:[%s765 + $0x8] sm:$0xf]
        %v768 = vld [vmem:[%s765 + $0xc] sm:$0xff]
        %v769 = vld [vmem:[%s765 + $0x14] sm:$0xf]
        %v770 = vld [vmem:[%s765 + $0x18] sm:$0xff]
        %v771 = vld [vmem:[%s765 + $0x20] sm:$0xf]
        %v772 = vld [vmem:[%s765 + $0x24] sm:$0x33]
        %v773 = vld [vmem:[%s765 + $0x2c] sm:$0x3]
        %v782 = vunpack.c.l.b16 %v766
        %v783 = vunpack.c.h.b16 %v766
        %v784 = vunpack.c.l.b16 %v767
        %v785 = vunpack.c.l.b16 %v768
        %v786 = vunpack.c.h.b16 %v768
        %v787 = vunpack.c.l.b16 %v769
        %v788 = vunpack.c.l.b16 %v770
        %v789 = vunpack.c.h.b16 %v770
        %v790 = vunpack.c.l.b16 %v771
        %v791 = vunpack.c.l.b16 %v772
        %v792 = vunpack.c.h.b16 %v772
        %v793 = vunpack.c.l.b16 %v773
        %v794 = vpack.c.b16 %v785, %v782
        %v795 = vpack.c.b16 %v786, %v783
        %v796 = vpack.c.b16 %v787, %v784
        %v797 = vpack.c.b16 %v791, %v788
        %v798 = vpack.c.b16 %v792, %v789
        %v799 = vpack.c.b16 %v793, %v790
        %v804 = vsel %vm289, %v797, 0
        %v807 = vsel %vm289, %v798, 0
        %v810 = vsel %vm289, %v799, 0
        %812 = vmatpush.bf16.msra.mxu0 0
        %813 = vmatpush.bf16.msra.mxu0 0
        %814 = vmatpush.bf16.msra.mxu0 0
        %815 = vmatpush.bf16.msra.mxu0 0
        %816 = vmatpush.bf16.msra.mxu0 0
        %817 = vmatpush.bf16.msra.mxu0 0
        %818 = vmatpush.bf16.msra.mxu0 %v804
        %819 = vmatpush.bf16.msra.mxu0 %v794
        %820 = vmatmul.bf16.gmra.mxu0 %v688
        %v821 = vpop.f32.mrf.mxu0
        %v822 = vadd.f32 0.0, %v821
        %v823 = vpop.f32.mrf.mxu0
        %v824 = vadd.f32 0.0, %v823
        %825 = vmatmul.bf16.gmra.mxu0 %v691
        %v826 = vpop.f32.mrf.mxu0
        %v827 = vadd.f32 0.0, %v826
        %v828 = vpop.f32.mrf.mxu0
        %829 = vdwg.mxu0
        %830 = vmatpush.bf16.msra.mxu0 0
        %831 = vmatpush.bf16.msra.mxu0 0
        %832 = vmatpush.bf16.msra.mxu0 0
        %833 = vmatpush.bf16.msra.mxu0 0
        %834 = vmatpush.bf16.msra.mxu0 0
        %835 = vmatpush.bf16.msra.mxu0 0
        %836 = vmatpush.bf16.msra.mxu0 %v807
        %837 = vmatpush.bf16.msra.mxu0 %v795
        %838 = vmatmul.bf16.gmra.mxu0 %v688
        %v839 = vpop.f32.mrf.mxu0
        %v840 = vadd.f32 0.0, %v839
        %v841 = vpop.f32.mrf.mxu0
        %v842 = vadd.f32 0.0, %v841
        %843 = vmatmul.bf16.gmra.mxu0 %v691
        %v844 = vpop.f32.mrf.mxu0
        %v845 = vadd.f32 0.0, %v844
        %v846 = vpop.f32.mrf.mxu0
        %847 = vdwg.mxu0
        %848 = vmatpush.bf16.msra.mxu0 0
        %849 = vmatpush.bf16.msra.mxu0 0
        %850 = vmatpush.bf16.msra.mxu0 0
        %851 = vmatpush.bf16.msra.mxu0 0
        %852 = vmatpush.bf16.msra.mxu0 0
        %853 = vmatpush.bf16.msra.mxu0 0
        %854 = vmatpush.bf16.msra.mxu0 %v810
        %855 = vmatpush.bf16.msra.mxu0 %v796
        %856 = vmatmul.bf16.gmra.mxu0 %v688
        %v857 = vpop.f32.mrf.mxu0
        %v858 = vadd.f32 0.0, %v857
        %v859 = vpop.f32.mrf.mxu0
        %v860 = vadd.f32 0.0, %v859
        %861 = vmatmul.bf16.gmra.mxu0 %v691
        %v862 = vpop.f32.mrf.mxu0
        %v863 = vadd.f32 0.0, %v862
        %v864 = vpop.f32.mrf.mxu0
        %865 = vdwg.mxu0
        %v866 = vadd.f32 %v599, %v822
        %v867 = vadd.f32 %v617, %v840
        %v868 = vadd.f32 %v635, %v858
        %v869 = vadd.f32 %v601, %v824
        %v870 = vadd.f32 %v619, %v842
        %v871 = vadd.f32 %v637, %v860
        %v872 = vadd.f32 %v604, %v827
        %v873 = vadd.f32 %v622, %v845
        %v874 = vadd.f32 %v640, %v863
        %s875 = scalar_lea.vmem [#allocation2], 288
        %v876 = vld [vmem:[%s875] sm:$0xff]
        %v877 = vld [vmem:[%s875 + $0x8] sm:$0xf]
        %v878 = vld [vmem:[%s875 + $0xc] sm:$0xff]
        %v879 = vld [vmem:[%s875 + $0x14] sm:$0xf]
        %v880 = vld [vmem:[%s875 + $0x18] sm:$0xff]
        %v881 = vld [vmem:[%s875 + $0x20] sm:$0xf]
        %v882 = vld [vmem:[%s875 + $0x24] sm:$0x33]
        %v883 = vld [vmem:[%s875 + $0x2c] sm:$0x3]
        %vm884 = vsmask.f32 6400
        %v885 = vrot.slane %v239, 1
        %v886 = vrot.slane %v241, 2
        %v887 = vor.u32 %v885, %v886
        %v888 = vrot.slane %v250, 1
        %v889 = vrot.slane %v246, 2
        %v890 = vor.u32 %v888, %v889
        %v891 = vsel %vm884, %v887, %v890
        %v900 = vunpack.c.l.b16 %v876
        %v901 = vunpack.c.h.b16 %v876
        %v902 = vunpack.c.l.b16 %v877
        %v903 = vunpack.c.l.b16 %v878
        %v904 = vunpack.c.h.b16 %v878
        %v905 = vunpack.c.l.b16 %v879
        %v906 = vunpack.c.l.b16 %v880
        %v907 = vunpack.c.h.b16 %v880
        %v908 = vunpack.c.l.b16 %v881
        %v909 = vunpack.c.l.b16 %v882
        %v910 = vunpack.c.h.b16 %v882
        %v911 = vunpack.c.l.b16 %v883
        %v912 = vpack.c.b16 %v903, %v900
        %v913 = vpack.c.b16 %v904, %v901
        %v914 = vpack.c.b16 %v905, %v902
        %v915 = vpack.c.b16 %v909, %v906
        %v916 = vpack.c.b16 %v910, %v907
        %v917 = vpack.c.b16 %v911, %v908
        %v922 = vsel %vm282, %v891, 0
        %v925 = vsel %vm282, %v890, 0
        %v928 = vsel %vm289, %v915, 0
        %v931 = vsel %vm289, %v916, 0
        %v934 = vsel %vm289, %v917, 0
        %936 = vmatpush.bf16.msra.mxu0 0
        %937 = vmatpush.bf16.msra.mxu0 0
        %938 = vmatpush.bf16.msra.mxu0 0
        %939 = vmatpush.bf16.msra.mxu0 0
        %940 = vmatpush.bf16.msra.mxu0 0
        %941 = vmatpush.bf16.msra.mxu0 0
        %942 = vmatpush.bf16.msra.mxu0 %v928
        %943 = vmatpush.bf16.msra.mxu0 %v912
        %944 = vmatmul.bf16.gmra.mxu0 %v922
        %v945 = vpop.f32.mrf.mxu0
        %v946 = vadd.f32 0.0, %v945
        %v947 = vpop.f32.mrf.mxu0
        %v948 = vadd.f32 0.0, %v947
        %949 = vmatmul.bf16.gmra.mxu0 %v925
        %v950 = vpop.f32.mrf.mxu0
        %v951 = vadd.f32 0.0, %v950
        %v952 = vpop.f32.mrf.mxu0
        %953 = vdwg.mxu0
        %954 = vmatpush.bf16.msra.mxu0 0
        %955 = vmatpush.bf16.msra.mxu0 0
        %956 = vmatpush.bf16.msra.mxu0 0
        %957 = vmatpush.bf16.msra.mxu0 0
        %958 = vmatpush.bf16.msra.mxu0 0
        %959 = vmatpush.bf16.msra.mxu0 0
        %960 = vmatpush.bf16.msra.mxu0 %v931
        %961 = vmatpush.bf16.msra.mxu0 %v913
        %962 = vmatmul.bf16.gmra.mxu0 %v922
        %v963 = vpop.f32.mrf.mxu0
        %v964 = vadd.f32 0.0, %v963
        %v965 = vpop.f32.mrf.mxu0
        %v966 = vadd.f32 0.0, %v965
        %967 = vmatmul.bf16.gmra.mxu0 %v925
        %v968 = vpop.f32.mrf.mxu0
        %v969 = vadd.f32 0.0, %v968
        %v970 = vpop.f32.mrf.mxu0
        %971 = vdwg.mxu0
        %972 = vmatpush.bf16.msra.mxu0 0
        %973 = vmatpush.bf16.msra.mxu0 0
        %974 = vmatpush.bf16.msra.mxu0 0
        %975 = vmatpush.bf16.msra.mxu0 0
        %976 = vmatpush.bf16.msra.mxu0 0
        %977 = vmatpush.bf16.msra.mxu0 0
        %978 = vmatpush.bf16.msra.mxu0 %v934
        %979 = vmatpush.bf16.msra.mxu0 %v914
        %980 = vmatmul.bf16.gmra.mxu0 %v922
        %v981 = vpop.f32.mrf.mxu0
        %v982 = vadd.f32 0.0, %v981
        %v983 = vpop.f32.mrf.mxu0
        %v984 = vadd.f32 0.0, %v983
        %985 = vmatmul.bf16.gmra.mxu0 %v925
        %v986 = vpop.f32.mrf.mxu0
        %v987 = vadd.f32 0.0, %v986
        %v988 = vpop.f32.mrf.mxu0
        %989 = vdwg.mxu0
        %v990 = vadd.f32 %v756, %v946
        %v991 = vadd.f32 %v757, %v964
        %v992 = vadd.f32 %v758, %v982
        %v993 = vadd.f32 %v759, %v948
        %v994 = vadd.f32 %v760, %v966
        %v995 = vadd.f32 %v761, %v984
        %v996 = vadd.f32 %v762, %v951
        %v997 = vadd.f32 %v763, %v969
        %v998 = vadd.f32 %v764, %v987
        %s999 = scalar_lea.vmem [#allocation2], 336
        %v1000 = vld [vmem:[%s999] sm:$0xff]
        %v1001 = vld [vmem:[%s999 + $0x8] sm:$0xf]
        %v1002 = vld [vmem:[%s999 + $0xc] sm:$0xff]
        %v1003 = vld [vmem:[%s999 + $0x14] sm:$0xf]
        %v1004 = vld [vmem:[%s999 + $0x18] sm:$0xff]
        %v1005 = vld [vmem:[%s999 + $0x20] sm:$0xf]
        %v1006 = vld [vmem:[%s999 + $0x24] sm:$0x33]
        %v1007 = vld [vmem:[%s999 + $0x2c] sm:$0x3]
        %v1016 = vunpack.c.l.b16 %v1000
        %v1017 = vunpack.c.h.b16 %v1000
        %v1018 = vunpack.c.l.b16 %v1001
        %v1019 = vunpack.c.l.b16 %v1002
        %v1020 = vunpack.c.h.b16 %v1002
        %v1021 = vunpack.c.l.b16 %v1003
        %v1022 = vunpack.c.l.b16 %v1004
        %v1023 = vunpack.c.h.b16 %v1004
        %v1024 = vunpack.c.l.b16 %v1005
        %v1025 = vunpack.c.l.b16 %v1006
        %v1026 = vunpack.c.h.b16 %v1006
        %v1027 = vunpack.c.l.b16 %v1007
        %v1028 = vpack.c.b16 %v1019, %v1016
        %v1029 = vpack.c.b16 %v1020, %v1017
        %v1030 = vpack.c.b16 %v1021, %v1018
        %v1031 = vpack.c.b16 %v1025, %v1022
        %v1032 = vpack.c.b16 %v1026, %v1023
        %v1033 = vpack.c.b16 %v1027, %v1024
        %v1038 = vsel %vm289, %v1031, 0
        %v1041 = vsel %vm289, %v1032, 0
        %v1044 = vsel %vm289, %v1033, 0
        %1046 = vmatpush.bf16.msra.mxu0 0
        %1047 = vmatpush.bf16.msra.mxu0 0
        %1048 = vmatpush.bf16.msra.mxu0 0
        %1049 = vmatpush.bf16.msra.mxu0 0
        %1050 = vmatpush.bf16.msra.mxu0 0
        %1051 = vmatpush.bf16.msra.mxu0 0
        %1052 = vmatpush.bf16.msra.mxu0 %v1038
        %1053 = vmatpush.bf16.msra.mxu0 %v1028
        %1054 = vmatmul.bf16.gmra.mxu0 %v922
        %v1055 = vpop.f32.mrf.mxu0
        %v1056 = vadd.f32 0.0, %v1055
        %v1057 = vpop.f32.mrf.mxu0
        %v1058 = vadd.f32 0.0, %v1057
        %1059 = vmatmul.bf16.gmra.mxu0 %v925
        %v1060 = vpop.f32.mrf.mxu0
        %v1061 = vadd.f32 0.0, %v1060
        %v1062 = vpop.f32.mrf.mxu0
        %1063 = vdwg.mxu0
        %1064 = vmatpush.bf16.msra.mxu0 0
        %1065 = vmatpush.bf16.msra.mxu0 0
        %1066 = vmatpush.bf16.msra.mxu0 0
        %1067 = vmatpush.bf16.msra.mxu0 0
        %1068 = vmatpush.bf16.msra.mxu0 0
        %1069 = vmatpush.bf16.msra.mxu0 0
        %1070 = vmatpush.bf16.msra.mxu0 %v1041
        %1071 = vmatpush.bf16.msra.mxu0 %v1029
        %1072 = vmatmul.bf16.gmra.mxu0 %v922
        %v1073 = vpop.f32.mrf.mxu0
        %v1074 = vadd.f32 0.0, %v1073
        %v1075 = vpop.f32.mrf.mxu0
        %v1076 = vadd.f32 0.0, %v1075
        %1077 = vmatmul.bf16.gmra.mxu0 %v925
        %v1078 = vpop.f32.mrf.mxu0
        %v1079 = vadd.f32 0.0, %v1078
        %v1080 = vpop.f32.mrf.mxu0
        %1081 = vdwg.mxu0
        %1082 = vmatpush.bf16.msra.mxu0 0
        %1083 = vmatpush.bf16.msra.mxu0 0
        %1084 = vmatpush.bf16.msra.mxu0 0
        %1085 = vmatpush.bf16.msra.mxu0 0
        %1086 = vmatpush.bf16.msra.mxu0 0
        %1087 = vmatpush.bf16.msra.mxu0 0
        %1088 = vmatpush.bf16.msra.mxu0 %v1044
        %1089 = vmatpush.bf16.msra.mxu0 %v1030
        %1090 = vmatmul.bf16.gmra.mxu0 %v922
        %v1091 = vpop.f32.mrf.mxu0
        %v1092 = vadd.f32 0.0, %v1091
        %v1093 = vpop.f32.mrf.mxu0
        %v1094 = vadd.f32 0.0, %v1093
        %1095 = vmatmul.bf16.gmra.mxu0 %v925
        %v1096 = vpop.f32.mrf.mxu0
        %v1097 = vadd.f32 0.0, %v1096
        %v1098 = vpop.f32.mrf.mxu0
        %1099 = vdwg.mxu0
        %v1100 = vadd.f32 %v866, %v1056
        %v1101 = vadd.f32 %v867, %v1074
        %v1102 = vadd.f32 %v868, %v1092
        %v1103 = vadd.f32 %v869, %v1058
        %v1104 = vadd.f32 %v870, %v1076
        %v1105 = vadd.f32 %v871, %v1094
        %v1106 = vadd.f32 %v872, %v1061
        %v1107 = vadd.f32 %v873, %v1079
        %v1108 = vadd.f32 %v874, %v1097
        %s1109 = scalar_lea.vmem [#allocation2], 384
        %v1110 = vld [vmem:[%s1109] sm:$0xff]
        %v1111 = vld [vmem:[%s1109 + $0x8] sm:$0xf]
        %v1112 = vld [vmem:[%s1109 + $0xc] sm:$0xff]
        %v1113 = vld [vmem:[%s1109 + $0x14] sm:$0xf]
        %v1114 = vld [vmem:[%s1109 + $0x18] sm:$0xff]
        %v1115 = vld [vmem:[%s1109 + $0x20] sm:$0xf]
        %v1116 = vld [vmem:[%s1109 + $0x24] sm:$0x33]
        %v1117 = vld [vmem:[%s1109 + $0x2c] sm:$0x3]
        %vm1118 = vcmask 1045504
        %v1119 = vrot.slane %v208, 2
        %v1120 = vrot.slane %v227, 2
        %v1121 = vsel %vm1118, %v1119, %v1120
        %v1130 = vunpack.c.l.b16 %v1110
        %v1131 = vunpack.c.h.b16 %v1110
        %v1132 = vunpack.c.l.b16 %v1111
        %v1133 = vunpack.c.l.b16 %v1112
        %v1134 = vunpack.c.h.b16 %v1112
        %v1135 = vunpack.c.l.b16 %v1113
        %v1136 = vunpack.c.l.b16 %v1114
        %v1137 = vunpack.c.h.b16 %v1114
        %v1138 = vunpack.c.l.b16 %v1115
        %v1139 = vunpack.c.l.b16 %v1116
        %v1140 = vunpack.c.h.b16 %v1116
        %v1141 = vunpack.c.l.b16 %v1117
        %v1142 = vpack.c.b16 %v1133, %v1130
        %v1143 = vpack.c.b16 %v1134, %v1131
        %v1144 = vpack.c.b16 %v1135, %v1132
        %v1145 = vpack.c.b16 %v1139, %v1136
        %v1146 = vpack.c.b16 %v1140, %v1137
        %v1147 = vpack.c.b16 %v1141, %v1138
        %v1152 = vsel %vm282, %v1121, 0
        %v1155 = vsel %vm282, %v1120, 0
        %v1158 = vsel %vm289, %v1145, 0
        %v1161 = vsel %vm289, %v1146, 0
        %v1164 = vsel %vm289, %v1147, 0
        %1166 = vmatpush.bf16.msra.mxu0 0
        %1167 = vmatpush.bf16.msra.mxu0 0
        %1168 = vmatpush.bf16.msra.mxu0 0
        %1169 = vmatpush.bf16.msra.mxu0 0
        %1170 = vmatpush.bf16.msra.mxu0 0
        %1171 = vmatpush.bf16.msra.mxu0 0
        %1172 = vmatpush.bf16.msra.mxu0 %v1158
        %1173 = vmatpush.bf16.msra.mxu0 %v1142
        %1174 = vmatmul.bf16.gmra.mxu0 %v1152
        %v1175 = vpop.f32.mrf.mxu0
        %v1176 = vadd.f32 0.0, %v1175
        %v1177 = vpop.f32.mrf.mxu0
        %v1178 = vadd.f32 0.0, %v1177
        %1179 = vmatmul.bf16.gmra.mxu0 %v1155
        %v1180 = vpop.f32.mrf.mxu0
        %v1181 = vadd.f32 0.0, %v1180
        %v1182 = vpop.f32.mrf.mxu0
        %1183 = vdwg.mxu0
        %1184 = vmatpush.bf16.msra.mxu0 0
        %1185 = vmatpush.bf16.msra.mxu0 0
        %1186 = vmatpush.bf16.msra.mxu0 0
        %1187 = vmatpush.bf16.msra.mxu0 0
        %1188 = vmatpush.bf16.msra.mxu0 0
        %1189 = vmatpush.bf16.msra.mxu0 0
        %1190 = vmatpush.bf16.msra.mxu0 %v1161
        %1191 = vmatpush.bf16.msra.mxu0 %v1143
        %1192 = vmatmul.bf16.gmra.mxu0 %v1152
        %v1193 = vpop.f32.mrf.mxu0
        %v1194 = vadd.f32 0.0, %v1193
        %v1195 = vpop.f32.mrf.mxu0
        %v1196 = vadd.f32 0.0, %v1195
        %1197 = vmatmul.bf16.gmra.mxu0 %v1155
        %v1198 = vpop.f32.mrf.mxu0
        %v1199 = vadd.f32 0.0, %v1198
        %v1200 = vpop.f32.mrf.mxu0
        %1201 = vdwg.mxu0
        %1202 = vmatpush.bf16.msra.mxu0 0
        %1203 = vmatpush.bf16.msra.mxu0 0
        %1204 = vmatpush.bf16.msra.mxu0 0
        %1205 = vmatpush.bf16.msra.mxu0 0
        %1206 = vmatpush.bf16.msra.mxu0 0
        %1207 = vmatpush.bf16.msra.mxu0 0
        %1208 = vmatpush.bf16.msra.mxu0 %v1164
        %1209 = vmatpush.bf16.msra.mxu0 %v1144
        %1210 = vmatmul.bf16.gmra.mxu0 %v1152
        %v1211 = vpop.f32.mrf.mxu0
        %v1212 = vadd.f32 0.0, %v1211
        %v1213 = vpop.f32.mrf.mxu0
        %v1214 = vadd.f32 0.0, %v1213
        %1215 = vmatmul.bf16.gmra.mxu0 %v1155
        %v1216 = vpop.f32.mrf.mxu0
        %v1217 = vadd.f32 0.0, %v1216
        %v1218 = vpop.f32.mrf.mxu0
        %1219 = vdwg.mxu0
        %v1220 = vadd.f32 %v990, %v1176
        %v1221 = vadd.f32 %v991, %v1194
        %v1222 = vadd.f32 %v992, %v1212
        %v1223 = vadd.f32 %v993, %v1178
        %v1224 = vadd.f32 %v994, %v1196
        %v1225 = vadd.f32 %v995, %v1214
        %v1226 = vadd.f32 %v996, %v1181
        %v1227 = vadd.f32 %v997, %v1199
        %v1228 = vadd.f32 %v998, %v1217
        %s1229 = scalar_lea.vmem [#allocation2], 432
        %v1230 = vld [vmem:[%s1229] sm:$0xff]
        %v1231 = vld [vmem:[%s1229 + $0x8] sm:$0xf]
        %v1232 = vld [vmem:[%s1229 + $0xc] sm:$0xff]
        %v1233 = vld [vmem:[%s1229 + $0x14] sm:$0xf]
        %v1234 = vld [vmem:[%s1229 + $0x18] sm:$0xff]
        %v1235 = vld [vmem:[%s1229 + $0x20] sm:$0xf]
        %v1236 = vld [vmem:[%s1229 + $0x24] sm:$0x33]
        %v1237 = vld [vmem:[%s1229 + $0x2c] sm:$0x3]
        %v1246 = vunpack.c.l.b16 %v1230
        %v1247 = vunpack.c.h.b16 %v1230
        %v1248 = vunpack.c.l.b16 %v1231
        %v1249 = vunpack.c.l.b16 %v1232
        %v1250 = vunpack.c.h.b16 %v1232
        %v1251 = vunpack.c.l.b16 %v1233
        %v1252 = vunpack.c.l.b16 %v1234
        %v1253 = vunpack.c.h.b16 %v1234
        %v1254 = vunpack.c.l.b16 %v1235
        %v1255 = vunpack.c.l.b16 %v1236
        %v1256 = vunpack.c.h.b16 %v1236
        %v1257 = vunpack.c.l.b16 %v1237
        %v1258 = vpack.c.b16 %v1249, %v1246
        %v1259 = vpack.c.b16 %v1250, %v1247
        %v1260 = vpack.c.b16 %v1251, %v1248
        %v1261 = vpack.c.b16 %v1255, %v1252
        %v1262 = vpack.c.b16 %v1256, %v1253
        %v1263 = vpack.c.b16 %v1257, %v1254
        %v1268 = vsel %vm289, %v1261, 0
        %v1271 = vsel %vm289, %v1262, 0
        %v1274 = vsel %vm289, %v1263, 0
        %1276 = vmatpush.bf16.msra.mxu0 0
        %1277 = vmatpush.bf16.msra.mxu0 0
        %1278 = vmatpush.bf16.msra.mxu0 0
        %1279 = vmatpush.bf16.msra.mxu0 0
        %1280 = vmatpush.bf16.msra.mxu0 0
        %1281 = vmatpush.bf16.msra.mxu0 0
        %1282 = vmatpush.bf16.msra.mxu0 %v1268
        %1283 = vmatpush.bf16.msra.mxu0 %v1258
        %1284 = vmatmul.bf16.gmra.mxu0 %v1152
        %v1285 = vpop.f32.mrf.mxu0
        %v1286 = vadd.f32 0.0, %v1285
        %v1287 = vpop.f32.mrf.mxu0
        %v1288 = vadd.f32 0.0, %v1287
        %1289 = vmatmul.bf16.gmra.mxu0 %v1155
        %v1290 = vpop.f32.mrf.mxu0
        %v1291 = vadd.f32 0.0, %v1290
        %v1292 = vpop.f32.mrf.mxu0
        %1293 = vdwg.mxu0
        %1294 = vmatpush.bf16.msra.mxu0 0
        %1295 = vmatpush.bf16.msra.mxu0 0
        %1296 = vmatpush.bf16.msra.mxu0 0
        %1297 = vmatpush.bf16.msra.mxu0 0
        %1298 = vmatpush.bf16.msra.mxu0 0
        %1299 = vmatpush.bf16.msra.mxu0 0
        %1300 = vmatpush.bf16.msra.mxu0 %v1271
        %1301 = vmatpush.bf16.msra.mxu0 %v1259
        %1302 = vmatmul.bf16.gmra.mxu0 %v1152
        %v1303 = vpop.f32.mrf.mxu0
        %v1304 = vadd.f32 0.0, %v1303
        %v1305 = vpop.f32.mrf.mxu0
        %v1306 = vadd.f32 0.0, %v1305
        %1307 = vmatmul.bf16.gmra.mxu0 %v1155
        %v1308 = vpop.f32.mrf.mxu0
        %v1309 = vadd.f32 0.0, %v1308
        %v1310 = vpop.f32.mrf.mxu0
        %1311 = vdwg.mxu0
        %1312 = vmatpush.bf16.msra.mxu0 0
        %1313 = vmatpush.bf16.msra.mxu0 0
        %1314 = vmatpush.bf16.msra.mxu0 0
        %1315 = vmatpush.bf16.msra.mxu0 0
        %1316 = vmatpush.bf16.msra.mxu0 0
        %1317 = vmatpush.bf16.msra.mxu0 0
        %1318 = vmatpush.bf16.msra.mxu0 %v1274
        %1319 = vmatpush.bf16.msra.mxu0 %v1260
        %1320 = vmatmul.bf16.gmra.mxu0 %v1152
        %v1321 = vpop.f32.mrf.mxu0
        %v1322 = vadd.f32 0.0, %v1321
        %v1323 = vpop.f32.mrf.mxu0
        %v1324 = vadd.f32 0.0, %v1323
        %1325 = vmatmul.bf16.gmra.mxu0 %v1155
        %v1326 = vpop.f32.mrf.mxu0
        %v1327 = vadd.f32 0.0, %v1326
        %v1328 = vpop.f32.mrf.mxu0
        %1329 = vdwg.mxu0
        %v1330 = vadd.f32 %v1100, %v1286
        %v1331 = vadd.f32 %v1101, %v1304
        %v1332 = vadd.f32 %v1102, %v1322
        %v1333 = vadd.f32 %v1103, %v1288
        %v1334 = vadd.f32 %v1104, %v1306
        %v1335 = vadd.f32 %v1105, %v1324
        %v1336 = vadd.f32 %v1106, %v1291
        %v1337 = vadd.f32 %v1107, %v1309
        %v1338 = vadd.f32 %v1108, %v1327
        %v1339 = vmax.f32 %v1220, %v1330
        %v1340 = vmax.f32 %v1221, %v1331
        %v1341 = vmax.f32 %v1222, %v1332
        %v1342 = vmax.f32 %v1223, %v1333
        %v1343 = vmax.f32 %v1224, %v1334
        %v1344 = vmax.f32 %v1225, %v1335
        %v1345 = vmax.f32 %v1226, %v1336
        %v1346 = vmax.f32 %v1227, %v1337
        %v1347 = vmax.f32 %v1228, %v1338
        %v1348 = vlaneseq
        %v1349 = vshrl.u32 %v1348, 7
        %v1350 = vadd.s32 %v1349, 8
        %v1351 = vlaneseq
        %v1352 = vand.u32 %v1351, 127
        %v1353 = vmul.u32 %v1349, 2
        %v1354 = vmul.u32 %v1350, 2
        %vm1355 = vcmp.eq.s32.totalorder %v1352, %v1353
        %vm1356 = vcmp.eq.s32.totalorder %v1352, %v1354
        %v1357 = vsel %vm1355, 1, 0
        %v1358 = vsel %vm1356, 1, 0
        %v1359 = vcvt.s32.f32 %v1357
        %v1360 = vcvt.s32.f32 %v1358
        %v1361 = vadd.s32 %v1353, 1
        %v1362 = vadd.s32 %v1354, 1
        %vm1363 = vcmp.eq.s32.totalorder %v1352, %v1361
        %vm1364 = vcmp.eq.s32.totalorder %v1352, %v1362
        %v1365 = vsel %vm1363, 1, 0
        %v1366 = vsel %vm1364, 1, 0
        %v1367 = vcvt.s32.f32 %v1365
        %v1368 = vcvt.s32.f32 %v1366
        %vm1369 = vcmask 195584
        %v1371 = vsel %vm1369, %v1359, 0
        %v1374 = vsel %vm1369, %v1360, 0
        %1376 = vmatpush.msra.mxu0 0.0
        %1377 = vmatpush.msra.mxu0 0.0
        %1378 = vmatpush.msra.mxu0 0.0
        %1379 = vmatpush.msra.mxu0 0.0
        %1380 = vmatpush.msra.mxu0 0.0
        %1381 = vmatpush.msra.mxu0 0.0
        %1382 = vmatpush.msra.mxu0 0.0
        %1383 = vmatpush.msra.mxu0 0.0
        %1384 = vmatpush.msra.mxu0 0.0
        %1385 = vmatpush.msra.mxu0 0.0
        %1386 = vmatpush.msra.mxu0 0.0
        %1387 = vmatpush.msra.mxu0 0.0
        %1388 = vmatpush.msra.mxu0 0.0
        %1389 = vmatpush.msra.mxu0 %v1345
        %1390 = vmatpush.msra.mxu0 %v1342
        %1391 = vmatpush.msra.mxu0 %v1339
        %1392 = vmatmul.f32.gmra.mxu0 %v1371
        %v1393 = vpop.f32.mrf.mxu0
        %v1394 = vadd.f32 0.0, %v1393
        %1395 = vmatmul.f32.gmra.mxu0 %v1374
        %v1396 = vpop.f32.mrf.mxu0
        %v1397 = vadd.f32 0.0, %v1396
        %1398 = vdwg.mxu0
        %1399 = vmatpush.msra.mxu0 0.0
        %1400 = vmatpush.msra.mxu0 0.0
        %1401 = vmatpush.msra.mxu0 0.0
        %1402 = vmatpush.msra.mxu0 0.0
        %1403 = vmatpush.msra.mxu0 0.0
        %1404 = vmatpush.msra.mxu0 0.0
        %1405 = vmatpush.msra.mxu0 0.0
        %1406 = vmatpush.msra.mxu0 0.0
        %1407 = vmatpush.msra.mxu0 0.0
        %1408 = vmatpush.msra.mxu0 0.0
        %1409 = vmatpush.msra.mxu0 0.0
        %1410 = vmatpush.msra.mxu0 0.0
        %1411 = vmatpush.msra.mxu0 0.0
        %1412 = vmatpush.msra.mxu0 %v1346
        %1413 = vmatpush.msra.mxu0 %v1343
        %1414 = vmatpush.msra.mxu0 %v1340
        %1415 = vmatmul.f32.gmra.mxu0 %v1371
        %v1416 = vpop.f32.mrf.mxu0
        %v1417 = vadd.f32 0.0, %v1416
        %1418 = vmatmul.f32.gmra.mxu0 %v1374
        %v1419 = vpop.f32.mrf.mxu0
        %v1420 = vadd.f32 0.0, %v1419
        %1421 = vdwg.mxu0
        %1422 = vmatpush.msra.mxu0 0.0
        %1423 = vmatpush.msra.mxu0 0.0
        %1424 = vmatpush.msra.mxu0 0.0
        %1425 = vmatpush.msra.mxu0 0.0
        %1426 = vmatpush.msra.mxu0 0.0
        %1427 = vmatpush.msra.mxu0 0.0
        %1428 = vmatpush.msra.mxu0 0.0
        %1429 = vmatpush.msra.mxu0 0.0
        %1430 = vmatpush.msra.mxu0 0.0
        %1431 = vmatpush.msra.mxu0 0.0
        %1432 = vmatpush.msra.mxu0 0.0
        %1433 = vmatpush.msra.mxu0 0.0
        %1434 = vmatpush.msra.mxu0 0.0
        %1435 = vmatpush.msra.mxu0 %v1347
        %1436 = vmatpush.msra.mxu0 %v1344
        %1437 = vmatpush.msra.mxu0 %v1341
        %1438 = vmatmul.f32.gmra.mxu0 %v1371
        %v1439 = vpop.f32.mrf.mxu0
        %v1440 = vadd.f32 0.0, %v1439
        %1441 = vmatmul.f32.gmra.mxu0 %v1374
        %v1442 = vpop.f32.mrf.mxu0
        %v1443 = vadd.f32 0.0, %v1442
        %1444 = vdwg.mxu0
        %v1446 = vsel %vm1369, %v1367, 0
        %v1449 = vsel %vm1369, %v1368, 0
        %1451 = vmatpush.msra.mxu0 0.0
        %1452 = vmatpush.msra.mxu0 0.0
        %1453 = vmatpush.msra.mxu0 0.0
        %1454 = vmatpush.msra.mxu0 0.0
        %1455 = vmatpush.msra.mxu0 0.0
        %1456 = vmatpush.msra.mxu0 0.0
        %1457 = vmatpush.msra.mxu0 0.0
        %1458 = vmatpush.msra.mxu0 0.0
        %1459 = vmatpush.msra.mxu0 0.0
        %1460 = vmatpush.msra.mxu0 0.0
        %1461 = vmatpush.msra.mxu0 0.0
        %1462 = vmatpush.msra.mxu0 0.0
        %1463 = vmatpush.msra.mxu0 0.0
        %1464 = vmatpush.msra.mxu0 %v1345
        %1465 = vmatpush.msra.mxu0 %v1342
        %1466 = vmatpush.msra.mxu0 %v1339
        %1467 = vmatmul.f32.gmra.mxu0 %v1446
        %v1468 = vpop.f32.mrf.mxu0
        %v1469 = vadd.f32 0.0, %v1468
        %1470 = vmatmul.f32.gmra.mxu0 %v1449
        %v1471 = vpop.f32.mrf.mxu0
        %v1472 = vadd.f32 0.0, %v1471
        %1473 = vdwg.mxu0
        %1474 = vmatpush.msra.mxu0 0.0
        %1475 = vmatpush.msra.mxu0 0.0
        %1476 = vmatpush.msra.mxu0 0.0
        %1477 = vmatpush.msra.mxu0 0.0
        %1478 = vmatpush.msra.mxu0 0.0
        %1479 = vmatpush.msra.mxu0 0.0
        %1480 = vmatpush.msra.mxu0 0.0
        %1481 = vmatpush.msra.mxu0 0.0
        %1482 = vmatpush.msra.mxu0 0.0
        %1483 = vmatpush.msra.mxu0 0.0
        %1484 = vmatpush.msra.mxu0 0.0
        %1485 = vmatpush.msra.mxu0 0.0
        %1486 = vmatpush.msra.mxu0 0.0
        %1487 = vmatpush.msra.mxu0 %v1346
        %1488 = vmatpush.msra.mxu0 %v1343
        %1489 = vmatpush.msra.mxu0 %v1340
        %1490 = vmatmul.f32.gmra.mxu0 %v1446
        %v1491 = vpop.f32.mrf.mxu0
        %v1492 = vadd.f32 0.0, %v1491
        %1493 = vmatmul.f32.gmra.mxu0 %v1449
        %v1494 = vpop.f32.mrf.mxu0
        %v1495 = vadd.f32 0.0, %v1494
        %1496 = vdwg.mxu0
        %1497 = vmatpush.msra.mxu0 0.0
        %1498 = vmatpush.msra.mxu0 0.0
        %1499 = vmatpush.msra.mxu0 0.0
        %1500 = vmatpush.msra.mxu0 0.0
        %1501 = vmatpush.msra.mxu0 0.0
        %1502 = vmatpush.msra.mxu0 0.0
        %1503 = vmatpush.msra.mxu0 0.0
        %1504 = vmatpush.msra.mxu0 0.0
        %1505 = vmatpush.msra.mxu0 0.0
        %1506 = vmatpush.msra.mxu0 0.0
        %1507 = vmatpush.msra.mxu0 0.0
        %1508 = vmatpush.msra.mxu0 0.0
        %1509 = vmatpush.msra.mxu0 0.0
        %1510 = vmatpush.msra.mxu0 %v1347
        %1511 = vmatpush.msra.mxu0 %v1344
        %1512 = vmatpush.msra.mxu0 %v1341
        %1513 = vmatmul.f32.gmra.mxu0 %v1446
        %v1514 = vpop.f32.mrf.mxu0
        %v1515 = vadd.f32 0.0, %v1514
        %1516 = vmatmul.f32.gmra.mxu0 %v1449
        %v1517 = vpop.f32.mrf.mxu0
        %v1518 = vadd.f32 0.0, %v1517
        %1519 = vdwg.mxu0
        %v1520 = vmax.f32 %v1394, %v1469
        %v1521 = vmax.f32 %v1417, %v1492
        %v1522 = vmax.f32 %v1440, %v1515
        %v1523 = vmax.f32 %v1397, %v1472
        %v1524 = vmax.f32 %v1420, %v1495
        %v1525 = vmax.f32 %v1443, %v1518
        %v1526 = vld [vmem:[#allocation4] sm:$0x7]
        %v1528 = vperm.slane %v1526, 0
        %v1529 = vperm.slane %v1526, 1
        %v1530 = vperm.slane %v1526, 2
        %v1534 = vadd.f32 %v1520, %v1528
        %v1535 = vadd.f32 %v1521, %v1529
        %v1536 = vadd.f32 %v1522, %v1530
        %v1537 = vadd.f32 %v1523, %v1528
        %v1538 = vadd.f32 %v1524, %v1529
        %v1539 = vadd.f32 %v1525, %v1530
        %v1540 = vmax.f32 %v1534, 0.0
        %v1541 = vmax.f32 %v1535, 0.0
        %v1542 = vmax.f32 %v1536, 0.0
        %v1543 = vmax.f32 %v1537, 0.0
        %v1544 = vmax.f32 %v1538, 0.0
        %v1545 = vmax.f32 %v1539, 0.0
        %1546 = vst [vmem:[%s202] sm:$0xff] %v1540
        %1547 = vst [vmem:[%s202 + $0x8] sm:$0xff] %v1541
        %1548 = vst [vmem:[%s202 + $0x10] sm:$0xff] %v1542
        %1549 = vst [vmem:[%s202 + $0x18] sm:$0xf] %v1543
        %1550 = vst [vmem:[%s202 + $0x20] sm:$0xf] %v1544
        %1551 = vst [vmem:[%s202 + $0x28] sm:$0xf] %v1545
        %p1552 = scmp.lt.s32.totalorder %s16, 1
        %s1553 = scalar_select %p1552, %s16, 1
        %s1554 = smul.addr %s1553, 6
        %s1555 = smul.addr %s1554, 8
        %s1556 = scalar_lea.vmem %s3, %s1555
        // Predicated region
        $region41: #{net_mnist_forward.3} parent=31 // pred_check
          %p1557 = pneg %p102
        $region42: #{net_mnist_forward.3} parent=31 // pred_check_branch
          %1559 = sbr.rel (%p1557) target = $region44
        $region43: #{net_mnist_forward.3} parent=31 // pred_region
          _
        $region44: #{net_mnist_forward.3} parent=31 // pred_fallthru
          _
      $region32: #{net_mnist_forward.3} parent=5 // pred_fallthru
        _
      %p1560 = scmp.le.s32.totalorder 2, %s11
      // Predicated region
      $region45: #{net_mnist_forward.3} parent=5 // pred_check
        %p1561 = pneg %p1560
      $region46: #{net_mnist_forward.3} parent=5 // pred_check_branch
        %1563 = sbr.rel (%p1561) target = $region48
      $region47: #{net_mnist_forward.3} parent=5 // pred_region
        %s1564 = ssub.s32 %s11, 2
        // Predicated region
        $region49: #{net_mnist_forward.3} parent=47 // pred_check
          %p1565 = pneg %p108
        $region50: #{net_mnist_forward.3} parent=47 // pred_check_branch
          %1567 = sbr.rel (%p1565) target = $region52
        $region51: #{net_mnist_forward.3} parent=47 // pred_region
          %p1568 = scmp.lt.s32.totalorder %s17, 1
          %s1569 = scalar_select %p1568, %s17, 1
          %s1570 = smul.addr %s1569, 6
          %s1571 = smul.addr %s1570, 8
          %s1572 = scalar_lea.vmem %s3, %s1571
        $region52: #{net_mnist_forward.3} parent=47 // pred_fallthru
          _
      $region48: #{net_mnist_forward.3} parent=5 // pred_fallthru
        _
    $region6: #{net_mnist_forward.3} parent=1 // loop_footer
      %s15 = sadd.s32 1, %s11
    $region7: #{net_mnist_forward.3} parent=1 // loop_footer_branch
      %10 = sbr.rel target = $region3
    $region8: #{net_mnist_forward.3} parent=1 // loop_exit
      _
    %1573 = vsyncpa [#allocation3], 1
    %s1574 = scalar_lea.sflag [#allocation3], 1
    %1575 = vsyncpa %s1574, 1
    %1576 = vsyncpa [#allocation5], 1

// kernel: net_mnist_forward.5
$region0: #{net_mnist_forward.5}
  #allocation0 [shape = 'u32[]', space=smem, size = 0x4, offset = 0x4, fixed_abs, tag = 'smem constant byte address 0x4 - core index']
  #allocation1 [shape = 'u32[72,128]{1,0:T(1,128)}', space=vmem, size = 0x9000, scoped, tag = 'internal scratch']
  %s0 = inlined_call_operand.vmem [shape: f32[2,1024], index: 0, kind: input, shape index: {}]
  %s1 = inlined_call_operand.hbm [shape: bf16[1024,512], index: 1, kind: input, shape index: {}]
  %s2 = inlined_call_operand.hbm [shape: f32[1,512], index: 2, kind: input, shape index: {}]
  %s3 = inlined_call_operand.hbm [shape: bf16[512,128], index: 3, kind: input, shape index: {}]
  %s4 = inlined_call_operand.hbm [shape: f32[1,128], index: 4, kind: input, shape index: {}]
  %s5 = inlined_call_operand.hbm [shape: f32[2,128], index: 5, kind: output, shape index: {}]
  %s6 = sld [smem:[#allocation0]]
  $region46: #{net_mnist_forward.5} parent=0
    _
  %s8 = ssub.s32 1, %s6
  %s9 = scalar_select 0, %s8, %s6
  $region1: #{net_mnist_forward.5} parent=0
    #allocation2 [shape = 'u8[1048576]{0}', space=vmem, size = 0x100000, scoped, tag = 'input window, operand 1, single buffered']
    #allocation3 [shape = 's32[1]{0}', space=sflag, size = 0x4, scoped, tag = 'scoped memory for net_mnist_forward.5']
    #allocation4 [shape = 's32[1]{0}', space=sflag, size = 0x4, scoped, tag = 'scoped memory for net_mnist_forward.5']
    #allocation5 [shape = 'u8[2048]{0}', space=vmem, size = 0x800, scoped, tag = 'input window, operand 2, single buffered']
    #allocation6 [shape = 's32[1]{0}', space=sflag, size = 0x4, scoped, tag = 'scoped memory for net_mnist_forward.5']
    #allocation7 [shape = 'u8[131072]{0}', space=vmem, size = 0x20000, scoped, tag = 'input window, operand 3, single buffered']
    #allocation8 [shape = 'u8[512]{0}', space=vmem, size = 0x400, scoped, tag = 'input window, operand 4, single buffered']
    #allocation9 [shape = 's32[1]{0}', space=sflag, size = 0x4, scoped, tag = 'scoped memory for net_mnist_forward.5']
    #allocation10 [shape = 'u8[1024]{0}', space=vmem, size = 0x400, scoped, tag = 'output window, operand 0, single buffered']
    %10 = vsyncpa [#allocation3], 0
    %11 = vsyncpa [#allocation6], 0
    %12 = vsyncpa [#allocation9], 0
    %13 = vsyncpa [#allocation4], 0
    // Predicated region
    $region2: #{net_mnist_forward.5} parent=1 // pred_check
      _
    $region3: #{net_mnist_forward.5} parent=1 // pred_check_branch
      %15 = sbr.rel (0) target = $region5
    $region4: #{net_mnist_forward.5} parent=1 // pred_region
      _
    $region5: #{net_mnist_forward.5} parent=1 // pred_fallthru
      _
    // Predicated region
    $region6: #{net_mnist_forward.5} parent=1 // pred_check
      _
    $region7: #{net_mnist_forward.5} parent=1 // pred_check_branch
      %17 = sbr.rel (0) target = $region9
    $region8: #{net_mnist_forward.5} parent=1 // pred_region
      %19 = vsyncadd [#allocation3], 0
      %s20 = sshll.u32 %s1, 4
      %s21 = int_to_ptr.hbm [resolvable:$true] %s20
      %s22 = sshll.u32 [#allocation2], 4
      %s23 = int_to_ptr.vmem [resolvable:$true] %s22
      %28 = dma.hbm_to_vmem [thread:$0]  %s21, 32768, %s23, [#allocation3], 256, 256, 16
    $region9: #{net_mnist_forward.5} parent=1 // pred_fallthru
      _
    // Predicated region
    $region10: #{net_mnist_forward.5} parent=1 // pred_check
      _
    $region11: #{net_mnist_forward.5} parent=1 // pred_check_branch
      %30 = sbr.rel (0) target = $region13
    $region12: #{net_mnist_forward.5} parent=1 // pred_region
      %32 = vsyncadd [#allocation6], 0
      %s34 = sshll.u32 %s2, 4
      %s35 = int_to_ptr.hbm [resolvable:$true] %s34
      %s36 = sshll.u32 [#allocation5], 4
      %s37 = int_to_ptr.vmem [resolvable:$true] %s36
      %39 = dma.hbm_to_vmem [thread:$0]  %s35, 64, %s37, [#allocation6]
    $region13: #{net_mnist_forward.5} parent=1 // pred_fallthru
      _
    // Predicated region
    $region14: #{net_mnist_forward.5} parent=1 // pred_check
      _
    $region15: #{net_mnist_forward.5} parent=1 // pred_check_branch
      %41 = sbr.rel (0) target = $region17
    $region16: #{net_mnist_forward.5} parent=1 // pred_region
      %43 = vsyncadd [#allocation6], 0
      %s44 = sshll.u32 %s3, 4
      %s45 = int_to_ptr.hbm [resolvable:$true] %s44
      %s46 = sshll.u32 [#allocation7], 4
      %s47 = int_to_ptr.vmem [resolvable:$true] %s46
      %52 = dma.hbm_to_vmem [thread:$0]  %s45, 4096, %s47, [#allocation6], 64, 64, 4
    $region17: #{net_mnist_forward.5} parent=1 // pred_fallthru
      _
    // Predicated region
    $region18: #{net_mnist_forward.5} parent=1 // pred_check
      _
    $region19: #{net_mnist_forward.5} parent=1 // pred_check_branch
      %54 = sbr.rel (0) target = $region21
    $region20: #{net_mnist_forward.5} parent=1 // pred_region
      %56 = vsyncadd [#allocation9], 0
      %s58 = sshll.u32 %s4, 4
      %s59 = int_to_ptr.hbm [resolvable:$true] %s58
      %s60 = sshll.u32 [#allocation8], 4
      %s61 = int_to_ptr.vmem [resolvable:$true] %s60
      %63 = dma.hbm_to_vmem [thread:$0]  %s59, 16, %s61, [#allocation9]
    $region21: #{net_mnist_forward.5} parent=1 // pred_fallthru
      _
    // Predicated region
    $region22: #{net_mnist_forward.5} parent=1 // pred_check
      _
    $region23: #{net_mnist_forward.5} parent=1 // pred_check_branch
      %65 = sbr.rel (0) target = $region25
    $region24: #{net_mnist_forward.5} parent=1 // pred_region
      %67 = dma.done [#allocation3], 32768
    $region25: #{net_mnist_forward.5} parent=1 // pred_fallthru
      _
    // Predicated region
    $region26: #{net_mnist_forward.5} parent=1 // pred_check
      _
    $region27: #{net_mnist_forward.5} parent=1 // pred_check_branch
      %69 = sbr.rel (0) target = $region29
    $region28: #{net_mnist_forward.5} parent=1 // pred_region
      %71 = dma.done [#allocation6], 64
    $region29: #{net_mnist_forward.5} parent=1 // pred_fallthru
      _
    // Predicated region
    $region30: #{net_mnist_forward.5} parent=1 // pred_check
      _
    $region31: #{net_mnist_forward.5} parent=1 // pred_check_branch
      %73 = sbr.rel (0) target = $region33
    $region32: #{net_mnist_forward.5} parent=1 // pred_region
      %75 = dma.done [#allocation6], 4096
    $region33: #{net_mnist_forward.5} parent=1 // pred_fallthru
      _
    // Predicated region
    $region34: #{net_mnist_forward.5} parent=1 // pred_check
      _
    $region35: #{net_mnist_forward.5} parent=1 // pred_check_branch
      %77 = sbr.rel (0) target = $region37
    $region36: #{net_mnist_forward.5} parent=1 // pred_region
      %79 = dma.done [#allocation9], 16
    $region37: #{net_mnist_forward.5} parent=1 // pred_fallthru
      _
    %v80 = vld [vmem:[%s0] sm:$0xff]
    %v81 = vld [vmem:[%s0 + $0x8] sm:$0xff]
    %84 = vst [vmem:[#allocation1] ss:$4 sm:$0xff] %v80
    %s85 = scalar_lea.vmem [#allocation1], 32
    %86 = vst [vmem:[%s85] ss:$4 sm:$0xff] %v81
    %v87 = vld.sshfl [vmem:[#allocation1] sm:$0xff pattern:$0x73625140]
    %v88 = vld.sshfl [vmem:[#allocation1 + $0x8] sm:$0xff pattern:$0x73625140]
    %v89 = vld.sshfl [vmem:[#allocation1 + $0x10] sm:$0xff pattern:$0x73625140]
    %v90 = vld.sshfl [vmem:[#allocation1 + $0x18] sm:$0xff pattern:$0x73625140]
    %v91 = vld.sshfl [vmem:[#allocation1 + $0x20] sm:$0xff pattern:$0x73625140]
    %v92 = vld.sshfl [vmem:[#allocation1 + $0x28] sm:$0xff pattern:$0x73625140]
    %v93 = vld.sshfl [vmem:[#allocation1 + $0x30] sm:$0xff pattern:$0x73625140]
    %v94 = vld.sshfl [vmem:[#allocation1 + $0x38] sm:$0xff pattern:$0x73625140]
    %v103 = vpack.c.bf16 %v87, %v87
    %v104 = vpack.c.bf16 %v88, %v88
    %v105 = vpack.c.bf16 %v89, %v89
    %v106 = vpack.c.bf16 %v90, %v90
    %v107 = vpack.c.bf16 %v91, %v91
    %v108 = vpack.c.bf16 %v92, %v92
    %v109 = vpack.c.bf16 %v93, %v93
    %v110 = vpack.c.bf16 %v94, %v94
    %v111 = vld [vmem:[#allocation2] sm:$0xff]
    %v112 = vld [vmem:[#allocation2 + $0x8] sm:$0xff]
    %v113 = vld [vmem:[#allocation2 + $0x10] sm:$0xff]
    %v114 = vld [vmem:[#allocation2 + $0x18] sm:$0xff]
    %v115 = vld [vmem:[#allocation2 + $0x20] sm:$0xff]
    %v116 = vld [vmem:[#allocation2 + $0x28] sm:$0xff]
    %v117 = vld [vmem:[#allocation2 + $0x30] sm:$0xff]
    %v118 = vld [vmem:[#allocation2 + $0x38] sm:$0xff]
    %v119 = vld [vmem:[#allocation2 + $0x40] sm:$0xff]
    %v120 = vld [vmem:[#allocation2 + $0x48] sm:$0xff]
    %v121 = vld [vmem:[#allocation2 + $0x50] sm:$0xff]
    %v122 = vld [vmem:[#allocation2 + $0x58] sm:$0xff]
    %v123 = vld [vmem:[#allocation2 + $0x60] sm:$0xff]
    %v124 = vld [vmem:[#allocation2 + $0x68] sm:$0xff]
    %v125 = vld [vmem:[#allocation2 + $0x70] sm:$0xff]
    %v126 = vld [vmem:[#allocation2 + $0x78] sm:$0xff]
    %v127 = vld [vmem:[#allocation2 + $0x80] sm:$0xff]
    %v128 = vld [vmem:[#allocation2 + $0x88] sm:$0xff]
    %v129 = vld [vmem:[#allocation2 + $0x90] sm:$0xff]
    %v130 = vld [vmem:[#allocation2 + $0x98] sm:$0xff]
    %v131 = vld [vmem:[#allocation2 + $0xa0] sm:$0xff]
    %v132 = vld [vmem:[#allocation2 + $0xa8] sm:$0xff]
    %v133 = vld [vmem:[#allocation2 + $0xb0] sm:$0xff]
    %v134 = vld [vmem:[#allocation2 + $0xb8] sm:$0xff]
    %v135 = vld [vmem:[#allocation2 + $0xc0] sm:$0xff]
    %v136 = vld [vmem:[#allocation2 + $0xc8] sm:$0xff]
    %v137 = vld [vmem:[#allocation2 + $0xd0] sm:$0xff]
    %v138 = vld [vmem:[#allocation2 + $0xd8] sm:$0xff]
    %v139 = vld [vmem:[#allocation2 + $0xe0] sm:$0xff]
    %v140 = vld [vmem:[#allocation2 + $0xe8] sm:$0xff]
    %v141 = vld [vmem:[#allocation2 + $0xf0] sm:$0xff]
    %v142 = vld [vmem:[#allocation2 + $0xf8] sm:$0xff]
    %v143 = vld [vmem:[#allocation2 + $0x100] sm:$0xff]
    %v144 = vld [vmem:[#allocation2 + $0x108] sm:$0xff]
    %v145 = vld [vmem:[#allocation2 + $0x110] sm:$0xff]
    %v146 = vld [vmem:[#allocation2 + $0x118] sm:$0xff]
    %v147 = vld [vmem:[#allocation2 + $0x120] sm:$0xff]
    %v148 = vld [vmem:[#allocation2 + $0x128] sm:$0xff]
    %v149 = vld [vmem:[#allocation2 + $0x130] sm:$0xff]
    %v150 = vld [vmem:[#allocation2 + $0x138] sm:$0xff]
    %v151 = vld [vmem:[#allocation2 + $0x140] sm:$0xff]
    %v152 = vld [vmem:[#allocation2 + $0x148] sm:$0xff]
    %v153 = vld [vmem:[#allocation2 + $0x150] sm:$0xff]
    %v154 = vld [vmem:[#allocation2 + $0x158] sm:$0xff]
    %v155 = vld [vmem:[#allocation2 + $0x160] sm:$0xff]
    %v156 = vld [vmem:[#allocation2 + $0x168] sm:$0xff]
    %v157 = vld [vmem:[#allocation2 + $0x170] sm:$0xff]
    %v158 = vld [vmem:[#allocation2 + $0x178] sm:$0xff]
    %v159 = vld [vmem:[#allocation2 + $0x180] sm:$0xff]
    %v160 = vld [vmem:[#allocation2 + $0x188] sm:$0xff]
    %v161 = vld [vmem:[#allocation2 + $0x190] sm:$0xff]
    %v162 = vld [vmem:[#allocation2 + $0x198] sm:$0xff]
    %v163 = vld [vmem:[#allocation2 + $0x1a0] sm:$0xff]
    %v164 = vld [vmem:[#allocation2 + $0x1a8] sm:$0xff]
    %v165 = vld [vmem:[#allocation2 + $0x1b0] sm:$0xff]
    %v166 = vld [vmem:[#allocation2 + $0x1b8] sm:$0xff]
    %v167 = vld [vmem:[#allocation2 + $0x1c0] sm:$0xff]
    %v168 = vld [vmem:[#allocation2 + $0x1c8] sm:$0xff]
    %v169 = vld [vmem:[#allocation2 + $0x1d0] sm:$0xff]
    %v170 = vld [vmem:[#allocation2 + $0x1d8] sm:$0xff]
    %v171 = vld [vmem:[#allocation2 + $0x1e0] sm:$0xff]
    %v172 = vld [vmem:[#allocation2 + $0x1e8] sm:$0xff]
    %v173 = vld [vmem:[#allocation2 + $0x1f0] sm:$0xff]
    %v174 = vld [vmem:[#allocation2 + $0x1f8] sm:$0xff]
    %v175 = vld [vmem:[#allocation2 + $0x200] sm:$0xff]
    %v176 = vld [vmem:[#allocation2 + $0x208] sm:$0xff]
    %v177 = vld [vmem:[#allocation2 + $0x210] sm:$0xff]
    %v178 = vld [vmem:[#allocation2 + $0x218] sm:$0xff]
    %v179 = vld [vmem:[#allocation2 + $0x220] sm:$0xff]
    %v180 = vld [vmem:[#allocation2 + $0x228] sm:$0xff]
    %v181 = vld [vmem:[#allocation2 + $0x230] sm:$0xff]
    %v182 = vld [vmem:[#allocation2 + $0x238] sm:$0xff]
    %v183 = vld [vmem:[#allocation2 + $0x240] sm:$0xff]
    %v184 = vld [vmem:[#allocation2 + $0x248] sm:$0xff]
    %v185 = vld [vmem:[#allocation2 + $0x250] sm:$0xff]
    %v186 = vld [vmem:[#allocation2 + $0x258] sm:$0xff]
    %v187 = vld [vmem:[#allocation2 + $0x260] sm:$0xff]
    %v188 = vld [vmem:[#allocation2 + $0x268] sm:$0xff]
    %v189 = vld [vmem:[#allocation2 + $0x270] sm:$0xff]
    %v190 = vld [vmem:[#allocation2 + $0x278] sm:$0xff]
    %v191 = vld [vmem:[#allocation2 + $0x280] sm:$0xff]
    %v192 = vld [vmem:[#allocation2 + $0x288] sm:$0xff]
    %v193 = vld [vmem:[#allocation2 + $0x290] sm:$0xff]
    %v194 = vld [vmem:[#allocation2 + $0x298] sm:$0xff]
    %v195 = vld [vmem:[#allocation2 + $0x2a0] sm:$0xff]
    %v196 = vld [vmem:[#allocation2 + $0x2a8] sm:$0xff]
    %v197 = vld [vmem:[#allocation2 + $0x2b0] sm:$0xff]
    %v198 = vld [vmem:[#allocation2 + $0x2b8] sm:$0xff]
    %v199 = vld [vmem:[#allocation2 + $0x2c0] sm:$0xff]
    %v200 = vld [vmem:[#allocation2 + $0x2c8] sm:$0xff]
    %v201 = vld [vmem:[#allocation2 + $0x2d0] sm:$0xff]
    %v202 = vld [vmem:[#allocation2 + $0x2d8] sm:$0xff]
    %v203 = vld [vmem:[#allocation2 + $0x2e0] sm:$0xff]
    %v204 = vld [vmem:[#allocation2 + $0x2e8] sm:$0xff]
    %v205 = vld [vmem:[#allocation2 + $0x2f0] sm:$0xff]
    %v206 = vld [vmem:[#allocation2 + $0x2f8] sm:$0xff]
    %v207 = vld [vmem:[#allocation2 + $0x300] sm:$0xff]
    %v208 = vld [vmem:[#allocation2 + $0x308] sm:$0xff]
    %v209 = vld [vmem:[#allocation2 + $0x310] sm:$0xff]
    %v210 = vld [vmem:[#allocation2 + $0x318] sm:$0xff]
    %v211 = vld [vmem:[#allocation2 + $0x320] sm:$0xff]
    %v212 = vld [vmem:[#allocation2 + $0x328] sm:$0xff]
    %v213 = vld [vmem:[#allocation2 + $0x330] sm:$0xff]
    %v214 = vld [vmem:[#allocation2 + $0x338] sm:$0xff]
    %v215 = vld [vmem:[#allocation2 + $0x340] sm:$0xff]
    %v216 = vld [vmem:[#allocation2 + $0x348] sm:$0xff]
    %v217 = vld [vmem:[#allocation2 + $0x350] sm:$0xff]
    %v218 = vld [vmem:[#allocation2 + $0x358] sm:$0xff]
    %v219 = vld [vmem:[#allocation2 + $0x360] sm:$0xff]
    %v220 = vld [vmem:[#allocation2 + $0x368] sm:$0xff]
    %v221 = vld [vmem:[#allocation2 + $0x370] sm:$0xff]
    %v222 = vld [vmem:[#allocation2 + $0x378] sm:$0xff]
    %v223 = vld [vmem:[#allocation2 + $0x380] sm:$0xff]
    %v224 = vld [vmem:[#allocation2 + $0x388] sm:$0xff]
    %v225 = vld [vmem:[#allocation2 + $0x390] sm:$0xff]
    %v226 = vld [vmem:[#allocation2 + $0x398] sm:$0xff]
    %v227 = vld [vmem:[#allocation2 + $0x3a0] sm:$0xff]
    %v228 = vld [vmem:[#allocation2 + $0x3a8] sm:$0xff]
    %v229 = vld [vmem:[#allocation2 + $0x3b0] sm:$0xff]
    %v230 = vld [vmem:[#allocation2 + $0x3b8] sm:$0xff]
    %v231 = vld [vmem:[#allocation2 + $0x3c0] sm:$0xff]
    %v232 = vld [vmem:[#allocation2 + $0x3c8] sm:$0xff]
    %v233 = vld [vmem:[#allocation2 + $0x3d0] sm:$0xff]
    %v234 = vld [vmem:[#allocation2 + $0x3d8] sm:$0xff]
    %v235 = vld [vmem:[#allocation2 + $0x3e0] sm:$0xff]
    %v236 = vld [vmem:[#allocation2 + $0x3e8] sm:$0xff]
    %v237 = vld [vmem:[#allocation2 + $0x3f0] sm:$0xff]
    %v238 = vld [vmem:[#allocation2 + $0x3f8] sm:$0xff]
    %v239 = vld [vmem:[#allocation2 + $0x400] sm:$0xff]
    %v240 = vld [vmem:[#allocation2 + $0x408] sm:$0xff]
    %v241 = vld [vmem:[#allocation2 + $0x410] sm:$0xff]
    %v242 = vld [vmem:[#allocation2 + $0x418] sm:$0xff]
    %v243 = vld [vmem:[#allocation2 + $0x420] sm:$0xff]
    %v244 = vld [vmem:[#allocation2 + $0x428] sm:$0xff]
    %v245 = vld [vmem:[#allocation2 + $0x430] sm:$0xff]
    %v246 = vld [vmem:[#allocation2 + $0x438] sm:$0xff]
    %v247 = vld [vmem:[#allocation2 + $0x440] sm:$0xff]
    %v248 = vld [vmem:[#allocation2 + $0x448] sm:$0xff]
    %v249 = vld [vmem:[#allocation2 + $0x450] sm:$0xff]
    %v250 = vld [vmem:[#allocation2 + $0x458] sm:$0xff]
    %v251 = vld [vmem:[#allocation2 + $0x460] sm:$0xff]
    %v252 = vld [vmem:[#allocation2 + $0x468] sm:$0xff]
    %v253 = vld [vmem:[#allocation2 + $0x470] sm:$0xff]
    %v254 = vld [vmem:[#allocation2 + $0x478] sm:$0xff]
    %v255 = vld [vmem:[#allocation2 + $0x480] sm:$0xff]
    %v256 = vld [vmem:[#allocation2 + $0x488] sm:$0xff]
    %v257 = vld [vmem:[#allocation2 + $0x490] sm:$0xff]
    %v258 = vld [vmem:[#allocation2 + $0x498] sm:$0xff]
    %v259 = vld [vmem:[#allocation2 + $0x4a0] sm:$0xff]
    %v260 = vld [vmem:[#allocation2 + $0x4a8] sm:$0xff]
    %v261 = vld [vmem:[#allocation2 + $0x4b0] sm:$0xff]
    %v262 = vld [vmem:[#allocation2 + $0x4b8] sm:$0xff]
    %v263 = vld [vmem:[#allocation2 + $0x4c0] sm:$0xff]
    %v264 = vld [vmem:[#allocation2 + $0x4c8] sm:$0xff]
    %v265 = vld [vmem:[#allocation2 + $0x4d0] sm:$0xff]
    %v266 = vld [vmem:[#allocation2 + $0x4d8] sm:$0xff]
    %v267 = vld [vmem:[#allocation2 + $0x4e0] sm:$0xff]
    %v268 = vld [vmem:[#allocation2 + $0x4e8] sm:$0xff]
    %v269 = vld [vmem:[#allocation2 + $0x4f0] sm:$0xff]
    %v270 = vld [vmem:[#allocation2 + $0x4f8] sm:$0xff]
    %v271 = vld [vmem:[#allocation2 + $0x500] sm:$0xff]
    %v272 = vld [vmem:[#allocation2 + $0x508] sm:$0xff]
    %v273 = vld [vmem:[#allocation2 + $0x510] sm:$0xff]
    %v274 = vld [vmem:[#allocation2 + $0x518] sm:$0xff]
    %v275 = vld [vmem:[#allocation2 + $0x520] sm:$0xff]
    %v276 = vld [vmem:[#allocation2 + $0x528] sm:$0xff]
    %v277 = vld [vmem:[#allocation2 + $0x530] sm:$0xff]
    %v278 = vld [vmem:[#allocation2 + $0x538] sm:$0xff]
    %v279 = vld [vmem:[#allocation2 + $0x540] sm:$0xff]
    %v280 = vld [vmem:[#allocation2 + $0x548] sm:$0xff]
    %v281 = vld [vmem:[#allocation2 + $0x550] sm:$0xff]
    %v282 = vld [vmem:[#allocation2 + $0x558] sm:$0xff]
    %v283 = vld [vmem:[#allocation2 + $0x560] sm:$0xff]
    %v284 = vld [vmem:[#allocation2 + $0x568] sm:$0xff]
    %v285 = vld [vmem:[#allocation2 + $0x570] sm:$0xff]
    %v286 = vld [vmem:[#allocation2 + $0x578] sm:$0xff]
    %v287 = vld [vmem:[#allocation2 + $0x580] sm:$0xff]
    %v288 = vld [vmem:[#allocation2 + $0x588] sm:$0xff]
    %v289 = vld [vmem:[#allocation2 + $0x590] sm:$0xff]
    %v290 = vld [vmem:[#allocation2 + $0x598] sm:$0xff]
    %v291 = vld [vmem:[#allocation2 + $0x5a0] sm:$0xff]
    %v292 = vld [vmem:[#allocation2 + $0x5a8] sm:$0xff]
    %v293 = vld [vmem:[#allocation2 + $0x5b0] sm:$0xff]
    %v294 = vld [vmem:[#allocation2 + $0x5b8] sm:$0xff]
    %v295 = vld [vmem:[#allocation2 + $0x5c0] sm:$0xff]
    %v296 = vld [vmem:[#allocation2 + $0x5c8] sm:$0xff]
    %v297 = vld [vmem:[#allocation2 + $0x5d0] sm:$0xff]
    %v298 = vld [vmem:[#allocation2 + $0x5d8] sm:$0xff]
    %v299 = vld [vmem:[#allocation2 + $0x5e0] sm:$0xff]
    %v300 = vld [vmem:[#allocation2 + $0x5e8] sm:$0xff]
    %v301 = vld [vmem:[#allocation2 + $0x5f0] sm:$0xff]
    %v302 = vld [vmem:[#allocation2 + $0x5f8] sm:$0xff]
    %v303 = vld [vmem:[#allocation2 + $0x600] sm:$0xff]
    %v304 = vld [vmem:[#allocation2 + $0x608] sm:$0xff]
    %v305 = vld [vmem:[#allocation2 + $0x610] sm:$0xff]
    %v306 = vld [vmem:[#allocation2 + $0x618] sm:$0xff]
    %v307 = vld [vmem:[#allocation2 + $0x620] sm:$0xff]
    %v308 = vld [vmem:[#allocation2 + $0x628] sm:$0xff]
    %v309 = vld [vmem:[#allocation2 + $0x630] sm:$0xff]
    %v310 = vld [vmem:[#allocation2 + $0x638] sm:$0xff]
    %v311 = vld [vmem:[#allocation2 + $0x640] sm:$0xff]
    %v312 = vld [vmem:[#allocation2 + $0x648] sm:$0xff]
    %v313 = vld [vmem:[#allocation2 + $0x650] sm:$0xff]
    %v314 = vld [vmem:[#allocation2 + $0x658] sm:$0xff]
    %v315 = vld [vmem:[#allocation2 + $0x660] sm:$0xff]
    %v316 = vld [vmem:[#allocation2 + $0x668] sm:$0xff]
    %v317 = vld [vmem:[#allocation2 + $0x670] sm:$0xff]
    %v318 = vld [vmem:[#allocation2 + $0x678] sm:$0xff]
    %v319 = vld [vmem:[#allocation2 + $0x680] sm:$0xff]
    %v320 = vld [vmem:[#allocation2 + $0x688] sm:$0xff]
    %v321 = vld [vmem:[#allocation2 + $0x690] sm:$0xff]
    %v322 = vld [vmem:[#allocation2 + $0x698] sm:$0xff]
    %v323 = vld [vmem:[#allocation2 + $0x6a0] sm:$0xff]
    %v324 = vld [vmem:[#allocation2 + $0x6a8] sm:$0xff]
    %v325 = vld [vmem:[#allocation2 + $0x6b0] sm:$0xff]
    %v326 = vld [vmem:[#allocation2 + $0x6b8] sm:$0xff]
    %v327 = vld [vmem:[#allocation2 + $0x6c0] sm:$0xff]
    %v328 = vld [vmem:[#allocation2 + $0x6c8] sm:$0xff]
    %v329 = vld [vmem:[#allocation2 + $0x6d0] sm:$0xff]
    %v330 = vld [vmem:[#allocation2 + $0x6d8] sm:$0xff]
    %v331 = vld [vmem:[#allocation2 + $0x6e0] sm:$0xff]
    %v332 = vld [vmem:[#allocation2 + $0x6e8] sm:$0xff]
    %v333 = vld [vmem:[#allocation2 + $0x6f0] sm:$0xff]
    %v334 = vld [vmem:[#allocation2 + $0x6f8] sm:$0xff]
    %v335 = vld [vmem:[#allocation2 + $0x700] sm:$0xff]
    %v336 = vld [vmem:[#allocation2 + $0x708] sm:$0xff]
    %v337 = vld [vmem:[#allocation2 + $0x710] sm:$0xff]
    %v338 = vld [vmem:[#allocation2 + $0x718] sm:$0xff]
    %v339 = vld [vmem:[#allocation2 + $0x720] sm:$0xff]
    %v340 = vld [vmem:[#allocation2 + $0x728] sm:$0xff]
    %v341 = vld [vmem:[#allocation2 + $0x730] sm:$0xff]
    %v342 = vld [vmem:[#allocation2 + $0x738] sm:$0xff]
    %v343 = vld [vmem:[#allocation2 + $0x740] sm:$0xff]
    %v344 = vld [vmem:[#allocation2 + $0x748] sm:$0xff]
    %v345 = vld [vmem:[#allocation2 + $0x750] sm:$0xff]
    %v346 = vld [vmem:[#allocation2 + $0x758] sm:$0xff]
    %v347 = vld [vmem:[#allocation2 + $0x760] sm:$0xff]
    %v348 = vld [vmem:[#allocation2 + $0x768] sm:$0xff]
    %v349 = vld [vmem:[#allocation2 + $0x770] sm:$0xff]
    %v350 = vld [vmem:[#allocation2 + $0x778] sm:$0xff]
    %v351 = vld [vmem:[#allocation2 + $0x780] sm:$0xff]
    %v352 = vld [vmem:[#allocation2 + $0x788] sm:$0xff]
    %v353 = vld [vmem:[#allocation2 + $0x790] sm:$0xff]
    %v354 = vld [vmem:[#allocation2 + $0x798] sm:$0xff]
    %v355 = vld [vmem:[#allocation2 + $0x7a0] sm:$0xff]
    %v356 = vld [vmem:[#allocation2 + $0x7a8] sm:$0xff]
    %v357 = vld [vmem:[#allocation2 + $0x7b0] sm:$0xff]
    %v358 = vld [vmem:[#allocation2 + $0x7b8] sm:$0xff]
    %v359 = vld [vmem:[#allocation2 + $0x7c0] sm:$0xff]
    %v360 = vld [vmem:[#allocation2 + $0x7c8] sm:$0xff]
    %v361 = vld [vmem:[#allocation2 + $0x7d0] sm:$0xff]
    %v362 = vld [vmem:[#allocation2 + $0x7d8] sm:$0xff]
    %v363 = vld [vmem:[#allocation2 + $0x7e0] sm:$0xff]
    %v364 = vld [vmem:[#allocation2 + $0x7e8] sm:$0xff]
    %v365 = vld [vmem:[#allocation2 + $0x7f0] sm:$0xff]
    %v366 = vld [vmem:[#allocation2 + $0x7f8] sm:$0xff]
    %v367 = vld [vmem:[#allocation5] sm:$0xf]
    %v369 = vperm.slane %v367, 0
    %v370 = vperm.slane %v367, 1
    %v371 = vperm.slane %v367, 2
    %v372 = vperm.slane %v367, 3
    %v633 = vunpack.c.l.b16 %v111
    %v634 = vunpack.c.h.b16 %v111
    %v635 = vunpack.c.l.b16 %v112
    %v636 = vunpack.c.h.b16 %v112
    %v637 = vunpack.c.l.b16 %v113
    %v638 = vunpack.c.h.b16 %v113
    %v639 = vunpack.c.l.b16 %v114
    %v640 = vunpack.c.h.b16 %v114
    %v641 = vunpack.c.l.b16 %v115
    %v642 = vunpack.c.h.b16 %v115
    %v643 = vunpack.c.l.b16 %v116
    %v644 = vunpack.c.h.b16 %v116
    %v645 = vunpack.c.l.b16 %v117
    %v646 = vunpack.c.h.b16 %v117
    %v647 = vunpack.c.l.b16 %v118
    %v648 = vunpack.c.h.b16 %v118
    %v649 = vunpack.c.l.b16 %v119
    %v650 = vunpack.c.h.b16 %v119
    %v651 = vunpack.c.l.b16 %v120
    %v652 = vunpack.c.h.b16 %v120
    %v653 = vunpack.c.l.b16 %v121
    %v654 = vunpack.c.h.b16 %v121
    %v655 = vunpack.c.l.b16 %v122
    %v656 = vunpack.c.h.b16 %v122
    %v657 = vunpack.c.l.b16 %v123
    %v658 = vunpack.c.h.b16 %v123
    %v659 = vunpack.c.l.b16 %v124
    %v660 = vunpack.c.h.b16 %v124
    %v661 = vunpack.c.l.b16 %v125
    %v662 = vunpack.c.h.b16 %v125
    %v663 = vunpack.c.l.b16 %v126
    %v664 = vunpack.c.h.b16 %v126
    %v665 = vunpack.c.l.b16 %v127
    %v666 = vunpack.c.h.b16 %v127
    %v667 = vunpack.c.l.b16 %v128
    %v668 = vunpack.c.h.b16 %v128
    %v669 = vunpack.c.l.b16 %v129
    %v670 = vunpack.c.h.b16 %v129
    %v671 = vunpack.c.l.b16 %v130
    %v672 = vunpack.c.h.b16 %v130
    %v673 = vunpack.c.l.b16 %v131
    %v674 = vunpack.c.h.b16 %v131
    %v675 = vunpack.c.l.b16 %v132
    %v676 = vunpack.c.h.b16 %v132
    %v677 = vunpack.c.l.b16 %v133
    %v678 = vunpack.c.h.b16 %v133
    %v679 = vunpack.c.l.b16 %v134
    %v680 = vunpack.c.h.b16 %v134
    %v681 = vunpack.c.l.b16 %v135
    %v682 = vunpack.c.h.b16 %v135
    %v683 = vunpack.c.l.b16 %v136
    %v684 = vunpack.c.h.b16 %v136
    %v685 = vunpack.c.l.b16 %v137
    %v686 = vunpack.c.h.b16 %v137
    %v687 = vunpack.c.l.b16 %v138
    %v688 = vunpack.c.h.b16 %v138
    %v689 = vunpack.c.l.b16 %v139
    %v690 = vunpack.c.h.b16 %v139
    %v691 = vunpack.c.l.b16 %v140
    %v692 = vunpack.c.h.b16 %v140
    %v693 = vunpack.c.l.b16 %v141
    %v694 = vunpack.c.h.b16 %v141
    %v695 = vunpack.c.l.b16 %v142
    %v696 = vunpack.c.h.b16 %v142
    %v697 = vunpack.c.l.b16 %v143
    %v698 = vunpack.c.h.b16 %v143
    %v699 = vunpack.c.l.b16 %v144
    %v700 = vunpack.c.h.b16 %v144
    %v701 = vunpack.c.l.b16 %v145
    %v702 = vunpack.c.h.b16 %v145
    %v703 = vunpack.c.l.b16 %v146
    %v704 = vunpack.c.h.b16 %v146
    %v705 = vunpack.c.l.b16 %v147
    %v706 = vunpack.c.h.b16 %v147
    %v707 = vunpack.c.l.b16 %v148
    %v708 = vunpack.c.h.b16 %v148
    %v709 = vunpack.c.l.b16 %v149
    %v710 = vunpack.c.h.b16 %v149
    %v711 = vunpack.c.l.b16 %v150
    %v712 = vunpack.c.h.b16 %v150
    %v713 = vunpack.c.l.b16 %v151
    %v714 = vunpack.c.h.b16 %v151
    %v715 = vunpack.c.l.b16 %v152
    %v716 = vunpack.c.h.b16 %v152
    %v717 = vunpack.c.l.b16 %v153
    %v718 = vunpack.c.h.b16 %v153
    %v719 = vunpack.c.l.b16 %v154
    %v720 = vunpack.c.h.b16 %v154
    %v721 = vunpack.c.l.b16 %v155
    %v722 = vunpack.c.h.b16 %v155
    %v723 = vunpack.c.l.b16 %v156
    %v724 = vunpack.c.h.b16 %v156
    %v725 = vunpack.c.l.b16 %v157
    %v726 = vunpack.c.h.b16 %v157
    %v727 = vunpack.c.l.b16 %v158
    %v728 = vunpack.c.h.b16 %v158
    %v729 = vunpack.c.l.b16 %v159
    %v730 = vunpack.c.h.b16 %v159
    %v731 = vunpack.c.l.b16 %v160
    %v732 = vunpack.c.h.b16 %v160
    %v733 = vunpack.c.l.b16 %v161
    %v734 = vunpack.c.h.b16 %v161
    %v735 = vunpack.c.l.b16 %v162
    %v736 = vunpack.c.h.b16 %v162
    %v737 = vunpack.c.l.b16 %v163
    %v738 = vunpack.c.h.b16 %v163
    %v739 = vunpack.c.l.b16 %v164
    %v740 = vunpack.c.h.b16 %v164
    %v741 = vunpack.c.l.b16 %v165
    %v742 = vunpack.c.h.b16 %v165
    %v743 = vunpack.c.l.b16 %v166
    %v744 = vunpack.c.h.b16 %v166
    %v745 = vunpack.c.l.b16 %v167
    %v746 = vunpack.c.h.b16 %v167
    %v747 = vunpack.c.l.b16 %v168
    %v748 = vunpack.c.h.b16 %v168
    %v749 = vunpack.c.l.b16 %v169
    %v750 = vunpack.c.h.b16 %v169
    %v751 = vunpack.c.l.b16 %v170
    %v752 = vunpack.c.h.b16 %v170
    %v753 = vunpack.c.l.b16 %v171
    %v754 = vunpack.c.h.b16 %v171
    %v755 = vunpack.c.l.b16 %v172
    %v756 = vunpack.c.h.b16 %v172
    %v757 = vunpack.c.l.b16 %v173
    %v758 = vunpack.c.h.b16 %v173
    %v759 = vunpack.c.l.b16 %v174
    %v760 = vunpack.c.h.b16 %v174
    %v761 = vunpack.c.l.b16 %v175
    %v762 = vunpack.c.h.b16 %v175
    %v763 = vunpack.c.l.b16 %v176
    %v764 = vunpack.c.h.b16 %v176
    %v765 = vunpack.c.l.b16 %v177
    %v766 = vunpack.c.h.b16 %v177
    %v767 = vunpack.c.l.b16 %v178
    %v768 = vunpack.c.h.b16 %v178
    %v769 = vunpack.c.l.b16 %v179
    %v770 = vunpack.c.h.b16 %v179
    %v771 = vunpack.c.l.b16 %v180
    %v772 = vunpack.c.h.b16 %v180
    %v773 = vunpack.c.l.b16 %v181
    %v774 = vunpack.c.h.b16 %v181
    %v775 = vunpack.c.l.b16 %v182
    %v776 = vunpack.c.h.b16 %v182
    %v777 = vunpack.c.l.b16 %v183
    %v778 = vunpack.c.h.b16 %v183
    %v779 = vunpack.c.l.b16 %v184
    %v780 = vunpack.c.h.b16 %v184
    %v781 = vunpack.c.l.b16 %v185
    %v782 = vunpack.c.h.b16 %v185
    %v783 = vunpack.c.l.b16 %v186
    %v784 = vunpack.c.h.b16 %v186
    %v785 = vunpack.c.l.b16 %v187
    %v786 = vunpack.c.h.b16 %v187
    %v787 = vunpack.c.l.b16 %v188
    %v788 = vunpack.c.h.b16 %v188
    %v789 = vunpack.c.l.b16 %v189
    %v790 = vunpack.c.h.b16 %v189
    %v791 = vunpack.c.l.b16 %v190
    %v792 = vunpack.c.h.b16 %v190
    %v793 = vunpack.c.l.b16 %v191
    %v794 = vunpack.c.h.b16 %v191
    %v795 = vunpack.c.l.b16 %v192
    %v796 = vunpack.c.h.b16 %v192
    %v797 = vunpack.c.l.b16 %v193
    %v798 = vunpack.c.h.b16 %v193
    %v799 = vunpack.c.l.b16 %v194
    %v800 = vunpack.c.h.b16 %v194
    %v801 = vunpack.c.l.b16 %v195
    %v802 = vunpack.c.h.b16 %v195
    %v803 = vunpack.c.l.b16 %v196
    %v804 = vunpack.c.h.b16 %v196
    %v805 = vunpack.c.l.b16 %v197
    %v806 = vunpack.c.h.b16 %v197
    %v807 = vunpack.c.l.b16 %v198
    %v808 = vunpack.c.h.b16 %v198
    %v809 = vunpack.c.l.b16 %v199
    %v810 = vunpack.c.h.b16 %v199
    %v811 = vunpack.c.l.b16 %v200
    %v812 = vunpack.c.h.b16 %v200
    %v813 = vunpack.c.l.b16 %v201
    %v814 = vunpack.c.h.b16 %v201
    %v815 = vunpack.c.l.b16 %v202
    %v816 = vunpack.c.h.b16 %v202
    %v817 = vunpack.c.l.b16 %v203
    %v818 = vunpack.c.h.b16 %v203
    %v819 = vunpack.c.l.b16 %v204
    %v820 = vunpack.c.h.b16 %v204
    %v821 = vunpack.c.l.b16 %v205
    %v822 = vunpack.c.h.b16 %v205
    %v823 = vunpack.c.l.b16 %v206
    %v824 = vunpack.c.h.b16 %v206
    %v825 = vunpack.c.l.b16 %v207
    %v826 = vunpack.c.h.b16 %v207
    %v827 = vunpack.c.l.b16 %v208
    %v828 = vunpack.c.h.b16 %v208
    %v829 = vunpack.c.l.b16 %v209
    %v830 = vunpack.c.h.b16 %v209
    %v831 = vunpack.c.l.b16 %v210
    %v832 = vunpack.c.h.b16 %v210
    %v833 = vunpack.c.l.b16 %v211
    %v834 = vunpack.c.h.b16 %v211
    %v835 = vunpack.c.l.b16 %v212
    %v836 = vunpack.c.h.b16 %v212
    %v837 = vunpack.c.l.b16 %v213
    %v838 = vunpack.c.h.b16 %v213
    %v839 = vunpack.c.l.b16 %v214
    %v840 = vunpack.c.h.b16 %v214
    %v841 = vunpack.c.l.b16 %v215
    %v842 = vunpack.c.h.b16 %v215
    %v843 = vunpack.c.l.b16 %v216
    %v844 = vunpack.c.h.b16 %v216
    %v845 = vunpack.c.l.b16 %v217
    %v846 = vunpack.c.h.b16 %v217
    %v847 = vunpack.c.l.b16 %v218
    %v848 = vunpack.c.h.b16 %v218
    %v849 = vunpack.c.l.b16 %v219
    %v850 = vunpack.c.h.b16 %v219
    %v851 = vunpack.c.l.b16 %v220
    %v852 = vunpack.c.h.b16 %v220
    %v853 = vunpack.c.l.b16 %v221
    %v854 = vunpack.c.h.b16 %v221
    %v855 = vunpack.c.l.b16 %v222
    %v856 = vunpack.c.h.b16 %v222
    %v857 = vunpack.c.l.b16 %v223
    %v858 = vunpack.c.h.b16 %v223
    %v859 = vunpack.c.l.b16 %v224
    %v860 = vunpack.c.h.b16 %v224
    %v861 = vunpack.c.l.b16 %v225
    %v862 = vunpack.c.h.b16 %v225
    %v863 = vunpack.c.l.b16 %v226
    %v864 = vunpack.c.h.b16 %v226
    %v865 = vunpack.c.l.b16 %v227
    %v866 = vunpack.c.h.b16 %v227
    %v867 = vunpack.c.l.b16 %v228
    %v868 = vunpack.c.h.b16 %v228
    %v869 = vunpack.c.l.b16 %v229
    %v870 = vunpack.c.h.b16 %v229
    %v871 = vunpack.c.l.b16 %v230
    %v872 = vunpack.c.h.b16 %v230
    %v873 = vunpack.c.l.b16 %v231
    %v874 = vunpack.c.h.b16 %v231
    %v875 = vunpack.c.l.b16 %v232
    %v876 = vunpack.c.h.b16 %v232
    %v877 = vunpack.c.l.b16 %v233
    %v878 = vunpack.c.h.b16 %v233
    %v879 = vunpack.c.l.b16 %v234
    %v880 = vunpack.c.h.b16 %v234
    %v881 = vunpack.c.l.b16 %v235
    %v882 = vunpack.c.h.b16 %v235
    %v883 = vunpack.c.l.b16 %v236
    %v884 = vunpack.c.h.b16 %v236
    %v885 = vunpack.c.l.b16 %v237
    %v886 = vunpack.c.h.b16 %v237
    %v887 = vunpack.c.l.b16 %v238
    %v888 = vunpack.c.h.b16 %v238
    %v889 = vunpack.c.l.b16 %v239
    %v890 = vunpack.c.h.b16 %v239
    %v891 = vunpack.c.l.b16 %v240
    %v892 = vunpack.c.h.b16 %v240
    %v893 = vunpack.c.l.b16 %v241
    %v894 = vunpack.c.h.b16 %v241
    %v895 = vunpack.c.l.b16 %v242
    %v896 = vunpack.c.h.b16 %v242
    %v897 = vunpack.c.l.b16 %v243
    %v898 = vunpack.c.h.b16 %v243
    %v899 = vunpack.c.l.b16 %v244
    %v900 = vunpack.c.h.b16 %v244
    %v901 = vunpack.c.l.b16 %v245
    %v902 = vunpack.c.h.b16 %v245
    %v903 = vunpack.c.l.b16 %v246
    %v904 = vunpack.c.h.b16 %v246
    %v905 = vunpack.c.l.b16 %v247
    %v906 = vunpack.c.h.b16 %v247
    %v907 = vunpack.c.l.b16 %v248
    %v908 = vunpack.c.h.b16 %v248
    %v909 = vunpack.c.l.b16 %v249
    %v910 = vunpack.c.h.b16 %v249
    %v911 = vunpack.c.l.b16 %v250
    %v912 = vunpack.c.h.b16 %v250
    %v913 = vunpack.c.l.b16 %v251
    %v914 = vunpack.c.h.b16 %v251
    %v915 = vunpack.c.l.b16 %v252
    %v916 = vunpack.c.h.b16 %v252
    %v917 = vunpack.c.l.b16 %v253
    %v918 = vunpack.c.h.b16 %v253
    %v919 = vunpack.c.l.b16 %v254
    %v920 = vunpack.c.h.b16 %v254
    %v921 = vunpack.c.l.b16 %v255
    %v922 = vunpack.c.h.b16 %v255
    %v923 = vunpack.c.l.b16 %v256
    %v924 = vunpack.c.h.b16 %v256
    %v925 = vunpack.c.l.b16 %v257
    %v926 = vunpack.c.h.b16 %v257
    %v927 = vunpack.c.l.b16 %v258
    %v928 = vunpack.c.h.b16 %v258
    %v929 = vunpack.c.l.b16 %v259
    %v930 = vunpack.c.h.b16 %v259
    %v931 = vunpack.c.l.b16 %v260
    %v932 = vunpack.c.h.b16 %v260
    %v933 = vunpack.c.l.b16 %v261
    %v934 = vunpack.c.h.b16 %v261
    %v935 = vunpack.c.l.b16 %v262
    %v936 = vunpack.c.h.b16 %v262
    %v937 = vunpack.c.l.b16 %v263
    %v938 = vunpack.c.h.b16 %v263
    %v939 = vunpack.c.l.b16 %v264
    %v940 = vunpack.c.h.b16 %v264
    %v941 = vunpack.c.l.b16 %v265
    %v942 = vunpack.c.h.b16 %v265
    %v943 = vunpack.c.l.b16 %v266
    %v944 = vunpack.c.h.b16 %v266
    %v945 = vunpack.c.l.b16 %v267
    %v946 = vunpack.c.h.b16 %v267
    %v947 = vunpack.c.l.b16 %v268
    %v948 = vunpack.c.h.b16 %v268
    %v949 = vunpack.c.l.b16 %v269
    %v950 = vunpack.c.h.b16 %v269
    %v951 = vunpack.c.l.b16 %v270
    %v952 = vunpack.c.h.b16 %v270
    %v953 = vunpack.c.l.b16 %v271
    %v954 = vunpack.c.h.b16 %v271
    %v955 = vunpack.c.l.b16 %v272
    %v956 = vunpack.c.h.b16 %v272
    %v957 = vunpack.c.l.b16 %v273
    %v958 = vunpack.c.h.b16 %v273
    %v959 = vunpack.c.l.b16 %v274
    %v960 = vunpack.c.h.b16 %v274
    %v961 = vunpack.c.l.b16 %v275
    %v962 = vunpack.c.h.b16 %v275
    %v963 = vunpack.c.l.b16 %v276
    %v964 = vunpack.c.h.b16 %v276
    %v965 = vunpack.c.l.b16 %v277
    %v966 = vunpack.c.h.b16 %v277
    %v967 = vunpack.c.l.b16 %v278
    %v968 = vunpack.c.h.b16 %v278
    %v969 = vunpack.c.l.b16 %v279
    %v970 = vunpack.c.h.b16 %v279
    %v971 = vunpack.c.l.b16 %v280
    %v972 = vunpack.c.h.b16 %v280
    %v973 = vunpack.c.l.b16 %v281
    %v974 = vunpack.c.h.b16 %v281
    %v975 = vunpack.c.l.b16 %v282
    %v976 = vunpack.c.h.b16 %v282
    %v977 = vunpack.c.l.b16 %v283
    %v978 = vunpack.c.h.b16 %v283
    %v979 = vunpack.c.l.b16 %v284
    %v980 = vunpack.c.h.b16 %v284
    %v981 = vunpack.c.l.b16 %v285
    %v982 = vunpack.c.h.b16 %v285
    %v983 = vunpack.c.l.b16 %v286
    %v984 = vunpack.c.h.b16 %v286
    %v985 = vunpack.c.l.b16 %v287
    %v986 = vunpack.c.h.b16 %v287
    %v987 = vunpack.c.l.b16 %v288
    %v988 = vunpack.c.h.b16 %v288
    %v989 = vunpack.c.l.b16 %v289
    %v990 = vunpack.c.h.b16 %v289
    %v991 = vunpack.c.l.b16 %v290
    %v992 = vunpack.c.h.b16 %v290
    %v993 = vunpack.c.l.b16 %v291
    %v994 = vunpack.c.h.b16 %v291
    %v995 = vunpack.c.l.b16 %v292
    %v996 = vunpack.c.h.b16 %v292
    %v997 = vunpack.c.l.b16 %v293
    %v998 = vunpack.c.h.b16 %v293
    %v999 = vunpack.c.l.b16 %v294
    %v1000 = vunpack.c.h.b16 %v294
    %v1001 = vunpack.c.l.b16 %v295
    %v1002 = vunpack.c.h.b16 %v295
    %v1003 = vunpack.c.l.b16 %v296
    %v1004 = vunpack.c.h.b16 %v296
    %v1005 = vunpack.c.l.b16 %v297
    %v1006 = vunpack.c.h.b16 %v297
    %v1007 = vunpack.c.l.b16 %v298
    %v1008 = vunpack.c.h.b16 %v298
    %v1009 = vunpack.c.l.b16 %v299
    %v1010 = vunpack.c.h.b16 %v299
    %v1011 = vunpack.c.l.b16 %v300
    %v1012 = vunpack.c.h.b16 %v300
    %v1013 = vunpack.c.l.b16 %v301
    %v1014 = vunpack.c.h.b16 %v301
    %v1015 = vunpack.c.l.b16 %v302
    %v1016 = vunpack.c.h.b16 %v302
    %v1017 = vunpack.c.l.b16 %v303
    %v1018 = vunpack.c.h.b16 %v303
    %v1019 = vunpack.c.l.b16 %v304
    %v1020 = vunpack.c.h.b16 %v304
    %v1021 = vunpack.c.l.b16 %v305
    %v1022 = vunpack.c.h.b16 %v305
    %v1023 = vunpack.c.l.b16 %v306
    %v1024 = vunpack.c.h.b16 %v306
    %v1025 = vunpack.c.l.b16 %v307
    %v1026 = vunpack.c.h.b16 %v307
    %v1027 = vunpack.c.l.b16 %v308
    %v1028 = vunpack.c.h.b16 %v308
    %v1029 = vunpack.c.l.b16 %v309
    %v1030 = vunpack.c.h.b16 %v309
    %v1031 = vunpack.c.l.b16 %v310
    %v1032 = vunpack.c.h.b16 %v310
    %v1033 = vunpack.c.l.b16 %v311
    %v1034 = vunpack.c.h.b16 %v311
    %v1035 = vunpack.c.l.b16 %v312
    %v1036 = vunpack.c.h.b16 %v312
    %v1037 = vunpack.c.l.b16 %v313
    %v1038 = vunpack.c.h.b16 %v313
    %v1039 = vunpack.c.l.b16 %v314
    %v1040 = vunpack.c.h.b16 %v314
    %v1041 = vunpack.c.l.b16 %v315
    %v1042 = vunpack.c.h.b16 %v315
    %v1043 = vunpack.c.l.b16 %v316
    %v1044 = vunpack.c.h.b16 %v316
    %v1045 = vunpack.c.l.b16 %v317
    %v1046 = vunpack.c.h.b16 %v317
    %v1047 = vunpack.c.l.b16 %v318
    %v1048 = vunpack.c.h.b16 %v318
    %v1049 = vunpack.c.l.b16 %v319
    %v1050 = vunpack.c.h.b16 %v319
    %v1051 = vunpack.c.l.b16 %v320
    %v1052 = vunpack.c.h.b16 %v320
    %v1053 = vunpack.c.l.b16 %v321
    %v1054 = vunpack.c.h.b16 %v321
    %v1055 = vunpack.c.l.b16 %v322
    %v1056 = vunpack.c.h.b16 %v322
    %v1057 = vunpack.c.l.b16 %v323
    %v1058 = vunpack.c.h.b16 %v323
    %v1059 = vunpack.c.l.b16 %v324
    %v1060 = vunpack.c.h.b16 %v324
    %v1061 = vunpack.c.l.b16 %v325
    %v1062 = vunpack.c.h.b16 %v325
    %v1063 = vunpack.c.l.b16 %v326
    %v1064 = vunpack.c.h.b16 %v326
    %v1065 = vunpack.c.l.b16 %v327
    %v1066 = vunpack.c.h.b16 %v327
    %v1067 = vunpack.c.l.b16 %v328
    %v1068 = vunpack.c.h.b16 %v328
    %v1069 = vunpack.c.l.b16 %v329
    %v1070 = vunpack.c.h.b16 %v329
    %v1071 = vunpack.c.l.b16 %v330
    %v1072 = vunpack.c.h.b16 %v330
    %v1073 = vunpack.c.l.b16 %v331
    %v1074 = vunpack.c.h.b16 %v331
    %v1075 = vunpack.c.l.b16 %v332
    %v1076 = vunpack.c.h.b16 %v332
    %v1077 = vunpack.c.l.b16 %v333
    %v1078 = vunpack.c.h.b16 %v333
    %v1079 = vunpack.c.l.b16 %v334
    %v1080 = vunpack.c.h.b16 %v334
    %v1081 = vunpack.c.l.b16 %v335
    %v1082 = vunpack.c.h.b16 %v335
    %v1083 = vunpack.c.l.b16 %v336
    %v1084 = vunpack.c.h.b16 %v336
    %v1085 = vunpack.c.l.b16 %v337
    %v1086 = vunpack.c.h.b16 %v337
    %v1087 = vunpack.c.l.b16 %v338
    %v1088 = vunpack.c.h.b16 %v338
    %v1089 = vunpack.c.l.b16 %v339
    %v1090 = vunpack.c.h.b16 %v339
    %v1091 = vunpack.c.l.b16 %v340
    %v1092 = vunpack.c.h.b16 %v340
    %v1093 = vunpack.c.l.b16 %v341
    %v1094 = vunpack.c.h.b16 %v341
    %v1095 = vunpack.c.l.b16 %v342
    %v1096 = vunpack.c.h.b16 %v342
    %v1097 = vunpack.c.l.b16 %v343
    %v1098 = vunpack.c.h.b16 %v343
    %v1099 = vunpack.c.l.b16 %v344
    %v1100 = vunpack.c.h.b16 %v344
    %v1101 = vunpack.c.l.b16 %v345
    %v1102 = vunpack.c.h.b16 %v345
    %v1103 = vunpack.c.l.b16 %v346
    %v1104 = vunpack.c.h.b16 %v346
    %v1105 = vunpack.c.l.b16 %v347
    %v1106 = vunpack.c.h.b16 %v347
    %v1107 = vunpack.c.l.b16 %v348
    %v1108 = vunpack.c.h.b16 %v348
    %v1109 = vunpack.c.l.b16 %v349
    %v1110 = vunpack.c.h.b16 %v349
    %v1111 = vunpack.c.l.b16 %v350
    %v1112 = vunpack.c.h.b16 %v350
    %v1113 = vunpack.c.l.b16 %v351
    %v1114 = vunpack.c.h.b16 %v351
    %v1115 = vunpack.c.l.b16 %v352
    %v1116 = vunpack.c.h.b16 %v352
    %v1117 = vunpack.c.l.b16 %v353
    %v1118 = vunpack.c.h.b16 %v353
    %v1119 = vunpack.c.l.b16 %v354
    %v1120 = vunpack.c.h.b16 %v354
    %v1121 = vunpack.c.l.b16 %v355
    %v1122 = vunpack.c.h.b16 %v355
    %v1123 = vunpack.c.l.b16 %v356
    %v1124 = vunpack.c.h.b16 %v356
    %v1125 = vunpack.c.l.b16 %v357
    %v1126 = vunpack.c.h.b16 %v357
    %v1127 = vunpack.c.l.b16 %v358
    %v1128 = vunpack.c.h.b16 %v358
    %v1129 = vunpack.c.l.b16 %v359
    %v1130 = vunpack.c.h.b16 %v359
    %v1131 = vunpack.c.l.b16 %v360
    %v1132 = vunpack.c.h.b16 %v360
    %v1133 = vunpack.c.l.b16 %v361
    %v1134 = vunpack.c.h.b16 %v361
    %v1135 = vunpack.c.l.b16 %v362
    %v1136 = vunpack.c.h.b16 %v362
    %v1137 = vunpack.c.l.b16 %v363
    %v1138 = vunpack.c.h.b16 %v363
    %v1139 = vunpack.c.l.b16 %v364
    %v1140 = vunpack.c.h.b16 %v364
    %v1141 = vunpack.c.l.b16 %v365
    %v1142 = vunpack.c.h.b16 %v365
    %v1143 = vunpack.c.l.b16 %v366
    %v1144 = vunpack.c.h.b16 %v366
    %v1145 = vpack.c.b16 %v637, %v633
    %v1146 = vpack.c.b16 %v638, %v634
    %v1147 = vpack.c.b16 %v639, %v635
    %v1148 = vpack.c.b16 %v640, %v636
    %v1149 = vpack.c.b16 %v645, %v641
    %v1150 = vpack.c.b16 %v646, %v642
    %v1151 = vpack.c.b16 %v647, %v643
    %v1152 = vpack.c.b16 %v648, %v644
    %v1153 = vpack.c.b16 %v653, %v649
    %v1154 = vpack.c.b16 %v654, %v650
    %v1155 = vpack.c.b16 %v655, %v651
    %v1156 = vpack.c.b16 %v656, %v652
    %v1157 = vpack.c.b16 %v661, %v657
    %v1158 = vpack.c.b16 %v662, %v658
    %v1159 = vpack.c.b16 %v663, %v659
    %v1160 = vpack.c.b16 %v664, %v660
    %v1161 = vpack.c.b16 %v669, %v665
    %v1162 = vpack.c.b16 %v670, %v666
    %v1163 = vpack.c.b16 %v671, %v667
    %v1164 = vpack.c.b16 %v672, %v668
    %v1165 = vpack.c.b16 %v677, %v673
    %v1166 = vpack.c.b16 %v678, %v674
    %v1167 = vpack.c.b16 %v679, %v675
    %v1168 = vpack.c.b16 %v680, %v676
    %v1169 = vpack.c.b16 %v685, %v681
    %v1170 = vpack.c.b16 %v686, %v682
    %v1171 = vpack.c.b16 %v687, %v683
    %v1172 = vpack.c.b16 %v688, %v684
    %v1173 = vpack.c.b16 %v693, %v689
    %v1174 = vpack.c.b16 %v694, %v690
    %v1175 = vpack.c.b16 %v695, %v691
    %v1176 = vpack.c.b16 %v696, %v692
    %v1177 = vpack.c.b16 %v701, %v697
    %v1178 = vpack.c.b16 %v702, %v698
    %v1179 = vpack.c.b16 %v703, %v699
    %v1180 = vpack.c.b16 %v704, %v700
    %v1181 = vpack.c.b16 %v709, %v705
    %v1182 = vpack.c.b16 %v710, %v706
    %v1183 = vpack.c.b16 %v711, %v707
    %v1184 = vpack.c.b16 %v712, %v708
    %v1185 = vpack.c.b16 %v717, %v713
    %v1186 = vpack.c.b16 %v718, %v714
    %v1187 = vpack.c.b16 %v719, %v715
    %v1188 = vpack.c.b16 %v720, %v716
    %v1189 = vpack.c.b16 %v725, %v721
    %v1190 = vpack.c.b16 %v726, %v722
    %v1191 = vpack.c.b16 %v727, %v723
    %v1192 = vpack.c.b16 %v728, %v724
    %v1193 = vpack.c.b16 %v733, %v729
    %v1194 = vpack.c.b16 %v734, %v730
    %v1195 = vpack.c.b16 %v735, %v731
    %v1196 = vpack.c.b16 %v736, %v732
    %v1197 = vpack.c.b16 %v741, %v737
    %v1198 = vpack.c.b16 %v742, %v738
    %v1199 = vpack.c.b16 %v743, %v739
    %v1200 = vpack.c.b16 %v744, %v740
    %v1201 = vpack.c.b16 %v749, %v745
    %v1202 = vpack.c.b16 %v750, %v746
    %v1203 = vpack.c.b16 %v751, %v747
    %v1204 = vpack.c.b16 %v752, %v748
    %v1205 = vpack.c.b16 %v757, %v753
    %v1206 = vpack.c.b16 %v758, %v754
    %v1207 = vpack.c.b16 %v759, %v755
    %v1208 = vpack.c.b16 %v760, %v756
    %v1209 = vpack.c.b16 %v765, %v761
    %v1210 = vpack.c.b16 %v766, %v762
    %v1211 = vpack.c.b16 %v767, %v763
    %v1212 = vpack.c.b16 %v768, %v764
    %v1213 = vpack.c.b16 %v773, %v769
    %v1214 = vpack.c.b16 %v774, %v770
    %v1215 = vpack.c.b16 %v775, %v771
    %v1216 = vpack.c.b16 %v776, %v772
    %v1217 = vpack.c.b16 %v781, %v777
    %v1218 = vpack.c.b16 %v782, %v778
    %v1219 = vpack.c.b16 %v783, %v779
    %v1220 = vpack.c.b16 %v784, %v780
    %v1221 = vpack.c.b16 %v789, %v785
    %v1222 = vpack.c.b16 %v790, %v786
    %v1223 = vpack.c.b16 %v791, %v787
    %v1224 = vpack.c.b16 %v792, %v788
    %v1225 = vpack.c.b16 %v797, %v793
    %v1226 = vpack.c.b16 %v798, %v794
    %v1227 = vpack.c.b16 %v799, %v795
    %v1228 = vpack.c.b16 %v800, %v796
    %v1229 = vpack.c.b16 %v805, %v801
    %v1230 = vpack.c.b16 %v806, %v802
    %v1231 = vpack.c.b16 %v807, %v803
    %v1232 = vpack.c.b16 %v808, %v804
    %v1233 = vpack.c.b16 %v813, %v809
    %v1234 = vpack.c.b16 %v814, %v810
    %v1235 = vpack.c.b16 %v815, %v811
    %v1236 = vpack.c.b16 %v816, %v812
    %v1237 = vpack.c.b16 %v821, %v817
    %v1238 = vpack.c.b16 %v822, %v818
    %v1239 = vpack.c.b16 %v823, %v819
    %v1240 = vpack.c.b16 %v824, %v820
    %v1241 = vpack.c.b16 %v829, %v825
    %v1242 = vpack.c.b16 %v830, %v826
    %v1243 = vpack.c.b16 %v831, %v827
    %v1244 = vpack.c.b16 %v832, %v828
    %v1245 = vpack.c.b16 %v837, %v833
    %v1246 = vpack.c.b16 %v838, %v834
    %v1247 = vpack.c.b16 %v839, %v835
    %v1248 = vpack.c.b16 %v840, %v836
    %v1249 = vpack.c.b16 %v845, %v841
    %v1250 = vpack.c.b16 %v846, %v842
    %v1251 = vpack.c.b16 %v847, %v843
    %v1252 = vpack.c.b16 %v848, %v844
    %v1253 = vpack.c.b16 %v853, %v849
    %v1254 = vpack.c.b16 %v854, %v850
    %v1255 = vpack.c.b16 %v855, %v851
    %v1256 = vpack.c.b16 %v856, %v852
    %v1257 = vpack.c.b16 %v861, %v857
    %v1258 = vpack.c.b16 %v862, %v858
    %v1259 = vpack.c.b16 %v863, %v859
    %v1260 = vpack.c.b16 %v864, %v860
    %v1261 = vpack.c.b16 %v869, %v865
    %v1262 = vpack.c.b16 %v870, %v866
    %v1263 = vpack.c.b16 %v871, %v867
    %v1264 = vpack.c.b16 %v872, %v868
    %v1265 = vpack.c.b16 %v877, %v873
    %v1266 = vpack.c.b16 %v878, %v874
    %v1267 = vpack.c.b16 %v879, %v875
    %v1268 = vpack.c.b16 %v880, %v876
    %v1269 = vpack.c.b16 %v885, %v881
    %v1270 = vpack.c.b16 %v886, %v882
    %v1271 = vpack.c.b16 %v887, %v883
    %v1272 = vpack.c.b16 %v888, %v884
    %v1273 = vpack.c.b16 %v893, %v889
    %v1274 = vpack.c.b16 %v894, %v890
    %v1275 = vpack.c.b16 %v895, %v891
    %v1276 = vpack.c.b16 %v896, %v892
    %v1277 = vpack.c.b16 %v901, %v897
    %v1278 = vpack.c.b16 %v902, %v898
    %v1279 = vpack.c.b16 %v903, %v899
    %v1280 = vpack.c.b16 %v904, %v900
    %v1281 = vpack.c.b16 %v909, %v905
    %v1282 = vpack.c.b16 %v910, %v906
    %v1283 = vpack.c.b16 %v911, %v907
    %v1284 = vpack.c.b16 %v912, %v908
    %v1285 = vpack.c.b16 %v917, %v913
    %v1286 = vpack.c.b16 %v918, %v914
    %v1287 = vpack.c.b16 %v919, %v915
    %v1288 = vpack.c.b16 %v920, %v916
    %v1289 = vpack.c.b16 %v925, %v921
    %v1290 = vpack.c.b16 %v926, %v922
    %v1291 = vpack.c.b16 %v927, %v923
    %v1292 = vpack.c.b16 %v928, %v924
    %v1293 = vpack.c.b16 %v933, %v929
    %v1294 = vpack.c.b16 %v934, %v930
    %v1295 = vpack.c.b16 %v935, %v931
    %v1296 = vpack.c.b16 %v936, %v932
    %v1297 = vpack.c.b16 %v941, %v937
    %v1298 = vpack.c.b16 %v942, %v938
    %v1299 = vpack.c.b16 %v943, %v939
    %v1300 = vpack.c.b16 %v944, %v940
    %v1301 = vpack.c.b16 %v949, %v945
    %v1302 = vpack.c.b16 %v950, %v946
    %v1303 = vpack.c.b16 %v951, %v947
    %v1304 = vpack.c.b16 %v952, %v948
    %v1305 = vpack.c.b16 %v957, %v953
    %v1306 = vpack.c.b16 %v958, %v954
    %v1307 = vpack.c.b16 %v959, %v955
    %v1308 = vpack.c.b16 %v960, %v956
    %v1309 = vpack.c.b16 %v965, %v961
    %v1310 = vpack.c.b16 %v966, %v962
    %v1311 = vpack.c.b16 %v967, %v963
    %v1312 = vpack.c.b16 %v968, %v964
    %v1313 = vpack.c.b16 %v973, %v969
    %v1314 = vpack.c.b16 %v974, %v970
    %v1315 = vpack.c.b16 %v975, %v971
    %v1316 = vpack.c.b16 %v976, %v972
    %v1317 = vpack.c.b16 %v981, %v977
    %v1318 = vpack.c.b16 %v982, %v978
    %v1319 = vpack.c.b16 %v983, %v979
    %v1320 = vpack.c.b16 %v984, %v980
    %v1321 = vpack.c.b16 %v989, %v985
    %v1322 = vpack.c.b16 %v990, %v986
    %v1323 = vpack.c.b16 %v991, %v987
    %v1324 = vpack.c.b16 %v992, %v988
    %v1325 = vpack.c.b16 %v997, %v993
    %v1326 = vpack.c.b16 %v998, %v994
    %v1327 = vpack.c.b16 %v999, %v995
    %v1328 = vpack.c.b16 %v1000, %v996
    %v1329 = vpack.c.b16 %v1005, %v1001
    %v1330 = vpack.c.b16 %v1006, %v1002
    %v1331 = vpack.c.b16 %v1007, %v1003
    %v1332 = vpack.c.b16 %v1008, %v1004
    %v1333 = vpack.c.b16 %v1013, %v1009
    %v1334 = vpack.c.b16 %v1014, %v1010
    %v1335 = vpack.c.b16 %v1015, %v1011
    %v1336 = vpack.c.b16 %v1016, %v1012
    %v1337 = vpack.c.b16 %v1021, %v1017
    %v1338 = vpack.c.b16 %v1022, %v1018
    %v1339 = vpack.c.b16 %v1023, %v1019
    %v1340 = vpack.c.b16 %v1024, %v1020
    %v1341 = vpack.c.b16 %v1029, %v1025
    %v1342 = vpack.c.b16 %v1030, %v1026
    %v1343 = vpack.c.b16 %v1031, %v1027
    %v1344 = vpack.c.b16 %v1032, %v1028
    %v1345 = vpack.c.b16 %v1037, %v1033
    %v1346 = vpack.c.b16 %v1038, %v1034
    %v1347 = vpack.c.b16 %v1039, %v1035
    %v1348 = vpack.c.b16 %v1040, %v1036
    %v1349 = vpack.c.b16 %v1045, %v1041
    %v1350 = vpack.c.b16 %v1046, %v1042
    %v1351 = vpack.c.b16 %v1047, %v1043
    %v1352 = vpack.c.b16 %v1048, %v1044
    %v1353 = vpack.c.b16 %v1053, %v1049
    %v1354 = vpack.c.b16 %v1054, %v1050
    %v1355 = vpack.c.b16 %v1055, %v1051
    %v1356 = vpack.c.b16 %v1056, %v1052
    %v1357 = vpack.c.b16 %v1061, %v1057
    %v1358 = vpack.c.b16 %v1062, %v1058
    %v1359 = vpack.c.b16 %v1063, %v1059
    %v1360 = vpack.c.b16 %v1064, %v1060
    %v1361 = vpack.c.b16 %v1069, %v1065
    %v1362 = vpack.c.b16 %v1070, %v1066
    %v1363 = vpack.c.b16 %v1071, %v1067
    %v1364 = vpack.c.b16 %v1072, %v1068
    %v1365 = vpack.c.b16 %v1077, %v1073
    %v1366 = vpack.c.b16 %v1078, %v1074
    %v1367 = vpack.c.b16 %v1079, %v1075
    %v1368 = vpack.c.b16 %v1080, %v1076
    %v1369 = vpack.c.b16 %v1085, %v1081
    %v1370 = vpack.c.b16 %v1086, %v1082
    %v1371 = vpack.c.b16 %v1087, %v1083
    %v1372 = vpack.c.b16 %v1088, %v1084
    %v1373 = vpack.c.b16 %v1093, %v1089
    %v1374 = vpack.c.b16 %v1094, %v1090
    %v1375 = vpack.c.b16 %v1095, %v1091
    %v1376 = vpack.c.b16 %v1096, %v1092
    %v1377 = vpack.c.b16 %v1101, %v1097
    %v1378 = vpack.c.b16 %v1102, %v1098
    %v1379 = vpack.c.b16 %v1103, %v1099
    %v1380 = vpack.c.b16 %v1104, %v1100
    %v1381 = vpack.c.b16 %v1109, %v1105
    %v1382 = vpack.c.b16 %v1110, %v1106
    %v1383 = vpack.c.b16 %v1111, %v1107
    %v1384 = vpack.c.b16 %v1112, %v1108
    %v1385 = vpack.c.b16 %v1117, %v1113
    %v1386 = vpack.c.b16 %v1118, %v1114
    %v1387 = vpack.c.b16 %v1119, %v1115
    %v1388 = vpack.c.b16 %v1120, %v1116
    %v1389 = vpack.c.b16 %v1125, %v1121
    %v1390 = vpack.c.b16 %v1126, %v1122
    %v1391 = vpack.c.b16 %v1127, %v1123
    %v1392 = vpack.c.b16 %v1128, %v1124
    %v1393 = vpack.c.b16 %v1133, %v1129
    %v1394 = vpack.c.b16 %v1134, %v1130
    %v1395 = vpack.c.b16 %v1135, %v1131
    %v1396 = vpack.c.b16 %v1136, %v1132
    %v1397 = vpack.c.b16 %v1141, %v1137
    %v1398 = vpack.c.b16 %v1142, %v1138
    %v1399 = vpack.c.b16 %v1143, %v1139
    %v1400 = vpack.c.b16 %v1144, %v1140
    %1657 = vmatpush.bf16.msra.mxu0 %v1173
    %1658 = vmatpush.bf16.msra.mxu0 %v1169
    %1659 = vmatpush.bf16.msra.mxu0 %v1165
    %1660 = vmatpush.bf16.msra.mxu0 %v1161
    %1661 = vmatpush.bf16.msra.mxu0 %v1157
    %1662 = vmatpush.bf16.msra.mxu0 %v1153
    %1663 = vmatpush.bf16.msra.mxu0 %v1149
    %1664 = vmatpush.bf16.msra.mxu0 %v1145
    %1665 = vmatmul.bf16.gmra.mxu0 %v103
    %v1666 = vpop.f32.mrf.mxu0
    %v1667 = vadd.f32 %v369, %v1666
    %v1668 = vpop.f32.mrf.mxu0
    %1669 = vdwg.mxu0
    %1670 = vmatpush.bf16.msra.mxu0 %v1205
    %1671 = vmatpush.bf16.msra.mxu0 %v1201
    %1672 = vmatpush.bf16.msra.mxu0 %v1197
    %1673 = vmatpush.bf16.msra.mxu0 %v1193
    %1674 = vmatpush.bf16.msra.mxu0 %v1189
    %1675 = vmatpush.bf16.msra.mxu0 %v1185
    %1676 = vmatpush.bf16.msra.mxu0 %v1181
    %1677 = vmatpush.bf16.msra.mxu0 %v1177
    %1678 = vmatmul.bf16.gmra.mxu0 %v104
    %v1679 = vpop.f32.mrf.mxu0
    %v1680 = vadd.f32 %v1667, %v1679
    %v1681 = vpop.f32.mrf.mxu0
    %1682 = vdwg.mxu0
    %1683 = vmatpush.bf16.msra.mxu0 %v1237
    %1684 = vmatpush.bf16.msra.mxu0 %v1233
    %1685 = vmatpush.bf16.msra.mxu0 %v1229
    %1686 = vmatpush.bf16.msra.mxu0 %v1225
    %1687 = vmatpush.bf16.msra.mxu0 %v1221
    %1688 = vmatpush.bf16.msra.mxu0 %v1217
    %1689 = vmatpush.bf16.msra.mxu0 %v1213
    %1690 = vmatpush.bf16.msra.mxu0 %v1209
    %1691 = vmatmul.bf16.gmra.mxu0 %v105
    %v1692 = vpop.f32.mrf.mxu0
    %v1693 = vadd.f32 %v1680, %v1692
    %v1694 = vpop.f32.mrf.mxu0
    %1695 = vdwg.mxu0
    %1696 = vmatpush.bf16.msra.mxu0 %v1269
    %1697 = vmatpush.bf16.msra.mxu0 %v1265
    %1698 = vmatpush.bf16.msra.mxu0 %v1261
    %1699 = vmatpush.bf16.msra.mxu0 %v1257
    %1700 = vmatpush.bf16.msra.mxu0 %v1253
    %1701 = vmatpush.bf16.msra.mxu0 %v1249
    %1702 = vmatpush.bf16.msra.mxu0 %v1245
    %1703 = vmatpush.bf16.msra.mxu0 %v1241
    %1704 = vmatmul.bf16.gmra.mxu0 %v106
    %v1705 = vpop.f32.mrf.mxu0
    %v1706 = vadd.f32 %v1693, %v1705
    %v1707 = vpop.f32.mrf.mxu0
    %1708 = vdwg.mxu0
    %1709 = vmatpush.bf16.msra.mxu0 %v1301
    %1710 = vmatpush.bf16.msra.mxu0 %v1297
    %1711 = vmatpush.bf16.msra.mxu0 %v1293
    %1712 = vmatpush.bf16.msra.mxu0 %v1289
    %1713 = vmatpush.bf16.msra.mxu0 %v1285
    %1714 = vmatpush.bf16.msra.mxu0 %v1281
    %1715 = vmatpush.bf16.msra.mxu0 %v1277
    %1716 = vmatpush.bf16.msra.mxu0 %v1273
    %1717 = vmatmul.bf16.gmra.mxu0 %v107
    %v1718 = vpop.f32.mrf.mxu0
    %v1719 = vadd.f32 %v1706, %v1718
    %v1720 = vpop.f32.mrf.mxu0
    %1721 = vdwg.mxu0
    %1722 = vmatpush.bf16.msra.mxu0 %v1333
    %1723 = vmatpush.bf16.msra.mxu0 %v1329
    %1724 = vmatpush.bf16.msra.mxu0 %v1325
    %1725 = vmatpush.bf16.msra.mxu0 %v1321
    %1726 = vmatpush.bf16.msra.mxu0 %v1317
    %1727 = vmatpush.bf16.msra.mxu0 %v1313
    %1728 = vmatpush.bf16.msra.mxu0 %v1309
    %1729 = vmatpush.bf16.msra.mxu0 %v1305
    %1730 = vmatmul.bf16.gmra.mxu0 %v108
    %v1731 = vpop.f32.mrf.mxu0
    %v1732 = vadd.f32 %v1719, %v1731
    %v1733 = vpop.f32.mrf.mxu0
    %1734 = vdwg.mxu0
    %1735 = vmatpush.bf16.msra.mxu0 %v1365
    %1736 = vmatpush.bf16.msra.mxu0 %v1361
    %1737 = vmatpush.bf16.msra.mxu0 %v1357
    %1738 = vmatpush.bf16.msra.mxu0 %v1353
    %1739 = vmatpush.bf16.msra.mxu0 %v1349
    %1740 = vmatpush.bf16.msra.mxu0 %v1345
    %1741 = vmatpush.bf16.msra.mxu0 %v1341
    %1742 = vmatpush.bf16.msra.mxu0 %v1337
    %1743 = vmatmul.bf16.gmra.mxu0 %v109
    %v1744 = vpop.f32.mrf.mxu0
    %v1745 = vadd.f32 %v1732, %v1744
    %v1746 = vpop.f32.mrf.mxu0
    %1747 = vdwg.mxu0
    %1748 = vmatpush.bf16.msra.mxu0 %v1397
    %1749 = vmatpush.bf16.msra.mxu0 %v1393
    %1750 = vmatpush.bf16.msra.mxu0 %v1389
    %1751 = vmatpush.bf16.msra.mxu0 %v1385
    %1752 = vmatpush.bf16.msra.mxu0 %v1381
    %1753 = vmatpush.bf16.msra.mxu0 %v1377
    %1754 = vmatpush.bf16.msra.mxu0 %v1373
    %1755 = vmatpush.bf16.msra.mxu0 %v1369
    %1756 = vmatmul.bf16.gmra.mxu0 %v110
    %v1757 = vpop.f32.mrf.mxu0
    %v1758 = vadd.f32 %v1745, %v1757
    %v1759 = vpop.f32.mrf.mxu0
    %1760 = vdwg.mxu0
    %1761 = vmatpush.bf16.msra.mxu0 %v1174
    %1762 = vmatpush.bf16.msra.mxu0 %v1170
    %1763 = vmatpush.bf16.msra.mxu0 %v1166
    %1764 = vmatpush.bf16.msra.mxu0 %v1162
    %1765 = vmatpush.bf16.msra.mxu0 %v1158
    %1766 = vmatpush.bf16.msra.mxu0 %v1154
    %1767 = vmatpush.bf16.msra.mxu0 %v1150
    %1768 = vmatpush.bf16.msra.mxu0 %v1146
    %1769 = vmatmul.bf16.gmra.mxu0 %v103
    %v1770 = vpop.f32.mrf.mxu0
    %v1771 = vadd.f32 %v370, %v1770
    %v1772 = vpop.f32.mrf.mxu0
    %1773 = vdwg.mxu0
    %1774 = vmatpush.bf16.msra.mxu0 %v1206
    %1775 = vmatpush.bf16.msra.mxu0 %v1202
    %1776 = vmatpush.bf16.msra.mxu0 %v1198
    %1777 = vmatpush.bf16.msra.mxu0 %v1194
    %1778 = vmatpush.bf16.msra.mxu0 %v1190
    %1779 = vmatpush.bf16.msra.mxu0 %v1186
    %1780 = vmatpush.bf16.msra.mxu0 %v1182
    %1781 = vmatpush.bf16.msra.mxu0 %v1178
    %1782 = vmatmul.bf16.gmra.mxu0 %v104
    %v1783 = vpop.f32.mrf.mxu0
    %v1784 = vadd.f32 %v1771, %v1783
    %v1785 = vpop.f32.mrf.mxu0
    %1786 = vdwg.mxu0
    %1787 = vmatpush.bf16.msra.mxu0 %v1238
    %1788 = vmatpush.bf16.msra.mxu0 %v1234
    %1789 = vmatpush.bf16.msra.mxu0 %v1230
    %1790 = vmatpush.bf16.msra.mxu0 %v1226
    %1791 = vmatpush.bf16.msra.mxu0 %v1222
    %1792 = vmatpush.bf16.msra.mxu0 %v1218
    %1793 = vmatpush.bf16.msra.mxu0 %v1214
    %1794 = vmatpush.bf16.msra.mxu0 %v1210
    %1795 = vmatmul.bf16.gmra.mxu0 %v105
    %v1796 = vpop.f32.mrf.mxu0
    %v1797 = vadd.f32 %v1784, %v1796
    %v1798 = vpop.f32.mrf.mxu0
    %1799 = vdwg.mxu0
    %1800 = vmatpush.bf16.msra.mxu0 %v1270
    %1801 = vmatpush.bf16.msra.mxu0 %v1266
    %1802 = vmatpush.bf16.msra.mxu0 %v1262
    %1803 = vmatpush.bf16.msra.mxu0 %v1258
    %1804 = vmatpush.bf16.msra.mxu0 %v1254
    %1805 = vmatpush.bf16.msra.mxu0 %v1250
    %1806 = vmatpush.bf16.msra.mxu0 %v1246
    %1807 = vmatpush.bf16.msra.mxu0 %v1242
    %1808 = vmatmul.bf16.gmra.mxu0 %v106
    %v1809 = vpop.f32.mrf.mxu0
    %v1810 = vadd.f32 %v1797, %v1809
    %v1811 = vpop.f32.mrf.mxu0
    %1812 = vdwg.mxu0
    %1813 = vmatpush.bf16.msra.mxu0 %v1302
    %1814 = vmatpush.bf16.msra.mxu0 %v1298
    %1815 = vmatpush.bf16.msra.mxu0 %v1294
    %1816 = vmatpush.bf16.msra.mxu0 %v1290
    %1817 = vmatpush.bf16.msra.mxu0 %v1286
    %1818 = vmatpush.bf16.msra.mxu0 %v1282
    %1819 = vmatpush.bf16.msra.mxu0 %v1278
    %1820 = vmatpush.bf16.msra.mxu0 %v1274
    %1821 = vmatmul.bf16.gmra.mxu0 %v107
    %v1822 = vpop.f32.mrf.mxu0
    %v1823 = vadd.f32 %v1810, %v1822
    %v1824 = vpop.f32.mrf.mxu0
    %1825 = vdwg.mxu0
    %1826 = vmatpush.bf16.msra.mxu0 %v1334
    %1827 = vmatpush.bf16.msra.mxu0 %v1330
    %1828 = vmatpush.bf16.msra.mxu0 %v1326
    %1829 = vmatpush.bf16.msra.mxu0 %v1322
    %1830 = vmatpush.bf16.msra.mxu0 %v1318
    %1831 = vmatpush.bf16.msra.mxu0 %v1314
    %1832 = vmatpush.bf16.msra.mxu0 %v1310
    %1833 = vmatpush.bf16.msra.mxu0 %v1306
    %1834 = vmatmul.bf16.gmra.mxu0 %v108
    %v1835 = vpop.f32.mrf.mxu0
    %v1836 = vadd.f32 %v1823, %v1835
    %v1837 = vpop.f32.mrf.mxu0
    %1838 = vdwg.mxu0
    %1839 = vmatpush.bf16.msra.mxu0 %v1366
    %1840 = vmatpush.bf16.msra.mxu0 %v1362
    %1841 = vmatpush.bf16.msra.mxu0 %v1358
    %1842 = vmatpush.bf16.msra.mxu0 %v1354
    %1843 = vmatpush.bf16.msra.mxu0 %v1350
    %1844 = vmatpush.bf16.msra.mxu0 %v1346
    %1845 = vmatpush.bf16.msra.mxu0 %v1342
    %1846 = vmatpush.bf16.msra.mxu0 %v1338
    %1847 = vmatmul.bf16.gmra.mxu0 %v109
    %v1848 = vpop.f32.mrf.mxu0
    %v1849 = vadd.f32 %v1836, %v1848
    %v1850 = vpop.f32.mrf.mxu0
    %1851 = vdwg.mxu0
    %1852 = vmatpush.bf16.msra.mxu0 %v1398
    %1853 = vmatpush.bf16.msra.mxu0 %v1394
    %1854 = vmatpush.bf16.msra.mxu0 %v1390
    %1855 = vmatpush.bf16.msra.mxu0 %v1386
    %1856 = vmatpush.bf16.msra.mxu0 %v1382
    %1857 = vmatpush.bf16.msra.mxu0 %v1378
    %1858 = vmatpush.bf16.msra.mxu0 %v1374
    %1859 = vmatpush.bf16.msra.mxu0 %v1370
    %1860 = vmatmul.bf16.gmra.mxu0 %v110
    %v1861 = vpop.f32.mrf.mxu0
    %v1862 = vadd.f32 %v1849, %v1861
    %v1863 = vpop.f32.mrf.mxu0
    %1864 = vdwg.mxu0
    %1865 = vmatpush.bf16.msra.mxu0 %v1175
    %1866 = vmatpush.bf16.msra.mxu0 %v1171
    %1867 = vmatpush.bf16.msra.mxu0 %v1167
    %1868 = vmatpush.bf16.msra.mxu0 %v1163
    %1869 = vmatpush.bf16.msra.mxu0 %v1159
    %1870 = vmatpush.bf16.msra.mxu0 %v1155
    %1871 = vmatpush.bf16.msra.mxu0 %v1151
    %1872 = vmatpush.bf16.msra.mxu0 %v1147
    %1873 = vmatmul.bf16.gmra.mxu0 %v103
    %v1874 = vpop.f32.mrf.mxu0
    %v1875 = vadd.f32 %v371, %v1874
    %v1876 = vpop.f32.mrf.mxu0
    %1877 = vdwg.mxu0
    %1878 = vmatpush.bf16.msra.mxu0 %v1207
    %1879 = vmatpush.bf16.msra.mxu0 %v1203
    %1880 = vmatpush.bf16.msra.mxu0 %v1199
    %1881 = vmatpush.bf16.msra.mxu0 %v1195
    %1882 = vmatpush.bf16.msra.mxu0 %v1191
    %1883 = vmatpush.bf16.msra.mxu0 %v1187
    %1884 = vmatpush.bf16.msra.mxu0 %v1183
    %1885 = vmatpush.bf16.msra.mxu0 %v1179
    %1886 = vmatmul.bf16.gmra.mxu0 %v104
    %v1887 = vpop.f32.mrf.mxu0
    %v1888 = vadd.f32 %v1875, %v1887
    %v1889 = vpop.f32.mrf.mxu0
    %1890 = vdwg.mxu0
    %1891 = vmatpush.bf16.msra.mxu0 %v1239
    %1892 = vmatpush.bf16.msra.mxu0 %v1235
    %1893 = vmatpush.bf16.msra.mxu0 %v1231
    %1894 = vmatpush.bf16.msra.mxu0 %v1227
    %1895 = vmatpush.bf16.msra.mxu0 %v1223
    %1896 = vmatpush.bf16.msra.mxu0 %v1219
    %1897 = vmatpush.bf16.msra.mxu0 %v1215
    %1898 = vmatpush.bf16.msra.mxu0 %v1211
    %1899 = vmatmul.bf16.gmra.mxu0 %v105
    %v1900 = vpop.f32.mrf.mxu0
    %v1901 = vadd.f32 %v1888, %v1900
    %v1902 = vpop.f32.mrf.mxu0
    %1903 = vdwg.mxu0
    %1904 = vmatpush.bf16.msra.mxu0 %v1271
    %1905 = vmatpush.bf16.msra.mxu0 %v1267
    %1906 = vmatpush.bf16.msra.mxu0 %v1263
    %1907 = vmatpush.bf16.msra.mxu0 %v1259
    %1908 = vmatpush.bf16.msra.mxu0 %v1255
    %1909 = vmatpush.bf16.msra.mxu0 %v1251
    %1910 = vmatpush.bf16.msra.mxu0 %v1247
    %1911 = vmatpush.bf16.msra.mxu0 %v1243
    %1912 = vmatmul.bf16.gmra.mxu0 %v106
    %v1913 = vpop.f32.mrf.mxu0
    %v1914 = vadd.f32 %v1901, %v1913
    %v1915 = vpop.f32.mrf.mxu0
    %1916 = vdwg.mxu0
    %1917 = vmatpush.bf16.msra.mxu0 %v1303
    %1918 = vmatpush.bf16.msra.mxu0 %v1299
    %1919 = vmatpush.bf16.msra.mxu0 %v1295
    %1920 = vmatpush.bf16.msra.mxu0 %v1291
    %1921 = vmatpush.bf16.msra.mxu0 %v1287
    %1922 = vmatpush.bf16.msra.mxu0 %v1283
    %1923 = vmatpush.bf16.msra.mxu0 %v1279
    %1924 = vmatpush.bf16.msra.mxu0 %v1275
    %1925 = vmatmul.bf16.gmra.mxu0 %v107
    %v1926 = vpop.f32.mrf.mxu0
    %v1927 = vadd.f32 %v1914, %v1926
    %v1928 = vpop.f32.mrf.mxu0
    %1929 = vdwg.mxu0
    %1930 = vmatpush.bf16.msra.mxu0 %v1335
    %1931 = vmatpush.bf16.msra.mxu0 %v1331
    %1932 = vmatpush.bf16.msra.mxu0 %v1327
    %1933 = vmatpush.bf16.msra.mxu0 %v1323
    %1934 = vmatpush.bf16.msra.mxu0 %v1319
    %1935 = vmatpush.bf16.msra.mxu0 %v1315
    %1936 = vmatpush.bf16.msra.mxu0 %v1311
    %1937 = vmatpush.bf16.msra.mxu0 %v1307
    %1938 = vmatmul.bf16.gmra.mxu0 %v108
    %v1939 = vpop.f32.mrf.mxu0
    %v1940 = vadd.f32 %v1927, %v1939
    %v1941 = vpop.f32.mrf.mxu0
    %1942 = vdwg.mxu0
    %1943 = vmatpush.bf16.msra.mxu0 %v1367
    %1944 = vmatpush.bf16.msra.mxu0 %v1363
    %1945 = vmatpush.bf16.msra.mxu0 %v1359
    %1946 = vmatpush.bf16.msra.mxu0 %v1355
    %1947 = vmatpush.bf16.msra.mxu0 %v1351
    %1948 = vmatpush.bf16.msra.mxu0 %v1347
    %1949 = vmatpush.bf16.msra.mxu0 %v1343
    %1950 = vmatpush.bf16.msra.mxu0 %v1339
    %1951 = vmatmul.bf16.gmra.mxu0 %v109
    %v1952 = vpop.f32.mrf.mxu0
    %v1953 = vadd.f32 %v1940, %v1952
    %v1954 = vpop.f32.mrf.mxu0
    %1955 = vdwg.mxu0
    %1956 = vmatpush.bf16.msra.mxu0 %v1399
    %1957 = vmatpush.bf16.msra.mxu0 %v1395
    %1958 = vmatpush.bf16.msra.mxu0 %v1391
    %1959 = vmatpush.bf16.msra.mxu0 %v1387
    %1960 = vmatpush.bf16.msra.mxu0 %v1383
    %1961 = vmatpush.bf16.msra.mxu0 %v1379
    %1962 = vmatpush.bf16.msra.mxu0 %v1375
    %1963 = vmatpush.bf16.msra.mxu0 %v1371
    %1964 = vmatmul.bf16.gmra.mxu0 %v110
    %v1965 = vpop.f32.mrf.mxu0
    %v1966 = vadd.f32 %v1953, %v1965
    %v1967 = vpop.f32.mrf.mxu0
    %1968 = vdwg.mxu0
    %1969 = vmatpush.bf16.msra.mxu0 %v1176
    %1970 = vmatpush.bf16.msra.mxu0 %v1172
    %1971 = vmatpush.bf16.msra.mxu0 %v1168
    %1972 = vmatpush.bf16.msra.mxu0 %v1164
    %1973 = vmatpush.bf16.msra.mxu0 %v1160
    %1974 = vmatpush.bf16.msra.mxu0 %v1156
    %1975 = vmatpush.bf16.msra.mxu0 %v1152
    %1976 = vmatpush.bf16.msra.mxu0 %v1148
    %1977 = vmatmul.bf16.gmra.mxu0 %v103
    %v1978 = vpop.f32.mrf.mxu0
    %v1979 = vadd.f32 %v372, %v1978
    %v1980 = vpop.f32.mrf.mxu0
    %1981 = vdwg.mxu0
    %1982 = vmatpush.bf16.msra.mxu0 %v1208
    %1983 = vmatpush.bf16.msra.mxu0 %v1204
    %1984 = vmatpush.bf16.msra.mxu0 %v1200
    %1985 = vmatpush.bf16.msra.mxu0 %v1196
    %1986 = vmatpush.bf16.msra.mxu0 %v1192
    %1987 = vmatpush.bf16.msra.mxu0 %v1188
    %1988 = vmatpush.bf16.msra.mxu0 %v1184
    %1989 = vmatpush.bf16.msra.mxu0 %v1180
    %1990 = vmatmul.bf16.gmra.mxu0 %v104
    %v1991 = vpop.f32.mrf.mxu0
    %v1992 = vadd.f32 %v1979, %v1991
    %v1993 = vpop.f32.mrf.mxu0
    %1994 = vdwg.mxu0
    %1995 = vmatpush.bf16.msra.mxu0 %v1240
    %1996 = vmatpush.bf16.msra.mxu0 %v1236
    %1997 = vmatpush.bf16.msra.mxu0 %v1232
    %1998 = vmatpush.bf16.msra.mxu0 %v1228
    %1999 = vmatpush.bf16.msra.mxu0 %v1224
    %2000 = vmatpush.bf16.msra.mxu0 %v1220
    %2001 = vmatpush.bf16.msra.mxu0 %v1216
    %2002 = vmatpush.bf16.msra.mxu0 %v1212
    %2003 = vmatmul.bf16.gmra.mxu0 %v105
    %v2004 = vpop.f32.mrf.mxu0
    %v2005 = vadd.f32 %v1992, %v2004
    %v2006 = vpop.f32.mrf.mxu0
    %2007 = vdwg.mxu0
    %2008 = vmatpush.bf16.msra.mxu0 %v1272
    %2009 = vmatpush.bf16.msra.mxu0 %v1268
    %2010 = vmatpush.bf16.msra.mxu0 %v1264
    %2011 = vmatpush.bf16.msra.mxu0 %v1260
    %2012 = vmatpush.bf16.msra.mxu0 %v1256
    %2013 = vmatpush.bf16.msra.mxu0 %v1252
    %2014 = vmatpush.bf16.msra.mxu0 %v1248
    %2015 = vmatpush.bf16.msra.mxu0 %v1244
    %2016 = vmatmul.bf16.gmra.mxu0 %v106
    %v2017 = vpop.f32.mrf.mxu0
    %v2018 = vadd.f32 %v2005, %v2017
    %v2019 = vpop.f32.mrf.mxu0
    %2020 = vdwg.mxu0
    %2021 = vmatpush.bf16.msra.mxu0 %v1304
    %2022 = vmatpush.bf16.msra.mxu0 %v1300
    %2023 = vmatpush.bf16.msra.mxu0 %v1296
    %2024 = vmatpush.bf16.msra.mxu0 %v1292
    %2025 = vmatpush.bf16.msra.mxu0 %v1288
    %2026 = vmatpush.bf16.msra.mxu0 %v1284
    %2027 = vmatpush.bf16.msra.mxu0 %v1280
    %2028 = vmatpush.bf16.msra.mxu0 %v1276
    %2029 = vmatmul.bf16.gmra.mxu0 %v107
    %v2030 = vpop.f32.mrf.mxu0
    %v2031 = vadd.f32 %v2018, %v2030
    %v2032 = vpop.f32.mrf.mxu0
    %2033 = vdwg.mxu0
    %2034 = vmatpush.bf16.msra.mxu0 %v1336
    %2035 = vmatpush.bf16.msra.mxu0 %v1332
    %2036 = vmatpush.bf16.msra.mxu0 %v1328
    %2037 = vmatpush.bf16.msra.mxu0 %v1324
    %2038 = vmatpush.bf16.msra.mxu0 %v1320
    %2039 = vmatpush.bf16.msra.mxu0 %v1316
    %2040 = vmatpush.bf16.msra.mxu0 %v1312
    %2041 = vmatpush.bf16.msra.mxu0 %v1308
    %2042 = vmatmul.bf16.gmra.mxu0 %v108
    %v2043 = vpop.f32.mrf.mxu0
    %v2044 = vadd.f32 %v2031, %v2043
    %v2045 = vpop.f32.mrf.mxu0
    %2046 = vdwg.mxu0
    %2047 = vmatpush.bf16.msra.mxu0 %v1368
    %2048 = vmatpush.bf16.msra.mxu0 %v1364
    %2049 = vmatpush.bf16.msra.mxu0 %v1360
    %2050 = vmatpush.bf16.msra.mxu0 %v1356
    %2051 = vmatpush.bf16.msra.mxu0 %v1352
    %2052 = vmatpush.bf16.msra.mxu0 %v1348
    %2053 = vmatpush.bf16.msra.mxu0 %v1344
    %2054 = vmatpush.bf16.msra.mxu0 %v1340
    %2055 = vmatmul.bf16.gmra.mxu0 %v109
    %v2056 = vpop.f32.mrf.mxu0
    %v2057 = vadd.f32 %v2044, %v2056
    %v2058 = vpop.f32.mrf.mxu0
    %2059 = vdwg.mxu0
    %2060 = vmatpush.bf16.msra.mxu0 %v1400
    %2061 = vmatpush.bf16.msra.mxu0 %v1396
    %2062 = vmatpush.bf16.msra.mxu0 %v1392
    %2063 = vmatpush.bf16.msra.mxu0 %v1388
    %2064 = vmatpush.bf16.msra.mxu0 %v1384
    %2065 = vmatpush.bf16.msra.mxu0 %v1380
    %2066 = vmatpush.bf16.msra.mxu0 %v1376
    %2067 = vmatpush.bf16.msra.mxu0 %v1372
    %2068 = vmatmul.bf16.gmra.mxu0 %v110
    %v2069 = vpop.f32.mrf.mxu0
    %v2070 = vadd.f32 %v2057, %v2069
    %v2071 = vpop.f32.mrf.mxu0
    %2072 = vdwg.mxu0
    %v2073 = vmax.f32 %v1758, 0.0
    %v2074 = vmax.f32 %v1862, 0.0
    %v2075 = vmax.f32 %v1966, 0.0
    %v2076 = vmax.f32 %v2070, 0.0
    %v2077 = vpack.c.bf16 %v2073, %v2073
    %v2078 = vpack.c.bf16 %v2074, %v2074
    %v2079 = vpack.c.bf16 %v2075, %v2075
    %v2080 = vpack.c.bf16 %v2076, %v2076
    %v2081 = vld [vmem:[#allocation7] sm:$0xf]
    %v2082 = vld [vmem:[#allocation7 + $0x4] sm:$0xf]
    %v2083 = vld [vmem:[#allocation7 + $0x8] sm:$0xf]
    %v2084 = vld [vmem:[#allocation7 + $0xc] sm:$0xf]
    %v2085 = vld [vmem:[#allocation7 + $0x10] sm:$0xf]
    %v2086 = vld [vmem:[#allocation7 + $0x14] sm:$0xf]
    %v2087 = vld [vmem:[#allocation7 + $0x18] sm:$0xf]
    %v2088 = vld [vmem:[#allocation7 + $0x1c] sm:$0xf]
    %v2089 = vld [vmem:[#allocation7 + $0x20] sm:$0xf]
    %v2090 = vld [vmem:[#allocation7 + $0x24] sm:$0xf]
    %v2091 = vld [vmem:[#allocation7 + $0x28] sm:$0xf]
    %v2092 = vld [vmem:[#allocation7 + $0x2c] sm:$0xf]
    %v2093 = vld [vmem:[#allocation7 + $0x30] sm:$0xf]
    %v2094 = vld [vmem:[#allocation7 + $0x34] sm:$0xf]
    %v2095 = vld [vmem:[#allocation7 + $0x38] sm:$0xf]
    %v2096 = vld [vmem:[#allocation7 + $0x3c] sm:$0xf]
    %v2097 = vld [vmem:[#allocation7 + $0x40] sm:$0xf]
    %v2098 = vld [vmem:[#allocation7 + $0x44] sm:$0xf]
    %v2099 = vld [vmem:[#allocation7 + $0x48] sm:$0xf]
    %v2100 = vld [vmem:[#allocation7 + $0x4c] sm:$0xf]
    %v2101 = vld [vmem:[#allocation7 + $0x50] sm:$0xf]
    %v2102 = vld [vmem:[#allocation7 + $0x54] sm:$0xf]
    %v2103 = vld [vmem:[#allocation7 + $0x58] sm:$0xf]
    %v2104 = vld [vmem:[#allocation7 + $0x5c] sm:$0xf]
    %v2105 = vld [vmem:[#allocation7 + $0x60] sm:$0xf]
    %v2106 = vld [vmem:[#allocation7 + $0x64] sm:$0xf]
    %v2107 = vld [vmem:[#allocation7 + $0x68] sm:$0xf]
    %v2108 = vld [vmem:[#allocation7 + $0x6c] sm:$0xf]
    %v2109 = vld [vmem:[#allocation7 + $0x70] sm:$0xf]
    %v2110 = vld [vmem:[#allocation7 + $0x74] sm:$0xf]
    %v2111 = vld [vmem:[#allocation7 + $0x78] sm:$0xf]
    %v2112 = vld [vmem:[#allocation7 + $0x7c] sm:$0xf]
    %v2113 = vld [vmem:[#allocation7 + $0x80] sm:$0xf]
    %v2114 = vld [vmem:[#allocation7 + $0x84] sm:$0xf]
    %v2115 = vld [vmem:[#allocation7 + $0x88] sm:$0xf]
    %v2116 = vld [vmem:[#allocation7 + $0x8c] sm:$0xf]
    %v2117 = vld [vmem:[#allocation7 + $0x90] sm:$0xf]
    %v2118 = vld [vmem:[#allocation7 + $0x94] sm:$0xf]
    %v2119 = vld [vmem:[#allocation7 + $0x98] sm:$0xf]
    %v2120 = vld [vmem:[#allocation7 + $0x9c] sm:$0xf]
    %v2121 = vld [vmem:[#allocation7 + $0xa0] sm:$0xf]
    %v2122 = vld [vmem:[#allocation7 + $0xa4] sm:$0xf]
    %v2123 = vld [vmem:[#allocation7 + $0xa8] sm:$0xf]
    %v2124 = vld [vmem:[#allocation7 + $0xac] sm:$0xf]
    %v2125 = vld [vmem:[#allocation7 + $0xb0] sm:$0xf]
    %v2126 = vld [vmem:[#allocation7 + $0xb4] sm:$0xf]
    %v2127 = vld [vmem:[#allocation7 + $0xb8] sm:$0xf]
    %v2128 = vld [vmem:[#allocation7 + $0xbc] sm:$0xf]
    %v2129 = vld [vmem:[#allocation7 + $0xc0] sm:$0xf]
    %v2130 = vld [vmem:[#allocation7 + $0xc4] sm:$0xf]
    %v2131 = vld [vmem:[#allocation7 + $0xc8] sm:$0xf]
    %v2132 = vld [vmem:[#allocation7 + $0xcc] sm:$0xf]
    %v2133 = vld [vmem:[#allocation7 + $0xd0] sm:$0xf]
    %v2134 = vld [vmem:[#allocation7 + $0xd4] sm:$0xf]
    %v2135 = vld [vmem:[#allocation7 + $0xd8] sm:$0xf]
    %v2136 = vld [vmem:[#allocation7 + $0xdc] sm:$0xf]
    %v2137 = vld [vmem:[#allocation7 + $0xe0] sm:$0xf]
    %v2138 = vld [vmem:[#allocation7 + $0xe4] sm:$0xf]
    %v2139 = vld [vmem:[#allocation7 + $0xe8] sm:$0xf]
    %v2140 = vld [vmem:[#allocation7 + $0xec] sm:$0xf]
    %v2141 = vld [vmem:[#allocation7 + $0xf0] sm:$0xf]
    %v2142 = vld [vmem:[#allocation7 + $0xf4] sm:$0xf]
    %v2143 = vld [vmem:[#allocation7 + $0xf8] sm:$0xf]
    %v2144 = vld [vmem:[#allocation7 + $0xfc] sm:$0xf]
    %v2145 = vld [vmem:[#allocation8] sm:$0x1]
    %v2147 = vperm.slane %v2145, 0
    %v2213 = vunpack.c.l.b16 %v2081
    %v2214 = vunpack.c.l.b16 %v2082
    %v2215 = vunpack.c.l.b16 %v2083
    %v2216 = vunpack.c.l.b16 %v2084
    %v2217 = vunpack.c.l.b16 %v2085
    %v2218 = vunpack.c.l.b16 %v2086
    %v2219 = vunpack.c.l.b16 %v2087
    %v2220 = vunpack.c.l.b16 %v2088
    %v2221 = vunpack.c.l.b16 %v2089
    %v2222 = vunpack.c.l.b16 %v2090
    %v2223 = vunpack.c.l.b16 %v2091
    %v2224 = vunpack.c.l.b16 %v2092
    %v2225 = vunpack.c.l.b16 %v2093
    %v2226 = vunpack.c.l.b16 %v2094
    %v2227 = vunpack.c.l.b16 %v2095
    %v2228 = vunpack.c.l.b16 %v2096
    %v2229 = vunpack.c.l.b16 %v2097
    %v2230 = vunpack.c.l.b16 %v2098
    %v2231 = vunpack.c.l.b16 %v2099
    %v2232 = vunpack.c.l.b16 %v2100
    %v2233 = vunpack.c.l.b16 %v2101
    %v2234 = vunpack.c.l.b16 %v2102
    %v2235 = vunpack.c.l.b16 %v2103
    %v2236 = vunpack.c.l.b16 %v2104
    %v2237 = vunpack.c.l.b16 %v2105
    %v2238 = vunpack.c.l.b16 %v2106
    %v2239 = vunpack.c.l.b16 %v2107
    %v2240 = vunpack.c.l.b16 %v2108
    %v2241 = vunpack.c.l.b16 %v2109
    %v2242 = vunpack.c.l.b16 %v2110
    %v2243 = vunpack.c.l.b16 %v2111
    %v2244 = vunpack.c.l.b16 %v2112
    %v2245 = vunpack.c.l.b16 %v2113
    %v2246 = vunpack.c.l.b16 %v2114
    %v2247 = vunpack.c.l.b16 %v2115
    %v2248 = vunpack.c.l.b16 %v2116
    %v2249 = vunpack.c.l.b16 %v2117
    %v2250 = vunpack.c.l.b16 %v2118
    %v2251 = vunpack.c.l.b16 %v2119
    %v2252 = vunpack.c.l.b16 %v2120
    %v2253 = vunpack.c.l.b16 %v2121
    %v2254 = vunpack.c.l.b16 %v2122
    %v2255 = vunpack.c.l.b16 %v2123
    %v2256 = vunpack.c.l.b16 %v2124
    %v2257 = vunpack.c.l.b16 %v2125
    %v2258 = vunpack.c.l.b16 %v2126
    %v2259 = vunpack.c.l.b16 %v2127
    %v2260 = vunpack.c.l.b16 %v2128
    %v2261 = vunpack.c.l.b16 %v2129
    %v2262 = vunpack.c.l.b16 %v2130
    %v2263 = vunpack.c.l.b16 %v2131
    %v2264 = vunpack.c.l.b16 %v2132
    %v2265 = vunpack.c.l.b16 %v2133
    %v2266 = vunpack.c.l.b16 %v2134
    %v2267 = vunpack.c.l.b16 %v2135
    %v2268 = vunpack.c.l.b16 %v2136
    %v2269 = vunpack.c.l.b16 %v2137
    %v2270 = vunpack.c.l.b16 %v2138
    %v2271 = vunpack.c.l.b16 %v2139
    %v2272 = vunpack.c.l.b16 %v2140
    %v2273 = vunpack.c.l.b16 %v2141
    %v2274 = vunpack.c.l.b16 %v2142
    %v2275 = vunpack.c.l.b16 %v2143
    %v2276 = vunpack.c.l.b16 %v2144
    %v2277 = vpack.c.b16 %v2214, %v2213
    %v2278 = vpack.c.b16 %v2216, %v2215
    %v2279 = vpack.c.b16 %v2218, %v2217
    %v2280 = vpack.c.b16 %v2220, %v2219
    %v2281 = vpack.c.b16 %v2222, %v2221
    %v2282 = vpack.c.b16 %v2224, %v2223
    %v2283 = vpack.c.b16 %v2226, %v2225
    %v2284 = vpack.c.b16 %v2228, %v2227
    %v2285 = vpack.c.b16 %v2230, %v2229
    %v2286 = vpack.c.b16 %v2232, %v2231
    %v2287 = vpack.c.b16 %v2234, %v2233
    %v2288 = vpack.c.b16 %v2236, %v2235
    %v2289 = vpack.c.b16 %v2238, %v2237
    %v2290 = vpack.c.b16 %v2240, %v2239
    %v2291 = vpack.c.b16 %v2242, %v2241
    %v2292 = vpack.c.b16 %v2244, %v2243
    %v2293 = vpack.c.b16 %v2246, %v2245
    %v2294 = vpack.c.b16 %v2248, %v2247
    %v2295 = vpack.c.b16 %v2250, %v2249
    %v2296 = vpack.c.b16 %v2252, %v2251
    %v2297 = vpack.c.b16 %v2254, %v2253
    %v2298 = vpack.c.b16 %v2256, %v2255
    %v2299 = vpack.c.b16 %v2258, %v2257
    %v2300 = vpack.c.b16 %v2260, %v2259
    %v2301 = vpack.c.b16 %v2262, %v2261
    %v2302 = vpack.c.b16 %v2264, %v2263
    %v2303 = vpack.c.b16 %v2266, %v2265
    %v2304 = vpack.c.b16 %v2268, %v2267
    %v2305 = vpack.c.b16 %v2270, %v2269
    %v2306 = vpack.c.b16 %v2272, %v2271
    %v2307 = vpack.c.b16 %v2274, %v2273
    %v2308 = vpack.c.b16 %v2276, %v2275
    %2341 = vmatpush.bf16.msra.mxu0 %v2284
    %2342 = vmatpush.bf16.msra.mxu0 %v2283
    %2343 = vmatpush.bf16.msra.mxu0 %v2282
    %2344 = vmatpush.bf16.msra.mxu0 %v2281
    %2345 = vmatpush.bf16.msra.mxu0 %v2280
    %2346 = vmatpush.bf16.msra.mxu0 %v2279
    %2347 = vmatpush.bf16.msra.mxu0 %v2278
    %2348 = vmatpush.bf16.msra.mxu0 %v2277
    %2349 = vmatmul.bf16.gmra.mxu0 %v2077
    %v2350 = vpop.f32.mrf.mxu0
    %v2351 = vadd.f32 %v2147, %v2350
    %v2352 = vpop.f32.mrf.mxu0
    %2353 = vdwg.mxu0
    %2354 = vmatpush.bf16.msra.mxu0 %v2292
    %2355 = vmatpush.bf16.msra.mxu0 %v2291
    %2356 = vmatpush.bf16.msra.mxu0 %v2290
    %2357 = vmatpush.bf16.msra.mxu0 %v2289
    %2358 = vmatpush.bf16.msra.mxu0 %v2288
    %2359 = vmatpush.bf16.msra.mxu0 %v2287
    %2360 = vmatpush.bf16.msra.mxu0 %v2286
    %2361 = vmatpush.bf16.msra.mxu0 %v2285
    %2362 = vmatmul.bf16.gmra.mxu0 %v2078
    %v2363 = vpop.f32.mrf.mxu0
    %v2364 = vadd.f32 %v2351, %v2363
    %v2365 = vpop.f32.mrf.mxu0
    %2366 = vdwg.mxu0
    %2367 = vmatpush.bf16.msra.mxu0 %v2300
    %2368 = vmatpush.bf16.msra.mxu0 %v2299
    %2369 = vmatpush.bf16.msra.mxu0 %v2298
    %2370 = vmatpush.bf16.msra.mxu0 %v2297
    %2371 = vmatpush.bf16.msra.mxu0 %v2296
    %2372 = vmatpush.bf16.msra.mxu0 %v2295
    %2373 = vmatpush.bf16.msra.mxu0 %v2294
    %2374 = vmatpush.bf16.msra.mxu0 %v2293
    %2375 = vmatmul.bf16.gmra.mxu0 %v2079
    %v2376 = vpop.f32.mrf.mxu0
    %v2377 = vadd.f32 %v2364, %v2376
    %v2378 = vpop.f32.mrf.mxu0
    %2379 = vdwg.mxu0
    %2380 = vmatpush.bf16.msra.mxu0 %v2308
    %2381 = vmatpush.bf16.msra.mxu0 %v2307
    %2382 = vmatpush.bf16.msra.mxu0 %v2306
    %2383 = vmatpush.bf16.msra.mxu0 %v2305
    %2384 = vmatpush.bf16.msra.mxu0 %v2304
    %2385 = vmatpush.bf16.msra.mxu0 %v2303
    %2386 = vmatpush.bf16.msra.mxu0 %v2302
    %2387 = vmatpush.bf16.msra.mxu0 %v2301
    %2388 = vmatmul.bf16.gmra.mxu0 %v2080
    %v2389 = vpop.f32.mrf.mxu0
    %v2390 = vadd.f32 %v2377, %v2389
    %v2391 = vpop.f32.mrf.mxu0
    %2392 = vdwg.mxu0
    %2393 = vst [vmem:[#allocation10] sm:$0x3] %v2390
    // Predicated region
    $region38: #{net_mnist_forward.5} parent=1 // pred_check
      _
    $region39: #{net_mnist_forward.5} parent=1 // pred_check_branch
      %2395 = sbr.rel (0) target = $region41
    $region40: #{net_mnist_forward.5} parent=1 // pred_region
      %2397 = vsyncadd [#allocation4], 0
      %s2399 = sshll.u32 [#allocation10], 4
      %s2400 = int_to_ptr.vmem [resolvable:$true] %s2399
      %s2401 = sshll.u32 %s5, 4
      %s2402 = int_to_ptr.hbm [resolvable:$true] %s2401
      %2404 = dma.vmem_to_hbm [thread:$0]  %s2400, 32, %s2402, [#allocation4]
    $region41: #{net_mnist_forward.5} parent=1 // pred_fallthru
      _
    // Predicated region
    $region42: #{net_mnist_forward.5} parent=1 // pred_check
      _
    $region43: #{net_mnist_forward.5} parent=1 // pred_check_branch
      %2406 = sbr.rel (0) target = $region45
    $region44: #{net_mnist_forward.5} parent=1 // pred_region
      %2408 = dma.done [#allocation4], 32
    $region45: #{net_mnist_forward.5} parent=1 // pred_fallthru
      _
    %2409 = vsyncpa [#allocation3], 1
    %2410 = vsyncpa [#allocation6], 1
    %2411 = vsyncpa [#allocation9], 1
    %2412 = vsyncpa [#allocation4], 1

// kernel: net_mnist_forward.4
$region0: #{net_mnist_forward.4}
  #allocation0 [shape = 'u32[]', space=smem, size = 0x4, offset = 0x4, fixed_abs, tag = 'smem constant byte address 0x4 - core index']
  #allocation1 [shape = 'u32[72,128]{1,0:T(1,128)}', space=vmem, size = 0x9000, scoped, tag = 'internal scratch']
  %s0 = inlined_call_operand.vmem [shape: f32[2,12,384], index: 0, kind: input, shape index: {}]
  %s1 = inlined_call_operand.hbm [shape: bf16[10,384,256], index: 1, kind: input, shape index: {}]
  %s2 = inlined_call_operand.hbm [shape: f32[1,256], index: 2, kind: input, shape index: {}]
  %s3 = inlined_call_operand.vmem [shape: f32[2,4,256], index: 3, kind: output, shape index: {}]
  %s4 = sld [smem:[#allocation0]]
  $region53: #{net_mnist_forward.4} parent=0
    _
  %s6 = ssub.s32 1, %s4
  %s7 = scalar_select 0, %s6, %s4
  $region1: #{net_mnist_forward.4} parent=0
    #allocation2 [shape = 'u8[1966080]{0}', space=vmem, size = 0x1e0000, scoped, tag = 'input window, operand 1, single buffered']
    #allocation3 [shape = 's32[2]{0}', space=sflag, size = 0x8, scoped, tag = 'scoped memory for net_mnist_forward.4']
    #allocation4 [shape = 'u8[1024]{0}', space=vmem, size = 0x400, scoped, tag = 'input window, operand 2, single buffered']
    #allocation5 [shape = 's32[1]{0}', space=sflag, size = 0x4, scoped, tag = 'scoped memory for net_mnist_forward.4']
    %8 = vsyncpa [#allocation3], 0
    %9 = vsyncpa [#allocation5], 0
    loop: start=0, step=1, limit=4
    $region2: #{net_mnist_forward.4} parent=1 // loop_pre_header
      _
    $region3: #{net_mnist_forward.4} parent=1 // loop_header
      %s11 = sphi 0, %s15
      %p12 = scmp.ge.s32.totalorder %s11, 4
      %s21 = sphi 0, %s23
      %s24 = sphi 0, %s21
      %s25 = sphi 0, %s24
      %s41 = sphi 0, %s25
      %s45 = sphi 0, %s45
      %s47 = sphi 0, %s45
      %s48 = sphi 0, %s47
      %s62 = sphi 0, %s48
      %s66 = sphi 0, %s66
      %s68 = sphi 0, %s66
      %s69 = sphi 0, %s68
      %s83 = sphi 0, %s69
      %s89 = sphi 0, %s91
      %s92 = sphi 0, %s89
      %s93 = sphi 0, %s92
      %s109 = sphi 0, %s93
    $region4: #{net_mnist_forward.4} parent=1 // loop_header_branch
      %14 = sbr.rel (%p12) target = $region8
    $region5: #{net_mnist_forward.4} parent=1 // loop_body
      %s16 = ssub.s32 %s11, 1
      %s17 = ssub.s32 %s11, 2
      %s18 = sadd.s32 %s11, 1
      %s19 = ssub.s32 %s11, %s18
      %p20 = scmp.eq.s32.totalorder %s19, 0
      %s22 = sadd.s32 %s21, 1
      %s23 = scalar_select %p20, %s21, %s22
      %p26 = pneg %p20
      %p27 = scmp.eq.s32.totalorder %s11, 1
      %p28 = por %p26, %p27
      %p29 = scmp.ne.s32.totalorder %s21, %s24
      %p30 = scmp.eq.s32.totalorder %s11, 0
      %p31 = por %p29, %p30
      %p32 = scmp.ne.s32.totalorder %s21, %s24
      %p33 = scmp.eq.s32.totalorder %s16, 1
      %p34 = por %p32, %p33
      %p35 = scmp.ne.s32.totalorder %s24, %s25
      %p36 = scmp.eq.s32.totalorder %s16, 0
      %p37 = por %p35, %p36
      %p38 = scmp.ne.s32.totalorder %s24, %s25
      %p39 = scmp.eq.s32.totalorder %s17, 1
      %p40 = por %p38, %p39
      %p42 = scmp.ne.s32.totalorder %s25, %s41
      %p43 = scmp.eq.s32.totalorder %s17, 0
      %p44 = por %p42, %p43
      %s46 = sadd.s32 %s45, 1
      %p49 = scmp.eq.s32.totalorder %s11, 1
      %p50 = scmp.ne.s32.totalorder %s45, %s47
      %p51 = scmp.eq.s32.totalorder %s11, 0
      %p52 = por %p50, %p51
      %p53 = scmp.ne.s32.totalorder %s45, %s47
      %p54 = scmp.eq.s32.totalorder %s16, 1
      %p55 = por %p53, %p54
      %p56 = scmp.ne.s32.totalorder %s47, %s48
      %p57 = scmp.eq.s32.totalorder %s16, 0
      %p58 = por %p56, %p57
      %p59 = scmp.ne.s32.totalorder %s47, %s48
      %p60 = scmp.eq.s32.totalorder %s17, 1
      %p61 = por %p59, %p60
      %p63 = scmp.ne.s32.totalorder %s48, %s62
      %p64 = scmp.eq.s32.totalorder %s17, 0
      %p65 = por %p63, %p64
      %s67 = sadd.s32 %s66, 1
      %p70 = scmp.eq.s32.totalorder %s11, 1
      %p71 = scmp.ne.s32.totalorder %s66, %s68
      %p72 = scmp.eq.s32.totalorder %s11, 0
      %p73 = por %p71, %p72
      %p74 = scmp.ne.s32.totalorder %s66, %s68
      %p75 = scmp.eq.s32.totalorder %s16, 1
      %p76 = por %p74, %p75
      %p77 = scmp.ne.s32.totalorder %s68, %s69
      %p78 = scmp.eq.s32.totalorder %s16, 0
      %p79 = por %p77, %p78
      %p80 = scmp.ne.s32.totalorder %s68, %s69
      %p81 = scmp.eq.s32.totalorder %s17, 1
      %p82 = por %p80, %p81
      %p84 = scmp.ne.s32.totalorder %s69, %s83
      %p85 = scmp.eq.s32.totalorder %s17, 0
      %p86 = por %p84, %p85
      %s87 = ssub.s32 %s11, %s18
      %p88 = scmp.eq.s32.totalorder %s87, 0
      %s90 = sadd.s32 %s89, 1
      %s91 = scalar_select %p88, %s89, %s90
      %p94 = pneg %p88
      %p95 = scmp.eq.s32.totalorder %s11, 1
      %p96 = por %p94, %p95
      %p97 = scmp.ne.s32.totalorder %s89, %s92
      %p98 = scmp.eq.s32.totalorder %s11, 0
      %p99 = por %p97, %p98
      %p100 = scmp.ne.s32.totalorder %s89, %s92
      %p101 = scmp.eq.s32.totalorder %s16, 1
      %p102 = por %p100, %p101
      %p103 = scmp.ne.s32.totalorder %s92, %s93
      %p104 = scmp.eq.s32.totalorder %s16, 0
      %p105 = por %p103, %p104
      %p106 = scmp.ne.s32.totalorder %s92, %s93
      %p107 = scmp.eq.s32.totalorder %s17, 1
      %p108 = por %p106, %p107
      %p110 = scmp.ne.s32.totalorder %s93, %s109
      %p111 = scmp.eq.s32.totalorder %s17, 0
      %p112 = por %p110, %p111
      %p113 = scmp.le.s32.totalorder 1, %s11
      %p114 = scmp.lt.s32.totalorder %s11, 3
      %p115 = pnand %p113, %p114
      %p116 = pneg %p115
      // Predicated region
      $region9: #{net_mnist_forward.4} parent=5 // pred_check
        _
      $region10: #{net_mnist_forward.4} parent=5 // pred_check_branch
        %118 = sbr.rel (%p115) target = $region12
      $region11: #{net_mnist_forward.4} parent=5 // pred_region
        %s119 = ssub.s32 %s11, 1
        // Predicated region
        $region13: #{net_mnist_forward.4} parent=11 // pred_check
          %p120 = pneg %p58
        $region14: #{net_mnist_forward.4} parent=11 // pred_check_branch
          %122 = sbr.rel (%p120) target = $region16
        $region15: #{net_mnist_forward.4} parent=11 // pred_region
          %124 = vsyncadd [#allocation3], 0
          %s125 = sshll.u32 %s1, 4
          %s126 = int_to_ptr.hbm [resolvable:$true] %s125
          %s127 = sshll.u32 [#allocation2], 4
          %s128 = int_to_ptr.vmem [resolvable:$true] %s127
          %133 = dma.hbm_to_vmem [thread:$0]  %s126, 61440, %s128, [#allocation3], 128, 128, 8
        $region16: #{net_mnist_forward.4} parent=11 // pred_fallthru
          _
        // Predicated region
        $region17: #{net_mnist_forward.4} parent=11 // pred_check
          %p134 = pneg %p79
        $region18: #{net_mnist_forward.4} parent=11 // pred_check_branch
          %136 = sbr.rel (%p134) target = $region20
        $region19: #{net_mnist_forward.4} parent=11 // pred_region
          %138 = vsyncadd [#allocation5], 0
          %s140 = sshll.u32 %s2, 4
          %s141 = int_to_ptr.hbm [resolvable:$true] %s140
          %s142 = sshll.u32 [#allocation4], 4
          %s143 = int_to_ptr.vmem [resolvable:$true] %s142
          %145 = dma.hbm_to_vmem [thread:$0]  %s141, 32, %s143, [#allocation5]
        $region20: #{net_mnist_forward.4} parent=11 // pred_fallthru
          _
      $region12: #{net_mnist_forward.4} parent=5 // pred_fallthru
        _
      %p146 = scmp.lt.s32.totalorder %s11, 2
      // Predicated region
      $region21: #{net_mnist_forward.4} parent=5 // pred_check
        %p147 = pneg %p146
      $region22: #{net_mnist_forward.4} parent=5 // pred_check_branch
        %149 = sbr.rel (%p147) target = $region24
      $region23: #{net_mnist_forward.4} parent=5 // pred_region
        // Predicated region
        $region25: #{net_mnist_forward.4} parent=23 // pred_check
          %p150 = pneg %p31
        $region26: #{net_mnist_forward.4} parent=23 // pred_check_branch
          %152 = sbr.rel (%p150) target = $region28
        $region27: #{net_mnist_forward.4} parent=23 // pred_region
          %p153 = scmp.lt.s32.totalorder %s11, 1
          %s154 = scalar_select %p153, %s11, 1
          %s155 = smul.addr %s154, 6
          %s156 = smul.addr %s155, 8
          %s157 = scalar_lea.vmem %s0, %s156
        $region28: #{net_mnist_forward.4} parent=23 // pred_fallthru
          _
      $region24: #{net_mnist_forward.4} parent=5 // pred_fallthru
        _
      %p158 = scmp.le.s32.totalorder 1, %s11
      %p159 = scmp.lt.s32.totalorder %s11, 3
      %p160 = pnand %p158, %p159
      %p161 = pneg %p160
      // Predicated region
      $region29: #{net_mnist_forward.4} parent=5 // pred_check
        _
      $region30: #{net_mnist_forward.4} parent=5 // pred_check_branch
        %163 = sbr.rel (%p160) target = $region32
      $region31: #{net_mnist_forward.4} parent=5 // pred_region
        %s164 = ssub.s32 %s11, 1
        // Predicated region
        $region33: #{net_mnist_forward.4} parent=31 // pred_check
          %p165 = pneg %p58
        $region34: #{net_mnist_forward.4} parent=31 // pred_check_branch
          %167 = sbr.rel (%p165) target = $region36
        $region35: #{net_mnist_forward.4} parent=31 // pred_region
          %169 = dma.done [#allocation3], 61440
        $region36: #{net_mnist_forward.4} parent=31 // pred_fallthru
          _
        // Predicated region
        $region37: #{net_mnist_forward.4} parent=31 // pred_check
          %p170 = pneg %p79
        $region38: #{net_mnist_forward.4} parent=31 // pred_check_branch
          %172 = sbr.rel (%p170) target = $region40
        $region39: #{net_mnist_forward.4} parent=31 // pred_region
          %174 = dma.done [#allocation5], 32
        $region40: #{net_mnist_forward.4} parent=31 // pred_fallthru
          _
        %p175 = scmp.lt.s32.totalorder %s16, 1
        %s176 = scalar_select %p175, %s16, 1
        %s177 = smul.addr %s176, 6
        %s178 = smul.addr %s177, 8
        %s179 = scalar_lea.vmem %s0, %s178
        %p180 = pneg %p37
        %p181 = pneg %p34
        %p182 = pneg %p58
        %p183 = pneg %p55
        %p184 = pneg %p79
        %p185 = pneg %p76
        %p186 = pneg %p105
        %p187 = pneg %p102
        %p188 = scmp.lt.s32.totalorder %s16, 1
        %s189 = scalar_select %p188, %s16, 1
        %s190 = smul.addr %s189, 2
        %s191 = smul.addr %s190, 4
        %s192 = scalar_lea.vmem %s3, %s191
        %p193 = scmp.lt.s32.totalorder %s16, 1
        %s194 = scalar_select %p193, %s16, 1
        %s195 = smul.addr %s194, 6
        %s196 = smul.addr %s195, 8
        %s197 = scalar_lea.vmem %s0, %s196
        %p198 = scmp.lt.s32.totalorder %s16, 1
        %s199 = scalar_select %p198, %s16, 1
        %s200 = smul.addr %s199, 2
        %s201 = smul.addr %s200, 4
        %s202 = scalar_lea.vmem %s3, %s201
        %v203 = vld [vmem:[%s197] sm:$0xff]
        %v204 = vld [vmem:[%s197 + $0x8] sm:$0xff]
        %v205 = vld [vmem:[%s197 + $0x10] sm:$0xff]
        %v206 = vld [vmem:[%s197 + $0x18] sm:$0xf]
        %v207 = vld [vmem:[%s197 + $0x20] sm:$0xf]
        %v208 = vld [vmem:[%s197 + $0x28] sm:$0xf]
        %v209 = vpack.c.bf16 %v203, %v203
        %v210 = vpack.c.bf16 %v204, %v204
        %v211 = vpack.c.bf16 %v205, %v205
        %v212 = vld [vmem:[#allocation2] sm:$0xff]
        %v213 = vld [vmem:[#allocation2 + $0x8] sm:$0xff]
        %v214 = vld [vmem:[#allocation2 + $0x10] sm:$0xff]
        %v215 = vld [vmem:[#allocation2 + $0x18] sm:$0xff]
        %v216 = vld [vmem:[#allocation2 + $0x20] sm:$0xff]
        %v217 = vld [vmem:[#allocation2 + $0x28] sm:$0xff]
        %v218 = vld [vmem:[#allocation2 + $0x30] sm:$0xff]
        %v219 = vld [vmem:[#allocation2 + $0x38] sm:$0xff]
        %v220 = vld [vmem:[#allocation2 + $0x40] sm:$0xff]
        %v221 = vld [vmem:[#allocation2 + $0x48] sm:$0xff]
        %v222 = vld [vmem:[#allocation2 + $0x50] sm:$0xff]
        %v223 = vld [vmem:[#allocation2 + $0x58] sm:$0xff]
        %v224 = vld [vmem:[#allocation2 + $0x60] sm:$0xff]
        %v225 = vld [vmem:[#allocation2 + $0x68] sm:$0xff]
        %v226 = vld [vmem:[#allocation2 + $0x70] sm:$0xff]
        %v227 = vld [vmem:[#allocation2 + $0x78] sm:$0xff]
        %v228 = vld [vmem:[#allocation2 + $0x80] sm:$0xff]
        %v229 = vld [vmem:[#allocation2 + $0x88] sm:$0xff]
        %v230 = vld [vmem:[#allocation2 + $0x90] sm:$0xff]
        %v231 = vld [vmem:[#allocation2 + $0x98] sm:$0xff]
        %v232 = vld [vmem:[#allocation2 + $0xa0] sm:$0xff]
        %v233 = vld [vmem:[#allocation2 + $0xa8] sm:$0xff]
        %v234 = vld [vmem:[#allocation2 + $0xb0] sm:$0xff]
        %v235 = vld [vmem:[#allocation2 + $0xb8] sm:$0xff]
        %v236 = vld [vmem:[#allocation2 + $0xc0] sm:$0xff]
        %v237 = vld [vmem:[#allocation2 + $0xc8] sm:$0xff]
        %v238 = vld [vmem:[#allocation2 + $0xd0] sm:$0xff]
        %v239 = vld [vmem:[#allocation2 + $0xd8] sm:$0xff]
        %v240 = vld [vmem:[#allocation2 + $0xe0] sm:$0xff]
        %v241 = vld [vmem:[#allocation2 + $0xe8] sm:$0xff]
        %v242 = vld [vmem:[#allocation2 + $0xf0] sm:$0xff]
        %v243 = vld [vmem:[#allocation2 + $0xf8] sm:$0xff]
        %v244 = vld [vmem:[#allocation2 + $0x100] sm:$0xff]
        %v245 = vld [vmem:[#allocation2 + $0x108] sm:$0xff]
        %v246 = vld [vmem:[#allocation2 + $0x110] sm:$0xff]
        %v247 = vld [vmem:[#allocation2 + $0x118] sm:$0xff]
        %v248 = vld [vmem:[#allocation2 + $0x120] sm:$0xff]
        %v249 = vld [vmem:[#allocation2 + $0x128] sm:$0xff]
        %v250 = vld [vmem:[#allocation2 + $0x130] sm:$0xff]
        %v251 = vld [vmem:[#allocation2 + $0x138] sm:$0xff]
        %v252 = vld [vmem:[#allocation2 + $0x140] sm:$0xff]
        %v253 = vld [vmem:[#allocation2 + $0x148] sm:$0xff]
        %v254 = vld [vmem:[#allocation2 + $0x150] sm:$0xff]
        %v255 = vld [vmem:[#allocation2 + $0x158] sm:$0xff]
        %v256 = vld [vmem:[#allocation2 + $0x160] sm:$0xff]
        %v257 = vld [vmem:[#allocation2 + $0x168] sm:$0xff]
        %v258 = vld [vmem:[#allocation2 + $0x170] sm:$0xff]
        %v259 = vld [vmem:[#allocation2 + $0x178] sm:$0xff]
        %s260 = scalar_lea.vmem [#allocation2], 384
        %v261 = vld [vmem:[%s260] sm:$0xff]
        %v262 = vld [vmem:[%s260 + $0x8] sm:$0xff]
        %v263 = vld [vmem:[%s260 + $0x10] sm:$0xff]
        %v264 = vld [vmem:[%s260 + $0x18] sm:$0xff]
        %v265 = vld [vmem:[%s260 + $0x20] sm:$0xff]
        %v266 = vld [vmem:[%s260 + $0x28] sm:$0xff]
        %v267 = vld [vmem:[%s260 + $0x30] sm:$0xff]
        %v268 = vld [vmem:[%s260 + $0x38] sm:$0xff]
        %v269 = vld [vmem:[%s260 + $0x40] sm:$0xff]
        %v270 = vld [vmem:[%s260 + $0x48] sm:$0xff]
        %v271 = vld [vmem:[%s260 + $0x50] sm:$0xff]
        %v272 = vld [vmem:[%s260 + $0x58] sm:$0xff]
        %v273 = vld [vmem:[%s260 + $0x60] sm:$0xff]
        %v274 = vld [vmem:[%s260 + $0x68] sm:$0xff]
        %v275 = vld [vmem:[%s260 + $0x70] sm:$0xff]
        %v276 = vld [vmem:[%s260 + $0x78] sm:$0xff]
        %v277 = vld [vmem:[%s260 + $0x80] sm:$0xff]
        %v278 = vld [vmem:[%s260 + $0x88] sm:$0xff]
        %v279 = vld [vmem:[%s260 + $0x90] sm:$0xff]
        %v280 = vld [vmem:[%s260 + $0x98] sm:$0xff]
        %v281 = vld [vmem:[%s260 + $0xa0] sm:$0xff]
        %v282 = vld [vmem:[%s260 + $0xa8] sm:$0xff]
        %v283 = vld [vmem:[%s260 + $0xb0] sm:$0xff]
        %v284 = vld [vmem:[%s260 + $0xb8] sm:$0xff]
        %v285 = vld [vmem:[%s260 + $0xc0] sm:$0xff]
        %v286 = vld [vmem:[%s260 + $0xc8] sm:$0xff]
        %v287 = vld [vmem:[%s260 + $0xd0] sm:$0xff]
        %v288 = vld [vmem:[%s260 + $0xd8] sm:$0xff]
        %v289 = vld [vmem:[%s260 + $0xe0] sm:$0xff]
        %v290 = vld [vmem:[%s260 + $0xe8] sm:$0xff]
        %v291 = vld [vmem:[%s260 + $0xf0] sm:$0xff]
        %v292 = vld [vmem:[%s260 + $0xf8] sm:$0xff]
        %v293 = vld [vmem:[%s260 + $0x100] sm:$0xff]
        %v294 = vld [vmem:[%s260 + $0x108] sm:$0xff]
        %v295 = vld [vmem:[%s260 + $0x110] sm:$0xff]
        %v296 = vld [vmem:[%s260 + $0x118] sm:$0xff]
        %v297 = vld [vmem:[%s260 + $0x120] sm:$0xff]
        %v298 = vld [vmem:[%s260 + $0x128] sm:$0xff]
        %v299 = vld [vmem:[%s260 + $0x130] sm:$0xff]
        %v300 = vld [vmem:[%s260 + $0x138] sm:$0xff]
        %v301 = vld [vmem:[%s260 + $0x140] sm:$0xff]
        %v302 = vld [vmem:[%s260 + $0x148] sm:$0xff]
        %v303 = vld [vmem:[%s260 + $0x150] sm:$0xff]
        %v304 = vld [vmem:[%s260 + $0x158] sm:$0xff]
        %v305 = vld [vmem:[%s260 + $0x160] sm:$0xff]
        %v306 = vld [vmem:[%s260 + $0x168] sm:$0xff]
        %v307 = vld [vmem:[%s260 + $0x170] sm:$0xff]
        %v308 = vld [vmem:[%s260 + $0x178] sm:$0xff]
        %v309 = vpack.c.bf16 %v206, %v203
        %v310 = vpack.c.bf16 %v207, %v204
        %v311 = vpack.c.bf16 %v208, %v205
        %s312 = scalar_lea.vmem [#allocation2], 768
        %v313 = vld [vmem:[%s312] sm:$0xff]
        %v314 = vld [vmem:[%s312 + $0x8] sm:$0xff]
        %v315 = vld [vmem:[%s312 + $0x10] sm:$0xff]
        %v316 = vld [vmem:[%s312 + $0x18] sm:$0xff]
        %v317 = vld [vmem:[%s312 + $0x20] sm:$0xff]
        %v318 = vld [vmem:[%s312 + $0x28] sm:$0xff]
        %v319 = vld [vmem:[%s312 + $0x30] sm:$0xff]
        %v320 = vld [vmem:[%s312 + $0x38] sm:$0xff]
        %v321 = vld [vmem:[%s312 + $0x40] sm:$0xff]
        %v322 = vld [vmem:[%s312 + $0x48] sm:$0xff]
        %v323 = vld [vmem:[%s312 + $0x50] sm:$0xff]
        %v324 = vld [vmem:[%s312 + $0x58] sm:$0xff]
        %v325 = vld [vmem:[%s312 + $0x60] sm:$0xff]
        %v326 = vld [vmem:[%s312 + $0x68] sm:$0xff]
        %v327 = vld [vmem:[%s312 + $0x70] sm:$0xff]
        %v328 = vld [vmem:[%s312 + $0x78] sm:$0xff]
        %v329 = vld [vmem:[%s312 + $0x80] sm:$0xff]
        %v330 = vld [vmem:[%s312 + $0x88] sm:$0xff]
        %v331 = vld [vmem:[%s312 + $0x90] sm:$0xff]
        %v332 = vld [vmem:[%s312 + $0x98] sm:$0xff]
        %v333 = vld [vmem:[%s312 + $0xa0] sm:$0xff]
        %v334 = vld [vmem:[%s312 + $0xa8] sm:$0xff]
        %v335 = vld [vmem:[%s312 + $0xb0] sm:$0xff]
        %v336 = vld [vmem:[%s312 + $0xb8] sm:$0xff]
        %v337 = vld [vmem:[%s312 + $0xc0] sm:$0xff]
        %v338 = vld [vmem:[%s312 + $0xc8] sm:$0xff]
        %v339 = vld [vmem:[%s312 + $0xd0] sm:$0xff]
        %v340 = vld [vmem:[%s312 + $0xd8] sm:$0xff]
        %v341 = vld [vmem:[%s312 + $0xe0] sm:$0xff]
        %v342 = vld [vmem:[%s312 + $0xe8] sm:$0xff]
        %v343 = vld [vmem:[%s312 + $0xf0] sm:$0xff]
        %v344 = vld [vmem:[%s312 + $0xf8] sm:$0xff]
        %v345 = vld [vmem:[%s312 + $0x100] sm:$0xff]
        %v346 = vld [vmem:[%s312 + $0x108] sm:$0xff]
        %v347 = vld [vmem:[%s312 + $0x110] sm:$0xff]
        %v348 = vld [vmem:[%s312 + $0x118] sm:$0xff]
        %v349 = vld [vmem:[%s312 + $0x120] sm:$0xff]
        %v350 = vld [vmem:[%s312 + $0x128] sm:$0xff]
        %v351 = vld [vmem:[%s312 + $0x130] sm:$0xff]
        %v352 = vld [vmem:[%s312 + $0x138] sm:$0xff]
        %v353 = vld [vmem:[%s312 + $0x140] sm:$0xff]
        %v354 = vld [vmem:[%s312 + $0x148] sm:$0xff]
        %v355 = vld [vmem:[%s312 + $0x150] sm:$0xff]
        %v356 = vld [vmem:[%s312 + $0x158] sm:$0xff]
        %v357 = vld [vmem:[%s312 + $0x160] sm:$0xff]
        %v358 = vld [vmem:[%s312 + $0x168] sm:$0xff]
        %v359 = vld [vmem:[%s312 + $0x170] sm:$0xff]
        %v360 = vld [vmem:[%s312 + $0x178] sm:$0xff]
        %v362 = vshrl.u32 %v309, 16
        %v364 = vshll.u32 %v309, 16
        %v366 = vrot.slane %v364, 1
        %v367 = vor.u32 %v362, %v366
        %v369 = vshrl.u32 %v310, 16
        %v371 = vshll.u32 %v310, 16
        %v373 = vrot.slane %v371, 1
        %v374 = vor.u32 %v369, %v373
        %v376 = vshrl.u32 %v311, 16
        %v378 = vshll.u32 %v311, 16
        %v380 = vrot.slane %v378, 1
        %v381 = vor.u32 %v376, %v380
        %v433 = vunpack.c.l.b16 %v313
        %v434 = vunpack.c.h.b16 %v313
        %v435 = vunpack.c.l.b16 %v314
        %v436 = vunpack.c.h.b16 %v314
        %v437 = vunpack.c.l.b16 %v315
        %v438 = vunpack.c.h.b16 %v315
        %v439 = vunpack.c.l.b16 %v316
        %v440 = vunpack.c.h.b16 %v316
        %v441 = vunpack.c.l.b16 %v317
        %v442 = vunpack.c.h.b16 %v317
        %v443 = vunpack.c.l.b16 %v318
        %v444 = vunpack.c.h.b16 %v318
        %v445 = vunpack.c.l.b16 %v319
        %v446 = vunpack.c.h.b16 %v319
        %v447 = vunpack.c.l.b16 %v320
        %v448 = vunpack.c.h.b16 %v320
        %v449 = vunpack.c.l.b16 %v321
        %v450 = vunpack.c.h.b16 %v321
        %v451 = vunpack.c.l.b16 %v322
        %v452 = vunpack.c.h.b16 %v322
        %v453 = vunpack.c.l.b16 %v323
        %v454 = vunpack.c.h.b16 %v323
        %v455 = vunpack.c.l.b16 %v324
        %v456 = vunpack.c.h.b16 %v324
        %v457 = vunpack.c.l.b16 %v325
        %v458 = vunpack.c.h.b16 %v325
        %v459 = vunpack.c.l.b16 %v326
        %v460 = vunpack.c.h.b16 %v326
        %v461 = vunpack.c.l.b16 %v327
        %v462 = vunpack.c.h.b16 %v327
        %v463 = vunpack.c.l.b16 %v328
        %v464 = vunpack.c.h.b16 %v328
        %v465 = vunpack.c.l.b16 %v329
        %v466 = vunpack.c.h.b16 %v329
        %v467 = vunpack.c.l.b16 %v330
        %v468 = vunpack.c.h.b16 %v330
        %v469 = vunpack.c.l.b16 %v331
        %v470 = vunpack.c.h.b16 %v331
        %v471 = vunpack.c.l.b16 %v332
        %v472 = vunpack.c.h.b16 %v332
        %v473 = vunpack.c.l.b16 %v333
        %v474 = vunpack.c.h.b16 %v333
        %v475 = vunpack.c.l.b16 %v334
        %v476 = vunpack.c.h.b16 %v334
        %v477 = vunpack.c.l.b16 %v335
        %v478 = vunpack.c.h.b16 %v335
        %v479 = vunpack.c.l.b16 %v336
        %v480 = vunpack.c.h.b16 %v336
        %v481 = vunpack.c.l.b16 %v337
        %v482 = vunpack.c.h.b16 %v337
        %v483 = vunpack.c.l.b16 %v338
        %v484 = vunpack.c.h.b16 %v338
        %v485 = vunpack.c.l.b16 %v339
        %v486 = vunpack.c.h.b16 %v339
        %v487 = vunpack.c.l.b16 %v340
        %v488 = vunpack.c.h.b16 %v340
        %v489 = vunpack.c.l.b16 %v341
        %v490 = vunpack.c.h.b16 %v341
        %v491 = vunpack.c.l.b16 %v342
        %v492 = vunpack.c.h.b16 %v342
        %v493 = vunpack.c.l.b16 %v343
        %v494 = vunpack.c.h.b16 %v343
        %v495 = vunpack.c.l.b16 %v344
        %v496 = vunpack.c.h.b16 %v344
        %v497 = vunpack.c.l.b16 %v345
        %v498 = vunpack.c.h.b16 %v345
        %v499 = vunpack.c.l.b16 %v346
        %v500 = vunpack.c.h.b16 %v346
        %v501 = vunpack.c.l.b16 %v347
        %v502 = vunpack.c.h.b16 %v347
        %v503 = vunpack.c.l.b16 %v348
        %v504 = vunpack.c.h.b16 %v348
        %v505 = vunpack.c.l.b16 %v349
        %v506 = vunpack.c.h.b16 %v349
        %v507 = vunpack.c.l.b16 %v350
        %v508 = vunpack.c.h.b16 %v350
        %v509 = vunpack.c.l.b16 %v351
        %v510 = vunpack.c.h.b16 %v351
        %v511 = vunpack.c.l.b16 %v352
        %v512 = vunpack.c.h.b16 %v352
        %v513 = vunpack.c.l.b16 %v353
        %v514 = vunpack.c.h.b16 %v353
        %v515 = vunpack.c.l.b16 %v354
        %v516 = vunpack.c.h.b16 %v354
        %v517 = vunpack.c.l.b16 %v355
        %v518 = vunpack.c.h.b16 %v355
        %v519 = vunpack.c.l.b16 %v356
        %v520 = vunpack.c.h.b16 %v356
        %v521 = vunpack.c.l.b16 %v357
        %v522 = vunpack.c.h.b16 %v357
        %v523 = vunpack.c.l.b16 %v358
        %v524 = vunpack.c.h.b16 %v358
        %v525 = vunpack.c.l.b16 %v359
        %v526 = vunpack.c.h.b16 %v359
        %v527 = vunpack.c.l.b16 %v360
        %v528 = vunpack.c.h.b16 %v360
        %v529 = vpack.c.b16 %v435, %v433
        %v530 = vpack.c.b16 %v436, %v434
        %v531 = vpack.c.b16 %v439, %v437
        %v532 = vpack.c.b16 %v440, %v438
        %v533 = vpack.c.b16 %v443, %v441
        %v534 = vpack.c.b16 %v444, %v442
        %v535 = vpack.c.b16 %v447, %v445
        %v536 = vpack.c.b16 %v448, %v446
        %v537 = vpack.c.b16 %v451, %v449
        %v538 = vpack.c.b16 %v452, %v450
        %v539 = vpack.c.b16 %v455, %v453
        %v540 = vpack.c.b16 %v456, %v454
        %v541 = vpack.c.b16 %v459, %v457
        %v542 = vpack.c.b16 %v460, %v458
        %v543 = vpack.c.b16 %v463, %v461
        %v544 = vpack.c.b16 %v464, %v462
        %v545 = vpack.c.b16 %v467, %v465
        %v546 = vpack.c.b16 %v468, %v466
        %v547 = vpack.c.b16 %v471, %v469
        %v548 = vpack.c.b16 %v472, %v470
        %v549 = vpack.c.b16 %v475, %v473
        %v550 = vpack.c.b16 %v476, %v474
        %v551 = vpack.c.b16 %v479, %v477
        %v552 = vpack.c.b16 %v480, %v478
        %v553 = vpack.c.b16 %v483, %v481
        %v554 = vpack.c.b16 %v484, %v482
        %v555 = vpack.c.b16 %v487, %v485
        %v556 = vpack.c.b16 %v488, %v486
        %v557 = vpack.c.b16 %v491, %v489
        %v558 = vpack.c.b16 %v492, %v490
        %v559 = vpack.c.b16 %v495, %v493
        %v560 = vpack.c.b16 %v496, %v494
        %v561 = vpack.c.b16 %v499, %v497
        %v562 = vpack.c.b16 %v500, %v498
        %v563 = vpack.c.b16 %v503, %v501
        %v564 = vpack.c.b16 %v504, %v502
        %v565 = vpack.c.b16 %v507, %v505
        %v566 = vpack.c.b16 %v508, %v506
        %v567 = vpack.c.b16 %v511, %v509
        %v568 = vpack.c.b16 %v512, %v510
        %v569 = vpack.c.b16 %v515, %v513
        %v570 = vpack.c.b16 %v516, %v514
        %v571 = vpack.c.b16 %v519, %v517
        %v572 = vpack.c.b16 %v520, %v518
        %v573 = vpack.c.b16 %v523, %v521
        %v574 = vpack.c.b16 %v524, %v522
        %v575 = vpack.c.b16 %v527, %v525
        %v576 = vpack.c.b16 %v528, %v526
        %625 = vmatpush.bf16.msra.mxu0 %v543
        %626 = vmatpush.bf16.msra.mxu0 %v541
        %627 = vmatpush.bf16.msra.mxu0 %v539
        %628 = vmatpush.bf16.msra.mxu0 %v537
        %629 = vmatpush.bf16.msra.mxu0 %v535
        %630 = vmatpush.bf16.msra.mxu0 %v533
        %631 = vmatpush.bf16.msra.mxu0 %v531
        %632 = vmatpush.bf16.msra.mxu0 %v529
        %633 = vmatmul.bf16.gmra.mxu0 %v367
        %v634 = vpop.f32.mrf.mxu0
        %v635 = vadd.f32 0.0, %v634
        %v636 = vpop.f32.mrf.mxu0
        %637 = vdwg.mxu0
        %638 = vmatpush.bf16.msra.mxu0 %v559
        %639 = vmatpush.bf16.msra.mxu0 %v557
        %640 = vmatpush.bf16.msra.mxu0 %v555
        %641 = vmatpush.bf16.msra.mxu0 %v553
        %642 = vmatpush.bf16.msra.mxu0 %v551
        %643 = vmatpush.bf16.msra.mxu0 %v549
        %644 = vmatpush.bf16.msra.mxu0 %v547
        %645 = vmatpush.bf16.msra.mxu0 %v545
        %646 = vmatmul.bf16.gmra.mxu0 %v374
        %v647 = vpop.f32.mrf.mxu0
        %v648 = vadd.f32 %v635, %v647
        %v649 = vpop.f32.mrf.mxu0
        %650 = vdwg.mxu0
        %651 = vmatpush.bf16.msra.mxu0 %v575
        %652 = vmatpush.bf16.msra.mxu0 %v573
        %653 = vmatpush.bf16.msra.mxu0 %v571
        %654 = vmatpush.bf16.msra.mxu0 %v569
        %655 = vmatpush.bf16.msra.mxu0 %v567
        %656 = vmatpush.bf16.msra.mxu0 %v565
        %657 = vmatpush.bf16.msra.mxu0 %v563
        %658 = vmatpush.bf16.msra.mxu0 %v561
        %659 = vmatmul.bf16.gmra.mxu0 %v381
        %v660 = vpop.f32.mrf.mxu0
        %v661 = vadd.f32 %v648, %v660
        %v662 = vpop.f32.mrf.mxu0
        %663 = vdwg.mxu0
        %664 = vmatpush.bf16.msra.mxu0 %v544
        %665 = vmatpush.bf16.msra.mxu0 %v542
        %666 = vmatpush.bf16.msra.mxu0 %v540
        %667 = vmatpush.bf16.msra.mxu0 %v538
        %668 = vmatpush.bf16.msra.mxu0 %v536
        %669 = vmatpush.bf16.msra.mxu0 %v534
        %670 = vmatpush.bf16.msra.mxu0 %v532
        %671 = vmatpush.bf16.msra.mxu0 %v530
        %672 = vmatmul.bf16.gmra.mxu0 %v367
        %v673 = vpop.f32.mrf.mxu0
        %v674 = vadd.f32 0.0, %v673
        %v675 = vpop.f32.mrf.mxu0
        %676 = vdwg.mxu0
        %677 = vmatpush.bf16.msra.mxu0 %v560
        %678 = vmatpush.bf16.msra.mxu0 %v558
        %679 = vmatpush.bf16.msra.mxu0 %v556
        %680 = vmatpush.bf16.msra.mxu0 %v554
        %681 = vmatpush.bf16.msra.mxu0 %v552
        %682 = vmatpush.bf16.msra.mxu0 %v550
        %683 = vmatpush.bf16.msra.mxu0 %v548
        %684 = vmatpush.bf16.msra.mxu0 %v546
        %685 = vmatmul.bf16.gmra.mxu0 %v374
        %v686 = vpop.f32.mrf.mxu0
        %v687 = vadd.f32 %v674, %v686
        %v688 = vpop.f32.mrf.mxu0
        %689 = vdwg.mxu0
        %690 = vmatpush.bf16.msra.mxu0 %v576
        %691 = vmatpush.bf16.msra.mxu0 %v574
        %692 = vmatpush.bf16.msra.mxu0 %v572
        %693 = vmatpush.bf16.msra.mxu0 %v570
        %694 = vmatpush.bf16.msra.mxu0 %v568
        %695 = vmatpush.bf16.msra.mxu0 %v566
        %696 = vmatpush.bf16.msra.mxu0 %v564
        %697 = vmatpush.bf16.msra.mxu0 %v562
        %698 = vmatmul.bf16.gmra.mxu0 %v381
        %v699 = vpop.f32.mrf.mxu0
        %v700 = vadd.f32 %v687, %v699
        %v701 = vpop.f32.mrf.mxu0
        %702 = vdwg.mxu0
        %v751 = vunpack.c.l.b16 %v212
        %v752 = vunpack.c.h.b16 %v212
        %v753 = vunpack.c.l.b16 %v213
        %v754 = vunpack.c.h.b16 %v213
        %v755 = vunpack.c.l.b16 %v214
        %v756 = vunpack.c.h.b16 %v214
        %v757 = vunpack.c.l.b16 %v215
        %v758 = vunpack.c.h.b16 %v215
        %v759 = vunpack.c.l.b16 %v216
        %v760 = vunpack.c.h.b16 %v216
        %v761 = vunpack.c.l.b16 %v217
        %v762 = vunpack.c.h.b16 %v217
        %v763 = vunpack.c.l.b16 %v218
        %v764 = vunpack.c.h.b16 %v218
        %v765 = vunpack.c.l.b16 %v219
        %v766 = vunpack.c.h.b16 %v219
        %v767 = vunpack.c.l.b16 %v220
        %v768 = vunpack.c.h.b16 %v220
        %v769 = vunpack.c.l.b16 %v221
        %v770 = vunpack.c.h.b16 %v221
        %v771 = vunpack.c.l.b16 %v222
        %v772 = vunpack.c.h.b16 %v222
        %v773 = vunpack.c.l.b16 %v223
        %v774 = vunpack.c.h.b16 %v223
        %v775 = vunpack.c.l.b16 %v224
        %v776 = vunpack.c.h.b16 %v224
        %v777 = vunpack.c.l.b16 %v225
        %v778 = vunpack.c.h.b16 %v225
        %v779 = vunpack.c.l.b16 %v226
        %v780 = vunpack.c.h.b16 %v226
        %v781 = vunpack.c.l.b16 %v227
        %v782 = vunpack.c.h.b16 %v227
        %v783 = vunpack.c.l.b16 %v228
        %v784 = vunpack.c.h.b16 %v228
        %v785 = vunpack.c.l.b16 %v229
        %v786 = vunpack.c.h.b16 %v229
        %v787 = vunpack.c.l.b16 %v230
        %v788 = vunpack.c.h.b16 %v230
        %v789 = vunpack.c.l.b16 %v231
        %v790 = vunpack.c.h.b16 %v231
        %v791 = vunpack.c.l.b16 %v232
        %v792 = vunpack.c.h.b16 %v232
        %v793 = vunpack.c.l.b16 %v233
        %v794 = vunpack.c.h.b16 %v233
        %v795 = vunpack.c.l.b16 %v234
        %v796 = vunpack.c.h.b16 %v234
        %v797 = vunpack.c.l.b16 %v235
        %v798 = vunpack.c.h.b16 %v235
        %v799 = vunpack.c.l.b16 %v236
        %v800 = vunpack.c.h.b16 %v236
        %v801 = vunpack.c.l.b16 %v237
        %v802 = vunpack.c.h.b16 %v237
        %v803 = vunpack.c.l.b16 %v238
        %v804 = vunpack.c.h.b16 %v238
        %v805 = vunpack.c.l.b16 %v239
        %v806 = vunpack.c.h.b16 %v239
        %v807 = vunpack.c.l.b16 %v240
        %v808 = vunpack.c.h.b16 %v240
        %v809 = vunpack.c.l.b16 %v241
        %v810 = vunpack.c.h.b16 %v241
        %v811 = vunpack.c.l.b16 %v242
        %v812 = vunpack.c.h.b16 %v242
        %v813 = vunpack.c.l.b16 %v243
        %v814 = vunpack.c.h.b16 %v243
        %v815 = vunpack.c.l.b16 %v244
        %v816 = vunpack.c.h.b16 %v244
        %v817 = vunpack.c.l.b16 %v245
        %v818 = vunpack.c.h.b16 %v245
        %v819 = vunpack.c.l.b16 %v246
        %v820 = vunpack.c.h.b16 %v246
        %v821 = vunpack.c.l.b16 %v247
        %v822 = vunpack.c.h.b16 %v247
        %v823 = vunpack.c.l.b16 %v248
        %v824 = vunpack.c.h.b16 %v248
        %v825 = vunpack.c.l.b16 %v249
        %v826 = vunpack.c.h.b16 %v249
        %v827 = vunpack.c.l.b16 %v250
        %v828 = vunpack.c.h.b16 %v250
        %v829 = vunpack.c.l.b16 %v251
        %v830 = vunpack.c.h.b16 %v251
        %v831 = vunpack.c.l.b16 %v252
        %v832 = vunpack.c.h.b16 %v252
        %v833 = vunpack.c.l.b16 %v253
        %v834 = vunpack.c.h.b16 %v253
        %v835 = vunpack.c.l.b16 %v254
        %v836 = vunpack.c.h.b16 %v254
        %v837 = vunpack.c.l.b16 %v255
        %v838 = vunpack.c.h.b16 %v255
        %v839 = vunpack.c.l.b16 %v256
        %v840 = vunpack.c.h.b16 %v256
        %v841 = vunpack.c.l.b16 %v257
        %v842 = vunpack.c.h.b16 %v257
        %v843 = vunpack.c.l.b16 %v258
        %v844 = vunpack.c.h.b16 %v258
        %v845 = vunpack.c.l.b16 %v259
        %v846 = vunpack.c.h.b16 %v259
        %v847 = vpack.c.b16 %v753, %v751
        %v848 = vpack.c.b16 %v754, %v752
        %v849 = vpack.c.b16 %v757, %v755
        %v850 = vpack.c.b16 %v758, %v756
        %v851 = vpack.c.b16 %v761, %v759
        %v852 = vpack.c.b16 %v762, %v760
        %v853 = vpack.c.b16 %v765, %v763
        %v854 = vpack.c.b16 %v766, %v764
        %v855 = vpack.c.b16 %v769, %v767
        %v856 = vpack.c.b16 %v770, %v768
        %v857 = vpack.c.b16 %v773, %v771
        %v858 = vpack.c.b16 %v774, %v772
        %v859 = vpack.c.b16 %v777, %v775
        %v860 = vpack.c.b16 %v778, %v776
        %v861 = vpack.c.b16 %v781, %v779
        %v862 = vpack.c.b16 %v782, %v780
        %v863 = vpack.c.b16 %v785, %v783
        %v864 = vpack.c.b16 %v786, %v784
        %v865 = vpack.c.b16 %v789, %v787
        %v866 = vpack.c.b16 %v790, %v788
        %v867 = vpack.c.b16 %v793, %v791
        %v868 = vpack.c.b16 %v794, %v792
        %v869 = vpack.c.b16 %v797, %v795
        %v870 = vpack.c.b16 %v798, %v796
        %v871 = vpack.c.b16 %v801, %v799
        %v872 = vpack.c.b16 %v802, %v800
        %v873 = vpack.c.b16 %v805, %v803
        %v874 = vpack.c.b16 %v806, %v804
        %v875 = vpack.c.b16 %v809, %v807
        %v876 = vpack.c.b16 %v810, %v808
        %v877 = vpack.c.b16 %v813, %v811
        %v878 = vpack.c.b16 %v814, %v812
        %v879 = vpack.c.b16 %v817, %v815
        %v880 = vpack.c.b16 %v818, %v816
        %v881 = vpack.c.b16 %v821, %v819
        %v882 = vpack.c.b16 %v822, %v820
        %v883 = vpack.c.b16 %v825, %v823
        %v884 = vpack.c.b16 %v826, %v824
        %v885 = vpack.c.b16 %v829, %v827
        %v886 = vpack.c.b16 %v830, %v828
        %v887 = vpack.c.b16 %v833, %v831
        %v888 = vpack.c.b16 %v834, %v832
        %v889 = vpack.c.b16 %v837, %v835
        %v890 = vpack.c.b16 %v838, %v836
        %v891 = vpack.c.b16 %v841, %v839
        %v892 = vpack.c.b16 %v842, %v840
        %v893 = vpack.c.b16 %v845, %v843
        %v894 = vpack.c.b16 %v846, %v844
        %943 = vmatpush.bf16.msra.mxu0 %v861
        %944 = vmatpush.bf16.msra.mxu0 %v859
        %945 = vmatpush.bf16.msra.mxu0 %v857
        %946 = vmatpush.bf16.msra.mxu0 %v855
        %947 = vmatpush.bf16.msra.mxu0 %v853
        %948 = vmatpush.bf16.msra.mxu0 %v851
        %949 = vmatpush.bf16.msra.mxu0 %v849
        %950 = vmatpush.bf16.msra.mxu0 %v847
        %951 = vmatmul.bf16.gmra.mxu0 %v209
        %v952 = vpop.f32.mrf.mxu0
        %v953 = vadd.f32 %v661, %v952
        %v954 = vpop.f32.mrf.mxu0
        %955 = vdwg.mxu0
        %956 = vmatpush.bf16.msra.mxu0 %v877
        %957 = vmatpush.bf16.msra.mxu0 %v875
        %958 = vmatpush.bf16.msra.mxu0 %v873
        %959 = vmatpush.bf16.msra.mxu0 %v871
        %960 = vmatpush.bf16.msra.mxu0 %v869
        %961 = vmatpush.bf16.msra.mxu0 %v867
        %962 = vmatpush.bf16.msra.mxu0 %v865
        %963 = vmatpush.bf16.msra.mxu0 %v863
        %964 = vmatmul.bf16.gmra.mxu0 %v210
        %v965 = vpop.f32.mrf.mxu0
        %v966 = vadd.f32 %v953, %v965
        %v967 = vpop.f32.mrf.mxu0
        %968 = vdwg.mxu0
        %969 = vmatpush.bf16.msra.mxu0 %v893
        %970 = vmatpush.bf16.msra.mxu0 %v891
        %971 = vmatpush.bf16.msra.mxu0 %v889
        %972 = vmatpush.bf16.msra.mxu0 %v887
        %973 = vmatpush.bf16.msra.mxu0 %v885
        %974 = vmatpush.bf16.msra.mxu0 %v883
        %975 = vmatpush.bf16.msra.mxu0 %v881
        %976 = vmatpush.bf16.msra.mxu0 %v879
        %977 = vmatmul.bf16.gmra.mxu0 %v211
        %v978 = vpop.f32.mrf.mxu0
        %v979 = vadd.f32 %v966, %v978
        %v980 = vpop.f32.mrf.mxu0
        %981 = vdwg.mxu0
        %982 = vmatpush.bf16.msra.mxu0 %v862
        %983 = vmatpush.bf16.msra.mxu0 %v860
        %984 = vmatpush.bf16.msra.mxu0 %v858
        %985 = vmatpush.bf16.msra.mxu0 %v856
        %986 = vmatpush.bf16.msra.mxu0 %v854
        %987 = vmatpush.bf16.msra.mxu0 %v852
        %988 = vmatpush.bf16.msra.mxu0 %v850
        %989 = vmatpush.bf16.msra.mxu0 %v848
        %990 = vmatmul.bf16.gmra.mxu0 %v209
        %v991 = vpop.f32.mrf.mxu0
        %v992 = vadd.f32 %v700, %v991
        %v993 = vpop.f32.mrf.mxu0
        %994 = vdwg.mxu0
        %995 = vmatpush.bf16.msra.mxu0 %v878
        %996 = vmatpush.bf16.msra.mxu0 %v876
        %997 = vmatpush.bf16.msra.mxu0 %v874
        %998 = vmatpush.bf16.msra.mxu0 %v872
        %999 = vmatpush.bf16.msra.mxu0 %v870
        %1000 = vmatpush.bf16.msra.mxu0 %v868
        %1001 = vmatpush.bf16.msra.mxu0 %v866
        %1002 = vmatpush.bf16.msra.mxu0 %v864
        %1003 = vmatmul.bf16.gmra.mxu0 %v210
        %v1004 = vpop.f32.mrf.mxu0
        %v1005 = vadd.f32 %v992, %v1004
        %v1006 = vpop.f32.mrf.mxu0
        %1007 = vdwg.mxu0
        %1008 = vmatpush.bf16.msra.mxu0 %v894
        %1009 = vmatpush.bf16.msra.mxu0 %v892
        %1010 = vmatpush.bf16.msra.mxu0 %v890
        %1011 = vmatpush.bf16.msra.mxu0 %v888
        %1012 = vmatpush.bf16.msra.mxu0 %v886
        %1013 = vmatpush.bf16.msra.mxu0 %v884
        %1014 = vmatpush.bf16.msra.mxu0 %v882
        %1015 = vmatpush.bf16.msra.mxu0 %v880
        %1016 = vmatmul.bf16.gmra.mxu0 %v211
        %v1017 = vpop.f32.mrf.mxu0
        %v1018 = vadd.f32 %v1005, %v1017
        %v1019 = vpop.f32.mrf.mxu0
        %1020 = vdwg.mxu0
        %s1021 = scalar_lea.vmem [#allocation2], 1152
        %v1022 = vld [vmem:[%s1021] sm:$0xff]
        %v1023 = vld [vmem:[%s1021 + $0x8] sm:$0xff]
        %v1024 = vld [vmem:[%s1021 + $0x10] sm:$0xff]
        %v1025 = vld [vmem:[%s1021 + $0x18] sm:$0xff]
        %v1026 = vld [vmem:[%s1021 + $0x20] sm:$0xff]
        %v1027 = vld [vmem:[%s1021 + $0x28] sm:$0xff]
        %v1028 = vld [vmem:[%s1021 + $0x30] sm:$0xff]
        %v1029 = vld [vmem:[%s1021 + $0x38] sm:$0xff]
        %v1030 = vld [vmem:[%s1021 + $0x40] sm:$0xff]
        %v1031 = vld [vmem:[%s1021 + $0x48] sm:$0xff]
        %v1032 = vld [vmem:[%s1021 + $0x50] sm:$0xff]
        %v1033 = vld [vmem:[%s1021 + $0x58] sm:$0xff]
        %v1034 = vld [vmem:[%s1021 + $0x60] sm:$0xff]
        %v1035 = vld [vmem:[%s1021 + $0x68] sm:$0xff]
        %v1036 = vld [vmem:[%s1021 + $0x70] sm:$0xff]
        %v1037 = vld [vmem:[%s1021 + $0x78] sm:$0xff]
        %v1038 = vld [vmem:[%s1021 + $0x80] sm:$0xff]
        %v1039 = vld [vmem:[%s1021 + $0x88] sm:$0xff]
        %v1040 = vld [vmem:[%s1021 + $0x90] sm:$0xff]
        %v1041 = vld [vmem:[%s1021 + $0x98] sm:$0xff]
        %v1042 = vld [vmem:[%s1021 + $0xa0] sm:$0xff]
        %v1043 = vld [vmem:[%s1021 + $0xa8] sm:$0xff]
        %v1044 = vld [vmem:[%s1021 + $0xb0] sm:$0xff]
        %v1045 = vld [vmem:[%s1021 + $0xb8] sm:$0xff]
        %v1046 = vld [vmem:[%s1021 + $0xc0] sm:$0xff]
        %v1047 = vld [vmem:[%s1021 + $0xc8] sm:$0xff]
        %v1048 = vld [vmem:[%s1021 + $0xd0] sm:$0xff]
        %v1049 = vld [vmem:[%s1021 + $0xd8] sm:$0xff]
        %v1050 = vld [vmem:[%s1021 + $0xe0] sm:$0xff]
        %v1051 = vld [vmem:[%s1021 + $0xe8] sm:$0xff]
        %v1052 = vld [vmem:[%s1021 + $0xf0] sm:$0xff]
        %v1053 = vld [vmem:[%s1021 + $0xf8] sm:$0xff]
        %v1054 = vld [vmem:[%s1021 + $0x100] sm:$0xff]
        %v1055 = vld [vmem:[%s1021 + $0x108] sm:$0xff]
        %v1056 = vld [vmem:[%s1021 + $0x110] sm:$0xff]
        %v1057 = vld [vmem:[%s1021 + $0x118] sm:$0xff]
        %v1058 = vld [vmem:[%s1021 + $0x120] sm:$0xff]
        %v1059 = vld [vmem:[%s1021 + $0x128] sm:$0xff]
        %v1060 = vld [vmem:[%s1021 + $0x130] sm:$0xff]
        %v1061 = vld [vmem:[%s1021 + $0x138] sm:$0xff]
        %v1062 = vld [vmem:[%s1021 + $0x140] sm:$0xff]
        %v1063 = vld [vmem:[%s1021 + $0x148] sm:$0xff]
        %v1064 = vld [vmem:[%s1021 + $0x150] sm:$0xff]
        %v1065 = vld [vmem:[%s1021 + $0x158] sm:$0xff]
        %v1066 = vld [vmem:[%s1021 + $0x160] sm:$0xff]
        %v1067 = vld [vmem:[%s1021 + $0x168] sm:$0xff]
        %v1068 = vld [vmem:[%s1021 + $0x170] sm:$0xff]
        %v1069 = vld [vmem:[%s1021 + $0x178] sm:$0xff]
        %v1118 = vunpack.c.l.b16 %v1022
        %v1119 = vunpack.c.h.b16 %v1022
        %v1120 = vunpack.c.l.b16 %v1023
        %v1121 = vunpack.c.h.b16 %v1023
        %v1122 = vunpack.c.l.b16 %v1024
        %v1123 = vunpack.c.h.b16 %v1024
        %v1124 = vunpack.c.l.b16 %v1025
        %v1125 = vunpack.c.h.b16 %v1025
        %v1126 = vunpack.c.l.b16 %v1026
        %v1127 = vunpack.c.h.b16 %v1026
        %v1128 = vunpack.c.l.b16 %v1027
        %v1129 = vunpack.c.h.b16 %v1027
        %v1130 = vunpack.c.l.b16 %v1028
        %v1131 = vunpack.c.h.b16 %v1028
        %v1132 = vunpack.c.l.b16 %v1029
        %v1133 = vunpack.c.h.b16 %v1029
        %v1134 = vunpack.c.l.b16 %v1030
        %v1135 = vunpack.c.h.b16 %v1030
        %v1136 = vunpack.c.l.b16 %v1031
        %v1137 = vunpack.c.h.b16 %v1031
        %v1138 = vunpack.c.l.b16 %v1032
        %v1139 = vunpack.c.h.b16 %v1032
        %v1140 = vunpack.c.l.b16 %v1033
        %v1141 = vunpack.c.h.b16 %v1033
        %v1142 = vunpack.c.l.b16 %v1034
        %v1143 = vunpack.c.h.b16 %v1034
        %v1144 = vunpack.c.l.b16 %v1035
        %v1145 = vunpack.c.h.b16 %v1035
        %v1146 = vunpack.c.l.b16 %v1036
        %v1147 = vunpack.c.h.b16 %v1036
        %v1148 = vunpack.c.l.b16 %v1037
        %v1149 = vunpack.c.h.b16 %v1037
        %v1150 = vunpack.c.l.b16 %v1038
        %v1151 = vunpack.c.h.b16 %v1038
        %v1152 = vunpack.c.l.b16 %v1039
        %v1153 = vunpack.c.h.b16 %v1039
        %v1154 = vunpack.c.l.b16 %v1040
        %v1155 = vunpack.c.h.b16 %v1040
        %v1156 = vunpack.c.l.b16 %v1041
        %v1157 = vunpack.c.h.b16 %v1041
        %v1158 = vunpack.c.l.b16 %v1042
        %v1159 = vunpack.c.h.b16 %v1042
        %v1160 = vunpack.c.l.b16 %v1043
        %v1161 = vunpack.c.h.b16 %v1043
        %v1162 = vunpack.c.l.b16 %v1044
        %v1163 = vunpack.c.h.b16 %v1044
        %v1164 = vunpack.c.l.b16 %v1045
        %v1165 = vunpack.c.h.b16 %v1045
        %v1166 = vunpack.c.l.b16 %v1046
        %v1167 = vunpack.c.h.b16 %v1046
        %v1168 = vunpack.c.l.b16 %v1047
        %v1169 = vunpack.c.h.b16 %v1047
        %v1170 = vunpack.c.l.b16 %v1048
        %v1171 = vunpack.c.h.b16 %v1048
        %v1172 = vunpack.c.l.b16 %v1049
        %v1173 = vunpack.c.h.b16 %v1049
        %v1174 = vunpack.c.l.b16 %v1050
        %v1175 = vunpack.c.h.b16 %v1050
        %v1176 = vunpack.c.l.b16 %v1051
        %v1177 = vunpack.c.h.b16 %v1051
        %v1178 = vunpack.c.l.b16 %v1052
        %v1179 = vunpack.c.h.b16 %v1052
        %v1180 = vunpack.c.l.b16 %v1053
        %v1181 = vunpack.c.h.b16 %v1053
        %v1182 = vunpack.c.l.b16 %v1054
        %v1183 = vunpack.c.h.b16 %v1054
        %v1184 = vunpack.c.l.b16 %v1055
        %v1185 = vunpack.c.h.b16 %v1055
        %v1186 = vunpack.c.l.b16 %v1056
        %v1187 = vunpack.c.h.b16 %v1056
        %v1188 = vunpack.c.l.b16 %v1057
        %v1189 = vunpack.c.h.b16 %v1057
        %v1190 = vunpack.c.l.b16 %v1058
        %v1191 = vunpack.c.h.b16 %v1058
        %v1192 = vunpack.c.l.b16 %v1059
        %v1193 = vunpack.c.h.b16 %v1059
        %v1194 = vunpack.c.l.b16 %v1060
        %v1195 = vunpack.c.h.b16 %v1060
        %v1196 = vunpack.c.l.b16 %v1061
        %v1197 = vunpack.c.h.b16 %v1061
        %v1198 = vunpack.c.l.b16 %v1062
        %v1199 = vunpack.c.h.b16 %v1062
        %v1200 = vunpack.c.l.b16 %v1063
        %v1201 = vunpack.c.h.b16 %v1063
        %v1202 = vunpack.c.l.b16 %v1064
        %v1203 = vunpack.c.h.b16 %v1064
        %v1204 = vunpack.c.l.b16 %v1065
        %v1205 = vunpack.c.h.b16 %v1065
        %v1206 = vunpack.c.l.b16 %v1066
        %v1207 = vunpack.c.h.b16 %v1066
        %v1208 = vunpack.c.l.b16 %v1067
        %v1209 = vunpack.c.h.b16 %v1067
        %v1210 = vunpack.c.l.b16 %v1068
        %v1211 = vunpack.c.h.b16 %v1068
        %v1212 = vunpack.c.l.b16 %v1069
        %v1213 = vunpack.c.h.b16 %v1069
        %v1214 = vpack.c.b16 %v1120, %v1118
        %v1215 = vpack.c.b16 %v1121, %v1119
        %v1216 = vpack.c.b16 %v1124, %v1122
        %v1217 = vpack.c.b16 %v1125, %v1123
        %v1218 = vpack.c.b16 %v1128, %v1126
        %v1219 = vpack.c.b16 %v1129, %v1127
        %v1220 = vpack.c.b16 %v1132, %v1130
        %v1221 = vpack.c.b16 %v1133, %v1131
        %v1222 = vpack.c.b16 %v1136, %v1134
        %v1223 = vpack.c.b16 %v1137, %v1135
        %v1224 = vpack.c.b16 %v1140, %v1138
        %v1225 = vpack.c.b16 %v1141, %v1139
        %v1226 = vpack.c.b16 %v1144, %v1142
        %v1227 = vpack.c.b16 %v1145, %v1143
        %v1228 = vpack.c.b16 %v1148, %v1146
        %v1229 = vpack.c.b16 %v1149, %v1147
        %v1230 = vpack.c.b16 %v1152, %v1150
        %v1231 = vpack.c.b16 %v1153, %v1151
        %v1232 = vpack.c.b16 %v1156, %v1154
        %v1233 = vpack.c.b16 %v1157, %v1155
        %v1234 = vpack.c.b16 %v1160, %v1158
        %v1235 = vpack.c.b16 %v1161, %v1159
        %v1236 = vpack.c.b16 %v1164, %v1162
        %v1237 = vpack.c.b16 %v1165, %v1163
        %v1238 = vpack.c.b16 %v1168, %v1166
        %v1239 = vpack.c.b16 %v1169, %v1167
        %v1240 = vpack.c.b16 %v1172, %v1170
        %v1241 = vpack.c.b16 %v1173, %v1171
        %v1242 = vpack.c.b16 %v1176, %v1174
        %v1243 = vpack.c.b16 %v1177, %v1175
        %v1244 = vpack.c.b16 %v1180, %v1178
        %v1245 = vpack.c.b16 %v1181, %v1179
        %v1246 = vpack.c.b16 %v1184, %v1182
        %v1247 = vpack.c.b16 %v1185, %v1183
        %v1248 = vpack.c.b16 %v1188, %v1186
        %v1249 = vpack.c.b16 %v1189, %v1187
        %v1250 = vpack.c.b16 %v1192, %v1190
        %v1251 = vpack.c.b16 %v1193, %v1191
        %v1252 = vpack.c.b16 %v1196, %v1194
        %v1253 = vpack.c.b16 %v1197, %v1195
        %v1254 = vpack.c.b16 %v1200, %v1198
        %v1255 = vpack.c.b16 %v1201, %v1199
        %v1256 = vpack.c.b16 %v1204, %v1202
        %v1257 = vpack.c.b16 %v1205, %v1203
        %v1258 = vpack.c.b16 %v1208, %v1206
        %v1259 = vpack.c.b16 %v1209, %v1207
        %v1260 = vpack.c.b16 %v1212, %v1210
        %v1261 = vpack.c.b16 %v1213, %v1211
        %1310 = vmatpush.bf16.msra.mxu0 %v1228
        %1311 = vmatpush.bf16.msra.mxu0 %v1226
        %1312 = vmatpush.bf16.msra.mxu0 %v1224
        %1313 = vmatpush.bf16.msra.mxu0 %v1222
        %1314 = vmatpush.bf16.msra.mxu0 %v1220
        %1315 = vmatpush.bf16.msra.mxu0 %v1218
        %1316 = vmatpush.bf16.msra.mxu0 %v1216
        %1317 = vmatpush.bf16.msra.mxu0 %v1214
        %1318 = vmatmul.bf16.gmra.mxu0 %v367
        %v1319 = vpop.f32.mrf.mxu0
        %v1320 = vadd.f32 0.0, %v1319
        %v1321 = vpop.f32.mrf.mxu0
        %1322 = vdwg.mxu0
        %1323 = vmatpush.bf16.msra.mxu0 %v1244
        %1324 = vmatpush.bf16.msra.mxu0 %v1242
        %1325 = vmatpush.bf16.msra.mxu0 %v1240
        %1326 = vmatpush.bf16.msra.mxu0 %v1238
        %1327 = vmatpush.bf16.msra.mxu0 %v1236
        %1328 = vmatpush.bf16.msra.mxu0 %v1234
        %1329 = vmatpush.bf16.msra.mxu0 %v1232
        %1330 = vmatpush.bf16.msra.mxu0 %v1230
        %1331 = vmatmul.bf16.gmra.mxu0 %v374
        %v1332 = vpop.f32.mrf.mxu0
        %v1333 = vadd.f32 %v1320, %v1332
        %v1334 = vpop.f32.mrf.mxu0
        %1335 = vdwg.mxu0
        %1336 = vmatpush.bf16.msra.mxu0 %v1260
        %1337 = vmatpush.bf16.msra.mxu0 %v1258
        %1338 = vmatpush.bf16.msra.mxu0 %v1256
        %1339 = vmatpush.bf16.msra.mxu0 %v1254
        %1340 = vmatpush.bf16.msra.mxu0 %v1252
        %1341 = vmatpush.bf16.msra.mxu0 %v1250
        %1342 = vmatpush.bf16.msra.mxu0 %v1248
        %1343 = vmatpush.bf16.msra.mxu0 %v1246
        %1344 = vmatmul.bf16.gmra.mxu0 %v381
        %v1345 = vpop.f32.mrf.mxu0
        %v1346 = vadd.f32 %v1333, %v1345
        %v1347 = vpop.f32.mrf.mxu0
        %1348 = vdwg.mxu0
        %1349 = vmatpush.bf16.msra.mxu0 %v1229
        %1350 = vmatpush.bf16.msra.mxu0 %v1227
        %1351 = vmatpush.bf16.msra.mxu0 %v1225
        %1352 = vmatpush.bf16.msra.mxu0 %v1223
        %1353 = vmatpush.bf16.msra.mxu0 %v1221
        %1354 = vmatpush.bf16.msra.mxu0 %v1219
        %1355 = vmatpush.bf16.msra.mxu0 %v1217
        %1356 = vmatpush.bf16.msra.mxu0 %v1215
        %1357 = vmatmul.bf16.gmra.mxu0 %v367
        %v1358 = vpop.f32.mrf.mxu0
        %v1359 = vadd.f32 0.0, %v1358
        %v1360 = vpop.f32.mrf.mxu0
        %1361 = vdwg.mxu0
        %1362 = vmatpush.bf16.msra.mxu0 %v1245
        %1363 = vmatpush.bf16.msra.mxu0 %v1243
        %1364 = vmatpush.bf16.msra.mxu0 %v1241
        %1365 = vmatpush.bf16.msra.mxu0 %v1239
        %1366 = vmatpush.bf16.msra.mxu0 %v1237
        %1367 = vmatpush.bf16.msra.mxu0 %v1235
        %1368 = vmatpush.bf16.msra.mxu0 %v1233
        %1369 = vmatpush.bf16.msra.mxu0 %v1231
        %1370 = vmatmul.bf16.gmra.mxu0 %v374
        %v1371 = vpop.f32.mrf.mxu0
        %v1372 = vadd.f32 %v1359, %v1371
        %v1373 = vpop.f32.mrf.mxu0
        %1374 = vdwg.mxu0
        %1375 = vmatpush.bf16.msra.mxu0 %v1261
        %1376 = vmatpush.bf16.msra.mxu0 %v1259
        %1377 = vmatpush.bf16.msra.mxu0 %v1257
        %1378 = vmatpush.bf16.msra.mxu0 %v1255
        %1379 = vmatpush.bf16.msra.mxu0 %v1253
        %1380 = vmatpush.bf16.msra.mxu0 %v1251
        %1381 = vmatpush.bf16.msra.mxu0 %v1249
        %1382 = vmatpush.bf16.msra.mxu0 %v1247
        %1383 = vmatmul.bf16.gmra.mxu0 %v381
        %v1384 = vpop.f32.mrf.mxu0
        %v1385 = vadd.f32 %v1372, %v1384
        %v1386 = vpop.f32.mrf.mxu0
        %1387 = vdwg.mxu0
        %v1436 = vunpack.c.l.b16 %v261
        %v1437 = vunpack.c.h.b16 %v261
        %v1438 = vunpack.c.l.b16 %v262
        %v1439 = vunpack.c.h.b16 %v262
        %v1440 = vunpack.c.l.b16 %v263
        %v1441 = vunpack.c.h.b16 %v263
        %v1442 = vunpack.c.l.b16 %v264
        %v1443 = vunpack.c.h.b16 %v264
        %v1444 = vunpack.c.l.b16 %v265
        %v1445 = vunpack.c.h.b16 %v265
        %v1446 = vunpack.c.l.b16 %v266
        %v1447 = vunpack.c.h.b16 %v266
        %v1448 = vunpack.c.l.b16 %v267
        %v1449 = vunpack.c.h.b16 %v267
        %v1450 = vunpack.c.l.b16 %v268
        %v1451 = vunpack.c.h.b16 %v268
        %v1452 = vunpack.c.l.b16 %v269
        %v1453 = vunpack.c.h.b16 %v269
        %v1454 = vunpack.c.l.b16 %v270
        %v1455 = vunpack.c.h.b16 %v270
        %v1456 = vunpack.c.l.b16 %v271
        %v1457 = vunpack.c.h.b16 %v271
        %v1458 = vunpack.c.l.b16 %v272
        %v1459 = vunpack.c.h.b16 %v272
        %v1460 = vunpack.c.l.b16 %v273
        %v1461 = vunpack.c.h.b16 %v273
        %v1462 = vunpack.c.l.b16 %v274
        %v1463 = vunpack.c.h.b16 %v274
        %v1464 = vunpack.c.l.b16 %v275
        %v1465 = vunpack.c.h.b16 %v275
        %v1466 = vunpack.c.l.b16 %v276
        %v1467 = vunpack.c.h.b16 %v276
        %v1468 = vunpack.c.l.b16 %v277
        %v1469 = vunpack.c.h.b16 %v277
        %v1470 = vunpack.c.l.b16 %v278
        %v1471 = vunpack.c.h.b16 %v278
        %v1472 = vunpack.c.l.b16 %v279
        %v1473 = vunpack.c.h.b16 %v279
        %v1474 = vunpack.c.l.b16 %v280
        %v1475 = vunpack.c.h.b16 %v280
        %v1476 = vunpack.c.l.b16 %v281
        %v1477 = vunpack.c.h.b16 %v281
        %v1478 = vunpack.c.l.b16 %v282
        %v1479 = vunpack.c.h.b16 %v282
        %v1480 = vunpack.c.l.b16 %v283
        %v1481 = vunpack.c.h.b16 %v283
        %v1482 = vunpack.c.l.b16 %v284
        %v1483 = vunpack.c.h.b16 %v284
        %v1484 = vunpack.c.l.b16 %v285
        %v1485 = vunpack.c.h.b16 %v285
        %v1486 = vunpack.c.l.b16 %v286
        %v1487 = vunpack.c.h.b16 %v286
        %v1488 = vunpack.c.l.b16 %v287
        %v1489 = vunpack.c.h.b16 %v287
        %v1490 = vunpack.c.l.b16 %v288
        %v1491 = vunpack.c.h.b16 %v288
        %v1492 = vunpack.c.l.b16 %v289
        %v1493 = vunpack.c.h.b16 %v289
        %v1494 = vunpack.c.l.b16 %v290
        %v1495 = vunpack.c.h.b16 %v290
        %v1496 = vunpack.c.l.b16 %v291
        %v1497 = vunpack.c.h.b16 %v291
        %v1498 = vunpack.c.l.b16 %v292
        %v1499 = vunpack.c.h.b16 %v292
        %v1500 = vunpack.c.l.b16 %v293
        %v1501 = vunpack.c.h.b16 %v293
        %v1502 = vunpack.c.l.b16 %v294
        %v1503 = vunpack.c.h.b16 %v294
        %v1504 = vunpack.c.l.b16 %v295
        %v1505 = vunpack.c.h.b16 %v295
        %v1506 = vunpack.c.l.b16 %v296
        %v1507 = vunpack.c.h.b16 %v296
        %v1508 = vunpack.c.l.b16 %v297
        %v1509 = vunpack.c.h.b16 %v297
        %v1510 = vunpack.c.l.b16 %v298
        %v1511 = vunpack.c.h.b16 %v298
        %v1512 = vunpack.c.l.b16 %v299
        %v1513 = vunpack.c.h.b16 %v299
        %v1514 = vunpack.c.l.b16 %v300
        %v1515 = vunpack.c.h.b16 %v300
        %v1516 = vunpack.c.l.b16 %v301
        %v1517 = vunpack.c.h.b16 %v301
        %v1518 = vunpack.c.l.b16 %v302
        %v1519 = vunpack.c.h.b16 %v302
        %v1520 = vunpack.c.l.b16 %v303
        %v1521 = vunpack.c.h.b16 %v303
        %v1522 = vunpack.c.l.b16 %v304
        %v1523 = vunpack.c.h.b16 %v304
        %v1524 = vunpack.c.l.b16 %v305
        %v1525 = vunpack.c.h.b16 %v305
        %v1526 = vunpack.c.l.b16 %v306
        %v1527 = vunpack.c.h.b16 %v306
        %v1528 = vunpack.c.l.b16 %v307
        %v1529 = vunpack.c.h.b16 %v307
        %v1530 = vunpack.c.l.b16 %v308
        %v1531 = vunpack.c.h.b16 %v308
        %v1532 = vpack.c.b16 %v1438, %v1436
        %v1533 = vpack.c.b16 %v1439, %v1437
        %v1534 = vpack.c.b16 %v1442, %v1440
        %v1535 = vpack.c.b16 %v1443, %v1441
        %v1536 = vpack.c.b16 %v1446, %v1444
        %v1537 = vpack.c.b16 %v1447, %v1445
        %v1538 = vpack.c.b16 %v1450, %v1448
        %v1539 = vpack.c.b16 %v1451, %v1449
        %v1540 = vpack.c.b16 %v1454, %v1452
        %v1541 = vpack.c.b16 %v1455, %v1453
        %v1542 = vpack.c.b16 %v1458, %v1456
        %v1543 = vpack.c.b16 %v1459, %v1457
        %v1544 = vpack.c.b16 %v1462, %v1460
        %v1545 = vpack.c.b16 %v1463, %v1461
        %v1546 = vpack.c.b16 %v1466, %v1464
        %v1547 = vpack.c.b16 %v1467, %v1465
        %v1548 = vpack.c.b16 %v1470, %v1468
        %v1549 = vpack.c.b16 %v1471, %v1469
        %v1550 = vpack.c.b16 %v1474, %v1472
        %v1551 = vpack.c.b16 %v1475, %v1473
        %v1552 = vpack.c.b16 %v1478, %v1476
        %v1553 = vpack.c.b16 %v1479, %v1477
        %v1554 = vpack.c.b16 %v1482, %v1480
        %v1555 = vpack.c.b16 %v1483, %v1481
        %v1556 = vpack.c.b16 %v1486, %v1484
        %v1557 = vpack.c.b16 %v1487, %v1485
        %v1558 = vpack.c.b16 %v1490, %v1488
        %v1559 = vpack.c.b16 %v1491, %v1489
        %v1560 = vpack.c.b16 %v1494, %v1492
        %v1561 = vpack.c.b16 %v1495, %v1493
        %v1562 = vpack.c.b16 %v1498, %v1496
        %v1563 = vpack.c.b16 %v1499, %v1497
        %v1564 = vpack.c.b16 %v1502, %v1500
        %v1565 = vpack.c.b16 %v1503, %v1501
        %v1566 = vpack.c.b16 %v1506, %v1504
        %v1567 = vpack.c.b16 %v1507, %v1505
        %v1568 = vpack.c.b16 %v1510, %v1508
        %v1569 = vpack.c.b16 %v1511, %v1509
        %v1570 = vpack.c.b16 %v1514, %v1512
        %v1571 = vpack.c.b16 %v1515, %v1513
        %v1572 = vpack.c.b16 %v1518, %v1516
        %v1573 = vpack.c.b16 %v1519, %v1517
        %v1574 = vpack.c.b16 %v1522, %v1520
        %v1575 = vpack.c.b16 %v1523, %v1521
        %v1576 = vpack.c.b16 %v1526, %v1524
        %v1577 = vpack.c.b16 %v1527, %v1525
        %v1578 = vpack.c.b16 %v1530, %v1528
        %v1579 = vpack.c.b16 %v1531, %v1529
        %1628 = vmatpush.bf16.msra.mxu0 %v1546
        %1629 = vmatpush.bf16.msra.mxu0 %v1544
        %1630 = vmatpush.bf16.msra.mxu0 %v1542
        %1631 = vmatpush.bf16.msra.mxu0 %v1540
        %1632 = vmatpush.bf16.msra.mxu0 %v1538
        %1633 = vmatpush.bf16.msra.mxu0 %v1536
        %1634 = vmatpush.bf16.msra.mxu0 %v1534
        %1635 = vmatpush.bf16.msra.mxu0 %v1532
        %1636 = vmatmul.bf16.gmra.mxu0 %v209
        %v1637 = vpop.f32.mrf.mxu0
        %v1638 = vadd.f32 %v1346, %v1637
        %v1639 = vpop.f32.mrf.mxu0
        %1640 = vdwg.mxu0
        %1641 = vmatpush.bf16.msra.mxu0 %v1562
        %1642 = vmatpush.bf16.msra.mxu0 %v1560
        %1643 = vmatpush.bf16.msra.mxu0 %v1558
        %1644 = vmatpush.bf16.msra.mxu0 %v1556
        %1645 = vmatpush.bf16.msra.mxu0 %v1554
        %1646 = vmatpush.bf16.msra.mxu0 %v1552
        %1647 = vmatpush.bf16.msra.mxu0 %v1550
        %1648 = vmatpush.bf16.msra.mxu0 %v1548
        %1649 = vmatmul.bf16.gmra.mxu0 %v210
        %v1650 = vpop.f32.mrf.mxu0
        %v1651 = vadd.f32 %v1638, %v1650
        %v1652 = vpop.f32.mrf.mxu0
        %1653 = vdwg.mxu0
        %1654 = vmatpush.bf16.msra.mxu0 %v1578
        %1655 = vmatpush.bf16.msra.mxu0 %v1576
        %1656 = vmatpush.bf16.msra.mxu0 %v1574
        %1657 = vmatpush.bf16.msra.mxu0 %v1572
        %1658 = vmatpush.bf16.msra.mxu0 %v1570
        %1659 = vmatpush.bf16.msra.mxu0 %v1568
        %1660 = vmatpush.bf16.msra.mxu0 %v1566
        %1661 = vmatpush.bf16.msra.mxu0 %v1564
        %1662 = vmatmul.bf16.gmra.mxu0 %v211
        %v1663 = vpop.f32.mrf.mxu0
        %v1664 = vadd.f32 %v1651, %v1663
        %v1665 = vpop.f32.mrf.mxu0
        %1666 = vdwg.mxu0
        %1667 = vmatpush.bf16.msra.mxu0 %v1547
        %1668 = vmatpush.bf16.msra.mxu0 %v1545
        %1669 = vmatpush.bf16.msra.mxu0 %v1543
        %1670 = vmatpush.bf16.msra.mxu0 %v1541
        %1671 = vmatpush.bf16.msra.mxu0 %v1539
        %1672 = vmatpush.bf16.msra.mxu0 %v1537
        %1673 = vmatpush.bf16.msra.mxu0 %v1535
        %1674 = vmatpush.bf16.msra.mxu0 %v1533
        %1675 = vmatmul.bf16.gmra.mxu0 %v209
        %v1676 = vpop.f32.mrf.mxu0
        %v1677 = vadd.f32 %v1385, %v1676
        %v1678 = vpop.f32.mrf.mxu0
        %1679 = vdwg.mxu0
        %1680 = vmatpush.bf16.msra.mxu0 %v1563
        %1681 = vmatpush.bf16.msra.mxu0 %v1561
        %1682 = vmatpush.bf16.msra.mxu0 %v1559
        %1683 = vmatpush.bf16.msra.mxu0 %v1557
        %1684 = vmatpush.bf16.msra.mxu0 %v1555
        %1685 = vmatpush.bf16.msra.mxu0 %v1553
        %1686 = vmatpush.bf16.msra.mxu0 %v1551
        %1687 = vmatpush.bf16.msra.mxu0 %v1549
        %1688 = vmatmul.bf16.gmra.mxu0 %v210
        %v1689 = vpop.f32.mrf.mxu0
        %v1690 = vadd.f32 %v1677, %v1689
        %v1691 = vpop.f32.mrf.mxu0
        %1692 = vdwg.mxu0
        %1693 = vmatpush.bf16.msra.mxu0 %v1579
        %1694 = vmatpush.bf16.msra.mxu0 %v1577
        %1695 = vmatpush.bf16.msra.mxu0 %v1575
        %1696 = vmatpush.bf16.msra.mxu0 %v1573
        %1697 = vmatpush.bf16.msra.mxu0 %v1571
        %1698 = vmatpush.bf16.msra.mxu0 %v1569
        %1699 = vmatpush.bf16.msra.mxu0 %v1567
        %1700 = vmatpush.bf16.msra.mxu0 %v1565
        %1701 = vmatmul.bf16.gmra.mxu0 %v211
        %v1702 = vpop.f32.mrf.mxu0
        %v1703 = vadd.f32 %v1690, %v1702
        %v1704 = vpop.f32.mrf.mxu0
        %1705 = vdwg.mxu0
        %s1706 = scalar_lea.vmem [#allocation2], 1536
        %v1707 = vld [vmem:[%s1706] sm:$0xff]
        %v1708 = vld [vmem:[%s1706 + $0x8] sm:$0xff]
        %v1709 = vld [vmem:[%s1706 + $0x10] sm:$0xff]
        %v1710 = vld [vmem:[%s1706 + $0x18] sm:$0xff]
        %v1711 = vld [vmem:[%s1706 + $0x20] sm:$0xff]
        %v1712 = vld [vmem:[%s1706 + $0x28] sm:$0xff]
        %v1713 = vld [vmem:[%s1706 + $0x30] sm:$0xff]
        %v1714 = vld [vmem:[%s1706 + $0x38] sm:$0xff]
        %v1715 = vld [vmem:[%s1706 + $0x40] sm:$0xff]
        %v1716 = vld [vmem:[%s1706 + $0x48] sm:$0xff]
        %v1717 = vld [vmem:[%s1706 + $0x50] sm:$0xff]
        %v1718 = vld [vmem:[%s1706 + $0x58] sm:$0xff]
        %v1719 = vld [vmem:[%s1706 + $0x60] sm:$0xff]
        %v1720 = vld [vmem:[%s1706 + $0x68] sm:$0xff]
        %v1721 = vld [vmem:[%s1706 + $0x70] sm:$0xff]
        %v1722 = vld [vmem:[%s1706 + $0x78] sm:$0xff]
        %v1723 = vld [vmem:[%s1706 + $0x80] sm:$0xff]
        %v1724 = vld [vmem:[%s1706 + $0x88] sm:$0xff]
        %v1725 = vld [vmem:[%s1706 + $0x90] sm:$0xff]
        %v1726 = vld [vmem:[%s1706 + $0x98] sm:$0xff]
        %v1727 = vld [vmem:[%s1706 + $0xa0] sm:$0xff]
        %v1728 = vld [vmem:[%s1706 + $0xa8] sm:$0xff]
        %v1729 = vld [vmem:[%s1706 + $0xb0] sm:$0xff]
        %v1730 = vld [vmem:[%s1706 + $0xb8] sm:$0xff]
        %v1731 = vld [vmem:[%s1706 + $0xc0] sm:$0xff]
        %v1732 = vld [vmem:[%s1706 + $0xc8] sm:$0xff]
        %v1733 = vld [vmem:[%s1706 + $0xd0] sm:$0xff]
        %v1734 = vld [vmem:[%s1706 + $0xd8] sm:$0xff]
        %v1735 = vld [vmem:[%s1706 + $0xe0] sm:$0xff]
        %v1736 = vld [vmem:[%s1706 + $0xe8] sm:$0xff]
        %v1737 = vld [vmem:[%s1706 + $0xf0] sm:$0xff]
        %v1738 = vld [vmem:[%s1706 + $0xf8] sm:$0xff]
        %v1739 = vld [vmem:[%s1706 + $0x100] sm:$0xff]
        %v1740 = vld [vmem:[%s1706 + $0x108] sm:$0xff]
        %v1741 = vld [vmem:[%s1706 + $0x110] sm:$0xff]
        %v1742 = vld [vmem:[%s1706 + $0x118] sm:$0xff]
        %v1743 = vld [vmem:[%s1706 + $0x120] sm:$0xff]
        %v1744 = vld [vmem:[%s1706 + $0x128] sm:$0xff]
        %v1745 = vld [vmem:[%s1706 + $0x130] sm:$0xff]
        %v1746 = vld [vmem:[%s1706 + $0x138] sm:$0xff]
        %v1747 = vld [vmem:[%s1706 + $0x140] sm:$0xff]
        %v1748 = vld [vmem:[%s1706 + $0x148] sm:$0xff]
        %v1749 = vld [vmem:[%s1706 + $0x150] sm:$0xff]
        %v1750 = vld [vmem:[%s1706 + $0x158] sm:$0xff]
        %v1751 = vld [vmem:[%s1706 + $0x160] sm:$0xff]
        %v1752 = vld [vmem:[%s1706 + $0x168] sm:$0xff]
        %v1753 = vld [vmem:[%s1706 + $0x170] sm:$0xff]
        %v1754 = vld [vmem:[%s1706 + $0x178] sm:$0xff]
        %v1758 = vrot.slane %v309, 1
        %v1759 = vrot.slane %v310, 1
        %v1760 = vrot.slane %v311, 1
        %v1812 = vunpack.c.l.b16 %v1707
        %v1813 = vunpack.c.h.b16 %v1707
        %v1814 = vunpack.c.l.b16 %v1708
        %v1815 = vunpack.c.h.b16 %v1708
        %v1816 = vunpack.c.l.b16 %v1709
        %v1817 = vunpack.c.h.b16 %v1709
        %v1818 = vunpack.c.l.b16 %v1710
        %v1819 = vunpack.c.h.b16 %v1710
        %v1820 = vunpack.c.l.b16 %v1711
        %v1821 = vunpack.c.h.b16 %v1711
        %v1822 = vunpack.c.l.b16 %v1712
        %v1823 = vunpack.c.h.b16 %v1712
        %v1824 = vunpack.c.l.b16 %v1713
        %v1825 = vunpack.c.h.b16 %v1713
        %v1826 = vunpack.c.l.b16 %v1714
        %v1827 = vunpack.c.h.b16 %v1714
        %v1828 = vunpack.c.l.b16 %v1715
        %v1829 = vunpack.c.h.b16 %v1715
        %v1830 = vunpack.c.l.b16 %v1716
        %v1831 = vunpack.c.h.b16 %v1716
        %v1832 = vunpack.c.l.b16 %v1717
        %v1833 = vunpack.c.h.b16 %v1717
        %v1834 = vunpack.c.l.b16 %v1718
        %v1835 = vunpack.c.h.b16 %v1718
        %v1836 = vunpack.c.l.b16 %v1719
        %v1837 = vunpack.c.h.b16 %v1719
        %v1838 = vunpack.c.l.b16 %v1720
        %v1839 = vunpack.c.h.b16 %v1720
        %v1840 = vunpack.c.l.b16 %v1721
        %v1841 = vunpack.c.h.b16 %v1721
        %v1842 = vunpack.c.l.b16 %v1722
        %v1843 = vunpack.c.h.b16 %v1722
        %v1844 = vunpack.c.l.b16 %v1723
        %v1845 = vunpack.c.h.b16 %v1723
        %v1846 = vunpack.c.l.b16 %v1724
        %v1847 = vunpack.c.h.b16 %v1724
        %v1848 = vunpack.c.l.b16 %v1725
        %v1849 = vunpack.c.h.b16 %v1725
        %v1850 = vunpack.c.l.b16 %v1726
        %v1851 = vunpack.c.h.b16 %v1726
        %v1852 = vunpack.c.l.b16 %v1727
        %v1853 = vunpack.c.h.b16 %v1727
        %v1854 = vunpack.c.l.b16 %v1728
        %v1855 = vunpack.c.h.b16 %v1728
        %v1856 = vunpack.c.l.b16 %v1729
        %v1857 = vunpack.c.h.b16 %v1729
        %v1858 = vunpack.c.l.b16 %v1730
        %v1859 = vunpack.c.h.b16 %v1730
        %v1860 = vunpack.c.l.b16 %v1731
        %v1861 = vunpack.c.h.b16 %v1731
        %v1862 = vunpack.c.l.b16 %v1732
        %v1863 = vunpack.c.h.b16 %v1732
        %v1864 = vunpack.c.l.b16 %v1733
        %v1865 = vunpack.c.h.b16 %v1733
        %v1866 = vunpack.c.l.b16 %v1734
        %v1867 = vunpack.c.h.b16 %v1734
        %v1868 = vunpack.c.l.b16 %v1735
        %v1869 = vunpack.c.h.b16 %v1735
        %v1870 = vunpack.c.l.b16 %v1736
        %v1871 = vunpack.c.h.b16 %v1736
        %v1872 = vunpack.c.l.b16 %v1737
        %v1873 = vunpack.c.h.b16 %v1737
        %v1874 = vunpack.c.l.b16 %v1738
        %v1875 = vunpack.c.h.b16 %v1738
        %v1876 = vunpack.c.l.b16 %v1739
        %v1877 = vunpack.c.h.b16 %v1739
        %v1878 = vunpack.c.l.b16 %v1740
        %v1879 = vunpack.c.h.b16 %v1740
        %v1880 = vunpack.c.l.b16 %v1741
        %v1881 = vunpack.c.h.b16 %v1741
        %v1882 = vunpack.c.l.b16 %v1742
        %v1883 = vunpack.c.h.b16 %v1742
        %v1884 = vunpack.c.l.b16 %v1743
        %v1885 = vunpack.c.h.b16 %v1743
        %v1886 = vunpack.c.l.b16 %v1744
        %v1887 = vunpack.c.h.b16 %v1744
        %v1888 = vunpack.c.l.b16 %v1745
        %v1889 = vunpack.c.h.b16 %v1745
        %v1890 = vunpack.c.l.b16 %v1746
        %v1891 = vunpack.c.h.b16 %v1746
        %v1892 = vunpack.c.l.b16 %v1747
        %v1893 = vunpack.c.h.b16 %v1747
        %v1894 = vunpack.c.l.b16 %v1748
        %v1895 = vunpack.c.h.b16 %v1748
        %v1896 = vunpack.c.l.b16 %v1749
        %v1897 = vunpack.c.h.b16 %v1749
        %v1898 = vunpack.c.l.b16 %v1750
        %v1899 = vunpack.c.h.b16 %v1750
        %v1900 = vunpack.c.l.b16 %v1751
        %v1901 = vunpack.c.h.b16 %v1751
        %v1902 = vunpack.c.l.b16 %v1752
        %v1903 = vunpack.c.h.b16 %v1752
        %v1904 = vunpack.c.l.b16 %v1753
        %v1905 = vunpack.c.h.b16 %v1753
        %v1906 = vunpack.c.l.b16 %v1754
        %v1907 = vunpack.c.h.b16 %v1754
        %v1908 = vpack.c.b16 %v1814, %v1812
        %v1909 = vpack.c.b16 %v1815, %v1813
        %v1910 = vpack.c.b16 %v1818, %v1816
        %v1911 = vpack.c.b16 %v1819, %v1817
        %v1912 = vpack.c.b16 %v1822, %v1820
        %v1913 = vpack.c.b16 %v1823, %v1821
        %v1914 = vpack.c.b16 %v1826, %v1824
        %v1915 = vpack.c.b16 %v1827, %v1825
        %v1916 = vpack.c.b16 %v1830, %v1828
        %v1917 = vpack.c.b16 %v1831, %v1829
        %v1918 = vpack.c.b16 %v1834, %v1832
        %v1919 = vpack.c.b16 %v1835, %v1833
        %v1920 = vpack.c.b16 %v1838, %v1836
        %v1921 = vpack.c.b16 %v1839, %v1837
        %v1922 = vpack.c.b16 %v1842, %v1840
        %v1923 = vpack.c.b16 %v1843, %v1841
        %v1924 = vpack.c.b16 %v1846, %v1844
        %v1925 = vpack.c.b16 %v1847, %v1845
        %v1926 = vpack.c.b16 %v1850, %v1848
        %v1927 = vpack.c.b16 %v1851, %v1849
        %v1928 = vpack.c.b16 %v1854, %v1852
        %v1929 = vpack.c.b16 %v1855, %v1853
        %v1930 = vpack.c.b16 %v1858, %v1856
        %v1931 = vpack.c.b16 %v1859, %v1857
        %v1932 = vpack.c.b16 %v1862, %v1860
        %v1933 = vpack.c.b16 %v1863, %v1861
        %v1934 = vpack.c.b16 %v1866, %v1864
        %v1935 = vpack.c.b16 %v1867, %v1865
        %v1936 = vpack.c.b16 %v1870, %v1868
        %v1937 = vpack.c.b16 %v1871, %v1869
        %v1938 = vpack.c.b16 %v1874, %v1872
        %v1939 = vpack.c.b16 %v1875, %v1873
        %v1940 = vpack.c.b16 %v1878, %v1876
        %v1941 = vpack.c.b16 %v1879, %v1877
        %v1942 = vpack.c.b16 %v1882, %v1880
        %v1943 = vpack.c.b16 %v1883, %v1881
        %v1944 = vpack.c.b16 %v1886, %v1884
        %v1945 = vpack.c.b16 %v1887, %v1885
        %v1946 = vpack.c.b16 %v1890, %v1888
        %v1947 = vpack.c.b16 %v1891, %v1889
        %v1948 = vpack.c.b16 %v1894, %v1892
        %v1949 = vpack.c.b16 %v1895, %v1893
        %v1950 = vpack.c.b16 %v1898, %v1896
        %v1951 = vpack.c.b16 %v1899, %v1897
        %v1952 = vpack.c.b16 %v1902, %v1900
        %v1953 = vpack.c.b16 %v1903, %v1901
        %v1954 = vpack.c.b16 %v1906, %v1904
        %v1955 = vpack.c.b16 %v1907, %v1905
        %2004 = vmatpush.bf16.msra.mxu0 %v1922
        %2005 = vmatpush.bf16.msra.mxu0 %v1920
        %2006 = vmatpush.bf16.msra.mxu0 %v1918
        %2007 = vmatpush.bf16.msra.mxu0 %v1916
        %2008 = vmatpush.bf16.msra.mxu0 %v1914
        %2009 = vmatpush.bf16.msra.mxu0 %v1912
        %2010 = vmatpush.bf16.msra.mxu0 %v1910
        %2011 = vmatpush.bf16.msra.mxu0 %v1908
        %2012 = vmatmul.bf16.gmra.mxu0 %v1758
        %v2013 = vpop.f32.mrf.mxu0
        %v2014 = vadd.f32 0.0, %v2013
        %v2015 = vpop.f32.mrf.mxu0
        %2016 = vdwg.mxu0
        %2017 = vmatpush.bf16.msra.mxu0 %v1938
        %2018 = vmatpush.bf16.msra.mxu0 %v1936
        %2019 = vmatpush.bf16.msra.mxu0 %v1934
        %2020 = vmatpush.bf16.msra.mxu0 %v1932
        %2021 = vmatpush.bf16.msra.mxu0 %v1930
        %2022 = vmatpush.bf16.msra.mxu0 %v1928
        %2023 = vmatpush.bf16.msra.mxu0 %v1926
        %2024 = vmatpush.bf16.msra.mxu0 %v1924
        %2025 = vmatmul.bf16.gmra.mxu0 %v1759
        %v2026 = vpop.f32.mrf.mxu0
        %v2027 = vadd.f32 %v2014, %v2026
        %v2028 = vpop.f32.mrf.mxu0
        %2029 = vdwg.mxu0
        %2030 = vmatpush.bf16.msra.mxu0 %v1954
        %2031 = vmatpush.bf16.msra.mxu0 %v1952
        %2032 = vmatpush.bf16.msra.mxu0 %v1950
        %2033 = vmatpush.bf16.msra.mxu0 %v1948
        %2034 = vmatpush.bf16.msra.mxu0 %v1946
        %2035 = vmatpush.bf16.msra.mxu0 %v1944
        %2036 = vmatpush.bf16.msra.mxu0 %v1942
        %2037 = vmatpush.bf16.msra.mxu0 %v1940
        %2038 = vmatmul.bf16.gmra.mxu0 %v1760
        %v2039 = vpop.f32.mrf.mxu0
        %v2040 = vadd.f32 %v2027, %v2039
        %v2041 = vpop.f32.mrf.mxu0
        %2042 = vdwg.mxu0
        %2043 = vmatpush.bf16.msra.mxu0 %v1923
        %2044 = vmatpush.bf16.msra.mxu0 %v1921
        %2045 = vmatpush.bf16.msra.mxu0 %v1919
        %2046 = vmatpush.bf16.msra.mxu0 %v1917
        %2047 = vmatpush.bf16.msra.mxu0 %v1915
        %2048 = vmatpush.bf16.msra.mxu0 %v1913
        %2049 = vmatpush.bf16.msra.mxu0 %v1911
        %2050 = vmatpush.bf16.msra.mxu0 %v1909
        %2051 = vmatmul.bf16.gmra.mxu0 %v1758
        %v2052 = vpop.f32.mrf.mxu0
        %v2053 = vadd.f32 0.0, %v2052
        %v2054 = vpop.f32.mrf.mxu0
        %2055 = vdwg.mxu0
        %2056 = vmatpush.bf16.msra.mxu0 %v1939
        %2057 = vmatpush.bf16.msra.mxu0 %v1937
        %2058 = vmatpush.bf16.msra.mxu0 %v1935
        %2059 = vmatpush.bf16.msra.mxu0 %v1933
        %2060 = vmatpush.bf16.msra.mxu0 %v1931
        %2061 = vmatpush.bf16.msra.mxu0 %v1929
        %2062 = vmatpush.bf16.msra.mxu0 %v1927
        %2063 = vmatpush.bf16.msra.mxu0 %v1925
        %2064 = vmatmul.bf16.gmra.mxu0 %v1759
        %v2065 = vpop.f32.mrf.mxu0
        %v2066 = vadd.f32 %v2053, %v2065
        %v2067 = vpop.f32.mrf.mxu0
        %2068 = vdwg.mxu0
        %2069 = vmatpush.bf16.msra.mxu0 %v1955
        %2070 = vmatpush.bf16.msra.mxu0 %v1953
        %2071 = vmatpush.bf16.msra.mxu0 %v1951
        %2072 = vmatpush.bf16.msra.mxu0 %v1949
        %2073 = vmatpush.bf16.msra.mxu0 %v1947
        %2074 = vmatpush.bf16.msra.mxu0 %v1945
        %2075 = vmatpush.bf16.msra.mxu0 %v1943
        %2076 = vmatpush.bf16.msra.mxu0 %v1941
        %2077 = vmatmul.bf16.gmra.mxu0 %v1760
        %v2078 = vpop.f32.mrf.mxu0
        %v2079 = vadd.f32 %v2066, %v2078
        %v2080 = vpop.f32.mrf.mxu0
        %2081 = vdwg.mxu0
        %v2082 = vadd.f32 %v979, %v2040
        %v2083 = vadd.f32 %v1018, %v2079
        %s2084 = scalar_lea.vmem [#allocation2], 1920
        %v2085 = vld [vmem:[%s2084] sm:$0xff]
        %v2086 = vld [vmem:[%s2084 + $0x8] sm:$0xff]
        %v2087 = vld [vmem:[%s2084 + $0x10] sm:$0xff]
        %v2088 = vld [vmem:[%s2084 + $0x18] sm:$0xff]
        %v2089 = vld [vmem:[%s2084 + $0x20] sm:$0xff]
        %v2090 = vld [vmem:[%s2084 + $0x28] sm:$0xff]
        %v2091 = vld [vmem:[%s2084 + $0x30] sm:$0xff]
        %v2092 = vld [vmem:[%s2084 + $0x38] sm:$0xff]
        %v2093 = vld [vmem:[%s2084 + $0x40] sm:$0xff]
        %v2094 = vld [vmem:[%s2084 + $0x48] sm:$0xff]
        %v2095 = vld [vmem:[%s2084 + $0x50] sm:$0xff]
        %v2096 = vld [vmem:[%s2084 + $0x58] sm:$0xff]
        %v2097 = vld [vmem:[%s2084 + $0x60] sm:$0xff]
        %v2098 = vld [vmem:[%s2084 + $0x68] sm:$0xff]
        %v2099 = vld [vmem:[%s2084 + $0x70] sm:$0xff]
        %v2100 = vld [vmem:[%s2084 + $0x78] sm:$0xff]
        %v2101 = vld [vmem:[%s2084 + $0x80] sm:$0xff]
        %v2102 = vld [vmem:[%s2084 + $0x88] sm:$0xff]
        %v2103 = vld [vmem:[%s2084 + $0x90] sm:$0xff]
        %v2104 = vld [vmem:[%s2084 + $0x98] sm:$0xff]
        %v2105 = vld [vmem:[%s2084 + $0xa0] sm:$0xff]
        %v2106 = vld [vmem:[%s2084 + $0xa8] sm:$0xff]
        %v2107 = vld [vmem:[%s2084 + $0xb0] sm:$0xff]
        %v2108 = vld [vmem:[%s2084 + $0xb8] sm:$0xff]
        %v2109 = vld [vmem:[%s2084 + $0xc0] sm:$0xff]
        %v2110 = vld [vmem:[%s2084 + $0xc8] sm:$0xff]
        %v2111 = vld [vmem:[%s2084 + $0xd0] sm:$0xff]
        %v2112 = vld [vmem:[%s2084 + $0xd8] sm:$0xff]
        %v2113 = vld [vmem:[%s2084 + $0xe0] sm:$0xff]
        %v2114 = vld [vmem:[%s2084 + $0xe8] sm:$0xff]
        %v2115 = vld [vmem:[%s2084 + $0xf0] sm:$0xff]
        %v2116 = vld [vmem:[%s2084 + $0xf8] sm:$0xff]
        %v2117 = vld [vmem:[%s2084 + $0x100] sm:$0xff]
        %v2118 = vld [vmem:[%s2084 + $0x108] sm:$0xff]
        %v2119 = vld [vmem:[%s2084 + $0x110] sm:$0xff]
        %v2120 = vld [vmem:[%s2084 + $0x118] sm:$0xff]
        %v2121 = vld [vmem:[%s2084 + $0x120] sm:$0xff]
        %v2122 = vld [vmem:[%s2084 + $0x128] sm:$0xff]
        %v2123 = vld [vmem:[%s2084 + $0x130] sm:$0xff]
        %v2124 = vld [vmem:[%s2084 + $0x138] sm:$0xff]
        %v2125 = vld [vmem:[%s2084 + $0x140] sm:$0xff]
        %v2126 = vld [vmem:[%s2084 + $0x148] sm:$0xff]
        %v2127 = vld [vmem:[%s2084 + $0x150] sm:$0xff]
        %v2128 = vld [vmem:[%s2084 + $0x158] sm:$0xff]
        %v2129 = vld [vmem:[%s2084 + $0x160] sm:$0xff]
        %v2130 = vld [vmem:[%s2084 + $0x168] sm:$0xff]
        %v2131 = vld [vmem:[%s2084 + $0x170] sm:$0xff]
        %v2132 = vld [vmem:[%s2084 + $0x178] sm:$0xff]
        %v2181 = vunpack.c.l.b16 %v2085
        %v2182 = vunpack.c.h.b16 %v2085
        %v2183 = vunpack.c.l.b16 %v2086
        %v2184 = vunpack.c.h.b16 %v2086
        %v2185 = vunpack.c.l.b16 %v2087
        %v2186 = vunpack.c.h.b16 %v2087
        %v2187 = vunpack.c.l.b16 %v2088
        %v2188 = vunpack.c.h.b16 %v2088
        %v2189 = vunpack.c.l.b16 %v2089
        %v2190 = vunpack.c.h.b16 %v2089
        %v2191 = vunpack.c.l.b16 %v2090
        %v2192 = vunpack.c.h.b16 %v2090
        %v2193 = vunpack.c.l.b16 %v2091
        %v2194 = vunpack.c.h.b16 %v2091
        %v2195 = vunpack.c.l.b16 %v2092
        %v2196 = vunpack.c.h.b16 %v2092
        %v2197 = vunpack.c.l.b16 %v2093
        %v2198 = vunpack.c.h.b16 %v2093
        %v2199 = vunpack.c.l.b16 %v2094
        %v2200 = vunpack.c.h.b16 %v2094
        %v2201 = vunpack.c.l.b16 %v2095
        %v2202 = vunpack.c.h.b16 %v2095
        %v2203 = vunpack.c.l.b16 %v2096
        %v2204 = vunpack.c.h.b16 %v2096
        %v2205 = vunpack.c.l.b16 %v2097
        %v2206 = vunpack.c.h.b16 %v2097
        %v2207 = vunpack.c.l.b16 %v2098
        %v2208 = vunpack.c.h.b16 %v2098
        %v2209 = vunpack.c.l.b16 %v2099
        %v2210 = vunpack.c.h.b16 %v2099
        %v2211 = vunpack.c.l.b16 %v2100
        %v2212 = vunpack.c.h.b16 %v2100
        %v2213 = vunpack.c.l.b16 %v2101
        %v2214 = vunpack.c.h.b16 %v2101
        %v2215 = vunpack.c.l.b16 %v2102
        %v2216 = vunpack.c.h.b16 %v2102
        %v2217 = vunpack.c.l.b16 %v2103
        %v2218 = vunpack.c.h.b16 %v2103
        %v2219 = vunpack.c.l.b16 %v2104
        %v2220 = vunpack.c.h.b16 %v2104
        %v2221 = vunpack.c.l.b16 %v2105
        %v2222 = vunpack.c.h.b16 %v2105
        %v2223 = vunpack.c.l.b16 %v2106
        %v2224 = vunpack.c.h.b16 %v2106
        %v2225 = vunpack.c.l.b16 %v2107
        %v2226 = vunpack.c.h.b16 %v2107
        %v2227 = vunpack.c.l.b16 %v2108
        %v2228 = vunpack.c.h.b16 %v2108
        %v2229 = vunpack.c.l.b16 %v2109
        %v2230 = vunpack.c.h.b16 %v2109
        %v2231 = vunpack.c.l.b16 %v2110
        %v2232 = vunpack.c.h.b16 %v2110
        %v2233 = vunpack.c.l.b16 %v2111
        %v2234 = vunpack.c.h.b16 %v2111
        %v2235 = vunpack.c.l.b16 %v2112
        %v2236 = vunpack.c.h.b16 %v2112
        %v2237 = vunpack.c.l.b16 %v2113
        %v2238 = vunpack.c.h.b16 %v2113
        %v2239 = vunpack.c.l.b16 %v2114
        %v2240 = vunpack.c.h.b16 %v2114
        %v2241 = vunpack.c.l.b16 %v2115
        %v2242 = vunpack.c.h.b16 %v2115
        %v2243 = vunpack.c.l.b16 %v2116
        %v2244 = vunpack.c.h.b16 %v2116
        %v2245 = vunpack.c.l.b16 %v2117
        %v2246 = vunpack.c.h.b16 %v2117
        %v2247 = vunpack.c.l.b16 %v2118
        %v2248 = vunpack.c.h.b16 %v2118
        %v2249 = vunpack.c.l.b16 %v2119
        %v2250 = vunpack.c.h.b16 %v2119
        %v2251 = vunpack.c.l.b16 %v2120
        %v2252 = vunpack.c.h.b16 %v2120
        %v2253 = vunpack.c.l.b16 %v2121
        %v2254 = vunpack.c.h.b16 %v2121
        %v2255 = vunpack.c.l.b16 %v2122
        %v2256 = vunpack.c.h.b16 %v2122
        %v2257 = vunpack.c.l.b16 %v2123
        %v2258 = vunpack.c.h.b16 %v2123
        %v2259 = vunpack.c.l.b16 %v2124
        %v2260 = vunpack.c.h.b16 %v2124
        %v2261 = vunpack.c.l.b16 %v2125
        %v2262 = vunpack.c.h.b16 %v2125
        %v2263 = vunpack.c.l.b16 %v2126
        %v2264 = vunpack.c.h.b16 %v2126
        %v2265 = vunpack.c.l.b16 %v2127
        %v2266 = vunpack.c.h.b16 %v2127
        %v2267 = vunpack.c.l.b16 %v2128
        %v2268 = vunpack.c.h.b16 %v2128
        %v2269 = vunpack.c.l.b16 %v2129
        %v2270 = vunpack.c.h.b16 %v2129
        %v2271 = vunpack.c.l.b16 %v2130
        %v2272 = vunpack.c.h.b16 %v2130
        %v2273 = vunpack.c.l.b16 %v2131
        %v2274 = vunpack.c.h.b16 %v2131
        %v2275 = vunpack.c.l.b16 %v2132
        %v2276 = vunpack.c.h.b16 %v2132
        %v2277 = vpack.c.b16 %v2183, %v2181
        %v2278 = vpack.c.b16 %v2184, %v2182
        %v2279 = vpack.c.b16 %v2187, %v2185
        %v2280 = vpack.c.b16 %v2188, %v2186
        %v2281 = vpack.c.b16 %v2191, %v2189
        %v2282 = vpack.c.b16 %v2192, %v2190
        %v2283 = vpack.c.b16 %v2195, %v2193
        %v2284 = vpack.c.b16 %v2196, %v2194
        %v2285 = vpack.c.b16 %v2199, %v2197
        %v2286 = vpack.c.b16 %v2200, %v2198
        %v2287 = vpack.c.b16 %v2203, %v2201
        %v2288 = vpack.c.b16 %v2204, %v2202
        %v2289 = vpack.c.b16 %v2207, %v2205
        %v2290 = vpack.c.b16 %v2208, %v2206
        %v2291 = vpack.c.b16 %v2211, %v2209
        %v2292 = vpack.c.b16 %v2212, %v2210
        %v2293 = vpack.c.b16 %v2215, %v2213
        %v2294 = vpack.c.b16 %v2216, %v2214
        %v2295 = vpack.c.b16 %v2219, %v2217
        %v2296 = vpack.c.b16 %v2220, %v2218
        %v2297 = vpack.c.b16 %v2223, %v2221
        %v2298 = vpack.c.b16 %v2224, %v2222
        %v2299 = vpack.c.b16 %v2227, %v2225
        %v2300 = vpack.c.b16 %v2228, %v2226
        %v2301 = vpack.c.b16 %v2231, %v2229
        %v2302 = vpack.c.b16 %v2232, %v2230
        %v2303 = vpack.c.b16 %v2235, %v2233
        %v2304 = vpack.c.b16 %v2236, %v2234
        %v2305 = vpack.c.b16 %v2239, %v2237
        %v2306 = vpack.c.b16 %v2240, %v2238
        %v2307 = vpack.c.b16 %v2243, %v2241
        %v2308 = vpack.c.b16 %v2244, %v2242
        %v2309 = vpack.c.b16 %v2247, %v2245
        %v2310 = vpack.c.b16 %v2248, %v2246
        %v2311 = vpack.c.b16 %v2251, %v2249
        %v2312 = vpack.c.b16 %v2252, %v2250
        %v2313 = vpack.c.b16 %v2255, %v2253
        %v2314 = vpack.c.b16 %v2256, %v2254
        %v2315 = vpack.c.b16 %v2259, %v2257
        %v2316 = vpack.c.b16 %v2260, %v2258
        %v2317 = vpack.c.b16 %v2263, %v2261
        %v2318 = vpack.c.b16 %v2264, %v2262
        %v2319 = vpack.c.b16 %v2267, %v2265
        %v2320 = vpack.c.b16 %v2268, %v2266
        %v2321 = vpack.c.b16 %v2271, %v2269
        %v2322 = vpack.c.b16 %v2272, %v2270
        %v2323 = vpack.c.b16 %v2275, %v2273
        %v2324 = vpack.c.b16 %v2276, %v2274
        %2373 = vmatpush.bf16.msra.mxu0 %v2291
        %2374 = vmatpush.bf16.msra.mxu0 %v2289
        %2375 = vmatpush.bf16.msra.mxu0 %v2287
        %2376 = vmatpush.bf16.msra.mxu0 %v2285
        %2377 = vmatpush.bf16.msra.mxu0 %v2283
        %2378 = vmatpush.bf16.msra.mxu0 %v2281
        %2379 = vmatpush.bf16.msra.mxu0 %v2279
        %2380 = vmatpush.bf16.msra.mxu0 %v2277
        %2381 = vmatmul.bf16.gmra.mxu0 %v1758
        %v2382 = vpop.f32.mrf.mxu0
        %v2383 = vadd.f32 0.0, %v2382
        %v2384 = vpop.f32.mrf.mxu0
        %2385 = vdwg.mxu0
        %2386 = vmatpush.bf16.msra.mxu0 %v2307
        %2387 = vmatpush.bf16.msra.mxu0 %v2305
        %2388 = vmatpush.bf16.msra.mxu0 %v2303
        %2389 = vmatpush.bf16.msra.mxu0 %v2301
        %2390 = vmatpush.bf16.msra.mxu0 %v2299
        %2391 = vmatpush.bf16.msra.mxu0 %v2297
        %2392 = vmatpush.bf16.msra.mxu0 %v2295
        %2393 = vmatpush.bf16.msra.mxu0 %v2293
        %2394 = vmatmul.bf16.gmra.mxu0 %v1759
        %v2395 = vpop.f32.mrf.mxu0
        %v2396 = vadd.f32 %v2383, %v2395
        %v2397 = vpop.f32.mrf.mxu0
        %2398 = vdwg.mxu0
        %2399 = vmatpush.bf16.msra.mxu0 %v2323
        %2400 = vmatpush.bf16.msra.mxu0 %v2321
        %2401 = vmatpush.bf16.msra.mxu0 %v2319
        %2402 = vmatpush.bf16.msra.mxu0 %v2317
        %2403 = vmatpush.bf16.msra.mxu0 %v2315
        %2404 = vmatpush.bf16.msra.mxu0 %v2313
        %2405 = vmatpush.bf16.msra.mxu0 %v2311
        %2406 = vmatpush.bf16.msra.mxu0 %v2309
        %2407 = vmatmul.bf16.gmra.mxu0 %v1760
        %v2408 = vpop.f32.mrf.mxu0
        %v2409 = vadd.f32 %v2396, %v2408
        %v2410 = vpop.f32.mrf.mxu0
        %2411 = vdwg.mxu0
        %2412 = vmatpush.bf16.msra.mxu0 %v2292
        %2413 = vmatpush.bf16.msra.mxu0 %v2290
        %2414 = vmatpush.bf16.msra.mxu0 %v2288
        %2415 = vmatpush.bf16.msra.mxu0 %v2286
        %2416 = vmatpush.bf16.msra.mxu0 %v2284
        %2417 = vmatpush.bf16.msra.mxu0 %v2282
        %2418 = vmatpush.bf16.msra.mxu0 %v2280
        %2419 = vmatpush.bf16.msra.mxu0 %v2278
        %2420 = vmatmul.bf16.gmra.mxu0 %v1758
        %v2421 = vpop.f32.mrf.mxu0
        %v2422 = vadd.f32 0.0, %v2421
        %v2423 = vpop.f32.mrf.mxu0
        %2424 = vdwg.mxu0
        %2425 = vmatpush.bf16.msra.mxu0 %v2308
        %2426 = vmatpush.bf16.msra.mxu0 %v2306
        %2427 = vmatpush.bf16.msra.mxu0 %v2304
        %2428 = vmatpush.bf16.msra.mxu0 %v2302
        %2429 = vmatpush.bf16.msra.mxu0 %v2300
        %2430 = vmatpush.bf16.msra.mxu0 %v2298
        %2431 = vmatpush.bf16.msra.mxu0 %v2296
        %2432 = vmatpush.bf16.msra.mxu0 %v2294
        %2433 = vmatmul.bf16.gmra.mxu0 %v1759
        %v2434 = vpop.f32.mrf.mxu0
        %v2435 = vadd.f32 %v2422, %v2434
        %v2436 = vpop.f32.mrf.mxu0
        %2437 = vdwg.mxu0
        %2438 = vmatpush.bf16.msra.mxu0 %v2324
        %2439 = vmatpush.bf16.msra.mxu0 %v2322
        %2440 = vmatpush.bf16.msra.mxu0 %v2320
        %2441 = vmatpush.bf16.msra.mxu0 %v2318
        %2442 = vmatpush.bf16.msra.mxu0 %v2316
        %2443 = vmatpush.bf16.msra.mxu0 %v2314
        %2444 = vmatpush.bf16.msra.mxu0 %v2312
        %2445 = vmatpush.bf16.msra.mxu0 %v2310
        %2446 = vmatmul.bf16.gmra.mxu0 %v1760
        %v2447 = vpop.f32.mrf.mxu0
        %v2448 = vadd.f32 %v2435, %v2447
        %v2449 = vpop.f32.mrf.mxu0
        %2450 = vdwg.mxu0
        %v2451 = vadd.f32 %v1664, %v2409
        %v2452 = vadd.f32 %v1703, %v2448
        %s2453 = scalar_lea.vmem [#allocation2], 2304
        %v2454 = vld [vmem:[%s2453] sm:$0xff]
        %v2455 = vld [vmem:[%s2453 + $0x8] sm:$0xff]
        %v2456 = vld [vmem:[%s2453 + $0x10] sm:$0xff]
        %v2457 = vld [vmem:[%s2453 + $0x18] sm:$0xff]
        %v2458 = vld [vmem:[%s2453 + $0x20] sm:$0xff]
        %v2459 = vld [vmem:[%s2453 + $0x28] sm:$0xff]
        %v2460 = vld [vmem:[%s2453 + $0x30] sm:$0xff]
        %v2461 = vld [vmem:[%s2453 + $0x38] sm:$0xff]
        %v2462 = vld [vmem:[%s2453 + $0x40] sm:$0xff]
        %v2463 = vld [vmem:[%s2453 + $0x48] sm:$0xff]
        %v2464 = vld [vmem:[%s2453 + $0x50] sm:$0xff]
        %v2465 = vld [vmem:[%s2453 + $0x58] sm:$0xff]
        %v2466 = vld [vmem:[%s2453 + $0x60] sm:$0xff]
        %v2467 = vld [vmem:[%s2453 + $0x68] sm:$0xff]
        %v2468 = vld [vmem:[%s2453 + $0x70] sm:$0xff]
        %v2469 = vld [vmem:[%s2453 + $0x78] sm:$0xff]
        %v2470 = vld [vmem:[%s2453 + $0x80] sm:$0xff]
        %v2471 = vld [vmem:[%s2453 + $0x88] sm:$0xff]
        %v2472 = vld [vmem:[%s2453 + $0x90] sm:$0xff]
        %v2473 = vld [vmem:[%s2453 + $0x98] sm:$0xff]
        %v2474 = vld [vmem:[%s2453 + $0xa0] sm:$0xff]
        %v2475 = vld [vmem:[%s2453 + $0xa8] sm:$0xff]
        %v2476 = vld [vmem:[%s2453 + $0xb0] sm:$0xff]
        %v2477 = vld [vmem:[%s2453 + $0xb8] sm:$0xff]
        %v2478 = vld [vmem:[%s2453 + $0xc0] sm:$0xff]
        %v2479 = vld [vmem:[%s2453 + $0xc8] sm:$0xff]
        %v2480 = vld [vmem:[%s2453 + $0xd0] sm:$0xff]
        %v2481 = vld [vmem:[%s2453 + $0xd8] sm:$0xff]
        %v2482 = vld [vmem:[%s2453 + $0xe0] sm:$0xff]
        %v2483 = vld [vmem:[%s2453 + $0xe8] sm:$0xff]
        %v2484 = vld [vmem:[%s2453 + $0xf0] sm:$0xff]
        %v2485 = vld [vmem:[%s2453 + $0xf8] sm:$0xff]
        %v2486 = vld [vmem:[%s2453 + $0x100] sm:$0xff]
        %v2487 = vld [vmem:[%s2453 + $0x108] sm:$0xff]
        %v2488 = vld [vmem:[%s2453 + $0x110] sm:$0xff]
        %v2489 = vld [vmem:[%s2453 + $0x118] sm:$0xff]
        %v2490 = vld [vmem:[%s2453 + $0x120] sm:$0xff]
        %v2491 = vld [vmem:[%s2453 + $0x128] sm:$0xff]
        %v2492 = vld [vmem:[%s2453 + $0x130] sm:$0xff]
        %v2493 = vld [vmem:[%s2453 + $0x138] sm:$0xff]
        %v2494 = vld [vmem:[%s2453 + $0x140] sm:$0xff]
        %v2495 = vld [vmem:[%s2453 + $0x148] sm:$0xff]
        %v2496 = vld [vmem:[%s2453 + $0x150] sm:$0xff]
        %v2497 = vld [vmem:[%s2453 + $0x158] sm:$0xff]
        %v2498 = vld [vmem:[%s2453 + $0x160] sm:$0xff]
        %v2499 = vld [vmem:[%s2453 + $0x168] sm:$0xff]
        %v2500 = vld [vmem:[%s2453 + $0x170] sm:$0xff]
        %v2501 = vld [vmem:[%s2453 + $0x178] sm:$0xff]
        %v2502 = vrot.slane %v362, 1
        %v2503 = vrot.slane %v364, 2
        %v2504 = vor.u32 %v2502, %v2503
        %v2505 = vrot.slane %v369, 1
        %v2506 = vrot.slane %v371, 2
        %v2507 = vor.u32 %v2505, %v2506
        %v2508 = vrot.slane %v376, 1
        %v2509 = vrot.slane %v378, 2
        %v2510 = vor.u32 %v2508, %v2509
        %v2562 = vunpack.c.l.b16 %v2454
        %v2563 = vunpack.c.h.b16 %v2454
        %v2564 = vunpack.c.l.b16 %v2455
        %v2565 = vunpack.c.h.b16 %v2455
        %v2566 = vunpack.c.l.b16 %v2456
        %v2567 = vunpack.c.h.b16 %v2456
        %v2568 = vunpack.c.l.b16 %v2457
        %v2569 = vunpack.c.h.b16 %v2457
        %v2570 = vunpack.c.l.b16 %v2458
        %v2571 = vunpack.c.h.b16 %v2458
        %v2572 = vunpack.c.l.b16 %v2459
        %v2573 = vunpack.c.h.b16 %v2459
        %v2574 = vunpack.c.l.b16 %v2460
        %v2575 = vunpack.c.h.b16 %v2460
        %v2576 = vunpack.c.l.b16 %v2461
        %v2577 = vunpack.c.h.b16 %v2461
        %v2578 = vunpack.c.l.b16 %v2462
        %v2579 = vunpack.c.h.b16 %v2462
        %v2580 = vunpack.c.l.b16 %v2463
        %v2581 = vunpack.c.h.b16 %v2463
        %v2582 = vunpack.c.l.b16 %v2464
        %v2583 = vunpack.c.h.b16 %v2464
        %v2584 = vunpack.c.l.b16 %v2465
        %v2585 = vunpack.c.h.b16 %v2465
        %v2586 = vunpack.c.l.b16 %v2466
        %v2587 = vunpack.c.h.b16 %v2466
        %v2588 = vunpack.c.l.b16 %v2467
        %v2589 = vunpack.c.h.b16 %v2467
        %v2590 = vunpack.c.l.b16 %v2468
        %v2591 = vunpack.c.h.b16 %v2468
        %v2592 = vunpack.c.l.b16 %v2469
        %v2593 = vunpack.c.h.b16 %v2469
        %v2594 = vunpack.c.l.b16 %v2470
        %v2595 = vunpack.c.h.b16 %v2470
        %v2596 = vunpack.c.l.b16 %v2471
        %v2597 = vunpack.c.h.b16 %v2471
        %v2598 = vunpack.c.l.b16 %v2472
        %v2599 = vunpack.c.h.b16 %v2472
        %v2600 = vunpack.c.l.b16 %v2473
        %v2601 = vunpack.c.h.b16 %v2473
        %v2602 = vunpack.c.l.b16 %v2474
        %v2603 = vunpack.c.h.b16 %v2474
        %v2604 = vunpack.c.l.b16 %v2475
        %v2605 = vunpack.c.h.b16 %v2475
        %v2606 = vunpack.c.l.b16 %v2476
        %v2607 = vunpack.c.h.b16 %v2476
        %v2608 = vunpack.c.l.b16 %v2477
        %v2609 = vunpack.c.h.b16 %v2477
        %v2610 = vunpack.c.l.b16 %v2478
        %v2611 = vunpack.c.h.b16 %v2478
        %v2612 = vunpack.c.l.b16 %v2479
        %v2613 = vunpack.c.h.b16 %v2479
        %v2614 = vunpack.c.l.b16 %v2480
        %v2615 = vunpack.c.h.b16 %v2480
        %v2616 = vunpack.c.l.b16 %v2481
        %v2617 = vunpack.c.h.b16 %v2481
        %v2618 = vunpack.c.l.b16 %v2482
        %v2619 = vunpack.c.h.b16 %v2482
        %v2620 = vunpack.c.l.b16 %v2483
        %v2621 = vunpack.c.h.b16 %v2483
        %v2622 = vunpack.c.l.b16 %v2484
        %v2623 = vunpack.c.h.b16 %v2484
        %v2624 = vunpack.c.l.b16 %v2485
        %v2625 = vunpack.c.h.b16 %v2485
        %v2626 = vunpack.c.l.b16 %v2486
        %v2627 = vunpack.c.h.b16 %v2486
        %v2628 = vunpack.c.l.b16 %v2487
        %v2629 = vunpack.c.h.b16 %v2487
        %v2630 = vunpack.c.l.b16 %v2488
        %v2631 = vunpack.c.h.b16 %v2488
        %v2632 = vunpack.c.l.b16 %v2489
        %v2633 = vunpack.c.h.b16 %v2489
        %v2634 = vunpack.c.l.b16 %v2490
        %v2635 = vunpack.c.h.b16 %v2490
        %v2636 = vunpack.c.l.b16 %v2491
        %v2637 = vunpack.c.h.b16 %v2491
        %v2638 = vunpack.c.l.b16 %v2492
        %v2639 = vunpack.c.h.b16 %v2492
        %v2640 = vunpack.c.l.b16 %v2493
        %v2641 = vunpack.c.h.b16 %v2493
        %v2642 = vunpack.c.l.b16 %v2494
        %v2643 = vunpack.c.h.b16 %v2494
        %v2644 = vunpack.c.l.b16 %v2495
        %v2645 = vunpack.c.h.b16 %v2495
        %v2646 = vunpack.c.l.b16 %v2496
        %v2647 = vunpack.c.h.b16 %v2496
        %v2648 = vunpack.c.l.b16 %v2497
        %v2649 = vunpack.c.h.b16 %v2497
        %v2650 = vunpack.c.l.b16 %v2498
        %v2651 = vunpack.c.h.b16 %v2498
        %v2652 = vunpack.c.l.b16 %v2499
        %v2653 = vunpack.c.h.b16 %v2499
        %v2654 = vunpack.c.l.b16 %v2500
        %v2655 = vunpack.c.h.b16 %v2500
        %v2656 = vunpack.c.l.b16 %v2501
        %v2657 = vunpack.c.h.b16 %v2501
        %v2658 = vpack.c.b16 %v2564, %v2562
        %v2659 = vpack.c.b16 %v2565, %v2563
        %v2660 = vpack.c.b16 %v2568, %v2566
        %v2661 = vpack.c.b16 %v2569, %v2567
        %v2662 = vpack.c.b16 %v2572, %v2570
        %v2663 = vpack.c.b16 %v2573, %v2571
        %v2664 = vpack.c.b16 %v2576, %v2574
        %v2665 = vpack.c.b16 %v2577, %v2575
        %v2666 = vpack.c.b16 %v2580, %v2578
        %v2667 = vpack.c.b16 %v2581, %v2579
        %v2668 = vpack.c.b16 %v2584, %v2582
        %v2669 = vpack.c.b16 %v2585, %v2583
        %v2670 = vpack.c.b16 %v2588, %v2586
        %v2671 = vpack.c.b16 %v2589, %v2587
        %v2672 = vpack.c.b16 %v2592, %v2590
        %v2673 = vpack.c.b16 %v2593, %v2591
        %v2674 = vpack.c.b16 %v2596, %v2594
        %v2675 = vpack.c.b16 %v2597, %v2595
        %v2676 = vpack.c.b16 %v2600, %v2598
        %v2677 = vpack.c.b16 %v2601, %v2599
        %v2678 = vpack.c.b16 %v2604, %v2602
        %v2679 = vpack.c.b16 %v2605, %v2603
        %v2680 = vpack.c.b16 %v2608, %v2606
        %v2681 = vpack.c.b16 %v2609, %v2607
        %v2682 = vpack.c.b16 %v2612, %v2610
        %v2683 = vpack.c.b16 %v2613, %v2611
        %v2684 = vpack.c.b16 %v2616, %v2614
        %v2685 = vpack.c.b16 %v2617, %v2615
        %v2686 = vpack.c.b16 %v2620, %v2618
        %v2687 = vpack.c.b16 %v2621, %v2619
        %v2688 = vpack.c.b16 %v2624, %v2622
        %v2689 = vpack.c.b16 %v2625, %v2623
        %v2690 = vpack.c.b16 %v2628, %v2626
        %v2691 = vpack.c.b16 %v2629, %v2627
        %v2692 = vpack.c.b16 %v2632, %v2630
        %v2693 = vpack.c.b16 %v2633, %v2631
        %v2694 = vpack.c.b16 %v2636, %v2634
        %v2695 = vpack.c.b16 %v2637, %v2635
        %v2696 = vpack.c.b16 %v2640, %v2638
        %v2697 = vpack.c.b16 %v2641, %v2639
        %v2698 = vpack.c.b16 %v2644, %v2642
        %v2699 = vpack.c.b16 %v2645, %v2643
        %v2700 = vpack.c.b16 %v2648, %v2646
        %v2701 = vpack.c.b16 %v2649, %v2647
        %v2702 = vpack.c.b16 %v2652, %v2650
        %v2703 = vpack.c.b16 %v2653, %v2651
        %v2704 = vpack.c.b16 %v2656, %v2654
        %v2705 = vpack.c.b16 %v2657, %v2655
        %2754 = vmatpush.bf16.msra.mxu0 %v2672
        %2755 = vmatpush.bf16.msra.mxu0 %v2670
        %2756 = vmatpush.bf16.msra.mxu0 %v2668
        %2757 = vmatpush.bf16.msra.mxu0 %v2666
        %2758 = vmatpush.bf16.msra.mxu0 %v2664
        %2759 = vmatpush.bf16.msra.mxu0 %v2662
        %2760 = vmatpush.bf16.msra.mxu0 %v2660
        %2761 = vmatpush.bf16.msra.mxu0 %v2658
        %2762 = vmatmul.bf16.gmra.mxu0 %v2504
        %v2763 = vpop.f32.mrf.mxu0
        %v2764 = vadd.f32 0.0, %v2763
        %v2765 = vpop.f32.mrf.mxu0
        %2766 = vdwg.mxu0
        %2767 = vmatpush.bf16.msra.mxu0 %v2688
        %2768 = vmatpush.bf16.msra.mxu0 %v2686
        %2769 = vmatpush.bf16.msra.mxu0 %v2684
        %2770 = vmatpush.bf16.msra.mxu0 %v2682
        %2771 = vmatpush.bf16.msra.mxu0 %v2680
        %2772 = vmatpush.bf16.msra.mxu0 %v2678
        %2773 = vmatpush.bf16.msra.mxu0 %v2676
        %2774 = vmatpush.bf16.msra.mxu0 %v2674
        %2775 = vmatmul.bf16.gmra.mxu0 %v2507
        %v2776 = vpop.f32.mrf.mxu0
        %v2777 = vadd.f32 %v2764, %v2776
        %v2778 = vpop.f32.mrf.mxu0
        %2779 = vdwg.mxu0
        %2780 = vmatpush.bf16.msra.mxu0 %v2704
        %2781 = vmatpush.bf16.msra.mxu0 %v2702
        %2782 = vmatpush.bf16.msra.mxu0 %v2700
        %2783 = vmatpush.bf16.msra.mxu0 %v2698
        %2784 = vmatpush.bf16.msra.mxu0 %v2696
        %2785 = vmatpush.bf16.msra.mxu0 %v2694
        %2786 = vmatpush.bf16.msra.mxu0 %v2692
        %2787 = vmatpush.bf16.msra.mxu0 %v2690
        %2788 = vmatmul.bf16.gmra.mxu0 %v2510
        %v2789 = vpop.f32.mrf.mxu0
        %v2790 = vadd.f32 %v2777, %v2789
        %v2791 = vpop.f32.mrf.mxu0
        %2792 = vdwg.mxu0
        %2793 = vmatpush.bf16.msra.mxu0 %v2673
        %2794 = vmatpush.bf16.msra.mxu0 %v2671
        %2795 = vmatpush.bf16.msra.mxu0 %v2669
        %2796 = vmatpush.bf16.msra.mxu0 %v2667
        %2797 = vmatpush.bf16.msra.mxu0 %v2665
        %2798 = vmatpush.bf16.msra.mxu0 %v2663
        %2799 = vmatpush.bf16.msra.mxu0 %v2661
        %2800 = vmatpush.bf16.msra.mxu0 %v2659
        %2801 = vmatmul.bf16.gmra.mxu0 %v2504
        %v2802 = vpop.f32.mrf.mxu0
        %v2803 = vadd.f32 0.0, %v2802
        %v2804 = vpop.f32.mrf.mxu0
        %2805 = vdwg.mxu0
        %2806 = vmatpush.bf16.msra.mxu0 %v2689
        %2807 = vmatpush.bf16.msra.mxu0 %v2687
        %2808 = vmatpush.bf16.msra.mxu0 %v2685
        %2809 = vmatpush.bf16.msra.mxu0 %v2683
        %2810 = vmatpush.bf16.msra.mxu0 %v2681
        %2811 = vmatpush.bf16.msra.mxu0 %v2679
        %2812 = vmatpush.bf16.msra.mxu0 %v2677
        %2813 = vmatpush.bf16.msra.mxu0 %v2675
        %2814 = vmatmul.bf16.gmra.mxu0 %v2507
        %v2815 = vpop.f32.mrf.mxu0
        %v2816 = vadd.f32 %v2803, %v2815
        %v2817 = vpop.f32.mrf.mxu0
        %2818 = vdwg.mxu0
        %2819 = vmatpush.bf16.msra.mxu0 %v2705
        %2820 = vmatpush.bf16.msra.mxu0 %v2703
        %2821 = vmatpush.bf16.msra.mxu0 %v2701
        %2822 = vmatpush.bf16.msra.mxu0 %v2699
        %2823 = vmatpush.bf16.msra.mxu0 %v2697
        %2824 = vmatpush.bf16.msra.mxu0 %v2695
        %2825 = vmatpush.bf16.msra.mxu0 %v2693
        %2826 = vmatpush.bf16.msra.mxu0 %v2691
        %2827 = vmatmul.bf16.gmra.mxu0 %v2510
        %v2828 = vpop.f32.mrf.mxu0
        %v2829 = vadd.f32 %v2816, %v2828
        %v2830 = vpop.f32.mrf.mxu0
        %2831 = vdwg.mxu0
        %v2832 = vadd.f32 %v2082, %v2790
        %v2833 = vadd.f32 %v2083, %v2829
        %s2834 = scalar_lea.vmem [#allocation2], 2688
        %v2835 = vld [vmem:[%s2834] sm:$0xff]
        %v2836 = vld [vmem:[%s2834 + $0x8] sm:$0xff]
        %v2837 = vld [vmem:[%s2834 + $0x10] sm:$0xff]
        %v2838 = vld [vmem:[%s2834 + $0x18] sm:$0xff]
        %v2839 = vld [vmem:[%s2834 + $0x20] sm:$0xff]
        %v2840 = vld [vmem:[%s2834 + $0x28] sm:$0xff]
        %v2841 = vld [vmem:[%s2834 + $0x30] sm:$0xff]
        %v2842 = vld [vmem:[%s2834 + $0x38] sm:$0xff]
        %v2843 = vld [vmem:[%s2834 + $0x40] sm:$0xff]
        %v2844 = vld [vmem:[%s2834 + $0x48] sm:$0xff]
        %v2845 = vld [vmem:[%s2834 + $0x50] sm:$0xff]
        %v2846 = vld [vmem:[%s2834 + $0x58] sm:$0xff]
        %v2847 = vld [vmem:[%s2834 + $0x60] sm:$0xff]
        %v2848 = vld [vmem:[%s2834 + $0x68] sm:$0xff]
        %v2849 = vld [vmem:[%s2834 + $0x70] sm:$0xff]
        %v2850 = vld [vmem:[%s2834 + $0x78] sm:$0xff]
        %v2851 = vld [vmem:[%s2834 + $0x80] sm:$0xff]
        %v2852 = vld [vmem:[%s2834 + $0x88] sm:$0xff]
        %v2853 = vld [vmem:[%s2834 + $0x90] sm:$0xff]
        %v2854 = vld [vmem:[%s2834 + $0x98] sm:$0xff]
        %v2855 = vld [vmem:[%s2834 + $0xa0] sm:$0xff]
        %v2856 = vld [vmem:[%s2834 + $0xa8] sm:$0xff]
        %v2857 = vld [vmem:[%s2834 + $0xb0] sm:$0xff]
        %v2858 = vld [vmem:[%s2834 + $0xb8] sm:$0xff]
        %v2859 = vld [vmem:[%s2834 + $0xc0] sm:$0xff]
        %v2860 = vld [vmem:[%s2834 + $0xc8] sm:$0xff]
        %v2861 = vld [vmem:[%s2834 + $0xd0] sm:$0xff]
        %v2862 = vld [vmem:[%s2834 + $0xd8] sm:$0xff]
        %v2863 = vld [vmem:[%s2834 + $0xe0] sm:$0xff]
        %v2864 = vld [vmem:[%s2834 + $0xe8] sm:$0xff]
        %v2865 = vld [vmem:[%s2834 + $0xf0] sm:$0xff]
        %v2866 = vld [vmem:[%s2834 + $0xf8] sm:$0xff]
        %v2867 = vld [vmem:[%s2834 + $0x100] sm:$0xff]
        %v2868 = vld [vmem:[%s2834 + $0x108] sm:$0xff]
        %v2869 = vld [vmem:[%s2834 + $0x110] sm:$0xff]
        %v2870 = vld [vmem:[%s2834 + $0x118] sm:$0xff]
        %v2871 = vld [vmem:[%s2834 + $0x120] sm:$0xff]
        %v2872 = vld [vmem:[%s2834 + $0x128] sm:$0xff]
        %v2873 = vld [vmem:[%s2834 + $0x130] sm:$0xff]
        %v2874 = vld [vmem:[%s2834 + $0x138] sm:$0xff]
        %v2875 = vld [vmem:[%s2834 + $0x140] sm:$0xff]
        %v2876 = vld [vmem:[%s2834 + $0x148] sm:$0xff]
        %v2877 = vld [vmem:[%s2834 + $0x150] sm:$0xff]
        %v2878 = vld [vmem:[%s2834 + $0x158] sm:$0xff]
        %v2879 = vld [vmem:[%s2834 + $0x160] sm:$0xff]
        %v2880 = vld [vmem:[%s2834 + $0x168] sm:$0xff]
        %v2881 = vld [vmem:[%s2834 + $0x170] sm:$0xff]
        %v2882 = vld [vmem:[%s2834 + $0x178] sm:$0xff]
        %v2931 = vunpack.c.l.b16 %v2835
        %v2932 = vunpack.c.h.b16 %v2835
        %v2933 = vunpack.c.l.b16 %v2836
        %v2934 = vunpack.c.h.b16 %v2836
        %v2935 = vunpack.c.l.b16 %v2837
        %v2936 = vunpack.c.h.b16 %v2837
        %v2937 = vunpack.c.l.b16 %v2838
        %v2938 = vunpack.c.h.b16 %v2838
        %v2939 = vunpack.c.l.b16 %v2839
        %v2940 = vunpack.c.h.b16 %v2839
        %v2941 = vunpack.c.l.b16 %v2840
        %v2942 = vunpack.c.h.b16 %v2840
        %v2943 = vunpack.c.l.b16 %v2841
        %v2944 = vunpack.c.h.b16 %v2841
        %v2945 = vunpack.c.l.b16 %v2842
        %v2946 = vunpack.c.h.b16 %v2842
        %v2947 = vunpack.c.l.b16 %v2843
        %v2948 = vunpack.c.h.b16 %v2843
        %v2949 = vunpack.c.l.b16 %v2844
        %v2950 = vunpack.c.h.b16 %v2844
        %v2951 = vunpack.c.l.b16 %v2845
        %v2952 = vunpack.c.h.b16 %v2845
        %v2953 = vunpack.c.l.b16 %v2846
        %v2954 = vunpack.c.h.b16 %v2846
        %v2955 = vunpack.c.l.b16 %v2847
        %v2956 = vunpack.c.h.b16 %v2847
        %v2957 = vunpack.c.l.b16 %v2848
        %v2958 = vunpack.c.h.b16 %v2848
        %v2959 = vunpack.c.l.b16 %v2849
        %v2960 = vunpack.c.h.b16 %v2849
        %v2961 = vunpack.c.l.b16 %v2850
        %v2962 = vunpack.c.h.b16 %v2850
        %v2963 = vunpack.c.l.b16 %v2851
        %v2964 = vunpack.c.h.b16 %v2851
        %v2965 = vunpack.c.l.b16 %v2852
        %v2966 = vunpack.c.h.b16 %v2852
        %v2967 = vunpack.c.l.b16 %v2853
        %v2968 = vunpack.c.h.b16 %v2853
        %v2969 = vunpack.c.l.b16 %v2854
        %v2970 = vunpack.c.h.b16 %v2854
        %v2971 = vunpack.c.l.b16 %v2855
        %v2972 = vunpack.c.h.b16 %v2855
        %v2973 = vunpack.c.l.b16 %v2856
        %v2974 = vunpack.c.h.b16 %v2856
        %v2975 = vunpack.c.l.b16 %v2857
        %v2976 = vunpack.c.h.b16 %v2857
        %v2977 = vunpack.c.l.b16 %v2858
        %v2978 = vunpack.c.h.b16 %v2858
        %v2979 = vunpack.c.l.b16 %v2859
        %v2980 = vunpack.c.h.b16 %v2859
        %v2981 = vunpack.c.l.b16 %v2860
        %v2982 = vunpack.c.h.b16 %v2860
        %v2983 = vunpack.c.l.b16 %v2861
        %v2984 = vunpack.c.h.b16 %v2861
        %v2985 = vunpack.c.l.b16 %v2862
        %v2986 = vunpack.c.h.b16 %v2862
        %v2987 = vunpack.c.l.b16 %v2863
        %v2988 = vunpack.c.h.b16 %v2863
        %v2989 = vunpack.c.l.b16 %v2864
        %v2990 = vunpack.c.h.b16 %v2864
        %v2991 = vunpack.c.l.b16 %v2865
        %v2992 = vunpack.c.h.b16 %v2865
        %v2993 = vunpack.c.l.b16 %v2866
        %v2994 = vunpack.c.h.b16 %v2866
        %v2995 = vunpack.c.l.b16 %v2867
        %v2996 = vunpack.c.h.b16 %v2867
        %v2997 = vunpack.c.l.b16 %v2868
        %v2998 = vunpack.c.h.b16 %v2868
        %v2999 = vunpack.c.l.b16 %v2869
        %v3000 = vunpack.c.h.b16 %v2869
        %v3001 = vunpack.c.l.b16 %v2870
        %v3002 = vunpack.c.h.b16 %v2870
        %v3003 = vunpack.c.l.b16 %v2871
        %v3004 = vunpack.c.h.b16 %v2871
        %v3005 = vunpack.c.l.b16 %v2872
        %v3006 = vunpack.c.h.b16 %v2872
        %v3007 = vunpack.c.l.b16 %v2873
        %v3008 = vunpack.c.h.b16 %v2873
        %v3009 = vunpack.c.l.b16 %v2874
        %v3010 = vunpack.c.h.b16 %v2874
        %v3011 = vunpack.c.l.b16 %v2875
        %v3012 = vunpack.c.h.b16 %v2875
        %v3013 = vunpack.c.l.b16 %v2876
        %v3014 = vunpack.c.h.b16 %v2876
        %v3015 = vunpack.c.l.b16 %v2877
        %v3016 = vunpack.c.h.b16 %v2877
        %v3017 = vunpack.c.l.b16 %v2878
        %v3018 = vunpack.c.h.b16 %v2878
        %v3019 = vunpack.c.l.b16 %v2879
        %v3020 = vunpack.c.h.b16 %v2879
        %v3021 = vunpack.c.l.b16 %v2880
        %v3022 = vunpack.c.h.b16 %v2880
        %v3023 = vunpack.c.l.b16 %v2881
        %v3024 = vunpack.c.h.b16 %v2881
        %v3025 = vunpack.c.l.b16 %v2882
        %v3026 = vunpack.c.h.b16 %v2882
        %v3027 = vpack.c.b16 %v2933, %v2931
        %v3028 = vpack.c.b16 %v2934, %v2932
        %v3029 = vpack.c.b16 %v2937, %v2935
        %v3030 = vpack.c.b16 %v2938, %v2936
        %v3031 = vpack.c.b16 %v2941, %v2939
        %v3032 = vpack.c.b16 %v2942, %v2940
        %v3033 = vpack.c.b16 %v2945, %v2943
        %v3034 = vpack.c.b16 %v2946, %v2944
        %v3035 = vpack.c.b16 %v2949, %v2947
        %v3036 = vpack.c.b16 %v2950, %v2948
        %v3037 = vpack.c.b16 %v2953, %v2951
        %v3038 = vpack.c.b16 %v2954, %v2952
        %v3039 = vpack.c.b16 %v2957, %v2955
        %v3040 = vpack.c.b16 %v2958, %v2956
        %v3041 = vpack.c.b16 %v2961, %v2959
        %v3042 = vpack.c.b16 %v2962, %v2960
        %v3043 = vpack.c.b16 %v2965, %v2963
        %v3044 = vpack.c.b16 %v2966, %v2964
        %v3045 = vpack.c.b16 %v2969, %v2967
        %v3046 = vpack.c.b16 %v2970, %v2968
        %v3047 = vpack.c.b16 %v2973, %v2971
        %v3048 = vpack.c.b16 %v2974, %v2972
        %v3049 = vpack.c.b16 %v2977, %v2975
        %v3050 = vpack.c.b16 %v2978, %v2976
        %v3051 = vpack.c.b16 %v2981, %v2979
        %v3052 = vpack.c.b16 %v2982, %v2980
        %v3053 = vpack.c.b16 %v2985, %v2983
        %v3054 = vpack.c.b16 %v2986, %v2984
        %v3055 = vpack.c.b16 %v2989, %v2987
        %v3056 = vpack.c.b16 %v2990, %v2988
        %v3057 = vpack.c.b16 %v2993, %v2991
        %v3058 = vpack.c.b16 %v2994, %v2992
        %v3059 = vpack.c.b16 %v2997, %v2995
        %v3060 = vpack.c.b16 %v2998, %v2996
        %v3061 = vpack.c.b16 %v3001, %v2999
        %v3062 = vpack.c.b16 %v3002, %v3000
        %v3063 = vpack.c.b16 %v3005, %v3003
        %v3064 = vpack.c.b16 %v3006, %v3004
        %v3065 = vpack.c.b16 %v3009, %v3007
        %v3066 = vpack.c.b16 %v3010, %v3008
        %v3067 = vpack.c.b16 %v3013, %v3011
        %v3068 = vpack.c.b16 %v3014, %v3012
        %v3069 = vpack.c.b16 %v3017, %v3015
        %v3070 = vpack.c.b16 %v3018, %v3016
        %v3071 = vpack.c.b16 %v3021, %v3019
        %v3072 = vpack.c.b16 %v3022, %v3020
        %v3073 = vpack.c.b16 %v3025, %v3023
        %v3074 = vpack.c.b16 %v3026, %v3024
        %3123 = vmatpush.bf16.msra.mxu0 %v3041
        %3124 = vmatpush.bf16.msra.mxu0 %v3039
        %3125 = vmatpush.bf16.msra.mxu0 %v3037
        %3126 = vmatpush.bf16.msra.mxu0 %v3035
        %3127 = vmatpush.bf16.msra.mxu0 %v3033
        %3128 = vmatpush.bf16.msra.mxu0 %v3031
        %3129 = vmatpush.bf16.msra.mxu0 %v3029
        %3130 = vmatpush.bf16.msra.mxu0 %v3027
        %3131 = vmatmul.bf16.gmra.mxu0 %v2504
        %v3132 = vpop.f32.mrf.mxu0
        %v3133 = vadd.f32 0.0, %v3132
        %v3134 = vpop.f32.mrf.mxu0
        %3135 = vdwg.mxu0
        %3136 = vmatpush.bf16.msra.mxu0 %v3057
        %3137 = vmatpush.bf16.msra.mxu0 %v3055
        %3138 = vmatpush.bf16.msra.mxu0 %v3053
        %3139 = vmatpush.bf16.msra.mxu0 %v3051
        %3140 = vmatpush.bf16.msra.mxu0 %v3049
        %3141 = vmatpush.bf16.msra.mxu0 %v3047
        %3142 = vmatpush.bf16.msra.mxu0 %v3045
        %3143 = vmatpush.bf16.msra.mxu0 %v3043
        %3144 = vmatmul.bf16.gmra.mxu0 %v2507
        %v3145 = vpop.f32.mrf.mxu0
        %v3146 = vadd.f32 %v3133, %v3145
        %v3147 = vpop.f32.mrf.mxu0
        %3148 = vdwg.mxu0
        %3149 = vmatpush.bf16.msra.mxu0 %v3073
        %3150 = vmatpush.bf16.msra.mxu0 %v3071
        %3151 = vmatpush.bf16.msra.mxu0 %v3069
        %3152 = vmatpush.bf16.msra.mxu0 %v3067
        %3153 = vmatpush.bf16.msra.mxu0 %v3065
        %3154 = vmatpush.bf16.msra.mxu0 %v3063
        %3155 = vmatpush.bf16.msra.mxu0 %v3061
        %3156 = vmatpush.bf16.msra.mxu0 %v3059
        %3157 = vmatmul.bf16.gmra.mxu0 %v2510
        %v3158 = vpop.f32.mrf.mxu0
        %v3159 = vadd.f32 %v3146, %v3158
        %v3160 = vpop.f32.mrf.mxu0
        %3161 = vdwg.mxu0
        %3162 = vmatpush.bf16.msra.mxu0 %v3042
        %3163 = vmatpush.bf16.msra.mxu0 %v3040
        %3164 = vmatpush.bf16.msra.mxu0 %v3038
        %3165 = vmatpush.bf16.msra.mxu0 %v3036
        %3166 = vmatpush.bf16.msra.mxu0 %v3034
        %3167 = vmatpush.bf16.msra.mxu0 %v3032
        %3168 = vmatpush.bf16.msra.mxu0 %v3030
        %3169 = vmatpush.bf16.msra.mxu0 %v3028
        %3170 = vmatmul.bf16.gmra.mxu0 %v2504
        %v3171 = vpop.f32.mrf.mxu0
        %v3172 = vadd.f32 0.0, %v3171
        %v3173 = vpop.f32.mrf.mxu0
        %3174 = vdwg.mxu0
        %3175 = vmatpush.bf16.msra.mxu0 %v3058
        %3176 = vmatpush.bf16.msra.mxu0 %v3056
        %3177 = vmatpush.bf16.msra.mxu0 %v3054
        %3178 = vmatpush.bf16.msra.mxu0 %v3052
        %3179 = vmatpush.bf16.msra.mxu0 %v3050
        %3180 = vmatpush.bf16.msra.mxu0 %v3048
        %3181 = vmatpush.bf16.msra.mxu0 %v3046
        %3182 = vmatpush.bf16.msra.mxu0 %v3044
        %3183 = vmatmul.bf16.gmra.mxu0 %v2507
        %v3184 = vpop.f32.mrf.mxu0
        %v3185 = vadd.f32 %v3172, %v3184
        %v3186 = vpop.f32.mrf.mxu0
        %3187 = vdwg.mxu0
        %3188 = vmatpush.bf16.msra.mxu0 %v3074
        %3189 = vmatpush.bf16.msra.mxu0 %v3072
        %3190 = vmatpush.bf16.msra.mxu0 %v3070
        %3191 = vmatpush.bf16.msra.mxu0 %v3068
        %3192 = vmatpush.bf16.msra.mxu0 %v3066
        %3193 = vmatpush.bf16.msra.mxu0 %v3064
        %3194 = vmatpush.bf16.msra.mxu0 %v3062
        %3195 = vmatpush.bf16.msra.mxu0 %v3060
        %3196 = vmatmul.bf16.gmra.mxu0 %v2510
        %v3197 = vpop.f32.mrf.mxu0
        %v3198 = vadd.f32 %v3185, %v3197
        %v3199 = vpop.f32.mrf.mxu0
        %3200 = vdwg.mxu0
        %v3201 = vadd.f32 %v2451, %v3159
        %v3202 = vadd.f32 %v2452, %v3198
        %s3203 = scalar_lea.vmem [#allocation2], 3072
        %v3204 = vld [vmem:[%s3203] sm:$0xff]
        %v3205 = vld [vmem:[%s3203 + $0x8] sm:$0xff]
        %v3206 = vld [vmem:[%s3203 + $0x10] sm:$0xff]
        %v3207 = vld [vmem:[%s3203 + $0x18] sm:$0xff]
        %v3208 = vld [vmem:[%s3203 + $0x20] sm:$0xff]
        %v3209 = vld [vmem:[%s3203 + $0x28] sm:$0xff]
        %v3210 = vld [vmem:[%s3203 + $0x30] sm:$0xff]
        %v3211 = vld [vmem:[%s3203 + $0x38] sm:$0xff]
        %v3212 = vld [vmem:[%s3203 + $0x40] sm:$0xff]
        %v3213 = vld [vmem:[%s3203 + $0x48] sm:$0xff]
        %v3214 = vld [vmem:[%s3203 + $0x50] sm:$0xff]
        %v3215 = vld [vmem:[%s3203 + $0x58] sm:$0xff]
        %v3216 = vld [vmem:[%s3203 + $0x60] sm:$0xff]
        %v3217 = vld [vmem:[%s3203 + $0x68] sm:$0xff]
        %v3218 = vld [vmem:[%s3203 + $0x70] sm:$0xff]
        %v3219 = vld [vmem:[%s3203 + $0x78] sm:$0xff]
        %v3220 = vld [vmem:[%s3203 + $0x80] sm:$0xff]
        %v3221 = vld [vmem:[%s3203 + $0x88] sm:$0xff]
        %v3222 = vld [vmem:[%s3203 + $0x90] sm:$0xff]
        %v3223 = vld [vmem:[%s3203 + $0x98] sm:$0xff]
        %v3224 = vld [vmem:[%s3203 + $0xa0] sm:$0xff]
        %v3225 = vld [vmem:[%s3203 + $0xa8] sm:$0xff]
        %v3226 = vld [vmem:[%s3203 + $0xb0] sm:$0xff]
        %v3227 = vld [vmem:[%s3203 + $0xb8] sm:$0xff]
        %v3228 = vld [vmem:[%s3203 + $0xc0] sm:$0xff]
        %v3229 = vld [vmem:[%s3203 + $0xc8] sm:$0xff]
        %v3230 = vld [vmem:[%s3203 + $0xd0] sm:$0xff]
        %v3231 = vld [vmem:[%s3203 + $0xd8] sm:$0xff]
        %v3232 = vld [vmem:[%s3203 + $0xe0] sm:$0xff]
        %v3233 = vld [vmem:[%s3203 + $0xe8] sm:$0xff]
        %v3234 = vld [vmem:[%s3203 + $0xf0] sm:$0xff]
        %v3235 = vld [vmem:[%s3203 + $0xf8] sm:$0xff]
        %v3236 = vld [vmem:[%s3203 + $0x100] sm:$0xff]
        %v3237 = vld [vmem:[%s3203 + $0x108] sm:$0xff]
        %v3238 = vld [vmem:[%s3203 + $0x110] sm:$0xff]
        %v3239 = vld [vmem:[%s3203 + $0x118] sm:$0xff]
        %v3240 = vld [vmem:[%s3203 + $0x120] sm:$0xff]
        %v3241 = vld [vmem:[%s3203 + $0x128] sm:$0xff]
        %v3242 = vld [vmem:[%s3203 + $0x130] sm:$0xff]
        %v3243 = vld [vmem:[%s3203 + $0x138] sm:$0xff]
        %v3244 = vld [vmem:[%s3203 + $0x140] sm:$0xff]
        %v3245 = vld [vmem:[%s3203 + $0x148] sm:$0xff]
        %v3246 = vld [vmem:[%s3203 + $0x150] sm:$0xff]
        %v3247 = vld [vmem:[%s3203 + $0x158] sm:$0xff]
        %v3248 = vld [vmem:[%s3203 + $0x160] sm:$0xff]
        %v3249 = vld [vmem:[%s3203 + $0x168] sm:$0xff]
        %v3250 = vld [vmem:[%s3203 + $0x170] sm:$0xff]
        %v3251 = vld [vmem:[%s3203 + $0x178] sm:$0xff]
        %v3252 = vrot.slane %v309, 2
        %v3253 = vrot.slane %v310, 2
        %v3254 = vrot.slane %v311, 2
        %v3306 = vunpack.c.l.b16 %v3204
        %v3307 = vunpack.c.h.b16 %v3204
        %v3308 = vunpack.c.l.b16 %v3205
        %v3309 = vunpack.c.h.b16 %v3205
        %v3310 = vunpack.c.l.b16 %v3206
        %v3311 = vunpack.c.h.b16 %v3206
        %v3312 = vunpack.c.l.b16 %v3207
        %v3313 = vunpack.c.h.b16 %v3207
        %v3314 = vunpack.c.l.b16 %v3208
        %v3315 = vunpack.c.h.b16 %v3208
        %v3316 = vunpack.c.l.b16 %v3209
        %v3317 = vunpack.c.h.b16 %v3209
        %v3318 = vunpack.c.l.b16 %v3210
        %v3319 = vunpack.c.h.b16 %v3210
        %v3320 = vunpack.c.l.b16 %v3211
        %v3321 = vunpack.c.h.b16 %v3211
        %v3322 = vunpack.c.l.b16 %v3212
        %v3323 = vunpack.c.h.b16 %v3212
        %v3324 = vunpack.c.l.b16 %v3213
        %v3325 = vunpack.c.h.b16 %v3213
        %v3326 = vunpack.c.l.b16 %v3214
        %v3327 = vunpack.c.h.b16 %v3214
        %v3328 = vunpack.c.l.b16 %v3215
        %v3329 = vunpack.c.h.b16 %v3215
        %v3330 = vunpack.c.l.b16 %v3216
        %v3331 = vunpack.c.h.b16 %v3216
        %v3332 = vunpack.c.l.b16 %v3217
        %v3333 = vunpack.c.h.b16 %v3217
        %v3334 = vunpack.c.l.b16 %v3218
        %v3335 = vunpack.c.h.b16 %v3218
        %v3336 = vunpack.c.l.b16 %v3219
        %v3337 = vunpack.c.h.b16 %v3219
        %v3338 = vunpack.c.l.b16 %v3220
        %v3339 = vunpack.c.h.b16 %v3220
        %v3340 = vunpack.c.l.b16 %v3221
        %v3341 = vunpack.c.h.b16 %v3221
        %v3342 = vunpack.c.l.b16 %v3222
        %v3343 = vunpack.c.h.b16 %v3222
        %v3344 = vunpack.c.l.b16 %v3223
        %v3345 = vunpack.c.h.b16 %v3223
        %v3346 = vunpack.c.l.b16 %v3224
        %v3347 = vunpack.c.h.b16 %v3224
        %v3348 = vunpack.c.l.b16 %v3225
        %v3349 = vunpack.c.h.b16 %v3225
        %v3350 = vunpack.c.l.b16 %v3226
        %v3351 = vunpack.c.h.b16 %v3226
        %v3352 = vunpack.c.l.b16 %v3227
        %v3353 = vunpack.c.h.b16 %v3227
        %v3354 = vunpack.c.l.b16 %v3228
        %v3355 = vunpack.c.h.b16 %v3228
        %v3356 = vunpack.c.l.b16 %v3229
        %v3357 = vunpack.c.h.b16 %v3229
        %v3358 = vunpack.c.l.b16 %v3230
        %v3359 = vunpack.c.h.b16 %v3230
        %v3360 = vunpack.c.l.b16 %v3231
        %v3361 = vunpack.c.h.b16 %v3231
        %v3362 = vunpack.c.l.b16 %v3232
        %v3363 = vunpack.c.h.b16 %v3232
        %v3364 = vunpack.c.l.b16 %v3233
        %v3365 = vunpack.c.h.b16 %v3233
        %v3366 = vunpack.c.l.b16 %v3234
        %v3367 = vunpack.c.h.b16 %v3234
        %v3368 = vunpack.c.l.b16 %v3235
        %v3369 = vunpack.c.h.b16 %v3235
        %v3370 = vunpack.c.l.b16 %v3236
        %v3371 = vunpack.c.h.b16 %v3236
        %v3372 = vunpack.c.l.b16 %v3237
        %v3373 = vunpack.c.h.b16 %v3237
        %v3374 = vunpack.c.l.b16 %v3238
        %v3375 = vunpack.c.h.b16 %v3238
        %v3376 = vunpack.c.l.b16 %v3239
        %v3377 = vunpack.c.h.b16 %v3239
        %v3378 = vunpack.c.l.b16 %v3240
        %v3379 = vunpack.c.h.b16 %v3240
        %v3380 = vunpack.c.l.b16 %v3241
        %v3381 = vunpack.c.h.b16 %v3241
        %v3382 = vunpack.c.l.b16 %v3242
        %v3383 = vunpack.c.h.b16 %v3242
        %v3384 = vunpack.c.l.b16 %v3243
        %v3385 = vunpack.c.h.b16 %v3243
        %v3386 = vunpack.c.l.b16 %v3244
        %v3387 = vunpack.c.h.b16 %v3244
        %v3388 = vunpack.c.l.b16 %v3245
        %v3389 = vunpack.c.h.b16 %v3245
        %v3390 = vunpack.c.l.b16 %v3246
        %v3391 = vunpack.c.h.b16 %v3246
        %v3392 = vunpack.c.l.b16 %v3247
        %v3393 = vunpack.c.h.b16 %v3247
        %v3394 = vunpack.c.l.b16 %v3248
        %v3395 = vunpack.c.h.b16 %v3248
        %v3396 = vunpack.c.l.b16 %v3249
        %v3397 = vunpack.c.h.b16 %v3249
        %v3398 = vunpack.c.l.b16 %v3250
        %v3399 = vunpack.c.h.b16 %v3250
        %v3400 = vunpack.c.l.b16 %v3251
        %v3401 = vunpack.c.h.b16 %v3251
        %v3402 = vpack.c.b16 %v3308, %v3306
        %v3403 = vpack.c.b16 %v3309, %v3307
        %v3404 = vpack.c.b16 %v3312, %v3310
        %v3405 = vpack.c.b16 %v3313, %v3311
        %v3406 = vpack.c.b16 %v3316, %v3314
        %v3407 = vpack.c.b16 %v3317, %v3315
        %v3408 = vpack.c.b16 %v3320, %v3318
        %v3409 = vpack.c.b16 %v3321, %v3319
        %v3410 = vpack.c.b16 %v3324, %v3322
        %v3411 = vpack.c.b16 %v3325, %v3323
        %v3412 = vpack.c.b16 %v3328, %v3326
        %v3413 = vpack.c.b16 %v3329, %v3327
        %v3414 = vpack.c.b16 %v3332, %v3330
        %v3415 = vpack.c.b16 %v3333, %v3331
        %v3416 = vpack.c.b16 %v3336, %v3334
        %v3417 = vpack.c.b16 %v3337, %v3335
        %v3418 = vpack.c.b16 %v3340, %v3338
        %v3419 = vpack.c.b16 %v3341, %v3339
        %v3420 = vpack.c.b16 %v3344, %v3342
        %v3421 = vpack.c.b16 %v3345, %v3343
        %v3422 = vpack.c.b16 %v3348, %v3346
        %v3423 = vpack.c.b16 %v3349, %v3347
        %v3424 = vpack.c.b16 %v3352, %v3350
        %v3425 = vpack.c.b16 %v3353, %v3351
        %v3426 = vpack.c.b16 %v3356, %v3354
        %v3427 = vpack.c.b16 %v3357, %v3355
        %v3428 = vpack.c.b16 %v3360, %v3358
        %v3429 = vpack.c.b16 %v3361, %v3359
        %v3430 = vpack.c.b16 %v3364, %v3362
        %v3431 = vpack.c.b16 %v3365, %v3363
        %v3432 = vpack.c.b16 %v3368, %v3366
        %v3433 = vpack.c.b16 %v3369, %v3367
        %v3434 = vpack.c.b16 %v3372, %v3370
        %v3435 = vpack.c.b16 %v3373, %v3371
        %v3436 = vpack.c.b16 %v3376, %v3374
        %v3437 = vpack.c.b16 %v3377, %v3375
        %v3438 = vpack.c.b16 %v3380, %v3378
        %v3439 = vpack.c.b16 %v3381, %v3379
        %v3440 = vpack.c.b16 %v3384, %v3382
        %v3441 = vpack.c.b16 %v3385, %v3383
        %v3442 = vpack.c.b16 %v3388, %v3386
        %v3443 = vpack.c.b16 %v3389, %v3387
        %v3444 = vpack.c.b16 %v3392, %v3390
        %v3445 = vpack.c.b16 %v3393, %v3391
        %v3446 = vpack.c.b16 %v3396, %v3394
        %v3447 = vpack.c.b16 %v3397, %v3395
        %v3448 = vpack.c.b16 %v3400, %v3398
        %v3449 = vpack.c.b16 %v3401, %v3399
        %3498 = vmatpush.bf16.msra.mxu0 %v3416
        %3499 = vmatpush.bf16.msra.mxu0 %v3414
        %3500 = vmatpush.bf16.msra.mxu0 %v3412
        %3501 = vmatpush.bf16.msra.mxu0 %v3410
        %3502 = vmatpush.bf16.msra.mxu0 %v3408
        %3503 = vmatpush.bf16.msra.mxu0 %v3406
        %3504 = vmatpush.bf16.msra.mxu0 %v3404
        %3505 = vmatpush.bf16.msra.mxu0 %v3402
        %3506 = vmatmul.bf16.gmra.mxu0 %v3252
        %v3507 = vpop.f32.mrf.mxu0
        %v3508 = vadd.f32 0.0, %v3507
        %v3509 = vpop.f32.mrf.mxu0
        %3510 = vdwg.mxu0
        %3511 = vmatpush.bf16.msra.mxu0 %v3432
        %3512 = vmatpush.bf16.msra.mxu0 %v3430
        %3513 = vmatpush.bf16.msra.mxu0 %v3428
        %3514 = vmatpush.bf16.msra.mxu0 %v3426
        %3515 = vmatpush.bf16.msra.mxu0 %v3424
        %3516 = vmatpush.bf16.msra.mxu0 %v3422
        %3517 = vmatpush.bf16.msra.mxu0 %v3420
        %3518 = vmatpush.bf16.msra.mxu0 %v3418
        %3519 = vmatmul.bf16.gmra.mxu0 %v3253
        %v3520 = vpop.f32.mrf.mxu0
        %v3521 = vadd.f32 %v3508, %v3520
        %v3522 = vpop.f32.mrf.mxu0
        %3523 = vdwg.mxu0
        %3524 = vmatpush.bf16.msra.mxu0 %v3448
        %3525 = vmatpush.bf16.msra.mxu0 %v3446
        %3526 = vmatpush.bf16.msra.mxu0 %v3444
        %3527 = vmatpush.bf16.msra.mxu0 %v3442
        %3528 = vmatpush.bf16.msra.mxu0 %v3440
        %3529 = vmatpush.bf16.msra.mxu0 %v3438
        %3530 = vmatpush.bf16.msra.mxu0 %v3436
        %3531 = vmatpush.bf16.msra.mxu0 %v3434
        %3532 = vmatmul.bf16.gmra.mxu0 %v3254
        %v3533 = vpop.f32.mrf.mxu0
        %v3534 = vadd.f32 %v3521, %v3533
        %v3535 = vpop.f32.mrf.mxu0
        %3536 = vdwg.mxu0
        %3537 = vmatpush.bf16.msra.mxu0 %v3417
        %3538 = vmatpush.bf16.msra.mxu0 %v3415
        %3539 = vmatpush.bf16.msra.mxu0 %v3413
        %3540 = vmatpush.bf16.msra.mxu0 %v3411
        %3541 = vmatpush.bf16.msra.mxu0 %v3409
        %3542 = vmatpush.bf16.msra.mxu0 %v3407
        %3543 = vmatpush.bf16.msra.mxu0 %v3405
        %3544 = vmatpush.bf16.msra.mxu0 %v3403
        %3545 = vmatmul.bf16.gmra.mxu0 %v3252
        %v3546 = vpop.f32.mrf.mxu0
        %v3547 = vadd.f32 0.0, %v3546
        %v3548 = vpop.f32.mrf.mxu0
        %3549 = vdwg.mxu0
        %3550 = vmatpush.bf16.msra.mxu0 %v3433
        %3551 = vmatpush.bf16.msra.mxu0 %v3431
        %3552 = vmatpush.bf16.msra.mxu0 %v3429
        %3553 = vmatpush.bf16.msra.mxu0 %v3427
        %3554 = vmatpush.bf16.msra.mxu0 %v3425
        %3555 = vmatpush.bf16.msra.mxu0 %v3423
        %3556 = vmatpush.bf16.msra.mxu0 %v3421
        %3557 = vmatpush.bf16.msra.mxu0 %v3419
        %3558 = vmatmul.bf16.gmra.mxu0 %v3253
        %v3559 = vpop.f32.mrf.mxu0
        %v3560 = vadd.f32 %v3547, %v3559
        %v3561 = vpop.f32.mrf.mxu0
        %3562 = vdwg.mxu0
        %3563 = vmatpush.bf16.msra.mxu0 %v3449
        %3564 = vmatpush.bf16.msra.mxu0 %v3447
        %3565 = vmatpush.bf16.msra.mxu0 %v3445
        %3566 = vmatpush.bf16.msra.mxu0 %v3443
        %3567 = vmatpush.bf16.msra.mxu0 %v3441
        %3568 = vmatpush.bf16.msra.mxu0 %v3439
        %3569 = vmatpush.bf16.msra.mxu0 %v3437
        %3570 = vmatpush.bf16.msra.mxu0 %v3435
        %3571 = vmatmul.bf16.gmra.mxu0 %v3254
        %v3572 = vpop.f32.mrf.mxu0
        %v3573 = vadd.f32 %v3560, %v3572
        %v3574 = vpop.f32.mrf.mxu0
        %3575 = vdwg.mxu0
        %v3576 = vadd.f32 %v2832, %v3534
        %v3577 = vadd.f32 %v2833, %v3573
        %s3578 = scalar_lea.vmem [#allocation2], 3456
        %v3579 = vld [vmem:[%s3578] sm:$0xff]
        %v3580 = vld [vmem:[%s3578 + $0x8] sm:$0xff]
        %v3581 = vld [vmem:[%s3578 + $0x10] sm:$0xff]
        %v3582 = vld [vmem:[%s3578 + $0x18] sm:$0xff]
        %v3583 = vld [vmem:[%s3578 + $0x20] sm:$0xff]
        %v3584 = vld [vmem:[%s3578 + $0x28] sm:$0xff]
        %v3585 = vld [vmem:[%s3578 + $0x30] sm:$0xff]
        %v3586 = vld [vmem:[%s3578 + $0x38] sm:$0xff]
        %v3587 = vld [vmem:[%s3578 + $0x40] sm:$0xff]
        %v3588 = vld [vmem:[%s3578 + $0x48] sm:$0xff]
        %v3589 = vld [vmem:[%s3578 + $0x50] sm:$0xff]
        %v3590 = vld [vmem:[%s3578 + $0x58] sm:$0xff]
        %v3591 = vld [vmem:[%s3578 + $0x60] sm:$0xff]
        %v3592 = vld [vmem:[%s3578 + $0x68] sm:$0xff]
        %v3593 = vld [vmem:[%s3578 + $0x70] sm:$0xff]
        %v3594 = vld [vmem:[%s3578 + $0x78] sm:$0xff]
        %v3595 = vld [vmem:[%s3578 + $0x80] sm:$0xff]
        %v3596 = vld [vmem:[%s3578 + $0x88] sm:$0xff]
        %v3597 = vld [vmem:[%s3578 + $0x90] sm:$0xff]
        %v3598 = vld [vmem:[%s3578 + $0x98] sm:$0xff]
        %v3599 = vld [vmem:[%s3578 + $0xa0] sm:$0xff]
        %v3600 = vld [vmem:[%s3578 + $0xa8] sm:$0xff]
        %v3601 = vld [vmem:[%s3578 + $0xb0] sm:$0xff]
        %v3602 = vld [vmem:[%s3578 + $0xb8] sm:$0xff]
        %v3603 = vld [vmem:[%s3578 + $0xc0] sm:$0xff]
        %v3604 = vld [vmem:[%s3578 + $0xc8] sm:$0xff]
        %v3605 = vld [vmem:[%s3578 + $0xd0] sm:$0xff]
        %v3606 = vld [vmem:[%s3578 + $0xd8] sm:$0xff]
        %v3607 = vld [vmem:[%s3578 + $0xe0] sm:$0xff]
        %v3608 = vld [vmem:[%s3578 + $0xe8] sm:$0xff]
        %v3609 = vld [vmem:[%s3578 + $0xf0] sm:$0xff]
        %v3610 = vld [vmem:[%s3578 + $0xf8] sm:$0xff]
        %v3611 = vld [vmem:[%s3578 + $0x100] sm:$0xff]
        %v3612 = vld [vmem:[%s3578 + $0x108] sm:$0xff]
        %v3613 = vld [vmem:[%s3578 + $0x110] sm:$0xff]
        %v3614 = vld [vmem:[%s3578 + $0x118] sm:$0xff]
        %v3615 = vld [vmem:[%s3578 + $0x120] sm:$0xff]
        %v3616 = vld [vmem:[%s3578 + $0x128] sm:$0xff]
        %v3617 = vld [vmem:[%s3578 + $0x130] sm:$0xff]
        %v3618 = vld [vmem:[%s3578 + $0x138] sm:$0xff]
        %v3619 = vld [vmem:[%s3578 + $0x140] sm:$0xff]
        %v3620 = vld [vmem:[%s3578 + $0x148] sm:$0xff]
        %v3621 = vld [vmem:[%s3578 + $0x150] sm:$0xff]
        %v3622 = vld [vmem:[%s3578 + $0x158] sm:$0xff]
        %v3623 = vld [vmem:[%s3578 + $0x160] sm:$0xff]
        %v3624 = vld [vmem:[%s3578 + $0x168] sm:$0xff]
        %v3625 = vld [vmem:[%s3578 + $0x170] sm:$0xff]
        %v3626 = vld [vmem:[%s3578 + $0x178] sm:$0xff]
        %v3675 = vunpack.c.l.b16 %v3579
        %v3676 = vunpack.c.h.b16 %v3579
        %v3677 = vunpack.c.l.b16 %v3580
        %v3678 = vunpack.c.h.b16 %v3580
        %v3679 = vunpack.c.l.b16 %v3581
        %v3680 = vunpack.c.h.b16 %v3581
        %v3681 = vunpack.c.l.b16 %v3582
        %v3682 = vunpack.c.h.b16 %v3582
        %v3683 = vunpack.c.l.b16 %v3583
        %v3684 = vunpack.c.h.b16 %v3583
        %v3685 = vunpack.c.l.b16 %v3584
        %v3686 = vunpack.c.h.b16 %v3584
        %v3687 = vunpack.c.l.b16 %v3585
        %v3688 = vunpack.c.h.b16 %v3585
        %v3689 = vunpack.c.l.b16 %v3586
        %v3690 = vunpack.c.h.b16 %v3586
        %v3691 = vunpack.c.l.b16 %v3587
        %v3692 = vunpack.c.h.b16 %v3587
        %v3693 = vunpack.c.l.b16 %v3588
        %v3694 = vunpack.c.h.b16 %v3588
        %v3695 = vunpack.c.l.b16 %v3589
        %v3696 = vunpack.c.h.b16 %v3589
        %v3697 = vunpack.c.l.b16 %v3590
        %v3698 = vunpack.c.h.b16 %v3590
        %v3699 = vunpack.c.l.b16 %v3591
        %v3700 = vunpack.c.h.b16 %v3591
        %v3701 = vunpack.c.l.b16 %v3592
        %v3702 = vunpack.c.h.b16 %v3592
        %v3703 = vunpack.c.l.b16 %v3593
        %v3704 = vunpack.c.h.b16 %v3593
        %v3705 = vunpack.c.l.b16 %v3594
        %v3706 = vunpack.c.h.b16 %v3594
        %v3707 = vunpack.c.l.b16 %v3595
        %v3708 = vunpack.c.h.b16 %v3595
        %v3709 = vunpack.c.l.b16 %v3596
        %v3710 = vunpack.c.h.b16 %v3596
        %v3711 = vunpack.c.l.b16 %v3597
        %v3712 = vunpack.c.h.b16 %v3597
        %v3713 = vunpack.c.l.b16 %v3598
        %v3714 = vunpack.c.h.b16 %v3598
        %v3715 = vunpack.c.l.b16 %v3599
        %v3716 = vunpack.c.h.b16 %v3599
        %v3717 = vunpack.c.l.b16 %v3600
        %v3718 = vunpack.c.h.b16 %v3600
        %v3719 = vunpack.c.l.b16 %v3601
        %v3720 = vunpack.c.h.b16 %v3601
        %v3721 = vunpack.c.l.b16 %v3602
        %v3722 = vunpack.c.h.b16 %v3602
        %v3723 = vunpack.c.l.b16 %v3603
        %v3724 = vunpack.c.h.b16 %v3603
        %v3725 = vunpack.c.l.b16 %v3604
        %v3726 = vunpack.c.h.b16 %v3604
        %v3727 = vunpack.c.l.b16 %v3605
        %v3728 = vunpack.c.h.b16 %v3605
        %v3729 = vunpack.c.l.b16 %v3606
        %v3730 = vunpack.c.h.b16 %v3606
        %v3731 = vunpack.c.l.b16 %v3607
        %v3732 = vunpack.c.h.b16 %v3607
        %v3733 = vunpack.c.l.b16 %v3608
        %v3734 = vunpack.c.h.b16 %v3608
        %v3735 = vunpack.c.l.b16 %v3609
        %v3736 = vunpack.c.h.b16 %v3609
        %v3737 = vunpack.c.l.b16 %v3610
        %v3738 = vunpack.c.h.b16 %v3610
        %v3739 = vunpack.c.l.b16 %v3611
        %v3740 = vunpack.c.h.b16 %v3611
        %v3741 = vunpack.c.l.b16 %v3612
        %v3742 = vunpack.c.h.b16 %v3612
        %v3743 = vunpack.c.l.b16 %v3613
        %v3744 = vunpack.c.h.b16 %v3613
        %v3745 = vunpack.c.l.b16 %v3614
        %v3746 = vunpack.c.h.b16 %v3614
        %v3747 = vunpack.c.l.b16 %v3615
        %v3748 = vunpack.c.h.b16 %v3615
        %v3749 = vunpack.c.l.b16 %v3616
        %v3750 = vunpack.c.h.b16 %v3616
        %v3751 = vunpack.c.l.b16 %v3617
        %v3752 = vunpack.c.h.b16 %v3617
        %v3753 = vunpack.c.l.b16 %v3618
        %v3754 = vunpack.c.h.b16 %v3618
        %v3755 = vunpack.c.l.b16 %v3619
        %v3756 = vunpack.c.h.b16 %v3619
        %v3757 = vunpack.c.l.b16 %v3620
        %v3758 = vunpack.c.h.b16 %v3620
        %v3759 = vunpack.c.l.b16 %v3621
        %v3760 = vunpack.c.h.b16 %v3621
        %v3761 = vunpack.c.l.b16 %v3622
        %v3762 = vunpack.c.h.b16 %v3622
        %v3763 = vunpack.c.l.b16 %v3623
        %v3764 = vunpack.c.h.b16 %v3623
        %v3765 = vunpack.c.l.b16 %v3624
        %v3766 = vunpack.c.h.b16 %v3624
        %v3767 = vunpack.c.l.b16 %v3625
        %v3768 = vunpack.c.h.b16 %v3625
        %v3769 = vunpack.c.l.b16 %v3626
        %v3770 = vunpack.c.h.b16 %v3626
        %v3771 = vpack.c.b16 %v3677, %v3675
        %v3772 = vpack.c.b16 %v3678, %v3676
        %v3773 = vpack.c.b16 %v3681, %v3679
        %v3774 = vpack.c.b16 %v3682, %v3680
        %v3775 = vpack.c.b16 %v3685, %v3683
        %v3776 = vpack.c.b16 %v3686, %v3684
        %v3777 = vpack.c.b16 %v3689, %v3687
        %v3778 = vpack.c.b16 %v3690, %v3688
        %v3779 = vpack.c.b16 %v3693, %v3691
        %v3780 = vpack.c.b16 %v3694, %v3692
        %v3781 = vpack.c.b16 %v3697, %v3695
        %v3782 = vpack.c.b16 %v3698, %v3696
        %v3783 = vpack.c.b16 %v3701, %v3699
        %v3784 = vpack.c.b16 %v3702, %v3700
        %v3785 = vpack.c.b16 %v3705, %v3703
        %v3786 = vpack.c.b16 %v3706, %v3704
        %v3787 = vpack.c.b16 %v3709, %v3707
        %v3788 = vpack.c.b16 %v3710, %v3708
        %v3789 = vpack.c.b16 %v3713, %v3711
        %v3790 = vpack.c.b16 %v3714, %v3712
        %v3791 = vpack.c.b16 %v3717, %v3715
        %v3792 = vpack.c.b16 %v3718, %v3716
        %v3793 = vpack.c.b16 %v3721, %v3719
        %v3794 = vpack.c.b16 %v3722, %v3720
        %v3795 = vpack.c.b16 %v3725, %v3723
        %v3796 = vpack.c.b16 %v3726, %v3724
        %v3797 = vpack.c.b16 %v3729, %v3727
        %v3798 = vpack.c.b16 %v3730, %v3728
        %v3799 = vpack.c.b16 %v3733, %v3731
        %v3800 = vpack.c.b16 %v3734, %v3732
        %v3801 = vpack.c.b16 %v3737, %v3735
        %v3802 = vpack.c.b16 %v3738, %v3736
        %v3803 = vpack.c.b16 %v3741, %v3739
        %v3804 = vpack.c.b16 %v3742, %v3740
        %v3805 = vpack.c.b16 %v3745, %v3743
        %v3806 = vpack.c.b16 %v3746, %v3744
        %v3807 = vpack.c.b16 %v3749, %v3747
        %v3808 = vpack.c.b16 %v3750, %v3748
        %v3809 = vpack.c.b16 %v3753, %v3751
        %v3810 = vpack.c.b16 %v3754, %v3752
        %v3811 = vpack.c.b16 %v3757, %v3755
        %v3812 = vpack.c.b16 %v3758, %v3756
        %v3813 = vpack.c.b16 %v3761, %v3759
        %v3814 = vpack.c.b16 %v3762, %v3760
        %v3815 = vpack.c.b16 %v3765, %v3763
        %v3816 = vpack.c.b16 %v3766, %v3764
        %v3817 = vpack.c.b16 %v3769, %v3767
        %v3818 = vpack.c.b16 %v3770, %v3768
        %3867 = vmatpush.bf16.msra.mxu0 %v3785
        %3868 = vmatpush.bf16.msra.mxu0 %v3783
        %3869 = vmatpush.bf16.msra.mxu0 %v3781
        %3870 = vmatpush.bf16.msra.mxu0 %v3779
        %3871 = vmatpush.bf16.msra.mxu0 %v3777
        %3872 = vmatpush.bf16.msra.mxu0 %v3775
        %3873 = vmatpush.bf16.msra.mxu0 %v3773
        %3874 = vmatpush.bf16.msra.mxu0 %v3771
        %3875 = vmatmul.bf16.gmra.mxu0 %v3252
        %v3876 = vpop.f32.mrf.mxu0
        %v3877 = vadd.f32 0.0, %v3876
        %v3878 = vpop.f32.mrf.mxu0
        %3879 = vdwg.mxu0
        %3880 = vmatpush.bf16.msra.mxu0 %v3801
        %3881 = vmatpush.bf16.msra.mxu0 %v3799
        %3882 = vmatpush.bf16.msra.mxu0 %v3797
        %3883 = vmatpush.bf16.msra.mxu0 %v3795
        %3884 = vmatpush.bf16.msra.mxu0 %v3793
        %3885 = vmatpush.bf16.msra.mxu0 %v3791
        %3886 = vmatpush.bf16.msra.mxu0 %v3789
        %3887 = vmatpush.bf16.msra.mxu0 %v3787
        %3888 = vmatmul.bf16.gmra.mxu0 %v3253
        %v3889 = vpop.f32.mrf.mxu0
        %v3890 = vadd.f32 %v3877, %v3889
        %v3891 = vpop.f32.mrf.mxu0
        %3892 = vdwg.mxu0
        %3893 = vmatpush.bf16.msra.mxu0 %v3817
        %3894 = vmatpush.bf16.msra.mxu0 %v3815
        %3895 = vmatpush.bf16.msra.mxu0 %v3813
        %3896 = vmatpush.bf16.msra.mxu0 %v3811
        %3897 = vmatpush.bf16.msra.mxu0 %v3809
        %3898 = vmatpush.bf16.msra.mxu0 %v3807
        %3899 = vmatpush.bf16.msra.mxu0 %v3805
        %3900 = vmatpush.bf16.msra.mxu0 %v3803
        %3901 = vmatmul.bf16.gmra.mxu0 %v3254
        %v3902 = vpop.f32.mrf.mxu0
        %v3903 = vadd.f32 %v3890, %v3902
        %v3904 = vpop.f32.mrf.mxu0
        %3905 = vdwg.mxu0
        %3906 = vmatpush.bf16.msra.mxu0 %v3786
        %3907 = vmatpush.bf16.msra.mxu0 %v3784
        %3908 = vmatpush.bf16.msra.mxu0 %v3782
        %3909 = vmatpush.bf16.msra.mxu0 %v3780
        %3910 = vmatpush.bf16.msra.mxu0 %v3778
        %3911 = vmatpush.bf16.msra.mxu0 %v3776
        %3912 = vmatpush.bf16.msra.mxu0 %v3774
        %3913 = vmatpush.bf16.msra.mxu0 %v3772
        %3914 = vmatmul.bf16.gmra.mxu0 %v3252
        %v3915 = vpop.f32.mrf.mxu0
        %v3916 = vadd.f32 0.0, %v3915
        %v3917 = vpop.f32.mrf.mxu0
        %3918 = vdwg.mxu0
        %3919 = vmatpush.bf16.msra.mxu0 %v3802
        %3920 = vmatpush.bf16.msra.mxu0 %v3800
        %3921 = vmatpush.bf16.msra.mxu0 %v3798
        %3922 = vmatpush.bf16.msra.mxu0 %v3796
        %3923 = vmatpush.bf16.msra.mxu0 %v3794
        %3924 = vmatpush.bf16.msra.mxu0 %v3792
        %3925 = vmatpush.bf16.msra.mxu0 %v3790
        %3926 = vmatpush.bf16.msra.mxu0 %v3788
        %3927 = vmatmul.bf16.gmra.mxu0 %v3253
        %v3928 = vpop.f32.mrf.mxu0
        %v3929 = vadd.f32 %v3916, %v3928
        %v3930 = vpop.f32.mrf.mxu0
        %3931 = vdwg.mxu0
        %3932 = vmatpush.bf16.msra.mxu0 %v3818
        %3933 = vmatpush.bf16.msra.mxu0 %v3816
        %3934 = vmatpush.bf16.msra.mxu0 %v3814
        %3935 = vmatpush.bf16.msra.mxu0 %v3812
        %3936 = vmatpush.bf16.msra.mxu0 %v3810
        %3937 = vmatpush.bf16.msra.mxu0 %v3808
        %3938 = vmatpush.bf16.msra.mxu0 %v3806
        %3939 = vmatpush.bf16.msra.mxu0 %v3804
        %3940 = vmatmul.bf16.gmra.mxu0 %v3254
        %v3941 = vpop.f32.mrf.mxu0
        %v3942 = vadd.f32 %v3929, %v3941
        %v3943 = vpop.f32.mrf.mxu0
        %3944 = vdwg.mxu0
        %v3945 = vadd.f32 %v3201, %v3903
        %v3946 = vadd.f32 %v3202, %v3942
        %v3947 = vmax.f32 %v3576, %v3945
        %v3948 = vmax.f32 %v3577, %v3946
        %v3949 = vlaneseq
        %v3950 = vshrl.u32 %v3949, 7
        %v3951 = vlaneseq
        %v3952 = vand.u32 %v3951, 127
        %v3953 = vmul.u32 %v3950, 2
        %vm3954 = vcmp.eq.s32.totalorder %v3952, %v3953
        %v3955 = vsel %vm3954, 1, 0
        %v3956 = vcvt.s32.f32 %v3955
        %v3957 = vadd.s32 %v3953, 1
        %vm3958 = vcmp.eq.s32.totalorder %v3952, %v3957
        %v3959 = vsel %vm3958, 1, 0
        %v3960 = vcvt.s32.f32 %v3959
        %vm3961 = vcmask 64512
        %v3963 = vsel %vm3961, %v3956, 0
        %3965 = vmatpush.msra.mxu0 0.0
        %3966 = vmatpush.msra.mxu0 0.0
        %3967 = vmatpush.msra.mxu0 0.0
        %3968 = vmatpush.msra.mxu0 0.0
        %3969 = vmatpush.msra.mxu0 0.0
        %3970 = vmatpush.msra.mxu0 0.0
        %3971 = vmatpush.msra.mxu0 0.0
        %3972 = vmatpush.msra.mxu0 0.0
        %3973 = vmatpush.msra.mxu0 0.0
        %3974 = vmatpush.msra.mxu0 0.0
        %3975 = vmatpush.msra.mxu0 0.0
        %3976 = vmatpush.msra.mxu0 0.0
        %3977 = vmatpush.msra.mxu0 0.0
        %3978 = vmatpush.msra.mxu0 0.0
        %3979 = vmatpush.msra.mxu0 0.0
        %3980 = vmatpush.msra.mxu0 %v3947
        %3981 = vmatmul.f32.gmra.mxu0 %v3963
        %v3982 = vpop.f32.mrf.mxu0
        %v3983 = vadd.f32 0.0, %v3982
        %3984 = vdwg.mxu0
        %3985 = vmatpush.msra.mxu0 0.0
        %3986 = vmatpush.msra.mxu0 0.0
        %3987 = vmatpush.msra.mxu0 0.0
        %3988 = vmatpush.msra.mxu0 0.0
        %3989 = vmatpush.msra.mxu0 0.0
        %3990 = vmatpush.msra.mxu0 0.0
        %3991 = vmatpush.msra.mxu0 0.0
        %3992 = vmatpush.msra.mxu0 0.0
        %3993 = vmatpush.msra.mxu0 0.0
        %3994 = vmatpush.msra.mxu0 0.0
        %3995 = vmatpush.msra.mxu0 0.0
        %3996 = vmatpush.msra.mxu0 0.0
        %3997 = vmatpush.msra.mxu0 0.0
        %3998 = vmatpush.msra.mxu0 0.0
        %3999 = vmatpush.msra.mxu0 0.0
        %4000 = vmatpush.msra.mxu0 %v3948
        %4001 = vmatmul.f32.gmra.mxu0 %v3963
        %v4002 = vpop.f32.mrf.mxu0
        %v4003 = vadd.f32 0.0, %v4002
        %4004 = vdwg.mxu0
        %v4006 = vsel %vm3961, %v3960, 0
        %4008 = vmatpush.msra.mxu0 0.0
        %4009 = vmatpush.msra.mxu0 0.0
        %4010 = vmatpush.msra.mxu0 0.0
        %4011 = vmatpush.msra.mxu0 0.0
        %4012 = vmatpush.msra.mxu0 0.0
        %4013 = vmatpush.msra.mxu0 0.0
        %4014 = vmatpush.msra.mxu0 0.0
        %4015 = vmatpush.msra.mxu0 0.0
        %4016 = vmatpush.msra.mxu0 0.0
        %4017 = vmatpush.msra.mxu0 0.0
        %4018 = vmatpush.msra.mxu0 0.0
        %4019 = vmatpush.msra.mxu0 0.0
        %4020 = vmatpush.msra.mxu0 0.0
        %4021 = vmatpush.msra.mxu0 0.0
        %4022 = vmatpush.msra.mxu0 0.0
        %4023 = vmatpush.msra.mxu0 %v3947
        %4024 = vmatmul.f32.gmra.mxu0 %v4006
        %v4025 = vpop.f32.mrf.mxu0
        %v4026 = vadd.f32 0.0, %v4025
        %4027 = vdwg.mxu0
        %4028 = vmatpush.msra.mxu0 0.0
        %4029 = vmatpush.msra.mxu0 0.0
        %4030 = vmatpush.msra.mxu0 0.0
        %4031 = vmatpush.msra.mxu0 0.0
        %4032 = vmatpush.msra.mxu0 0.0
        %4033 = vmatpush.msra.mxu0 0.0
        %4034 = vmatpush.msra.mxu0 0.0
        %4035 = vmatpush.msra.mxu0 0.0
        %4036 = vmatpush.msra.mxu0 0.0
        %4037 = vmatpush.msra.mxu0 0.0
        %4038 = vmatpush.msra.mxu0 0.0
        %4039 = vmatpush.msra.mxu0 0.0
        %4040 = vmatpush.msra.mxu0 0.0
        %4041 = vmatpush.msra.mxu0 0.0
        %4042 = vmatpush.msra.mxu0 0.0
        %4043 = vmatpush.msra.mxu0 %v3948
        %4044 = vmatmul.f32.gmra.mxu0 %v4006
        %v4045 = vpop.f32.mrf.mxu0
        %v4046 = vadd.f32 0.0, %v4045
        %4047 = vdwg.mxu0
        %v4048 = vmax.f32 %v3983, %v4026
        %v4049 = vmax.f32 %v4003, %v4046
        %v4050 = vld [vmem:[#allocation4] sm:$0x3]
        %v4052 = vperm.slane %v4050, 0
        %v4053 = vperm.slane %v4050, 1
        %v4056 = vadd.f32 %v4048, %v4052
        %v4057 = vadd.f32 %v4049, %v4053
        %v4058 = vmax.f32 %v4056, 0.0
        %v4059 = vmax.f32 %v4057, 0.0
        %v4062 = vrot.slane %v4059, 4
        %vm4063 = vcmask 1043456
        %v4064 = vsel %vm4063, %v4058, %v4062
        %4066 = vst [vmem:[%s202] sm:$0xff] %v4064
        %p4067 = scmp.lt.s32.totalorder %s16, 1
        %s4068 = scalar_select %p4067, %s16, 1
        %s4069 = smul.addr %s4068, 2
        %s4070 = smul.addr %s4069, 4
        %s4071 = scalar_lea.vmem %s3, %s4070
        // Predicated region
        $region41: #{net_mnist_forward.4} parent=31 // pred_check
          %p4072 = pneg %p102
        $region42: #{net_mnist_forward.4} parent=31 // pred_check_branch
          %4074 = sbr.rel (%p4072) target = $region44
        $region43: #{net_mnist_forward.4} parent=31 // pred_region
          _
        $region44: #{net_mnist_forward.4} parent=31 // pred_fallthru
          _
      $region32: #{net_mnist_forward.4} parent=5 // pred_fallthru
        _
      %p4075 = scmp.le.s32.totalorder 2, %s11
      // Predicated region
      $region45: #{net_mnist_forward.4} parent=5 // pred_check
        %p4076 = pneg %p4075
      $region46: #{net_mnist_forward.4} parent=5 // pred_check_branch
        %4078 = sbr.rel (%p4076) target = $region48
      $region47: #{net_mnist_forward.4} parent=5 // pred_region
        %s4079 = ssub.s32 %s11, 2
        // Predicated region
        $region49: #{net_mnist_forward.4} parent=47 // pred_check
          %p4080 = pneg %p108
        $region50: #{net_mnist_forward.4} parent=47 // pred_check_branch
          %4082 = sbr.rel (%p4080) target = $region52
        $region51: #{net_mnist_forward.4} parent=47 // pred_region
          %p4083 = scmp.lt.s32.totalorder %s17, 1
          %s4084 = scalar_select %p4083, %s17, 1
          %s4085 = smul.addr %s4084, 2
          %s4086 = smul.addr %s4085, 4
          %s4087 = scalar_lea.vmem %s3, %s4086
        $region52: #{net_mnist_forward.4} parent=47 // pred_fallthru
          _
      $region48: #{net_mnist_forward.4} parent=5 // pred_fallthru
        _
    $region6: #{net_mnist_forward.4} parent=1 // loop_footer
      %s15 = sadd.s32 1, %s11
    $region7: #{net_mnist_forward.4} parent=1 // loop_footer_branch
      %10 = sbr.rel target = $region3
    $region8: #{net_mnist_forward.4} parent=1 // loop_exit
      _
    %4088 = vsyncpa [#allocation3], 1
    %s4089 = scalar_lea.sflag [#allocation3], 1
    %4090 = vsyncpa %s4089, 1
    %4091 = vsyncpa [#allocation5], 1

</llo_original>
